<compile_context>
chip_gen: v5e
topology: v5e:2x2
jax: 0.10.0
libtpu: 0.0.40
codegen_flags: <defaults>
</compile_context>

<pallas_src>
import functools
import math

import jax
import jax.numpy as jnp
import numpy as np
from jax import lax
from jax.experimental import pallas as pl
from jax.experimental.pallas import tpu as pltpu

LN_EPS = 1e-5  # PyTorch LayerNorm default


# --------------------------------------------------------------------------
# Fused MAUCell kernel: conv_s_next+conv_s (one matmul), conv_t_next,
# attention over tau, conv_t, final gating — all per sample, all in VMEM.
# --------------------------------------------------------------------------
def _mau_kernel(s_t_ref, t_t_ref, s_att_ref, t_att_ref,
                w_s_ref, b_s_ref, g_sn_ref, be_sn_ref, g_sc_ref, be_sc_ref,
                w_tn_ref, b_tn_ref, g_tn_ref, be_tn_ref,
                w_t_ref, b_t_ref, g_t_ref, be_t_ref,
                t_new_ref, s_new_ref,
                *, H, W, C, KH, KW, residual, inv_sqrt_d):
    HW = H * W
    ph, pw = KH // 2, KW // 2
    tau = s_att_ref.shape[1]
    mxu_dtype = w_s_ref.dtype          # bf16 operands, fp32 accumulation

    def pad_hw(x):
        # (H, W, Cin) -> (H+2ph, W+2pw, Cin) with a zero border (in-register).
        Cin = x.shape[-1]
        zr = jnp.zeros((ph, W, Cin), x.dtype)
        x = jnp.concatenate([zr, x, zr], axis=0)
        zc = jnp.zeros((H + 2 * ph, pw, Cin), x.dtype)
        return jnp.concatenate([zc, x, zc], axis=1)

    def im2col(x):
        # (H, W, Cin) -> (H*W, KH*KW*Cin) patch matrix for one big MXU matmul.
        xp = pad_hw(x)
        cols = []
        for kh in range(KH):                       # static tap loops
            for kw in range(KW):
                cols.append(xp[kh:kh + H, kw:kw + W, :].reshape(HW, -1))
        return jnp.concatenate(cols, axis=-1).astype(mxu_dtype)

    def ln_affine(acc, gamma, beta):
        # Per-sample LayerNorm over all elements of acc (single pass), fp32.
        n_inv = 1.0 / float(acc.shape[0] * acc.shape[1])
        mean = jnp.sum(acc) * n_inv
        msq = jnp.sum(acc * acc) * n_inv
        inv = lax.rsqrt(msq - mean * mean + LN_EPS)
        return (acc - mean) * inv * gamma + beta

    S_t = s_t_ref[0]                               # (H, W, C)  fp32
    T_t = t_t_ref[0]                               # (H, W, C)  fp32

    # ---- fused S-path conv: columns [conv_s_next | conv_s], Cout = 4C ------
    acc_s = jnp.dot(im2col(S_t), w_s_ref[...],
                    preferred_element_type=jnp.float32) + b_s_ref[...]
    s_next = ln_affine(acc_s[:, :C], g_sn_ref[...], be_sn_ref[...])      # (HW, C)
    S_concat = ln_affine(acc_s[:, C:], g_sc_ref[...], be_sc_ref[...])    # (HW, 3C)

    # ---- conv_t_next --------------------------------------------------------
    acc_tn = jnp.dot(im2col(T_t), w_tn_ref[...],
                     preferred_element_type=jnp.float32) + b_tn_ref[...]
    t_next = ln_affine(acc_tn, g_tn_ref[...], be_tn_ref[...])            # (HW, C)

    # ---- attention over tau (softmax of scaled dot products) ---------------
    s_att = s_att_ref[0]                           # (tau, HW, C)
    t_att = t_att_ref[0]                           # (tau, HW, C)
    logits = [jnp.sum(s_att[i] * s_next) * inv_sqrt_d for i in range(tau)]
    m = logits[0]
    for i in range(1, tau):
        m = jnp.maximum(m, logits[i])
    exps = [jnp.exp(l - m) for l in logits]
    denom = exps[0]
    for i in range(1, tau):
        denom = denom + exps[i]
    inv_denom = 1.0 / denom                        # single normalization
    T_trend = t_att[0] * (exps[0] * inv_denom)
    for i in range(1, tau):
        T_trend = T_trend + t_att[i] * (exps[i] * inv_denom)

    gate = jax.nn.sigmoid(t_next)
    T_fusion = T_t.reshape(HW, C) * gate + (1.0 - gate) * T_trend        # (HW, C)

    # ---- conv_t on T_fusion -------------------------------------------------
    acc_t = jnp.dot(im2col(T_fusion.reshape(H, W, C)), w_t_ref[...],
                    preferred_element_type=jnp.float32) + b_t_ref[...]
    T_concat = ln_affine(acc_t, g_t_ref[...], be_t_ref[...])             # (HW, 3C)

    # ---- output gating (in-register; no 3C tensors ever hit HBM) -----------
    t_g, t_tt, t_s = T_concat[:, :C], T_concat[:, C:2 * C], T_concat[:, 2 * C:]
    s_g, s_tt, s_s = S_concat[:, :C], S_concat[:, C:2 * C], S_concat[:, 2 * C:]
    T_gate = jax.nn.sigmoid(t_g)
    S_gate = jax.nn.sigmoid(s_g)
    T_new = T_gate * t_tt + (1.0 - T_gate) * s_tt
    S_new = S_gate * s_s + (1.0 - S_gate) * t_s
    if residual:
        S_new = S_new + S_t.reshape(HW, C)

    t_new_ref[0] = T_new.astype(t_new_ref.dtype)
    s_new_ref[0] = S_new.astype(s_new_ref.dtype)


def mau_cell_fused(S_t_h, T_t_h, s_att_h, t_att_h, kp, *, H, W, C, KH, KW,
                   tau, residual):
    """One pallas_call for the whole cell.  Inputs are NHWC / (B,tau,HW,C)."""
    B = S_t_h.shape[0]
    HW = H * W
    kern = functools.partial(_mau_kernel, H=H, W=W, C=C, KH=KH, KW=KW,
                             residual=residual,
                             inv_sqrt_d=1.0 / math.sqrt(C * H * W))

    def full_spec(arr):
        shape = arr.shape
        return pl.BlockSpec(shape, lambda i, _s=shape: (0,) * len(_s))

    in_specs = [
        pl.BlockSpec((1, H, W, C), lambda i: (i, 0, 0, 0)),       # S_t
        pl.BlockSpec((1, H, W, C), lambda i: (i, 0, 0, 0)),       # T_t
        pl.BlockSpec((1, tau, HW, C), lambda i: (i, 0, 0, 0)),    # s_att
        pl.BlockSpec((1, tau, HW, C), lambda i: (i, 0, 0, 0)),    # t_att
        full_spec(kp['w_s']), full_spec(kp['b_s']),
        full_spec(kp['g_sn']), full_spec(kp['be_sn']),
        full_spec(kp['g_sc']), full_spec(kp['be_sc']),
        full_spec(kp['w_tn']), full_spec(kp['b_tn']),
        full_spec(kp['g_tn']), full_spec(kp['be_tn']),
        full_spec(kp['w_t']), full_spec(kp['b_t']),
        full_spec(kp['g_t']), full_spec(kp['be_t']),
    ]
    out_spec = pl.BlockSpec((1, HW, C), lambda i: (i, 0, 0))

    return pl.pallas_call(
        kern,
        out_shape=(jax.ShapeDtypeStruct((B, HW, C), jnp.float32),
                   jax.ShapeDtypeStruct((B, HW, C), jnp.float32)),
        grid=(B,),
        in_specs=in_specs,
        out_specs=(out_spec, out_spec),
        compiler_params=pltpu.CompilerParams(
            dimension_semantics=("parallel",)),
    )(S_t_h, T_t_h, s_att_h, t_att_h,
      kp['w_s'], kp['b_s'], kp['g_sn'], kp['be_sn'], kp['g_sc'], kp['be_sc'],
      kp['w_tn'], kp['b_tn'], kp['g_tn'], kp['be_tn'],
      kp['w_t'], kp['b_t'], kp['g_t'], kp['be_t'])


# --------------------------------------------------------------------------
# MAUCell (Pallas)
# --------------------------------------------------------------------------
def _init_conv_ln(key, KH, KW, Cin, Cout, H, W):
    k1, k2, k3, k4 = jax.random.split(key, 4)
    fan_in = Cin * KH * KW
    bound = 1.0 / math.sqrt(fan_in)
    return dict(
        w=jax.random.uniform(k1, (KH, KW, Cin, Cout), jnp.float32, -bound, bound),
        b=jax.random.uniform(k2, (Cout,), jnp.float32, -bound, bound),
        gamma=1.0 + 0.1 * jax.random.normal(k3, (H, W, Cout), jnp.float32),
        beta=0.1 * jax.random.normal(k4, (H, W, Cout), jnp.float32),
    )


class MAUCellPallas:
    def __init__(self, in_channel, num_hidden, height, width, filter_size,
                 stride, tau, cell_mode, key, mxu_dtype=jnp.bfloat16):
        assert stride == 1, "stride-1 'same' conv, as in the reference config"
        assert cell_mode in ('residual', 'normal')
        assert in_channel == num_hidden, "MAUCell requires in_channel == num_hidden"
        self.num_hidden = num_hidden
        self.height, self.width = height, width
        self.tau = tau
        self.filter_size = filter_size
        self.cell_mode = cell_mode
        self.d = num_hidden * height * width
        C, H, W, fs = num_hidden, height, width, filter_size

        k1, k2, k3, k4 = jax.random.split(key, 4)
        self.p_t = _init_conv_ln(k1, fs, fs, in_channel, 3 * C, H, W)
        self.p_t_next = _init_conv_ln(k2, fs, fs, in_channel, C, H, W)
        self.p_s = _init_conv_ln(k3, fs, fs, C, 3 * C, H, W)
        self.p_s_next = _init_conv_ln(k4, fs, fs, C, C, H, W)

        # Kernel-layout params: im2col weights (K, Cout) in bf16 for the MXU,
        # the two S-path convs fused along Cout (-> 4C = 128 output columns),
        # LN affine flattened to (H*W, Cout) fp32, biases as (1, Cout) fp32.
        flat_w = lambda p: p['w'].reshape(-1, p['w'].shape[-1]).astype(mxu_dtype)
        flat_g = lambda p: p['gamma'].reshape(H * W, -1)
        flat_be = lambda p: p['beta'].reshape(H * W, -1)
        self.kp = dict(
            w_s=jnp.concatenate([flat_w(self.p_s_next), flat_w(self.p_s)], axis=1),
            b_s=jnp.concatenate([self.p_s_next['b'], self.p_s['b']])[None, :],
            g_sn=flat_g(self.p_s_next), be_sn=flat_be(self.p_s_next),
            g_sc=flat_g(self.p_s), be_sc=flat_be(self.p_s),
            w_tn=flat_w(self.p_t_next), b_tn=self.p_t_next['b'][None, :],
            g_tn=flat_g(self.p_t_next), be_tn=flat_be(self.p_t_next),
            w_t=flat_w(self.p_t), b_t=self.p_t['b'][None, :],
            g_t=flat_g(self.p_t), be_t=flat_be(self.p_t),
        )
        self._fwd = jax.jit(self._forward_impl)

    def _forward_impl(self, T_t, S_t, t_att, s_att):
        # PyTorch convention: T_t, S_t (B, C, H, W); t_att, s_att (tau, B, C, H, W)
        B = T_t.shape[0]
        H, W, C, tau = self.height, self.width, self.num_hidden, self.tau
        to_nhwc = lambda x: jnp.transpose(x, (0, 2, 3, 1))
        T_t_h, S_t_h = to_nhwc(T_t), to_nhwc(S_t)
        # (tau, B, C, H, W) -> (B, tau, H*W, C).  This is a small one-off HBM
        # relayout; it could be folded into the kernel's BlockSpec index maps
        # if tau*B*H*W*C ever grows large.
        s_att_h = jnp.transpose(s_att, (1, 0, 3, 4, 2)).reshape(B, tau, H * W, C)
        t_att_h = jnp.transpose(t_att, (1, 0, 3, 4, 2)).reshape(B, tau, H * W, C)

        T_new, S_new = mau_cell_fused(
            S_t_h, T_t_h, s_att_h, t_att_h, self.kp,
            H=H, W=W, C=C, KH=self.filter_size, KW=self.filter_size,
            tau=tau, residual=(self.cell_mode == 'residual'))
        back = lambda x: jnp.transpose(x.reshape(B, H, W, C), (0, 3, 1, 2))
        return back(T_new), back(S_new)

    def forward(self, T_t, S_t, t_att, s_att):
        return self._fwd(T_t, S_t, t_att, s_att)


# --------------------------------------------------------------------------
# Pure-JAX fp32 reference (mirrors the PyTorch NCHW semantics) for verification.
# --------------------------------------------------------------------------
def _conv_ln_ref(x_nchw, params):
    w = jnp.transpose(params['w'], (3, 2, 0, 1))  # OIHW
    p = params['w'].shape[0] // 2
    y = lax.conv_general_dilated(x_nchw, w, (1, 1), [(p, p), (p, p)],
                                 dimension_numbers=('NCHW', 'OIHW', 'NCHW'))
    y = y + params['b'][None, :, None, None]
    mean = jnp.mean(y, axis=(1, 2, 3), keepdims=True)
    var = jnp.mean((y - mean) ** 2, axis=(1, 2, 3), keepdims=True)
    y = (y - mean) / jnp.sqrt(var + LN_EPS)
    gamma = jnp.transpose(params['gamma'], (2, 0, 1))[None]
    beta = jnp.transpose(params['beta'], (2, 0, 1))[None]
    return y * gamma + beta


def mau_ref(cell, T_t, S_t, t_att, s_att):
    s_next = _conv_ln_ref(S_t, cell.p_s_next)
    t_next = _conv_ln_ref(T_t, cell.p_t_next)
    logits = jnp.stack([jnp.sum(s_att[i] * s_next, axis=(1, 2, 3))
                        / math.sqrt(cell.d) for i in range(cell.tau)], axis=0)
    wts = jax.nn.softmax(logits, axis=0)[:, :, None, None, None]
    T_trend = jnp.sum(t_att * wts, axis=0)
    gate = jax.nn.sigmoid(t_next)
    T_fusion = T_t * gate + (1 - gate) * T_trend
    T_concat = _conv_ln_ref(T_fusion, cell.p_t)
    S_concat = _conv_ln_ref(S_t, cell.p_s)
    C = cell.num_hidden
    t_g, t_t_, t_s = T_concat[:, :C], T_concat[:, C:2 * C], T_concat[:, 2 * C:]
    s_g, s_t_, s_s = S_concat[:, :C], S_concat[:, C:2 * C], S_concat[:, 2 * C:]
    T_gate, S_gate = jax.nn.sigmoid(t_g), jax.nn.sigmoid(s_g)
    T_new = T_gate * t_t_ + (1 - T_gate) * s_t_
    S_new = S_gate * s_s + (1 - S_gate) * t_s
    if cell.cell_mode == 'residual':
        S_new = S_new + S_t
    return T_new, S_new


if __name__ == "__main__":
    B, C, H, W = 2, 32, 16, 16     # in_channel == num_hidden (required by MAU)
    tau, filter_size, stride = 4, 3, 1
    key = jax.random.PRNGKey(0)
    kcell, k1, k2, k3, k4 = jax.random.split(key, 5)

    cell = MAUCellPallas(C, C, H, W, filter_size, stride, tau, 'residual', kcell)

    T_t = jax.random.normal(k1, (B, C, H, W), jnp.float32)
    S_t = jax.random.normal(k2, (B, C, H, W), jnp.float32)
    t_att = jax.random.normal(k3, (tau, B, C, H, W), jnp.float32)
    s_att = jax.random.normal(k4, (tau, B, C, H, W), jnp.float32)

    T_new, S_new = cell.forward(T_t, S_t, t_att, s_att)
    jax.block_until_ready((T_new, S_new))

    # Correctness check vs. an all-fp32 reference.  Tolerance accounts for the
    # bf16 MXU operands used in the Pallas conv matmuls (LN stats, softmax and
    # gating remain fp32), as recommended by the perf review.
    T_ref, S_ref = mau_ref(cell, T_t, S_t, t_att, s_att)
    np.testing.assert_allclose(np.asarray(T_new), np.asarray(T_ref),
                               rtol=3e-2, atol=3e-2)
    np.testing.assert_allclose(np.asarray(S_new), np.asarray(S_ref),
                               rtol=3e-2, atol=3e-2)
    print("KERNEL_OK")
</pallas_src>

<mosaic_0001>
module attributes {stable_mosaic.version = 11 : i64} {
  func.func @_mau_kernel(%arg0: i32, %arg1: memref<1x16x16x32xf32, #tpu.memory_space<vmem>>, %arg2: memref<1x16x16x32xf32, #tpu.memory_space<vmem>>, %arg3: memref<1x4x256x32xf32, #tpu.memory_space<vmem>>, %arg4: memref<1x4x256x32xf32, #tpu.memory_space<vmem>>, %arg5: memref<288x128xbf16, #tpu.memory_space<vmem>>, %arg6: memref<1x128xf32, #tpu.memory_space<vmem>>, %arg7: memref<256x32xf32, #tpu.memory_space<vmem>>, %arg8: memref<256x32xf32, #tpu.memory_space<vmem>>, %arg9: memref<256x96xf32, #tpu.memory_space<vmem>>, %arg10: memref<256x96xf32, #tpu.memory_space<vmem>>, %arg11: memref<288x32xbf16, #tpu.memory_space<vmem>>, %arg12: memref<1x32xf32, #tpu.memory_space<vmem>>, %arg13: memref<256x32xf32, #tpu.memory_space<vmem>>, %arg14: memref<256x32xf32, #tpu.memory_space<vmem>>, %arg15: memref<288x96xbf16, #tpu.memory_space<vmem>>, %arg16: memref<1x96xf32, #tpu.memory_space<vmem>>, %arg17: memref<256x96xf32, #tpu.memory_space<vmem>>, %arg18: memref<256x96xf32, #tpu.memory_space<vmem>>, %arg19: memref<1x256x32xf32, #tpu.memory_space<vmem>>, %arg20: memref<1x256x32xf32, #tpu.memory_space<vmem>>) attributes {dimension_semantics = [#tpu.dimension_semantics<parallel>], iteration_bounds = array<i64: 2>, scalar_prefetch = 0 : i64, scratch_operands = 0 : i64, tpu.core_type = #tpu.core_type<tc>, window_params = [{transform_indices = @transform_0, window_bounds = array<i64: 1, 16, 16, 32>}, {transform_indices = @transform_1, window_bounds = array<i64: 1, 16, 16, 32>}, {transform_indices = @transform_2, window_bounds = array<i64: 1, 4, 256, 32>}, {transform_indices = @transform_3, window_bounds = array<i64: 1, 4, 256, 32>}, {pipeline_mode = #tpu.pipeline_mode<synchronous>, transform_indices = @transform_4, window_bounds = array<i64: 288, 128>}, {pipeline_mode = #tpu.pipeline_mode<synchronous>, transform_indices = @transform_5, window_bounds = array<i64: 1, 128>}, {pipeline_mode = #tpu.pipeline_mode<synchronous>, transform_indices = @transform_6, window_bounds = array<i64: 256, 32>}, {pipeline_mode = #tpu.pipeline_mode<synchronous>, transform_indices = @transform_7, window_bounds = array<i64: 256, 32>}, {pipeline_mode = #tpu.pipeline_mode<synchronous>, transform_indices = @transform_8, window_bounds = array<i64: 256, 96>}, {pipeline_mode = #tpu.pipeline_mode<synchronous>, transform_indices = @transform_9, window_bounds = array<i64: 256, 96>}, {pipeline_mode = #tpu.pipeline_mode<synchronous>, transform_indices = @transform_10, window_bounds = array<i64: 288, 32>}, {pipeline_mode = #tpu.pipeline_mode<synchronous>, transform_indices = @transform_11, window_bounds = array<i64: 1, 32>}, {pipeline_mode = #tpu.pipeline_mode<synchronous>, transform_indices = @transform_12, window_bounds = array<i64: 256, 32>}, {pipeline_mode = #tpu.pipeline_mode<synchronous>, transform_indices = @transform_13, window_bounds = array<i64: 256, 32>}, {pipeline_mode = #tpu.pipeline_mode<synchronous>, transform_indices = @transform_14, window_bounds = array<i64: 288, 96>}, {pipeline_mode = #tpu.pipeline_mode<synchronous>, transform_indices = @transform_15, window_bounds = array<i64: 1, 96>}, {pipeline_mode = #tpu.pipeline_mode<synchronous>, transform_indices = @transform_16, window_bounds = array<i64: 256, 96>}, {pipeline_mode = #tpu.pipeline_mode<synchronous>, transform_indices = @transform_17, window_bounds = array<i64: 256, 96>}, {transform_indices = @transform_18, window_bounds = array<i64: 1, 256, 32>}, {transform_indices = @transform_19, window_bounds = array<i64: 1, 256, 32>}]} {
    %c0 = arith.constant 0 : index
    %c0_0 = arith.constant 0 : index
    %c0_1 = arith.constant 0 : index
    %c0_2 = arith.constant 0 : index
    %0 = vector.load %arg1[%c0, %c0_0, %c0_1, %c0_2] : memref<1x16x16x32xf32, #tpu.memory_space<vmem>>, vector<1x16x16x32xf32>
    %1 = vector.shape_cast %0 : vector<1x16x16x32xf32> to vector<16x16x32xf32>
    %c0_3 = arith.constant 0 : index
    %c0_4 = arith.constant 0 : index
    %c0_5 = arith.constant 0 : index
    %c0_6 = arith.constant 0 : index
    %2 = vector.load %arg2[%c0_3, %c0_4, %c0_5, %c0_6] : memref<1x16x16x32xf32, #tpu.memory_space<vmem>>, vector<1x16x16x32xf32>
    %3 = vector.shape_cast %2 : vector<1x16x16x32xf32> to vector<16x16x32xf32>
    %cst = arith.constant 0.000000e+00 : f32
    %4 = vector.broadcast %cst : f32 to vector<1x16x32xf32>
    %5 = tpu.concatenate %4, %1, %4 in 0 : vector<1x16x32xf32>, vector<16x16x32xf32>, vector<1x16x32xf32> -> vector<18x16x32xf32>
    %cst_7 = arith.constant 0.000000e+00 : f32
    %6 = vector.broadcast %cst_7 : f32 to vector<18x1x32xf32>
    %7 = tpu.concatenate %6, %5, %6 in 1 : vector<18x1x32xf32>, vector<18x16x32xf32>, vector<18x1x32xf32> -> vector<18x18x32xf32>
    %8 = vector.extract_strided_slice %7 {offsets = [0, 0, 0], sizes = [16, 16, 32], strides = [1, 1, 1]} : vector<18x18x32xf32> to vector<16x16x32xf32>
    %9 = vector.shape_cast %8 : vector<16x16x32xf32> to vector<256x32xf32>
    %10 = vector.extract_strided_slice %7 {offsets = [0, 1, 0], sizes = [16, 16, 32], strides = [1, 1, 1]} : vector<18x18x32xf32> to vector<16x16x32xf32>
    %11 = vector.shape_cast %10 : vector<16x16x32xf32> to vector<256x32xf32>
    %12 = vector.extract_strided_slice %7 {offsets = [0, 2, 0], sizes = [16, 16, 32], strides = [1, 1, 1]} : vector<18x18x32xf32> to vector<16x16x32xf32>
    %13 = vector.shape_cast %12 : vector<16x16x32xf32> to vector<256x32xf32>
    %14 = vector.extract_strided_slice %7 {offsets = [1, 0, 0], sizes = [16, 16, 32], strides = [1, 1, 1]} : vector<18x18x32xf32> to vector<16x16x32xf32>
    %15 = vector.shape_cast %14 : vector<16x16x32xf32> to vector<256x32xf32>
    %16 = vector.extract_strided_slice %7 {offsets = [1, 1, 0], sizes = [16, 16, 32], strides = [1, 1, 1]} : vector<18x18x32xf32> to vector<16x16x32xf32>
    %17 = vector.shape_cast %16 : vector<16x16x32xf32> to vector<256x32xf32>
    %18 = vector.extract_strided_slice %7 {offsets = [1, 2, 0], sizes = [16, 16, 32], strides = [1, 1, 1]} : vector<18x18x32xf32> to vector<16x16x32xf32>
    %19 = vector.shape_cast %18 : vector<16x16x32xf32> to vector<256x32xf32>
    %20 = vector.extract_strided_slice %7 {offsets = [2, 0, 0], sizes = [16, 16, 32], strides = [1, 1, 1]} : vector<18x18x32xf32> to vector<16x16x32xf32>
    %21 = vector.shape_cast %20 : vector<16x16x32xf32> to vector<256x32xf32>
    %22 = vector.extract_strided_slice %7 {offsets = [2, 1, 0], sizes = [16, 16, 32], strides = [1, 1, 1]} : vector<18x18x32xf32> to vector<16x16x32xf32>
    %23 = vector.shape_cast %22 : vector<16x16x32xf32> to vector<256x32xf32>
    %24 = vector.extract_strided_slice %7 {offsets = [2, 2, 0], sizes = [16, 16, 32], strides = [1, 1, 1]} : vector<18x18x32xf32> to vector<16x16x32xf32>
    %25 = vector.shape_cast %24 : vector<16x16x32xf32> to vector<256x32xf32>
    %26 = tpu.concatenate %9, %11, %13, %15, %17, %19, %21, %23, %25 in 1 : vector<256x32xf32>, vector<256x32xf32>, vector<256x32xf32>, vector<256x32xf32>, vector<256x32xf32>, vector<256x32xf32>, vector<256x32xf32>, vector<256x32xf32>, vector<256x32xf32> -> vector<256x288xf32>
    %27 = arith.truncf %26 : vector<256x288xf32> to vector<256x288xbf16>
    %c0_8 = arith.constant 0 : index
    %c0_9 = arith.constant 0 : index
    %28 = vector.load %arg5[%c0_8, %c0_9] : memref<288x128xbf16, #tpu.memory_space<vmem>>, vector<288x128xbf16>
    %cst_10 = arith.constant dense<0.000000e+00> : vector<256x128xf32>
    %29 = tpu.matmul %27, %28, %cst_10 {dimension_numbers = #tpu.dot_dimension_numbers<[1], [0], [0], [1], [0, 0, 1, 1], [], []>} : vector<256x288xbf16>, vector<288x128xbf16>, vector<256x128xf32> -> vector<256x128xf32>
    %c0_11 = arith.constant 0 : index
    %c0_12 = arith.constant 0 : index
    %30 = vector.load %arg6[%c0_11, %c0_12] : memref<1x128xf32, #tpu.memory_space<vmem>>, vector<1x128xf32>
    %31 = vector.broadcast %30 : vector<1x128xf32> to vector<256x128xf32>
    %32 = arith.addf %29, %31 : vector<256x128xf32>
    %33 = vector.extract_strided_slice %32 {offsets = [0, 0], sizes = [256, 32], strides = [1, 1]} : vector<256x128xf32> to vector<256x32xf32>
    %c0_13 = arith.constant 0 : index
    %c0_14 = arith.constant 0 : index
    %34 = vector.load %arg7[%c0_13, %c0_14] : memref<256x32xf32, #tpu.memory_space<vmem>>, vector<256x32xf32>
    %c0_15 = arith.constant 0 : index
    %c0_16 = arith.constant 0 : index
    %35 = vector.load %arg8[%c0_15, %c0_16] : memref<256x32xf32, #tpu.memory_space<vmem>>, vector<256x32xf32>
    %36 = vector.shape_cast %33 : vector<256x32xf32> to vector<1x256x32xf32>
    %cst_17 = arith.constant dense<0.000000e+00> : vector<1xf32>
    %37 = vector.multi_reduction <add>, %36, %cst_17 [1, 2] : vector<1x256x32xf32> to vector<1xf32>
    %38 = vector.shape_cast %37 : vector<1xf32> to vector<1x1x1xf32>
    %39 = vector.extract %38[0, 0, 0] : f32 from vector<1x1x1xf32>
    %cst_18 = arith.constant 1.22070313E-4 : f32
    %40 = arith.mulf %39, %cst_18 : f32
    %41 = arith.mulf %33, %33 : vector<256x32xf32>
    %42 = vector.shape_cast %41 : vector<256x32xf32> to vector<1x256x32xf32>
    %cst_19 = arith.constant dense<0.000000e+00> : vector<1xf32>
    %43 = vector.multi_reduction <add>, %42, %cst_19 [1, 2] : vector<1x256x32xf32> to vector<1xf32>
    %44 = vector.shape_cast %43 : vector<1xf32> to vector<1x1x1xf32>
    %45 = vector.extract %44[0, 0, 0] : f32 from vector<1x1x1xf32>
    %cst_20 = arith.constant 1.22070313E-4 : f32
    %46 = arith.mulf %45, %cst_20 : f32
    %47 = arith.mulf %40, %40 : f32
    %48 = arith.subf %46, %47 : f32
    %cst_21 = arith.constant 9.99999974E-6 : f32
    %49 = arith.addf %48, %cst_21 : f32
    %50 = math.rsqrt %49 : f32
    %51 = vector.broadcast %40 : f32 to vector<256x32xf32>
    %52 = arith.subf %33, %51 : vector<256x32xf32>
    %53 = vector.broadcast %50 : f32 to vector<256x32xf32>
    %54 = arith.mulf %52, %53 : vector<256x32xf32>
    %55 = arith.mulf %54, %34 : vector<256x32xf32>
    %56 = arith.addf %55, %35 : vector<256x32xf32>
    %57 = vector.extract_strided_slice %32 {offsets = [0, 32], sizes = [256, 96], strides = [1, 1]} : vector<256x128xf32> to vector<256x96xf32>
    %c0_22 = arith.constant 0 : index
    %c0_23 = arith.constant 0 : index
    %58 = vector.load %arg9[%c0_22, %c0_23] : memref<256x96xf32, #tpu.memory_space<vmem>>, vector<256x96xf32>
    %c0_24 = arith.constant 0 : index
    %c0_25 = arith.constant 0 : index
    %59 = vector.load %arg10[%c0_24, %c0_25] : memref<256x96xf32, #tpu.memory_space<vmem>>, vector<256x96xf32>
    %60 = vector.shape_cast %57 : vector<256x96xf32> to vector<1x256x96xf32>
    %cst_26 = arith.constant dense<0.000000e+00> : vector<1xf32>
    %61 = vector.multi_reduction <add>, %60, %cst_26 [1, 2] : vector<1x256x96xf32> to vector<1xf32>
    %62 = vector.shape_cast %61 : vector<1xf32> to vector<1x1x1xf32>
    %63 = vector.extract %62[0, 0, 0] : f32 from vector<1x1x1xf32>
    %cst_27 = arith.constant 4.06901054E-5 : f32
    %64 = arith.mulf %63, %cst_27 : f32
    %65 = arith.mulf %57, %57 : vector<256x96xf32>
    %66 = vector.shape_cast %65 : vector<256x96xf32> to vector<1x256x96xf32>
    %cst_28 = arith.constant dense<0.000000e+00> : vector<1xf32>
    %67 = vector.multi_reduction <add>, %66, %cst_28 [1, 2] : vector<1x256x96xf32> to vector<1xf32>
    %68 = vector.shape_cast %67 : vector<1xf32> to vector<1x1x1xf32>
    %69 = vector.extract %68[0, 0, 0] : f32 from vector<1x1x1xf32>
    %cst_29 = arith.constant 4.06901054E-5 : f32
    %70 = arith.mulf %69, %cst_29 : f32
    %71 = arith.mulf %64, %64 : f32
    %72 = arith.subf %70, %71 : f32
    %cst_30 = arith.constant 9.99999974E-6 : f32
    %73 = arith.addf %72, %cst_30 : f32
    %74 = math.rsqrt %73 : f32
    %75 = vector.broadcast %64 : f32 to vector<256x96xf32>
    %76 = arith.subf %57, %75 : vector<256x96xf32>
    %77 = vector.broadcast %74 : f32 to vector<256x96xf32>
    %78 = arith.mulf %76, %77 : vector<256x96xf32>
    %79 = arith.mulf %78, %58 : vector<256x96xf32>
    %80 = arith.addf %79, %59 : vector<256x96xf32>
    %cst_31 = arith.constant 0.000000e+00 : f32
    %81 = vector.broadcast %cst_31 : f32 to vector<1x16x32xf32>
    %82 = tpu.concatenate %81, %3, %81 in 0 : vector<1x16x32xf32>, vector<16x16x32xf32>, vector<1x16x32xf32> -> vector<18x16x32xf32>
    %cst_32 = arith.constant 0.000000e+00 : f32
    %83 = vector.broadcast %cst_32 : f32 to vector<18x1x32xf32>
    %84 = tpu.concatenate %83, %82, %83 in 1 : vector<18x1x32xf32>, vector<18x16x32xf32>, vector<18x1x32xf32> -> vector<18x18x32xf32>
    %85 = vector.extract_strided_slice %84 {offsets = [0, 0, 0], sizes = [16, 16, 32], strides = [1, 1, 1]} : vector<18x18x32xf32> to vector<16x16x32xf32>
    %86 = vector.shape_cast %85 : vector<16x16x32xf32> to vector<256x32xf32>
    %87 = vector.extract_strided_slice %84 {offsets = [0, 1, 0], sizes = [16, 16, 32], strides = [1, 1, 1]} : vector<18x18x32xf32> to vector<16x16x32xf32>
    %88 = vector.shape_cast %87 : vector<16x16x32xf32> to vector<256x32xf32>
    %89 = vector.extract_strided_slice %84 {offsets = [0, 2, 0], sizes = [16, 16, 32], strides = [1, 1, 1]} : vector<18x18x32xf32> to vector<16x16x32xf32>
    %90 = vector.shape_cast %89 : vector<16x16x32xf32> to vector<256x32xf32>
    %91 = vector.extract_strided_slice %84 {offsets = [1, 0, 0], sizes = [16, 16, 32], strides = [1, 1, 1]} : vector<18x18x32xf32> to vector<16x16x32xf32>
    %92 = vector.shape_cast %91 : vector<16x16x32xf32> to vector<256x32xf32>
    %93 = vector.extract_strided_slice %84 {offsets = [1, 1, 0], sizes = [16, 16, 32], strides = [1, 1, 1]} : vector<18x18x32xf32> to vector<16x16x32xf32>
    %94 = vector.shape_cast %93 : vector<16x16x32xf32> to vector<256x32xf32>
    %95 = vector.extract_strided_slice %84 {offsets = [1, 2, 0], sizes = [16, 16, 32], strides = [1, 1, 1]} : vector<18x18x32xf32> to vector<16x16x32xf32>
    %96 = vector.shape_cast %95 : vector<16x16x32xf32> to vector<256x32xf32>
    %97 = vector.extract_strided_slice %84 {offsets = [2, 0, 0], sizes = [16, 16, 32], strides = [1, 1, 1]} : vector<18x18x32xf32> to vector<16x16x32xf32>
    %98 = vector.shape_cast %97 : vector<16x16x32xf32> to vector<256x32xf32>
    %99 = vector.extract_strided_slice %84 {offsets = [2, 1, 0], sizes = [16, 16, 32], strides = [1, 1, 1]} : vector<18x18x32xf32> to vector<16x16x32xf32>
    %100 = vector.shape_cast %99 : vector<16x16x32xf32> to vector<256x32xf32>
    %101 = vector.extract_strided_slice %84 {offsets = [2, 2, 0], sizes = [16, 16, 32], strides = [1, 1, 1]} : vector<18x18x32xf32> to vector<16x16x32xf32>
    %102 = vector.shape_cast %101 : vector<16x16x32xf32> to vector<256x32xf32>
    %103 = tpu.concatenate %86, %88, %90, %92, %94, %96, %98, %100, %102 in 1 : vector<256x32xf32>, vector<256x32xf32>, vector<256x32xf32>, vector<256x32xf32>, vector<256x32xf32>, vector<256x32xf32>, vector<256x32xf32>, vector<256x32xf32>, vector<256x32xf32> -> vector<256x288xf32>
    %104 = arith.truncf %103 : vector<256x288xf32> to vector<256x288xbf16>
    %c0_33 = arith.constant 0 : index
    %c0_34 = arith.constant 0 : index
    %105 = vector.load %arg11[%c0_33, %c0_34] : memref<288x32xbf16, #tpu.memory_space<vmem>>, vector<288x32xbf16>
    %cst_35 = arith.constant dense<0.000000e+00> : vector<256x32xf32>
    %106 = tpu.matmul %104, %105, %cst_35 {dimension_numbers = #tpu.dot_dimension_numbers<[1], [0], [0], [1], [0, 0, 1, 1], [], []>} : vector<256x288xbf16>, vector<288x32xbf16>, vector<256x32xf32> -> vector<256x32xf32>
    %c0_36 = arith.constant 0 : index
    %c0_37 = arith.constant 0 : index
    %107 = vector.load %arg12[%c0_36, %c0_37] : memref<1x32xf32, #tpu.memory_space<vmem>>, vector<1x32xf32>
    %108 = vector.broadcast %107 : vector<1x32xf32> to vector<256x32xf32>
    %109 = arith.addf %106, %108 : vector<256x32xf32>
    %c0_38 = arith.constant 0 : index
    %c0_39 = arith.constant 0 : index
    %110 = vector.load %arg13[%c0_38, %c0_39] : memref<256x32xf32, #tpu.memory_space<vmem>>, vector<256x32xf32>
    %c0_40 = arith.constant 0 : index
    %c0_41 = arith.constant 0 : index
    %111 = vector.load %arg14[%c0_40, %c0_41] : memref<256x32xf32, #tpu.memory_space<vmem>>, vector<256x32xf32>
    %112 = vector.shape_cast %109 : vector<256x32xf32> to vector<1x256x32xf32>
    %cst_42 = arith.constant dense<0.000000e+00> : vector<1xf32>
    %113 = vector.multi_reduction <add>, %112, %cst_42 [1, 2] : vector<1x256x32xf32> to vector<1xf32>
    %114 = vector.shape_cast %113 : vector<1xf32> to vector<1x1x1xf32>
    %115 = vector.extract %114[0, 0, 0] : f32 from vector<1x1x1xf32>
    %cst_43 = arith.constant 1.22070313E-4 : f32
    %116 = arith.mulf %115, %cst_43 : f32
    %117 = arith.mulf %109, %109 : vector<256x32xf32>
    %118 = vector.shape_cast %117 : vector<256x32xf32> to vector<1x256x32xf32>
    %cst_44 = arith.constant dense<0.000000e+00> : vector<1xf32>
    %119 = vector.multi_reduction <add>, %118, %cst_44 [1, 2] : vector<1x256x32xf32> to vector<1xf32>
    %120 = vector.shape_cast %119 : vector<1xf32> to vector<1x1x1xf32>
    %121 = vector.extract %120[0, 0, 0] : f32 from vector<1x1x1xf32>
    %cst_45 = arith.constant 1.22070313E-4 : f32
    %122 = arith.mulf %121, %cst_45 : f32
    %123 = arith.mulf %116, %116 : f32
    %124 = arith.subf %122, %123 : f32
    %cst_46 = arith.constant 9.99999974E-6 : f32
    %125 = arith.addf %124, %cst_46 : f32
    %126 = math.rsqrt %125 : f32
    %127 = vector.broadcast %116 : f32 to vector<256x32xf32>
    %128 = arith.subf %109, %127 : vector<256x32xf32>
    %129 = vector.broadcast %126 : f32 to vector<256x32xf32>
    %130 = arith.mulf %128, %129 : vector<256x32xf32>
    %131 = arith.mulf %130, %110 : vector<256x32xf32>
    %132 = arith.addf %131, %111 : vector<256x32xf32>
    %c0_47 = arith.constant 0 : index
    %c0_48 = arith.constant 0 : index
    %c0_49 = arith.constant 0 : index
    %c0_50 = arith.constant 0 : index
    %133 = vector.load %arg3[%c0_47, %c0_48, %c0_49, %c0_50] : memref<1x4x256x32xf32, #tpu.memory_space<vmem>>, vector<1x4x256x32xf32>
    %134 = vector.shape_cast %133 : vector<1x4x256x32xf32> to vector<4x256x32xf32>
    %c0_51 = arith.constant 0 : index
    %c0_52 = arith.constant 0 : index
    %c0_53 = arith.constant 0 : index
    %c0_54 = arith.constant 0 : index
    %135 = vector.load %arg4[%c0_51, %c0_52, %c0_53, %c0_54] : memref<1x4x256x32xf32, #tpu.memory_space<vmem>>, vector<1x4x256x32xf32>
    %136 = vector.shape_cast %135 : vector<1x4x256x32xf32> to vector<4x256x32xf32>
    %137 = vector.extract_strided_slice %134 {offsets = [0, 0, 0], sizes = [1, 256, 32], strides = [1, 1, 1]} : vector<4x256x32xf32> to vector<1x256x32xf32>
    %138 = vector.shape_cast %137 : vector<1x256x32xf32> to vector<256x32xf32>
    %139 = arith.mulf %138, %56 : vector<256x32xf32>
    %140 = vector.shape_cast %139 : vector<256x32xf32> to vector<1x256x32xf32>
    %cst_55 = arith.constant dense<0.000000e+00> : vector<1xf32>
    %141 = vector.multi_reduction <add>, %140, %cst_55 [1, 2] : vector<1x256x32xf32> to vector<1xf32>
    %142 = vector.shape_cast %141 : vector<1xf32> to vector<1x1x1xf32>
    %143 = vector.extract %142[0, 0, 0] : f32 from vector<1x1x1xf32>
    %cst_56 = arith.constant 0.0110485433 : f32
    %144 = arith.mulf %143, %cst_56 : f32
    %145 = vector.extract_strided_slice %134 {offsets = [1, 0, 0], sizes = [1, 256, 32], strides = [1, 1, 1]} : vector<4x256x32xf32> to vector<1x256x32xf32>
    %146 = vector.shape_cast %145 : vector<1x256x32xf32> to vector<256x32xf32>
    %147 = arith.mulf %146, %56 : vector<256x32xf32>
    %148 = vector.shape_cast %147 : vector<256x32xf32> to vector<1x256x32xf32>
    %cst_57 = arith.constant dense<0.000000e+00> : vector<1xf32>
    %149 = vector.multi_reduction <add>, %148, %cst_57 [1, 2] : vector<1x256x32xf32> to vector<1xf32>
    %150 = vector.shape_cast %149 : vector<1xf32> to vector<1x1x1xf32>
    %151 = vector.extract %150[0, 0, 0] : f32 from vector<1x1x1xf32>
    %cst_58 = arith.constant 0.0110485433 : f32
    %152 = arith.mulf %151, %cst_58 : f32
    %153 = vector.extract_strided_slice %134 {offsets = [2, 0, 0], sizes = [1, 256, 32], strides = [1, 1, 1]} : vector<4x256x32xf32> to vector<1x256x32xf32>
    %154 = vector.shape_cast %153 : vector<1x256x32xf32> to vector<256x32xf32>
    %155 = arith.mulf %154, %56 : vector<256x32xf32>
    %156 = vector.shape_cast %155 : vector<256x32xf32> to vector<1x256x32xf32>
    %cst_59 = arith.constant dense<0.000000e+00> : vector<1xf32>
    %157 = vector.multi_reduction <add>, %156, %cst_59 [1, 2] : vector<1x256x32xf32> to vector<1xf32>
    %158 = vector.shape_cast %157 : vector<1xf32> to vector<1x1x1xf32>
    %159 = vector.extract %158[0, 0, 0] : f32 from vector<1x1x1xf32>
    %cst_60 = arith.constant 0.0110485433 : f32
    %160 = arith.mulf %159, %cst_60 : f32
    %161 = vector.extract_strided_slice %134 {offsets = [3, 0, 0], sizes = [1, 256, 32], strides = [1, 1, 1]} : vector<4x256x32xf32> to vector<1x256x32xf32>
    %162 = vector.shape_cast %161 : vector<1x256x32xf32> to vector<256x32xf32>
    %163 = arith.mulf %162, %56 : vector<256x32xf32>
    %164 = vector.shape_cast %163 : vector<256x32xf32> to vector<1x256x32xf32>
    %cst_61 = arith.constant dense<0.000000e+00> : vector<1xf32>
    %165 = vector.multi_reduction <add>, %164, %cst_61 [1, 2] : vector<1x256x32xf32> to vector<1xf32>
    %166 = vector.shape_cast %165 : vector<1xf32> to vector<1x1x1xf32>
    %167 = vector.extract %166[0, 0, 0] : f32 from vector<1x1x1xf32>
    %cst_62 = arith.constant 0.0110485433 : f32
    %168 = arith.mulf %167, %cst_62 : f32
    %169 = arith.maximumf %144, %152 : f32
    %170 = arith.maximumf %169, %160 : f32
    %171 = arith.maximumf %170, %168 : f32
    %172 = arith.subf %144, %171 : f32
    %173 = math.exp %172 : f32
    %174 = arith.subf %152, %171 : f32
    %175 = math.exp %174 : f32
    %176 = arith.subf %160, %171 : f32
    %177 = math.exp %176 : f32
    %178 = arith.subf %168, %171 : f32
    %179 = math.exp %178 : f32
    %180 = arith.addf %173, %175 : f32
    %181 = arith.addf %180, %177 : f32
    %182 = arith.addf %181, %179 : f32
    %cst_63 = arith.constant 1.000000e+00 : f32
    %183 = arith.divf %cst_63, %182 : f32
    %184 = vector.extract_strided_slice %136 {offsets = [0, 0, 0], sizes = [1, 256, 32], strides = [1, 1, 1]} : vector<4x256x32xf32> to vector<1x256x32xf32>
    %185 = vector.shape_cast %184 : vector<1x256x32xf32> to vector<256x32xf32>
    %186 = arith.mulf %173, %183 : f32
    %187 = vector.broadcast %186 : f32 to vector<256x32xf32>
    %188 = arith.mulf %185, %187 : vector<256x32xf32>
    %189 = vector.extract_strided_slice %136 {offsets = [1, 0, 0], sizes = [1, 256, 32], strides = [1, 1, 1]} : vector<4x256x32xf32> to vector<1x256x32xf32>
    %190 = vector.shape_cast %189 : vector<1x256x32xf32> to vector<256x32xf32>
    %191 = arith.mulf %175, %183 : f32
    %192 = vector.broadcast %191 : f32 to vector<256x32xf32>
    %193 = arith.mulf %190, %192 : vector<256x32xf32>
    %194 = arith.addf %188, %193 : vector<256x32xf32>
    %195 = vector.extract_strided_slice %136 {offsets = [2, 0, 0], sizes = [1, 256, 32], strides = [1, 1, 1]} : vector<4x256x32xf32> to vector<1x256x32xf32>
    %196 = vector.shape_cast %195 : vector<1x256x32xf32> to vector<256x32xf32>
    %197 = arith.mulf %177, %183 : f32
    %198 = vector.broadcast %197 : f32 to vector<256x32xf32>
    %199 = arith.mulf %196, %198 : vector<256x32xf32>
    %200 = arith.addf %194, %199 : vector<256x32xf32>
    %201 = vector.extract_strided_slice %136 {offsets = [3, 0, 0], sizes = [1, 256, 32], strides = [1, 1, 1]} : vector<4x256x32xf32> to vector<1x256x32xf32>
    %202 = vector.shape_cast %201 : vector<1x256x32xf32> to vector<256x32xf32>
    %203 = arith.mulf %179, %183 : f32
    %204 = vector.broadcast %203 : f32 to vector<256x32xf32>
    %205 = arith.mulf %202, %204 : vector<256x32xf32>
    %206 = arith.addf %200, %205 : vector<256x32xf32>
    %207 = arith.negf %132 : vector<256x32xf32>
    %208 = math.exp %207 : vector<256x32xf32>
    %cst_64 = arith.constant 1.000000e+00 : f32
    %209 = vector.broadcast %cst_64 : f32 to vector<256x32xf32>
    %210 = arith.addf %209, %208 : vector<256x32xf32>
    %211 = arith.divf %209, %210 : vector<256x32xf32>
    %212 = vector.shape_cast %3 : vector<16x16x32xf32> to vector<256x32xf32>
    %213 = arith.mulf %212, %211 : vector<256x32xf32>
    %cst_65 = arith.constant 1.000000e+00 : f32
    %214 = vector.broadcast %cst_65 : f32 to vector<256x32xf32>
    %215 = arith.subf %214, %211 : vector<256x32xf32>
    %216 = arith.mulf %215, %206 : vector<256x32xf32>
    %217 = arith.addf %213, %216 : vector<256x32xf32>
    %218 = vector.shape_cast %217 : vector<256x32xf32> to vector<16x16x32xf32>
    %cst_66 = arith.constant 0.000000e+00 : f32
    %219 = vector.broadcast %cst_66 : f32 to vector<1x16x32xf32>
    %220 = tpu.concatenate %219, %218, %219 in 0 : vector<1x16x32xf32>, vector<16x16x32xf32>, vector<1x16x32xf32> -> vector<18x16x32xf32>
    %cst_67 = arith.constant 0.000000e+00 : f32
    %221 = vector.broadcast %cst_67 : f32 to vector<18x1x32xf32>
    %222 = tpu.concatenate %221, %220, %221 in 1 : vector<18x1x32xf32>, vector<18x16x32xf32>, vector<18x1x32xf32> -> vector<18x18x32xf32>
    %223 = vector.extract_strided_slice %222 {offsets = [0, 0, 0], sizes = [16, 16, 32], strides = [1, 1, 1]} : vector<18x18x32xf32> to vector<16x16x32xf32>
    %224 = vector.shape_cast %223 : vector<16x16x32xf32> to vector<256x32xf32>
    %225 = vector.extract_strided_slice %222 {offsets = [0, 1, 0], sizes = [16, 16, 32], strides = [1, 1, 1]} : vector<18x18x32xf32> to vector<16x16x32xf32>
    %226 = vector.shape_cast %225 : vector<16x16x32xf32> to vector<256x32xf32>
    %227 = vector.extract_strided_slice %222 {offsets = [0, 2, 0], sizes = [16, 16, 32], strides = [1, 1, 1]} : vector<18x18x32xf32> to vector<16x16x32xf32>
    %228 = vector.shape_cast %227 : vector<16x16x32xf32> to vector<256x32xf32>
    %229 = vector.extract_strided_slice %222 {offsets = [1, 0, 0], sizes = [16, 16, 32], strides = [1, 1, 1]} : vector<18x18x32xf32> to vector<16x16x32xf32>
    %230 = vector.shape_cast %229 : vector<16x16x32xf32> to vector<256x32xf32>
    %231 = vector.extract_strided_slice %222 {offsets = [1, 1, 0], sizes = [16, 16, 32], strides = [1, 1, 1]} : vector<18x18x32xf32> to vector<16x16x32xf32>
    %232 = vector.shape_cast %231 : vector<16x16x32xf32> to vector<256x32xf32>
    %233 = vector.extract_strided_slice %222 {offsets = [1, 2, 0], sizes = [16, 16, 32], strides = [1, 1, 1]} : vector<18x18x32xf32> to vector<16x16x32xf32>
    %234 = vector.shape_cast %233 : vector<16x16x32xf32> to vector<256x32xf32>
    %235 = vector.extract_strided_slice %222 {offsets = [2, 0, 0], sizes = [16, 16, 32], strides = [1, 1, 1]} : vector<18x18x32xf32> to vector<16x16x32xf32>
    %236 = vector.shape_cast %235 : vector<16x16x32xf32> to vector<256x32xf32>
    %237 = vector.extract_strided_slice %222 {offsets = [2, 1, 0], sizes = [16, 16, 32], strides = [1, 1, 1]} : vector<18x18x32xf32> to vector<16x16x32xf32>
    %238 = vector.shape_cast %237 : vector<16x16x32xf32> to vector<256x32xf32>
    %239 = vector.extract_strided_slice %222 {offsets = [2, 2, 0], sizes = [16, 16, 32], strides = [1, 1, 1]} : vector<18x18x32xf32> to vector<16x16x32xf32>
    %240 = vector.shape_cast %239 : vector<16x16x32xf32> to vector<256x32xf32>
    %241 = tpu.concatenate %224, %226, %228, %230, %232, %234, %236, %238, %240 in 1 : vector<256x32xf32>, vector<256x32xf32>, vector<256x32xf32>, vector<256x32xf32>, vector<256x32xf32>, vector<256x32xf32>, vector<256x32xf32>, vector<256x32xf32>, vector<256x32xf32> -> vector<256x288xf32>
    %242 = arith.truncf %241 : vector<256x288xf32> to vector<256x288xbf16>
    %c0_68 = arith.constant 0 : index
    %c0_69 = arith.constant 0 : index
    %243 = vector.load %arg15[%c0_68, %c0_69] : memref<288x96xbf16, #tpu.memory_space<vmem>>, vector<288x96xbf16>
    %cst_70 = arith.constant dense<0.000000e+00> : vector<256x96xf32>
    %244 = tpu.matmul %242, %243, %cst_70 {dimension_numbers = #tpu.dot_dimension_numbers<[1], [0], [0], [1], [0, 0, 1, 1], [], []>} : vector<256x288xbf16>, vector<288x96xbf16>, vector<256x96xf32> -> vector<256x96xf32>
    %c0_71 = arith.constant 0 : index
    %c0_72 = arith.constant 0 : index
    %245 = vector.load %arg16[%c0_71, %c0_72] : memref<1x96xf32, #tpu.memory_space<vmem>>, vector<1x96xf32>
    %246 = vector.broadcast %245 : vector<1x96xf32> to vector<256x96xf32>
    %247 = arith.addf %244, %246 : vector<256x96xf32>
    %c0_73 = arith.constant 0 : index
    %c0_74 = arith.constant 0 : index
    %248 = vector.load %arg17[%c0_73, %c0_74] : memref<256x96xf32, #tpu.memory_space<vmem>>, vector<256x96xf32>
    %c0_75 = arith.constant 0 : index
    %c0_76 = arith.constant 0 : index
    %249 = vector.load %arg18[%c0_75, %c0_76] : memref<256x96xf32, #tpu.memory_space<vmem>>, vector<256x96xf32>
    %250 = vector.shape_cast %247 : vector<256x96xf32> to vector<1x256x96xf32>
    %cst_77 = arith.constant dense<0.000000e+00> : vector<1xf32>
    %251 = vector.multi_reduction <add>, %250, %cst_77 [1, 2] : vector<1x256x96xf32> to vector<1xf32>
    %252 = vector.shape_cast %251 : vector<1xf32> to vector<1x1x1xf32>
    %253 = vector.extract %252[0, 0, 0] : f32 from vector<1x1x1xf32>
    %cst_78 = arith.constant 4.06901054E-5 : f32
    %254 = arith.mulf %253, %cst_78 : f32
    %255 = arith.mulf %247, %247 : vector<256x96xf32>
    %256 = vector.shape_cast %255 : vector<256x96xf32> to vector<1x256x96xf32>
    %cst_79 = arith.constant dense<0.000000e+00> : vector<1xf32>
    %257 = vector.multi_reduction <add>, %256, %cst_79 [1, 2] : vector<1x256x96xf32> to vector<1xf32>
    %258 = vector.shape_cast %257 : vector<1xf32> to vector<1x1x1xf32>
    %259 = vector.extract %258[0, 0, 0] : f32 from vector<1x1x1xf32>
    %cst_80 = arith.constant 4.06901054E-5 : f32
    %260 = arith.mulf %259, %cst_80 : f32
    %261 = arith.mulf %254, %254 : f32
    %262 = arith.subf %260, %261 : f32
    %cst_81 = arith.constant 9.99999974E-6 : f32
    %263 = arith.addf %262, %cst_81 : f32
    %264 = math.rsqrt %263 : f32
    %265 = vector.broadcast %254 : f32 to vector<256x96xf32>
    %266 = arith.subf %247, %265 : vector<256x96xf32>
    %267 = vector.broadcast %264 : f32 to vector<256x96xf32>
    %268 = arith.mulf %266, %267 : vector<256x96xf32>
    %269 = arith.mulf %268, %248 : vector<256x96xf32>
    %270 = arith.addf %269, %249 : vector<256x96xf32>
    %271 = vector.extract_strided_slice %270 {offsets = [0, 0], sizes = [256, 32], strides = [1, 1]} : vector<256x96xf32> to vector<256x32xf32>
    %272 = vector.extract_strided_slice %270 {offsets = [0, 32], sizes = [256, 32], strides = [1, 1]} : vector<256x96xf32> to vector<256x32xf32>
    %273 = vector.extract_strided_slice %270 {offsets = [0, 64], sizes = [256, 32], strides = [1, 1]} : vector<256x96xf32> to vector<256x32xf32>
    %274 = vector.extract_strided_slice %80 {offsets = [0, 0], sizes = [256, 32], strides = [1, 1]} : vector<256x96xf32> to vector<256x32xf32>
    %275 = vector.extract_strided_slice %80 {offsets = [0, 32], sizes = [256, 32], strides = [1, 1]} : vector<256x96xf32> to vector<256x32xf32>
    %276 = vector.extract_strided_slice %80 {offsets = [0, 64], sizes = [256, 32], strides = [1, 1]} : vector<256x96xf32> to vector<256x32xf32>
    %277 = arith.negf %271 : vector<256x32xf32>
    %278 = math.exp %277 : vector<256x32xf32>
    %cst_82 = arith.constant 1.000000e+00 : f32
    %279 = vector.broadcast %cst_82 : f32 to vector<256x32xf32>
    %280 = arith.addf %279, %278 : vector<256x32xf32>
    %281 = arith.divf %279, %280 : vector<256x32xf32>
    %282 = arith.negf %274 : vector<256x32xf32>
    %283 = math.exp %282 : vector<256x32xf32>
    %cst_83 = arith.constant 1.000000e+00 : f32
    %284 = vector.broadcast %cst_83 : f32 to vector<256x32xf32>
    %285 = arith.addf %284, %283 : vector<256x32xf32>
    %286 = arith.divf %284, %285 : vector<256x32xf32>
    %287 = arith.mulf %281, %272 : vector<256x32xf32>
    %cst_84 = arith.constant 1.000000e+00 : f32
    %288 = vector.broadcast %cst_84 : f32 to vector<256x32xf32>
    %289 = arith.subf %288, %281 : vector<256x32xf32>
    %290 = arith.mulf %289, %275 : vector<256x32xf32>
    %291 = arith.addf %287, %290 : vector<256x32xf32>
    %292 = arith.mulf %286, %276 : vector<256x32xf32>
    %cst_85 = arith.constant 1.000000e+00 : f32
    %293 = vector.broadcast %cst_85 : f32 to vector<256x32xf32>
    %294 = arith.subf %293, %286 : vector<256x32xf32>
    %295 = arith.mulf %294, %273 : vector<256x32xf32>
    %296 = arith.addf %292, %295 : vector<256x32xf32>
    %297 = vector.shape_cast %1 : vector<16x16x32xf32> to vector<256x32xf32>
    %298 = arith.addf %296, %297 : vector<256x32xf32>
    %c0_86 = arith.constant 0 : index
    %c0_87 = arith.constant 0 : index
    %c0_88 = arith.constant 0 : index
    %299 = vector.load %arg19[%c0_86, %c0_87, %c0_88] : memref<1x256x32xf32, #tpu.memory_space<vmem>>, vector<1x256x32xf32>
    %300 = vector.shape_cast %299 : vector<1x256x32xf32> to vector<256x32xf32>
    %301 = vector.shape_cast %291 : vector<256x32xf32> to vector<1x256x32xf32>
    tpu.vector_store %arg19[%c0_86, %c0_87, %c0_88], %301 {strides = array<i32>} : memref<1x256x32xf32, #tpu.memory_space<vmem>>, vector<1x256x32xf32>,
    %c0_89 = arith.constant 0 : index
    %c0_90 = arith.constant 0 : index
    %c0_91 = arith.constant 0 : index
    %302 = vector.load %arg20[%c0_89, %c0_90, %c0_91] : memref<1x256x32xf32, #tpu.memory_space<vmem>>, vector<1x256x32xf32>
    %303 = vector.shape_cast %302 : vector<1x256x32xf32> to vector<256x32xf32>
    %304 = vector.shape_cast %298 : vector<256x32xf32> to vector<1x256x32xf32>
    tpu.vector_store %arg20[%c0_89, %c0_90, %c0_91], %304 {strides = array<i32>} : memref<1x256x32xf32, #tpu.memory_space<vmem>>, vector<1x256x32xf32>,
    return
  }
  func.func @transform_0(%arg0: i32) -> (i32, i32, i32, i32) {
    %c0_i32 = arith.constant 0 : i32
    %c0_i32_0 = arith.constant 0 : i32
    %c0_i32_1 = arith.constant 0 : i32
    %c0_i32_2 = arith.constant 0 : i32
    return %arg0, %c0_i32, %c0_i32_0, %c0_i32_1 : i32, i32, i32, i32
  }
  func.func @transform_1(%arg0: i32) -> (i32, i32, i32, i32) {
    %c0_i32 = arith.constant 0 : i32
    %c0_i32_0 = arith.constant 0 : i32
    %c0_i32_1 = arith.constant 0 : i32
    %c0_i32_2 = arith.constant 0 : i32
    return %arg0, %c0_i32, %c0_i32_0, %c0_i32_1 : i32, i32, i32, i32
  }
  func.func @transform_2(%arg0: i32) -> (i32, i32, i32, i32) {
    %c0_i32 = arith.constant 0 : i32
    %c0_i32_0 = arith.constant 0 : i32
    %c0_i32_1 = arith.constant 0 : i32
    %c0_i32_2 = arith.constant 0 : i32
    return %arg0, %c0_i32, %c0_i32_0, %c0_i32_1 : i32, i32, i32, i32
  }
  func.func @transform_3(%arg0: i32) -> (i32, i32, i32, i32) {
    %c0_i32 = arith.constant 0 : i32
    %c0_i32_0 = arith.constant 0 : i32
    %c0_i32_1 = arith.constant 0 : i32
    %c0_i32_2 = arith.constant 0 : i32
    return %arg0, %c0_i32, %c0_i32_0, %c0_i32_1 : i32, i32, i32, i32
  }
  func.func @transform_4(%arg0: i32) -> (i32, i32) {
    %c0_i32 = arith.constant 0 : i32
    %c0_i32_0 = arith.constant 0 : i32
    %c0_i32_1 = arith.constant 0 : i32
    return %c0_i32, %c0_i32_0 : i32, i32
  }
  func.func @transform_5(%arg0: i32) -> (i32, i32) {
    %c0_i32 = arith.constant 0 : i32
    %c0_i32_0 = arith.constant 0 : i32
    %c0_i32_1 = arith.constant 0 : i32
    return %c0_i32, %c0_i32_0 : i32, i32
  }
  func.func @transform_6(%arg0: i32) -> (i32, i32) {
    %c0_i32 = arith.constant 0 : i32
    %c0_i32_0 = arith.constant 0 : i32
    %c0_i32_1 = arith.constant 0 : i32
    return %c0_i32, %c0_i32_0 : i32, i32
  }
  func.func @transform_7(%arg0: i32) -> (i32, i32) {
    %c0_i32 = arith.constant 0 : i32
    %c0_i32_0 = arith.constant 0 : i32
    %c0_i32_1 = arith.constant 0 : i32
    return %c0_i32, %c0_i32_0 : i32, i32
  }
  func.func @transform_8(%arg0: i32) -> (i32, i32) {
    %c0_i32 = arith.constant 0 : i32
    %c0_i32_0 = arith.constant 0 : i32
    %c0_i32_1 = arith.constant 0 : i32
    return %c0_i32, %c0_i32_0 : i32, i32
  }
  func.func @transform_9(%arg0: i32) -> (i32, i32) {
    %c0_i32 = arith.constant 0 : i32
    %c0_i32_0 = arith.constant 0 : i32
    %c0_i32_1 = arith.constant 0 : i32
    return %c0_i32, %c0_i32_0 : i32, i32
  }
  func.func @transform_10(%arg0: i32) -> (i32, i32) {
    %c0_i32 = arith.constant 0 : i32
    %c0_i32_0 = arith.constant 0 : i32
    %c0_i32_1 = arith.constant 0 : i32
    return %c0_i32, %c0_i32_0 : i32, i32
  }
  func.func @transform_11(%arg0: i32) -> (i32, i32) {
    %c0_i32 = arith.constant 0 : i32
    %c0_i32_0 = arith.constant 0 : i32
    %c0_i32_1 = arith.constant 0 : i32
    return %c0_i32, %c0_i32_0 : i32, i32
  }
  func.func @transform_12(%arg0: i32) -> (i32, i32) {
    %c0_i32 = arith.constant 0 : i32
    %c0_i32_0 = arith.constant 0 : i32
    %c0_i32_1 = arith.constant 0 : i32
    return %c0_i32, %c0_i32_0 : i32, i32
  }
  func.func @transform_13(%arg0: i32) -> (i32, i32) {
    %c0_i32 = arith.constant 0 : i32
    %c0_i32_0 = arith.constant 0 : i32
    %c0_i32_1 = arith.constant 0 : i32
    return %c0_i32, %c0_i32_0 : i32, i32
  }
  func.func @transform_14(%arg0: i32) -> (i32, i32) {
    %c0_i32 = arith.constant 0 : i32
    %c0_i32_0 = arith.constant 0 : i32
    %c0_i32_1 = arith.constant 0 : i32
    return %c0_i32, %c0_i32_0 : i32, i32
  }
  func.func @transform_15(%arg0: i32) -> (i32, i32) {
    %c0_i32 = arith.constant 0 : i32
    %c0_i32_0 = arith.constant 0 : i32
    %c0_i32_1 = arith.constant 0 : i32
    return %c0_i32, %c0_i32_0 : i32, i32
  }
  func.func @transform_16(%arg0: i32) -> (i32, i32) {
    %c0_i32 = arith.constant 0 : i32
    %c0_i32_0 = arith.constant 0 : i32
    %c0_i32_1 = arith.constant 0 : i32
    return %c0_i32, %c0_i32_0 : i32, i32
  }
  func.func @transform_17(%arg0: i32) -> (i32, i32) {
    %c0_i32 = arith.constant 0 : i32
    %c0_i32_0 = arith.constant 0 : i32
    %c0_i32_1 = arith.constant 0 : i32
    return %c0_i32, %c0_i32_0 : i32, i32
  }
  func.func @transform_18(%arg0: i32) -> (i32, i32, i32) {
    %c0_i32 = arith.constant 0 : i32
    %c0_i32_0 = arith.constant 0 : i32
    %c0_i32_1 = arith.constant 0 : i32
    return %arg0, %c0_i32, %c0_i32_0 : i32, i32, i32
  }
  func.func @transform_19(%arg0: i32) -> (i32, i32, i32) {
    %c0_i32 = arith.constant 0 : i32
    %c0_i32_0 = arith.constant 0 : i32
    %c0_i32_1 = arith.constant 0 : i32
    return %arg0, %c0_i32, %c0_i32_0 : i32, i32, i32
  }
}

</mosaic_0001>

<llo_original>
// kernel: _forward_impl.1
$region0: #{_forward_impl.1}
  #allocation0 [shape = 'u32[]', space=smem, size = 0x4, offset = 0x4, fixed_abs, tag = 'smem constant byte address 0x4 - core index']
  #allocation1 [shape = 'u32[72,128]{1,0:T(1,128)}', space=vmem, size = 0x9000, scoped, tag = 'internal scratch']
  %s0 = inlined_call_operand.vmem [shape: f32[2,16,16,32], index: 0, kind: input, shape index: {}]
  %s1 = inlined_call_operand.vmem [shape: f32[2,16,16,32], index: 1, kind: input, shape index: {}]
  %s2 = inlined_call_operand.vmem [shape: f32[2,4,256,32], index: 2, kind: input, shape index: {}]
  %s3 = inlined_call_operand.vmem [shape: f32[2,4,256,32], index: 3, kind: input, shape index: {}]
  %s4 = inlined_call_operand.vmem [shape: bf16[288,128], index: 4, kind: input, shape index: {}]
  %s5 = inlined_call_operand.vmem [shape: f32[1,128], index: 5, kind: input, shape index: {}]
  %s6 = inlined_call_operand.vmem [shape: f32[256,32], index: 6, kind: input, shape index: {}]
  %s7 = inlined_call_operand.vmem [shape: f32[256,32], index: 7, kind: input, shape index: {}]
  %s8 = inlined_call_operand.vmem [shape: f32[256,96], index: 8, kind: input, shape index: {}]
  %s9 = inlined_call_operand.vmem [shape: f32[256,96], index: 9, kind: input, shape index: {}]
  %s10 = inlined_call_operand.vmem [shape: bf16[288,32], index: 10, kind: input, shape index: {}]
  %s11 = inlined_call_operand.vmem [shape: f32[1,32], index: 11, kind: input, shape index: {}]
  %s12 = inlined_call_operand.vmem [shape: f32[256,32], index: 12, kind: input, shape index: {}]
  %s13 = inlined_call_operand.vmem [shape: f32[256,32], index: 13, kind: input, shape index: {}]
  %s14 = inlined_call_operand.vmem [shape: bf16[288,96], index: 14, kind: input, shape index: {}]
  %s15 = inlined_call_operand.vmem [shape: f32[1,96], index: 15, kind: input, shape index: {}]
  %s16 = inlined_call_operand.vmem [shape: f32[256,96], index: 16, kind: input, shape index: {}]
  %s17 = inlined_call_operand.vmem [shape: f32[256,96], index: 17, kind: input, shape index: {}]
  %s18 = inlined_call_operand.hbm [shape: f32[2,256,32], index: 18, kind: output, shape index: {0}]
  %s19 = inlined_call_operand.hbm [shape: f32[2,256,32], index: 19, kind: output, shape index: {1}]
  %20 = xla_tuple %s18, %s19
  %s21 = sld [smem:[#allocation0]]
  $region113: #{_forward_impl.1} parent=0
    _
  %s23 = ssub.s32 1, %s21
  %s24 = scalar_select 0, %s23, %s21
  $region1: #{_forward_impl.1} parent=0
    #allocation2 [shape = 'u8[262144]{0}', space=vmem, size = 0x40000, scoped, tag = 'output window, operand 0']
    #allocation3 [shape = 's32[2]{0}', space=sflag, size = 0x8, scoped, tag = 'scoped memory for _forward_impl.1']
    #allocation4 [shape = 'u8[262144]{0}', space=vmem, size = 0x40000, scoped, tag = 'output window, operand 1']
    #allocation5 [shape = 's32[2]{0}', space=sflag, size = 0x8, scoped, tag = 'scoped memory for _forward_impl.1']
    %25 = vsyncpa [#allocation3], 0
    %s26 = scalar_lea.sflag [#allocation3], 1
    %27 = vsyncpa %s26, 0
    %28 = vsyncpa [#allocation5], 0
    %s29 = scalar_lea.sflag [#allocation5], 1
    %30 = vsyncpa %s29, 0
    loop: start=0, step=1, limit=4
    $region2: #{_forward_impl.1} parent=1 // loop_pre_header
      _
    $region3: #{_forward_impl.1} parent=1 // loop_header
      %s32 = sphi 0, %s36
      %p33 = scmp.ge.s32.totalorder %s32, 4
      %s42 = sphi 0, %s44
      %s45 = sphi 0, %s42
      %s46 = sphi 0, %s45
      %s62 = sphi 0, %s46
      %s68 = sphi 0, %s70
      %s71 = sphi 0, %s68
      %s72 = sphi 0, %s71
      %s88 = sphi 0, %s72
      %s94 = sphi 0, %s96
      %s97 = sphi 0, %s94
      %s98 = sphi 0, %s97
      %s114 = sphi 0, %s98
      %s120 = sphi 0, %s122
      %s123 = sphi 0, %s120
      %s124 = sphi 0, %s123
      %s140 = sphi 0, %s124
      %s144 = sphi 0, %s144
      %s146 = sphi 0, %s144
      %s147 = sphi 0, %s146
      %s161 = sphi 0, %s147
      %s165 = sphi 0, %s165
      %s167 = sphi 0, %s165
      %s168 = sphi 0, %s167
      %s182 = sphi 0, %s168
      %s186 = sphi 0, %s186
      %s188 = sphi 0, %s186
      %s189 = sphi 0, %s188
      %s203 = sphi 0, %s189
      %s207 = sphi 0, %s207
      %s209 = sphi 0, %s207
      %s210 = sphi 0, %s209
      %s224 = sphi 0, %s210
      %s228 = sphi 0, %s228
      %s230 = sphi 0, %s228
      %s231 = sphi 0, %s230
      %s245 = sphi 0, %s231
      %s249 = sphi 0, %s249
      %s251 = sphi 0, %s249
      %s252 = sphi 0, %s251
      %s266 = sphi 0, %s252
      %s270 = sphi 0, %s270
      %s272 = sphi 0, %s270
      %s273 = sphi 0, %s272
      %s287 = sphi 0, %s273
      %s291 = sphi 0, %s291
      %s293 = sphi 0, %s291
      %s294 = sphi 0, %s293
      %s308 = sphi 0, %s294
      %s312 = sphi 0, %s312
      %s314 = sphi 0, %s312
      %s315 = sphi 0, %s314
      %s329 = sphi 0, %s315
      %s333 = sphi 0, %s333
      %s335 = sphi 0, %s333
      %s336 = sphi 0, %s335
      %s350 = sphi 0, %s336
      %s354 = sphi 0, %s354
      %s356 = sphi 0, %s354
      %s357 = sphi 0, %s356
      %s371 = sphi 0, %s357
      %s375 = sphi 0, %s375
      %s377 = sphi 0, %s375
      %s378 = sphi 0, %s377
      %s392 = sphi 0, %s378
      %s396 = sphi 0, %s396
      %s398 = sphi 0, %s396
      %s399 = sphi 0, %s398
      %s413 = sphi 0, %s399
      %s417 = sphi 0, %s417
      %s419 = sphi 0, %s417
      %s420 = sphi 0, %s419
      %s434 = sphi 0, %s420
      %s440 = sphi 0, %s442
      %s443 = sphi 0, %s440
      %s444 = sphi 0, %s443
      %s460 = sphi 0, %s444
      %s466 = sphi 0, %s468
      %s469 = sphi 0, %s466
      %s470 = sphi 0, %s469
      %s486 = sphi 0, %s470
    $region4: #{_forward_impl.1} parent=1 // loop_header_branch
      %35 = sbr.rel (%p33) target = $region8
    $region5: #{_forward_impl.1} parent=1 // loop_body
      %s37 = ssub.s32 %s32, 1
      %s38 = ssub.s32 %s32, 2
      %s39 = sadd.s32 %s32, 1
      %s40 = ssub.s32 %s32, %s39
      %p41 = scmp.eq.s32.totalorder %s40, 0
      %s43 = sadd.s32 %s42, 1
      %s44 = scalar_select %p41, %s42, %s43
      %p47 = pneg %p41
      %p48 = scmp.eq.s32.totalorder %s32, 1
      %p49 = por %p47, %p48
      %p50 = scmp.ne.s32.totalorder %s42, %s45
      %p51 = scmp.eq.s32.totalorder %s32, 0
      %p52 = por %p50, %p51
      %p53 = scmp.ne.s32.totalorder %s42, %s45
      %p54 = scmp.eq.s32.totalorder %s37, 1
      %p55 = por %p53, %p54
      %p56 = scmp.ne.s32.totalorder %s45, %s46
      %p57 = scmp.eq.s32.totalorder %s37, 0
      %p58 = por %p56, %p57
      %p59 = scmp.ne.s32.totalorder %s45, %s46
      %p60 = scmp.eq.s32.totalorder %s38, 1
      %p61 = por %p59, %p60
      %p63 = scmp.ne.s32.totalorder %s46, %s62
      %p64 = scmp.eq.s32.totalorder %s38, 0
      %p65 = por %p63, %p64
      %s66 = ssub.s32 %s32, %s39
      %p67 = scmp.eq.s32.totalorder %s66, 0
      %s69 = sadd.s32 %s68, 1
      %s70 = scalar_select %p67, %s68, %s69
      %p73 = pneg %p67
      %p74 = scmp.eq.s32.totalorder %s32, 1
      %p75 = por %p73, %p74
      %p76 = scmp.ne.s32.totalorder %s68, %s71
      %p77 = scmp.eq.s32.totalorder %s32, 0
      %p78 = por %p76, %p77
      %p79 = scmp.ne.s32.totalorder %s68, %s71
      %p80 = scmp.eq.s32.totalorder %s37, 1
      %p81 = por %p79, %p80
      %p82 = scmp.ne.s32.totalorder %s71, %s72
      %p83 = scmp.eq.s32.totalorder %s37, 0
      %p84 = por %p82, %p83
      %p85 = scmp.ne.s32.totalorder %s71, %s72
      %p86 = scmp.eq.s32.totalorder %s38, 1
      %p87 = por %p85, %p86
      %p89 = scmp.ne.s32.totalorder %s72, %s88
      %p90 = scmp.eq.s32.totalorder %s38, 0
      %p91 = por %p89, %p90
      %s92 = ssub.s32 %s32, %s39
      %p93 = scmp.eq.s32.totalorder %s92, 0
      %s95 = sadd.s32 %s94, 1
      %s96 = scalar_select %p93, %s94, %s95
      %p99 = pneg %p93
      %p100 = scmp.eq.s32.totalorder %s32, 1
      %p101 = por %p99, %p100
      %p102 = scmp.ne.s32.totalorder %s94, %s97
      %p103 = scmp.eq.s32.totalorder %s32, 0
      %p104 = por %p102, %p103
      %p105 = scmp.ne.s32.totalorder %s94, %s97
      %p106 = scmp.eq.s32.totalorder %s37, 1
      %p107 = por %p105, %p106
      %p108 = scmp.ne.s32.totalorder %s97, %s98
      %p109 = scmp.eq.s32.totalorder %s37, 0
      %p110 = por %p108, %p109
      %p111 = scmp.ne.s32.totalorder %s97, %s98
      %p112 = scmp.eq.s32.totalorder %s38, 1
      %p113 = por %p111, %p112
      %p115 = scmp.ne.s32.totalorder %s98, %s114
      %p116 = scmp.eq.s32.totalorder %s38, 0
      %p117 = por %p115, %p116
      %s118 = ssub.s32 %s32, %s39
      %p119 = scmp.eq.s32.totalorder %s118, 0
      %s121 = sadd.s32 %s120, 1
      %s122 = scalar_select %p119, %s120, %s121
      %p125 = pneg %p119
      %p126 = scmp.eq.s32.totalorder %s32, 1
      %p127 = por %p125, %p126
      %p128 = scmp.ne.s32.totalorder %s120, %s123
      %p129 = scmp.eq.s32.totalorder %s32, 0
      %p130 = por %p128, %p129
      %p131 = scmp.ne.s32.totalorder %s120, %s123
      %p132 = scmp.eq.s32.totalorder %s37, 1
      %p133 = por %p131, %p132
      %p134 = scmp.ne.s32.totalorder %s123, %s124
      %p135 = scmp.eq.s32.totalorder %s37, 0
      %p136 = por %p134, %p135
      %p137 = scmp.ne.s32.totalorder %s123, %s124
      %p138 = scmp.eq.s32.totalorder %s38, 1
      %p139 = por %p137, %p138
      %p141 = scmp.ne.s32.totalorder %s124, %s140
      %p142 = scmp.eq.s32.totalorder %s38, 0
      %p143 = por %p141, %p142
      %s145 = sadd.s32 %s144, 1
      %p148 = scmp.eq.s32.totalorder %s32, 1
      %p149 = scmp.ne.s32.totalorder %s144, %s146
      %p150 = scmp.eq.s32.totalorder %s32, 0
      %p151 = por %p149, %p150
      %p152 = scmp.ne.s32.totalorder %s144, %s146
      %p153 = scmp.eq.s32.totalorder %s37, 1
      %p154 = por %p152, %p153
      %p155 = scmp.ne.s32.totalorder %s146, %s147
      %p156 = scmp.eq.s32.totalorder %s37, 0
      %p157 = por %p155, %p156
      %p158 = scmp.ne.s32.totalorder %s146, %s147
      %p159 = scmp.eq.s32.totalorder %s38, 1
      %p160 = por %p158, %p159
      %p162 = scmp.ne.s32.totalorder %s147, %s161
      %p163 = scmp.eq.s32.totalorder %s38, 0
      %p164 = por %p162, %p163
      %s166 = sadd.s32 %s165, 1
      %p169 = scmp.eq.s32.totalorder %s32, 1
      %p170 = scmp.ne.s32.totalorder %s165, %s167
      %p171 = scmp.eq.s32.totalorder %s32, 0
      %p172 = por %p170, %p171
      %p173 = scmp.ne.s32.totalorder %s165, %s167
      %p174 = scmp.eq.s32.totalorder %s37, 1
      %p175 = por %p173, %p174
      %p176 = scmp.ne.s32.totalorder %s167, %s168
      %p177 = scmp.eq.s32.totalorder %s37, 0
      %p178 = por %p176, %p177
      %p179 = scmp.ne.s32.totalorder %s167, %s168
      %p180 = scmp.eq.s32.totalorder %s38, 1
      %p181 = por %p179, %p180
      %p183 = scmp.ne.s32.totalorder %s168, %s182
      %p184 = scmp.eq.s32.totalorder %s38, 0
      %p185 = por %p183, %p184
      %s187 = sadd.s32 %s186, 1
      %p190 = scmp.eq.s32.totalorder %s32, 1
      %p191 = scmp.ne.s32.totalorder %s186, %s188
      %p192 = scmp.eq.s32.totalorder %s32, 0
      %p193 = por %p191, %p192
      %p194 = scmp.ne.s32.totalorder %s186, %s188
      %p195 = scmp.eq.s32.totalorder %s37, 1
      %p196 = por %p194, %p195
      %p197 = scmp.ne.s32.totalorder %s188, %s189
      %p198 = scmp.eq.s32.totalorder %s37, 0
      %p199 = por %p197, %p198
      %p200 = scmp.ne.s32.totalorder %s188, %s189
      %p201 = scmp.eq.s32.totalorder %s38, 1
      %p202 = por %p200, %p201
      %p204 = scmp.ne.s32.totalorder %s189, %s203
      %p205 = scmp.eq.s32.totalorder %s38, 0
      %p206 = por %p204, %p205
      %s208 = sadd.s32 %s207, 1
      %p211 = scmp.eq.s32.totalorder %s32, 1
      %p212 = scmp.ne.s32.totalorder %s207, %s209
      %p213 = scmp.eq.s32.totalorder %s32, 0
      %p214 = por %p212, %p213
      %p215 = scmp.ne.s32.totalorder %s207, %s209
      %p216 = scmp.eq.s32.totalorder %s37, 1
      %p217 = por %p215, %p216
      %p218 = scmp.ne.s32.totalorder %s209, %s210
      %p219 = scmp.eq.s32.totalorder %s37, 0
      %p220 = por %p218, %p219
      %p221 = scmp.ne.s32.totalorder %s209, %s210
      %p222 = scmp.eq.s32.totalorder %s38, 1
      %p223 = por %p221, %p222
      %p225 = scmp.ne.s32.totalorder %s210, %s224
      %p226 = scmp.eq.s32.totalorder %s38, 0
      %p227 = por %p225, %p226
      %s229 = sadd.s32 %s228, 1
      %p232 = scmp.eq.s32.totalorder %s32, 1
      %p233 = scmp.ne.s32.totalorder %s228, %s230
      %p234 = scmp.eq.s32.totalorder %s32, 0
      %p235 = por %p233, %p234
      %p236 = scmp.ne.s32.totalorder %s228, %s230
      %p237 = scmp.eq.s32.totalorder %s37, 1
      %p238 = por %p236, %p237
      %p239 = scmp.ne.s32.totalorder %s230, %s231
      %p240 = scmp.eq.s32.totalorder %s37, 0
      %p241 = por %p239, %p240
      %p242 = scmp.ne.s32.totalorder %s230, %s231
      %p243 = scmp.eq.s32.totalorder %s38, 1
      %p244 = por %p242, %p243
      %p246 = scmp.ne.s32.totalorder %s231, %s245
      %p247 = scmp.eq.s32.totalorder %s38, 0
      %p248 = por %p246, %p247
      %s250 = sadd.s32 %s249, 1
      %p253 = scmp.eq.s32.totalorder %s32, 1
      %p254 = scmp.ne.s32.totalorder %s249, %s251
      %p255 = scmp.eq.s32.totalorder %s32, 0
      %p256 = por %p254, %p255
      %p257 = scmp.ne.s32.totalorder %s249, %s251
      %p258 = scmp.eq.s32.totalorder %s37, 1
      %p259 = por %p257, %p258
      %p260 = scmp.ne.s32.totalorder %s251, %s252
      %p261 = scmp.eq.s32.totalorder %s37, 0
      %p262 = por %p260, %p261
      %p263 = scmp.ne.s32.totalorder %s251, %s252
      %p264 = scmp.eq.s32.totalorder %s38, 1
      %p265 = por %p263, %p264
      %p267 = scmp.ne.s32.totalorder %s252, %s266
      %p268 = scmp.eq.s32.totalorder %s38, 0
      %p269 = por %p267, %p268
      %s271 = sadd.s32 %s270, 1
      %p274 = scmp.eq.s32.totalorder %s32, 1
      %p275 = scmp.ne.s32.totalorder %s270, %s272
      %p276 = scmp.eq.s32.totalorder %s32, 0
      %p277 = por %p275, %p276
      %p278 = scmp.ne.s32.totalorder %s270, %s272
      %p279 = scmp.eq.s32.totalorder %s37, 1
      %p280 = por %p278, %p279
      %p281 = scmp.ne.s32.totalorder %s272, %s273
      %p282 = scmp.eq.s32.totalorder %s37, 0
      %p283 = por %p281, %p282
      %p284 = scmp.ne.s32.totalorder %s272, %s273
      %p285 = scmp.eq.s32.totalorder %s38, 1
      %p286 = por %p284, %p285
      %p288 = scmp.ne.s32.totalorder %s273, %s287
      %p289 = scmp.eq.s32.totalorder %s38, 0
      %p290 = por %p288, %p289
      %s292 = sadd.s32 %s291, 1
      %p295 = scmp.eq.s32.totalorder %s32, 1
      %p296 = scmp.ne.s32.totalorder %s291, %s293
      %p297 = scmp.eq.s32.totalorder %s32, 0
      %p298 = por %p296, %p297
      %p299 = scmp.ne.s32.totalorder %s291, %s293
      %p300 = scmp.eq.s32.totalorder %s37, 1
      %p301 = por %p299, %p300
      %p302 = scmp.ne.s32.totalorder %s293, %s294
      %p303 = scmp.eq.s32.totalorder %s37, 0
      %p304 = por %p302, %p303
      %p305 = scmp.ne.s32.totalorder %s293, %s294
      %p306 = scmp.eq.s32.totalorder %s38, 1
      %p307 = por %p305, %p306
      %p309 = scmp.ne.s32.totalorder %s294, %s308
      %p310 = scmp.eq.s32.totalorder %s38, 0
      %p311 = por %p309, %p310
      %s313 = sadd.s32 %s312, 1
      %p316 = scmp.eq.s32.totalorder %s32, 1
      %p317 = scmp.ne.s32.totalorder %s312, %s314
      %p318 = scmp.eq.s32.totalorder %s32, 0
      %p319 = por %p317, %p318
      %p320 = scmp.ne.s32.totalorder %s312, %s314
      %p321 = scmp.eq.s32.totalorder %s37, 1
      %p322 = por %p320, %p321
      %p323 = scmp.ne.s32.totalorder %s314, %s315
      %p324 = scmp.eq.s32.totalorder %s37, 0
      %p325 = por %p323, %p324
      %p326 = scmp.ne.s32.totalorder %s314, %s315
      %p327 = scmp.eq.s32.totalorder %s38, 1
      %p328 = por %p326, %p327
      %p330 = scmp.ne.s32.totalorder %s315, %s329
      %p331 = scmp.eq.s32.totalorder %s38, 0
      %p332 = por %p330, %p331
      %s334 = sadd.s32 %s333, 1
      %p337 = scmp.eq.s32.totalorder %s32, 1
      %p338 = scmp.ne.s32.totalorder %s333, %s335
      %p339 = scmp.eq.s32.totalorder %s32, 0
      %p340 = por %p338, %p339
      %p341 = scmp.ne.s32.totalorder %s333, %s335
      %p342 = scmp.eq.s32.totalorder %s37, 1
      %p343 = por %p341, %p342
      %p344 = scmp.ne.s32.totalorder %s335, %s336
      %p345 = scmp.eq.s32.totalorder %s37, 0
      %p346 = por %p344, %p345
      %p347 = scmp.ne.s32.totalorder %s335, %s336
      %p348 = scmp.eq.s32.totalorder %s38, 1
      %p349 = por %p347, %p348
      %p351 = scmp.ne.s32.totalorder %s336, %s350
      %p352 = scmp.eq.s32.totalorder %s38, 0
      %p353 = por %p351, %p352
      %s355 = sadd.s32 %s354, 1
      %p358 = scmp.eq.s32.totalorder %s32, 1
      %p359 = scmp.ne.s32.totalorder %s354, %s356
      %p360 = scmp.eq.s32.totalorder %s32, 0
      %p361 = por %p359, %p360
      %p362 = scmp.ne.s32.totalorder %s354, %s356
      %p363 = scmp.eq.s32.totalorder %s37, 1
      %p364 = por %p362, %p363
      %p365 = scmp.ne.s32.totalorder %s356, %s357
      %p366 = scmp.eq.s32.totalorder %s37, 0
      %p367 = por %p365, %p366
      %p368 = scmp.ne.s32.totalorder %s356, %s357
      %p369 = scmp.eq.s32.totalorder %s38, 1
      %p370 = por %p368, %p369
      %p372 = scmp.ne.s32.totalorder %s357, %s371
      %p373 = scmp.eq.s32.totalorder %s38, 0
      %p374 = por %p372, %p373
      %s376 = sadd.s32 %s375, 1
      %p379 = scmp.eq.s32.totalorder %s32, 1
      %p380 = scmp.ne.s32.totalorder %s375, %s377
      %p381 = scmp.eq.s32.totalorder %s32, 0
      %p382 = por %p380, %p381
      %p383 = scmp.ne.s32.totalorder %s375, %s377
      %p384 = scmp.eq.s32.totalorder %s37, 1
      %p385 = por %p383, %p384
      %p386 = scmp.ne.s32.totalorder %s377, %s378
      %p387 = scmp.eq.s32.totalorder %s37, 0
      %p388 = por %p386, %p387
      %p389 = scmp.ne.s32.totalorder %s377, %s378
      %p390 = scmp.eq.s32.totalorder %s38, 1
      %p391 = por %p389, %p390
      %p393 = scmp.ne.s32.totalorder %s378, %s392
      %p394 = scmp.eq.s32.totalorder %s38, 0
      %p395 = por %p393, %p394
      %s397 = sadd.s32 %s396, 1
      %p400 = scmp.eq.s32.totalorder %s32, 1
      %p401 = scmp.ne.s32.totalorder %s396, %s398
      %p402 = scmp.eq.s32.totalorder %s32, 0
      %p403 = por %p401, %p402
      %p404 = scmp.ne.s32.totalorder %s396, %s398
      %p405 = scmp.eq.s32.totalorder %s37, 1
      %p406 = por %p404, %p405
      %p407 = scmp.ne.s32.totalorder %s398, %s399
      %p408 = scmp.eq.s32.totalorder %s37, 0
      %p409 = por %p407, %p408
      %p410 = scmp.ne.s32.totalorder %s398, %s399
      %p411 = scmp.eq.s32.totalorder %s38, 1
      %p412 = por %p410, %p411
      %p414 = scmp.ne.s32.totalorder %s399, %s413
      %p415 = scmp.eq.s32.totalorder %s38, 0
      %p416 = por %p414, %p415
      %s418 = sadd.s32 %s417, 1
      %p421 = scmp.eq.s32.totalorder %s32, 1
      %p422 = scmp.ne.s32.totalorder %s417, %s419
      %p423 = scmp.eq.s32.totalorder %s32, 0
      %p424 = por %p422, %p423
      %p425 = scmp.ne.s32.totalorder %s417, %s419
      %p426 = scmp.eq.s32.totalorder %s37, 1
      %p427 = por %p425, %p426
      %p428 = scmp.ne.s32.totalorder %s419, %s420
      %p429 = scmp.eq.s32.totalorder %s37, 0
      %p430 = por %p428, %p429
      %p431 = scmp.ne.s32.totalorder %s419, %s420
      %p432 = scmp.eq.s32.totalorder %s38, 1
      %p433 = por %p431, %p432
      %p435 = scmp.ne.s32.totalorder %s420, %s434
      %p436 = scmp.eq.s32.totalorder %s38, 0
      %p437 = por %p435, %p436
      %s438 = ssub.s32 %s32, %s39
      %p439 = scmp.eq.s32.totalorder %s438, 0
      %s441 = sadd.s32 %s440, 1
      %s442 = scalar_select %p439, %s440, %s441
      %p445 = pneg %p439
      %p446 = scmp.eq.s32.totalorder %s32, 1
      %p447 = por %p445, %p446
      %p448 = scmp.ne.s32.totalorder %s440, %s443
      %p449 = scmp.eq.s32.totalorder %s32, 0
      %p450 = por %p448, %p449
      %p451 = scmp.ne.s32.totalorder %s440, %s443
      %p452 = scmp.eq.s32.totalorder %s37, 1
      %p453 = por %p451, %p452
      %p454 = scmp.ne.s32.totalorder %s443, %s444
      %p455 = scmp.eq.s32.totalorder %s37, 0
      %p456 = por %p454, %p455
      %p457 = scmp.ne.s32.totalorder %s443, %s444
      %p458 = scmp.eq.s32.totalorder %s38, 1
      %p459 = por %p457, %p458
      %p461 = scmp.ne.s32.totalorder %s444, %s460
      %p462 = scmp.eq.s32.totalorder %s38, 0
      %p463 = por %p461, %p462
      %s464 = ssub.s32 %s32, %s39
      %p465 = scmp.eq.s32.totalorder %s464, 0
      %s467 = sadd.s32 %s466, 1
      %s468 = scalar_select %p465, %s466, %s467
      %p471 = pneg %p465
      %p472 = scmp.eq.s32.totalorder %s32, 1
      %p473 = por %p471, %p472
      %p474 = scmp.ne.s32.totalorder %s466, %s469
      %p475 = scmp.eq.s32.totalorder %s32, 0
      %p476 = por %p474, %p475
      %p477 = scmp.ne.s32.totalorder %s466, %s469
      %p478 = scmp.eq.s32.totalorder %s37, 1
      %p479 = por %p477, %p478
      %p480 = scmp.ne.s32.totalorder %s469, %s470
      %p481 = scmp.eq.s32.totalorder %s37, 0
      %p482 = por %p480, %p481
      %p483 = scmp.ne.s32.totalorder %s469, %s470
      %p484 = scmp.eq.s32.totalorder %s38, 1
      %p485 = por %p483, %p484
      %p487 = scmp.ne.s32.totalorder %s470, %s486
      %p488 = scmp.eq.s32.totalorder %s38, 0
      %p489 = por %p487, %p488
      %p490 = scmp.le.s32.totalorder 1, %s32
      %p491 = scmp.lt.s32.totalorder %s32, 3
      %p492 = pnand %p490, %p491
      %p493 = pneg %p492
      // Predicated region
      $region9: #{_forward_impl.1} parent=5 // pred_check
        _
      $region10: #{_forward_impl.1} parent=5 // pred_check_branch
        %495 = sbr.rel (%p492) target = $region12
      $region11: #{_forward_impl.1} parent=5 // pred_region
        %s496 = ssub.s32 %s32, 1
        // Predicated region
        $region13: #{_forward_impl.1} parent=11 // pred_check
          %p497 = pneg %p157
        $region14: #{_forward_impl.1} parent=11 // pred_check_branch
          %499 = sbr.rel (%p497) target = $region16
        $region15: #{_forward_impl.1} parent=11 // pred_region
          _
        $region16: #{_forward_impl.1} parent=11 // pred_fallthru
          _
        // Predicated region
        $region17: #{_forward_impl.1} parent=11 // pred_check
          %p500 = pneg %p178
        $region18: #{_forward_impl.1} parent=11 // pred_check_branch
          %502 = sbr.rel (%p500) target = $region20
        $region19: #{_forward_impl.1} parent=11 // pred_region
          _
        $region20: #{_forward_impl.1} parent=11 // pred_fallthru
          _
        // Predicated region
        $region21: #{_forward_impl.1} parent=11 // pred_check
          %p503 = pneg %p199
        $region22: #{_forward_impl.1} parent=11 // pred_check_branch
          %505 = sbr.rel (%p503) target = $region24
        $region23: #{_forward_impl.1} parent=11 // pred_region
          _
        $region24: #{_forward_impl.1} parent=11 // pred_fallthru
          _
        // Predicated region
        $region25: #{_forward_impl.1} parent=11 // pred_check
          %p506 = pneg %p220
        $region26: #{_forward_impl.1} parent=11 // pred_check_branch
          %508 = sbr.rel (%p506) target = $region28
        $region27: #{_forward_impl.1} parent=11 // pred_region
          _
        $region28: #{_forward_impl.1} parent=11 // pred_fallthru
          _
        // Predicated region
        $region29: #{_forward_impl.1} parent=11 // pred_check
          %p509 = pneg %p241
        $region30: #{_forward_impl.1} parent=11 // pred_check_branch
          %511 = sbr.rel (%p509) target = $region32
        $region31: #{_forward_impl.1} parent=11 // pred_region
          _
        $region32: #{_forward_impl.1} parent=11 // pred_fallthru
          _
        // Predicated region
        $region33: #{_forward_impl.1} parent=11 // pred_check
          %p512 = pneg %p262
        $region34: #{_forward_impl.1} parent=11 // pred_check_branch
          %514 = sbr.rel (%p512) target = $region36
        $region35: #{_forward_impl.1} parent=11 // pred_region
          _
        $region36: #{_forward_impl.1} parent=11 // pred_fallthru
          _
        // Predicated region
        $region37: #{_forward_impl.1} parent=11 // pred_check
          %p515 = pneg %p283
        $region38: #{_forward_impl.1} parent=11 // pred_check_branch
          %517 = sbr.rel (%p515) target = $region40
        $region39: #{_forward_impl.1} parent=11 // pred_region
          _
        $region40: #{_forward_impl.1} parent=11 // pred_fallthru
          _
        // Predicated region
        $region41: #{_forward_impl.1} parent=11 // pred_check
          %p518 = pneg %p304
        $region42: #{_forward_impl.1} parent=11 // pred_check_branch
          %520 = sbr.rel (%p518) target = $region44
        $region43: #{_forward_impl.1} parent=11 // pred_region
          _
        $region44: #{_forward_impl.1} parent=11 // pred_fallthru
          _
        // Predicated region
        $region45: #{_forward_impl.1} parent=11 // pred_check
          %p521 = pneg %p325
        $region46: #{_forward_impl.1} parent=11 // pred_check_branch
          %523 = sbr.rel (%p521) target = $region48
        $region47: #{_forward_impl.1} parent=11 // pred_region
          _
        $region48: #{_forward_impl.1} parent=11 // pred_fallthru
          _
        // Predicated region
        $region49: #{_forward_impl.1} parent=11 // pred_check
          %p524 = pneg %p346
        $region50: #{_forward_impl.1} parent=11 // pred_check_branch
          %526 = sbr.rel (%p524) target = $region52
        $region51: #{_forward_impl.1} parent=11 // pred_region
          _
        $region52: #{_forward_impl.1} parent=11 // pred_fallthru
          _
        // Predicated region
        $region53: #{_forward_impl.1} parent=11 // pred_check
          %p527 = pneg %p367
        $region54: #{_forward_impl.1} parent=11 // pred_check_branch
          %529 = sbr.rel (%p527) target = $region56
        $region55: #{_forward_impl.1} parent=11 // pred_region
          _
        $region56: #{_forward_impl.1} parent=11 // pred_fallthru
          _
        // Predicated region
        $region57: #{_forward_impl.1} parent=11 // pred_check
          %p530 = pneg %p388
        $region58: #{_forward_impl.1} parent=11 // pred_check_branch
          %532 = sbr.rel (%p530) target = $region60
        $region59: #{_forward_impl.1} parent=11 // pred_region
          _
        $region60: #{_forward_impl.1} parent=11 // pred_fallthru
          _
        // Predicated region
        $region61: #{_forward_impl.1} parent=11 // pred_check
          %p533 = pneg %p409
        $region62: #{_forward_impl.1} parent=11 // pred_check_branch
          %535 = sbr.rel (%p533) target = $region64
        $region63: #{_forward_impl.1} parent=11 // pred_region
          _
        $region64: #{_forward_impl.1} parent=11 // pred_fallthru
          _
        // Predicated region
        $region65: #{_forward_impl.1} parent=11 // pred_check
          %p536 = pneg %p430
        $region66: #{_forward_impl.1} parent=11 // pred_check_branch
          %538 = sbr.rel (%p536) target = $region68
        $region67: #{_forward_impl.1} parent=11 // pred_region
          _
        $region68: #{_forward_impl.1} parent=11 // pred_fallthru
          _
      $region12: #{_forward_impl.1} parent=5 // pred_fallthru
        _
      %p539 = scmp.lt.s32.totalorder %s32, 2
      // Predicated region
      $region69: #{_forward_impl.1} parent=5 // pred_check
        %p540 = pneg %p539
      $region70: #{_forward_impl.1} parent=5 // pred_check_branch
        %542 = sbr.rel (%p540) target = $region72
      $region71: #{_forward_impl.1} parent=5 // pred_region
        // Predicated region
        $region73: #{_forward_impl.1} parent=71 // pred_check
          %p543 = pneg %p52
        $region74: #{_forward_impl.1} parent=71 // pred_check_branch
          %545 = sbr.rel (%p543) target = $region76
        $region75: #{_forward_impl.1} parent=71 // pred_region
          %p546 = scmp.lt.s32.totalorder %s32, 1
          %s547 = scalar_select %p546, %s32, 1
          %s548 = smul.addr %s547, 32
          %s549 = smul.addr %s548, 8
          %s550 = scalar_lea.vmem %s0, %s549
        $region76: #{_forward_impl.1} parent=71 // pred_fallthru
          _
        // Predicated region
        $region77: #{_forward_impl.1} parent=71 // pred_check
          %p551 = pneg %p78
        $region78: #{_forward_impl.1} parent=71 // pred_check_branch
          %553 = sbr.rel (%p551) target = $region80
        $region79: #{_forward_impl.1} parent=71 // pred_region
          %p554 = scmp.lt.s32.totalorder %s32, 1
          %s555 = scalar_select %p554, %s32, 1
          %s556 = smul.addr %s555, 32
          %s557 = smul.addr %s556, 8
          %s558 = scalar_lea.vmem %s1, %s557
        $region80: #{_forward_impl.1} parent=71 // pred_fallthru
          _
        // Predicated region
        $region81: #{_forward_impl.1} parent=71 // pred_check
          %p559 = pneg %p104
        $region82: #{_forward_impl.1} parent=71 // pred_check_branch
          %561 = sbr.rel (%p559) target = $region84
        $region83: #{_forward_impl.1} parent=71 // pred_region
          %p562 = scmp.lt.s32.totalorder %s32, 1
          %s563 = scalar_select %p562, %s32, 1
          %s564 = smul.addr %s563, 128
          %s565 = smul.addr %s564, 8
          %s566 = scalar_lea.vmem %s2, %s565
        $region84: #{_forward_impl.1} parent=71 // pred_fallthru
          _
        // Predicated region
        $region85: #{_forward_impl.1} parent=71 // pred_check
          %p567 = pneg %p130
        $region86: #{_forward_impl.1} parent=71 // pred_check_branch
          %569 = sbr.rel (%p567) target = $region88
        $region87: #{_forward_impl.1} parent=71 // pred_region
          %p570 = scmp.lt.s32.totalorder %s32, 1
          %s571 = scalar_select %p570, %s32, 1
          %s572 = smul.addr %s571, 128
          %s573 = smul.addr %s572, 8
          %s574 = scalar_lea.vmem %s3, %s573
        $region88: #{_forward_impl.1} parent=71 // pred_fallthru
          _
      $region72: #{_forward_impl.1} parent=5 // pred_fallthru
        _
      %p575 = scmp.le.s32.totalorder 1, %s32
      %p576 = scmp.lt.s32.totalorder %s32, 3
      %p577 = pnand %p575, %p576
      %p578 = pneg %p577
      // Predicated region
      $region89: #{_forward_impl.1} parent=5 // pred_check
        _
      $region90: #{_forward_impl.1} parent=5 // pred_check_branch
        %580 = sbr.rel (%p577) target = $region92
      $region91: #{_forward_impl.1} parent=5 // pred_region
        %s581 = ssub.s32 %s32, 1
        %p582 = scmp.lt.s32.totalorder %s37, 1
        %s583 = scalar_select %p582, %s37, 1
        %s584 = smul.addr %s583, 32
        %s585 = smul.addr %s584, 8
        %s586 = scalar_lea.vmem %s0, %s585
        %p587 = pneg %p58
        %p588 = pneg %p55
        %p589 = scmp.lt.s32.totalorder %s37, 1
        %s590 = scalar_select %p589, %s37, 1
        %s591 = smul.addr %s590, 32
        %s592 = smul.addr %s591, 8
        %s593 = scalar_lea.vmem %s1, %s592
        %p594 = pneg %p84
        %p595 = pneg %p81
        %p596 = scmp.lt.s32.totalorder %s37, 1
        %s597 = scalar_select %p596, %s37, 1
        %s598 = smul.addr %s597, 128
        %s599 = smul.addr %s598, 8
        %s600 = scalar_lea.vmem %s2, %s599
        %p601 = pneg %p110
        %p602 = pneg %p107
        %p603 = scmp.lt.s32.totalorder %s37, 1
        %s604 = scalar_select %p603, %s37, 1
        %s605 = smul.addr %s604, 128
        %s606 = smul.addr %s605, 8
        %s607 = scalar_lea.vmem %s3, %s606
        %p608 = pneg %p136
        %p609 = pneg %p133
        %p610 = pneg %p157
        %p611 = pneg %p154
        %p612 = pneg %p178
        %p613 = pneg %p175
        %p614 = pneg %p199
        %p615 = pneg %p196
        %p616 = pneg %p220
        %p617 = pneg %p217
        %p618 = pneg %p241
        %p619 = pneg %p238
        %p620 = pneg %p262
        %p621 = pneg %p259
        %p622 = pneg %p283
        %p623 = pneg %p280
        %p624 = pneg %p304
        %p625 = pneg %p301
        %p626 = pneg %p325
        %p627 = pneg %p322
        %p628 = pneg %p346
        %p629 = pneg %p343
        %p630 = pneg %p367
        %p631 = pneg %p364
        %p632 = pneg %p388
        %p633 = pneg %p385
        %p634 = pneg %p409
        %p635 = pneg %p406
        %p636 = pneg %p430
        %p637 = pneg %p427
        %p638 = pneg %p456
        %p639 = pneg %p453
        %s640 = sand.u32 %s443, 1
        %s641 = scalar_lea.sflag [#allocation3], %s640
        %s642 = sand.u32 %s443, 1
        %s643 = smul.addr %s642, 256
        %s644 = scalar_lea.vmem [#allocation2], %s643
        %p645 = pneg %p482
        %p646 = pneg %p479
        %s647 = sand.u32 %s469, 1
        %s648 = scalar_lea.sflag [#allocation5], %s647
        %s649 = sand.u32 %s469, 1
        %s650 = smul.addr %s649, 256
        %s651 = scalar_lea.vmem [#allocation4], %s650
        %p652 = scmp.lt.s32.totalorder %s37, 1
        %s653 = scalar_select %p652, %s37, 1
        %s654 = smul.addr %s653, 32
        %s655 = smul.addr %s654, 8
        %s656 = scalar_lea.vmem %s0, %s655
        %p657 = scmp.lt.s32.totalorder %s37, 1
        %s658 = scalar_select %p657, %s37, 1
        %s659 = smul.addr %s658, 32
        %s660 = smul.addr %s659, 8
        %s661 = scalar_lea.vmem %s1, %s660
        %p662 = scmp.lt.s32.totalorder %s37, 1
        %s663 = scalar_select %p662, %s37, 1
        %s664 = smul.addr %s663, 128
        %s665 = smul.addr %s664, 8
        %s666 = scalar_lea.vmem %s2, %s665
        %p667 = scmp.lt.s32.totalorder %s37, 1
        %s668 = scalar_select %p667, %s37, 1
        %s669 = smul.addr %s668, 128
        %s670 = smul.addr %s669, 8
        %s671 = scalar_lea.vmem %s3, %s670
        %v673 = vld [vmem:[%s656] sm:$0xff]
        %v674 = vld [vmem:[%s656 + $0x8] sm:$0xff]
        %v675 = vld [vmem:[%s656 + $0x10] sm:$0xff]
        %v676 = vld [vmem:[%s656 + $0x18] sm:$0xff]
        %v677 = vld [vmem:[%s656 + $0x20] sm:$0xff]
        %v678 = vld [vmem:[%s656 + $0x28] sm:$0xff]
        %v679 = vld [vmem:[%s656 + $0x30] sm:$0xff]
        %v680 = vld [vmem:[%s656 + $0x38] sm:$0xff]
        %v681 = vld [vmem:[%s656 + $0x40] sm:$0xff]
        %v682 = vld [vmem:[%s656 + $0x48] sm:$0xff]
        %v683 = vld [vmem:[%s656 + $0x50] sm:$0xff]
        %v684 = vld [vmem:[%s656 + $0x58] sm:$0xff]
        %v685 = vld [vmem:[%s656 + $0x60] sm:$0xff]
        %v686 = vld [vmem:[%s656 + $0x68] sm:$0xff]
        %v687 = vld [vmem:[%s656 + $0x70] sm:$0xff]
        %v688 = vld [vmem:[%s656 + $0x78] sm:$0xff]
        %v689 = vld [vmem:[%s656 + $0x80] sm:$0xff]
        %v690 = vld [vmem:[%s656 + $0x88] sm:$0xff]
        %v691 = vld [vmem:[%s656 + $0x90] sm:$0xff]
        %v692 = vld [vmem:[%s656 + $0x98] sm:$0xff]
        %v693 = vld [vmem:[%s656 + $0xa0] sm:$0xff]
        %v694 = vld [vmem:[%s656 + $0xa8] sm:$0xff]
        %v695 = vld [vmem:[%s656 + $0xb0] sm:$0xff]
        %v696 = vld [vmem:[%s656 + $0xb8] sm:$0xff]
        %v697 = vld [vmem:[%s656 + $0xc0] sm:$0xff]
        %v698 = vld [vmem:[%s656 + $0xc8] sm:$0xff]
        %v699 = vld [vmem:[%s656 + $0xd0] sm:$0xff]
        %v700 = vld [vmem:[%s656 + $0xd8] sm:$0xff]
        %v701 = vld [vmem:[%s656 + $0xe0] sm:$0xff]
        %v702 = vld [vmem:[%s656 + $0xe8] sm:$0xff]
        %v703 = vld [vmem:[%s656 + $0xf0] sm:$0xff]
        %v704 = vld [vmem:[%s656 + $0xf8] sm:$0xff]
        %v705 = vld [vmem:[%s661] sm:$0xff]
        %v706 = vld [vmem:[%s661 + $0x8] sm:$0xff]
        %v707 = vld [vmem:[%s661 + $0x10] sm:$0xff]
        %v708 = vld [vmem:[%s661 + $0x18] sm:$0xff]
        %v709 = vld [vmem:[%s661 + $0x20] sm:$0xff]
        %v710 = vld [vmem:[%s661 + $0x28] sm:$0xff]
        %v711 = vld [vmem:[%s661 + $0x30] sm:$0xff]
        %v712 = vld [vmem:[%s661 + $0x38] sm:$0xff]
        %v713 = vld [vmem:[%s661 + $0x40] sm:$0xff]
        %v714 = vld [vmem:[%s661 + $0x48] sm:$0xff]
        %v715 = vld [vmem:[%s661 + $0x50] sm:$0xff]
        %v716 = vld [vmem:[%s661 + $0x58] sm:$0xff]
        %v717 = vld [vmem:[%s661 + $0x60] sm:$0xff]
        %v718 = vld [vmem:[%s661 + $0x68] sm:$0xff]
        %v719 = vld [vmem:[%s661 + $0x70] sm:$0xff]
        %v720 = vld [vmem:[%s661 + $0x78] sm:$0xff]
        %v721 = vld [vmem:[%s661 + $0x80] sm:$0xff]
        %v722 = vld [vmem:[%s661 + $0x88] sm:$0xff]
        %v723 = vld [vmem:[%s661 + $0x90] sm:$0xff]
        %v724 = vld [vmem:[%s661 + $0x98] sm:$0xff]
        %v725 = vld [vmem:[%s661 + $0xa0] sm:$0xff]
        %v726 = vld [vmem:[%s661 + $0xa8] sm:$0xff]
        %v727 = vld [vmem:[%s661 + $0xb0] sm:$0xff]
        %v728 = vld [vmem:[%s661 + $0xb8] sm:$0xff]
        %v729 = vld [vmem:[%s661 + $0xc0] sm:$0xff]
        %v730 = vld [vmem:[%s661 + $0xc8] sm:$0xff]
        %v731 = vld [vmem:[%s661 + $0xd0] sm:$0xff]
        %v732 = vld [vmem:[%s661 + $0xd8] sm:$0xff]
        %v733 = vld [vmem:[%s661 + $0xe0] sm:$0xff]
        %v734 = vld [vmem:[%s661 + $0xe8] sm:$0xff]
        %v735 = vld [vmem:[%s661 + $0xf0] sm:$0xff]
        %v736 = vld [vmem:[%s661 + $0xf8] sm:$0xff]
        %vm770 = vcmask 1040384
        %v771 = vrot.slane 0.0, 7
        %v772 = vsel %vm770, %v771, %v771
        %v773 = vrot.slane %v673, 7
        %v774 = vrot.slane %v674, 7
        %v775 = vsel %vm770, %v773, %v774
        %v776 = vrot.slane %v675, 7
        %v777 = vrot.slane %v676, 7
        %v778 = vsel %vm770, %v776, %v777
        %v779 = vrot.slane %v677, 7
        %v780 = vrot.slane %v678, 7
        %v781 = vsel %vm770, %v779, %v780
        %v782 = vrot.slane %v679, 7
        %v783 = vrot.slane %v680, 7
        %v784 = vsel %vm770, %v782, %v783
        %v785 = vrot.slane %v681, 7
        %v786 = vrot.slane %v682, 7
        %v787 = vsel %vm770, %v785, %v786
        %v788 = vrot.slane %v683, 7
        %v789 = vrot.slane %v684, 7
        %v790 = vsel %vm770, %v788, %v789
        %v791 = vrot.slane %v685, 7
        %v792 = vrot.slane %v686, 7
        %v793 = vsel %vm770, %v791, %v792
        %v794 = vrot.slane %v687, 7
        %v795 = vrot.slane %v688, 7
        %v796 = vsel %vm770, %v794, %v795
        %v797 = vrot.slane %v689, 7
        %v798 = vrot.slane %v690, 7
        %v799 = vsel %vm770, %v797, %v798
        %v800 = vrot.slane %v691, 7
        %v801 = vrot.slane %v692, 7
        %v802 = vsel %vm770, %v800, %v801
        %v803 = vrot.slane %v693, 7
        %v804 = vrot.slane %v694, 7
        %v805 = vsel %vm770, %v803, %v804
        %v806 = vrot.slane %v695, 7
        %v807 = vrot.slane %v696, 7
        %v808 = vsel %vm770, %v806, %v807
        %v809 = vrot.slane %v697, 7
        %v810 = vrot.slane %v698, 7
        %v811 = vsel %vm770, %v809, %v810
        %v812 = vrot.slane %v699, 7
        %v813 = vrot.slane %v700, 7
        %v814 = vsel %vm770, %v812, %v813
        %v815 = vrot.slane %v701, 7
        %v816 = vrot.slane %v702, 7
        %v817 = vsel %vm770, %v815, %v816
        %v818 = vrot.slane %v703, 7
        %v819 = vrot.slane %v704, 7
        %v820 = vsel %vm770, %v818, %v819
        %v870 = vsel %vm770, 0.0, %v771
        %v871 = vsel %vm770, 0.0, %v773
        %v872 = vsel %vm770, 0.0, %v776
        %v873 = vsel %vm770, 0.0, %v779
        %v874 = vsel %vm770, 0.0, %v782
        %v875 = vsel %vm770, 0.0, %v785
        %v876 = vsel %vm770, 0.0, %v788
        %v877 = vsel %vm770, 0.0, %v791
        %v878 = vsel %vm770, 0.0, %v794
        %v879 = vsel %vm770, 0.0, %v797
        %v880 = vsel %vm770, 0.0, %v800
        %v881 = vsel %vm770, 0.0, %v803
        %v882 = vsel %vm770, 0.0, %v806
        %v883 = vsel %vm770, 0.0, %v809
        %v884 = vsel %vm770, 0.0, %v812
        %v885 = vsel %vm770, 0.0, %v815
        %v886 = vsel %vm770, 0.0, %v818
        %v887 = vsel %vm770, %v771, 0.0
        %v888 = vsel %vm770, %v774, 0.0
        %v889 = vsel %vm770, %v777, 0.0
        %v890 = vsel %vm770, %v780, 0.0
        %v891 = vsel %vm770, %v783, 0.0
        %v892 = vsel %vm770, %v786, 0.0
        %v893 = vsel %vm770, %v789, 0.0
        %v894 = vsel %vm770, %v792, 0.0
        %v895 = vsel %vm770, %v795, 0.0
        %v896 = vsel %vm770, %v798, 0.0
        %v897 = vsel %vm770, %v801, 0.0
        %v898 = vsel %vm770, %v804, 0.0
        %v899 = vsel %vm770, %v807, 0.0
        %v900 = vsel %vm770, %v810, 0.0
        %v901 = vsel %vm770, %v813, 0.0
        %v902 = vsel %vm770, %v816, 0.0
        %v903 = vsel %vm770, %v819, 0.0
        %vm936 = vcmask 1046528
        %v937 = vrot.slane %v870, 1
        %v938 = vrot.slane %v772, 1
        %v939 = vsel %vm936, %v937, %v938
        %v940 = vrot.slane %v887, 1
        %v941 = vsel %vm936, %v938, %v940
        %v942 = vrot.slane %v871, 1
        %v943 = vrot.slane %v775, 1
        %v944 = vsel %vm936, %v942, %v943
        %v945 = vrot.slane %v888, 1
        %v946 = vsel %vm936, %v943, %v945
        %v947 = vrot.slane %v872, 1
        %v948 = vrot.slane %v778, 1
        %v949 = vsel %vm936, %v947, %v948
        %v950 = vrot.slane %v889, 1
        %v951 = vsel %vm936, %v948, %v950
        %v952 = vrot.slane %v873, 1
        %v953 = vrot.slane %v781, 1
        %v954 = vsel %vm936, %v952, %v953
        %v955 = vrot.slane %v890, 1
        %v956 = vsel %vm936, %v953, %v955
        %v957 = vrot.slane %v874, 1
        %v958 = vrot.slane %v784, 1
        %v959 = vsel %vm936, %v957, %v958
        %v960 = vrot.slane %v891, 1
        %v961 = vsel %vm936, %v958, %v960
        %v962 = vrot.slane %v875, 1
        %v963 = vrot.slane %v787, 1
        %v964 = vsel %vm936, %v962, %v963
        %v965 = vrot.slane %v892, 1
        %v966 = vsel %vm936, %v963, %v965
        %v967 = vrot.slane %v876, 1
        %v968 = vrot.slane %v790, 1
        %v969 = vsel %vm936, %v967, %v968
        %v970 = vrot.slane %v893, 1
        %v971 = vsel %vm936, %v968, %v970
        %v972 = vrot.slane %v877, 1
        %v973 = vrot.slane %v793, 1
        %v974 = vsel %vm936, %v972, %v973
        %v975 = vrot.slane %v894, 1
        %v976 = vsel %vm936, %v973, %v975
        %v977 = vrot.slane %v878, 1
        %v978 = vrot.slane %v796, 1
        %v979 = vsel %vm936, %v977, %v978
        %v980 = vrot.slane %v895, 1
        %v981 = vsel %vm936, %v978, %v980
        %v982 = vrot.slane %v879, 1
        %v983 = vrot.slane %v799, 1
        %v984 = vsel %vm936, %v982, %v983
        %v985 = vrot.slane %v896, 1
        %v986 = vsel %vm936, %v983, %v985
        %v987 = vrot.slane %v880, 1
        %v988 = vrot.slane %v802, 1
        %v989 = vsel %vm936, %v987, %v988
        %v990 = vrot.slane %v897, 1
        %v991 = vsel %vm936, %v988, %v990
        %v992 = vrot.slane %v881, 1
        %v993 = vrot.slane %v805, 1
        %v994 = vsel %vm936, %v992, %v993
        %v995 = vrot.slane %v898, 1
        %v996 = vsel %vm936, %v993, %v995
        %v997 = vrot.slane %v882, 1
        %v998 = vrot.slane %v808, 1
        %v999 = vsel %vm936, %v997, %v998
        %v1000 = vrot.slane %v899, 1
        %v1001 = vsel %vm936, %v998, %v1000
        %v1002 = vrot.slane %v883, 1
        %v1003 = vrot.slane %v811, 1
        %v1004 = vsel %vm936, %v1002, %v1003
        %v1005 = vrot.slane %v900, 1
        %v1006 = vsel %vm936, %v1003, %v1005
        %v1007 = vrot.slane %v884, 1
        %v1008 = vrot.slane %v814, 1
        %v1009 = vsel %vm936, %v1007, %v1008
        %v1010 = vrot.slane %v901, 1
        %v1011 = vsel %vm936, %v1008, %v1010
        %v1012 = vrot.slane %v885, 1
        %v1013 = vrot.slane %v817, 1
        %v1014 = vsel %vm936, %v1012, %v1013
        %v1015 = vrot.slane %v902, 1
        %v1016 = vsel %vm936, %v1013, %v1015
        %vm1017 = vcmask 1045504
        %v1018 = vrot.slane %v870, 2
        %v1019 = vrot.slane %v772, 2
        %v1020 = vsel %vm1017, %v1018, %v1019
        %v1021 = vrot.slane %v887, 2
        %v1022 = vsel %vm1017, %v1019, %v1021
        %v1023 = vrot.slane %v871, 2
        %v1024 = vrot.slane %v775, 2
        %v1025 = vsel %vm1017, %v1023, %v1024
        %v1026 = vrot.slane %v888, 2
        %v1027 = vsel %vm1017, %v1024, %v1026
        %v1028 = vrot.slane %v872, 2
        %v1029 = vrot.slane %v778, 2
        %v1030 = vsel %vm1017, %v1028, %v1029
        %v1031 = vrot.slane %v889, 2
        %v1032 = vsel %vm1017, %v1029, %v1031
        %v1033 = vrot.slane %v873, 2
        %v1034 = vrot.slane %v781, 2
        %v1035 = vsel %vm1017, %v1033, %v1034
        %v1036 = vrot.slane %v890, 2
        %v1037 = vsel %vm1017, %v1034, %v1036
        %v1038 = vrot.slane %v874, 2
        %v1039 = vrot.slane %v784, 2
        %v1040 = vsel %vm1017, %v1038, %v1039
        %v1041 = vrot.slane %v891, 2
        %v1042 = vsel %vm1017, %v1039, %v1041
        %v1043 = vrot.slane %v875, 2
        %v1044 = vrot.slane %v787, 2
        %v1045 = vsel %vm1017, %v1043, %v1044
        %v1046 = vrot.slane %v892, 2
        %v1047 = vsel %vm1017, %v1044, %v1046
        %v1048 = vrot.slane %v876, 2
        %v1049 = vrot.slane %v790, 2
        %v1050 = vsel %vm1017, %v1048, %v1049
        %v1051 = vrot.slane %v893, 2
        %v1052 = vsel %vm1017, %v1049, %v1051
        %v1053 = vrot.slane %v877, 2
        %v1054 = vrot.slane %v793, 2
        %v1055 = vsel %vm1017, %v1053, %v1054
        %v1056 = vrot.slane %v894, 2
        %v1057 = vsel %vm1017, %v1054, %v1056
        %v1058 = vrot.slane %v878, 2
        %v1059 = vrot.slane %v796, 2
        %v1060 = vsel %vm1017, %v1058, %v1059
        %v1061 = vrot.slane %v895, 2
        %v1062 = vsel %vm1017, %v1059, %v1061
        %v1063 = vrot.slane %v879, 2
        %v1064 = vrot.slane %v799, 2
        %v1065 = vsel %vm1017, %v1063, %v1064
        %v1066 = vrot.slane %v896, 2
        %v1067 = vsel %vm1017, %v1064, %v1066
        %v1068 = vrot.slane %v880, 2
        %v1069 = vrot.slane %v802, 2
        %v1070 = vsel %vm1017, %v1068, %v1069
        %v1071 = vrot.slane %v897, 2
        %v1072 = vsel %vm1017, %v1069, %v1071
        %v1073 = vrot.slane %v881, 2
        %v1074 = vrot.slane %v805, 2
        %v1075 = vsel %vm1017, %v1073, %v1074
        %v1076 = vrot.slane %v898, 2
        %v1077 = vsel %vm1017, %v1074, %v1076
        %v1078 = vrot.slane %v882, 2
        %v1079 = vrot.slane %v808, 2
        %v1080 = vsel %vm1017, %v1078, %v1079
        %v1081 = vrot.slane %v899, 2
        %v1082 = vsel %vm1017, %v1079, %v1081
        %v1083 = vrot.slane %v883, 2
        %v1084 = vrot.slane %v811, 2
        %v1085 = vsel %vm1017, %v1083, %v1084
        %v1086 = vrot.slane %v900, 2
        %v1087 = vsel %vm1017, %v1084, %v1086
        %v1088 = vrot.slane %v884, 2
        %v1089 = vrot.slane %v814, 2
        %v1090 = vsel %vm1017, %v1088, %v1089
        %v1091 = vrot.slane %v901, 2
        %v1092 = vsel %vm1017, %v1089, %v1091
        %v1093 = vrot.slane %v885, 2
        %v1094 = vrot.slane %v817, 2
        %v1095 = vsel %vm1017, %v1093, %v1094
        %v1096 = vrot.slane %v902, 2
        %v1097 = vsel %vm1017, %v1094, %v1096
        %v1100 = vrot.slane %v886, 1
        %v1101 = vrot.slane %v820, 1
        %v1102 = vsel %vm936, %v1100, %v1101
        %v1103 = vrot.slane %v903, 1
        %v1104 = vsel %vm936, %v1101, %v1103
        %v1137 = vrot.slane %v886, 2
        %v1138 = vrot.slane %v820, 2
        %v1139 = vsel %vm1017, %v1137, %v1138
        %v1140 = vrot.slane %v903, 2
        %v1141 = vsel %vm1017, %v1138, %v1140
        %1174 = vrot.lane.b32.xlu0 %v939, 32
        %v1175 = vpop.permute.xlu0 %1174
        %1176 = vrot.lane.b32.xlu0 %v941, 32
        %v1177 = vpop.permute.xlu0 %1176
        %1178 = vrot.lane.b32.xlu0 %v944, 32
        %v1179 = vpop.permute.xlu0 %1178
        %1180 = vrot.lane.b32.xlu0 %v946, 32
        %v1181 = vpop.permute.xlu0 %1180
        %1182 = vrot.lane.b32.xlu0 %v949, 32
        %v1183 = vpop.permute.xlu0 %1182
        %1184 = vrot.lane.b32.xlu0 %v951, 32
        %v1185 = vpop.permute.xlu0 %1184
        %1186 = vrot.lane.b32.xlu0 %v954, 32
        %v1187 = vpop.permute.xlu0 %1186
        %1188 = vrot.lane.b32.xlu0 %v956, 32
        %v1189 = vpop.permute.xlu0 %1188
        %1190 = vrot.lane.b32.xlu0 %v959, 32
        %v1191 = vpop.permute.xlu0 %1190
        %1192 = vrot.lane.b32.xlu0 %v961, 32
        %v1193 = vpop.permute.xlu0 %1192
        %1194 = vrot.lane.b32.xlu0 %v964, 32
        %v1195 = vpop.permute.xlu0 %1194
        %1196 = vrot.lane.b32.xlu0 %v966, 32
        %v1197 = vpop.permute.xlu0 %1196
        %1198 = vrot.lane.b32.xlu0 %v969, 32
        %v1199 = vpop.permute.xlu0 %1198
        %1200 = vrot.lane.b32.xlu0 %v971, 32
        %v1201 = vpop.permute.xlu0 %1200
        %1202 = vrot.lane.b32.xlu0 %v974, 32
        %v1203 = vpop.permute.xlu0 %1202
        %1204 = vrot.lane.b32.xlu0 %v976, 32
        %v1205 = vpop.permute.xlu0 %1204
        %1206 = vrot.lane.b32.xlu0 %v979, 32
        %v1207 = vpop.permute.xlu0 %1206
        %1208 = vrot.lane.b32.xlu0 %v981, 32
        %v1209 = vpop.permute.xlu0 %1208
        %1210 = vrot.lane.b32.xlu0 %v984, 32
        %v1211 = vpop.permute.xlu0 %1210
        %1212 = vrot.lane.b32.xlu0 %v986, 32
        %v1213 = vpop.permute.xlu0 %1212
        %1214 = vrot.lane.b32.xlu0 %v989, 32
        %v1215 = vpop.permute.xlu0 %1214
        %1216 = vrot.lane.b32.xlu0 %v991, 32
        %v1217 = vpop.permute.xlu0 %1216
        %1218 = vrot.lane.b32.xlu0 %v994, 32
        %v1219 = vpop.permute.xlu0 %1218
        %1220 = vrot.lane.b32.xlu0 %v996, 32
        %v1221 = vpop.permute.xlu0 %1220
        %1222 = vrot.lane.b32.xlu0 %v999, 32
        %v1223 = vpop.permute.xlu0 %1222
        %1224 = vrot.lane.b32.xlu0 %v1001, 32
        %v1225 = vpop.permute.xlu0 %1224
        %1226 = vrot.lane.b32.xlu0 %v1004, 32
        %v1227 = vpop.permute.xlu0 %1226
        %1228 = vrot.lane.b32.xlu0 %v1006, 32
        %v1229 = vpop.permute.xlu0 %1228
        %1230 = vrot.lane.b32.xlu0 %v1009, 32
        %v1231 = vpop.permute.xlu0 %1230
        %1232 = vrot.lane.b32.xlu0 %v1011, 32
        %v1233 = vpop.permute.xlu0 %1232
        %1234 = vrot.lane.b32.xlu0 %v1014, 32
        %v1235 = vpop.permute.xlu0 %1234
        %1236 = vrot.lane.b32.xlu0 %v1016, 32
        %v1237 = vpop.permute.xlu0 %1236
        %1270 = vrot.lane.b32.xlu0 %v1020, 64
        %v1271 = vpop.permute.xlu0 %1270
        %1272 = vrot.lane.b32.xlu0 %v1022, 64
        %v1273 = vpop.permute.xlu0 %1272
        %1274 = vrot.lane.b32.xlu0 %v1025, 64
        %v1275 = vpop.permute.xlu0 %1274
        %1276 = vrot.lane.b32.xlu0 %v1027, 64
        %v1277 = vpop.permute.xlu0 %1276
        %1278 = vrot.lane.b32.xlu0 %v1030, 64
        %v1279 = vpop.permute.xlu0 %1278
        %1280 = vrot.lane.b32.xlu0 %v1032, 64
        %v1281 = vpop.permute.xlu0 %1280
        %1282 = vrot.lane.b32.xlu0 %v1035, 64
        %v1283 = vpop.permute.xlu0 %1282
        %1284 = vrot.lane.b32.xlu0 %v1037, 64
        %v1285 = vpop.permute.xlu0 %1284
        %1286 = vrot.lane.b32.xlu0 %v1040, 64
        %v1287 = vpop.permute.xlu0 %1286
        %1288 = vrot.lane.b32.xlu0 %v1042, 64
        %v1289 = vpop.permute.xlu0 %1288
        %1290 = vrot.lane.b32.xlu0 %v1045, 64
        %v1291 = vpop.permute.xlu0 %1290
        %1292 = vrot.lane.b32.xlu0 %v1047, 64
        %v1293 = vpop.permute.xlu0 %1292
        %1294 = vrot.lane.b32.xlu0 %v1050, 64
        %v1295 = vpop.permute.xlu0 %1294
        %1296 = vrot.lane.b32.xlu0 %v1052, 64
        %v1297 = vpop.permute.xlu0 %1296
        %1298 = vrot.lane.b32.xlu0 %v1055, 64
        %v1299 = vpop.permute.xlu0 %1298
        %1300 = vrot.lane.b32.xlu0 %v1057, 64
        %v1301 = vpop.permute.xlu0 %1300
        %1302 = vrot.lane.b32.xlu0 %v1060, 64
        %v1303 = vpop.permute.xlu0 %1302
        %1304 = vrot.lane.b32.xlu0 %v1062, 64
        %v1305 = vpop.permute.xlu0 %1304
        %1306 = vrot.lane.b32.xlu0 %v1065, 64
        %v1307 = vpop.permute.xlu0 %1306
        %1308 = vrot.lane.b32.xlu0 %v1067, 64
        %v1309 = vpop.permute.xlu0 %1308
        %1310 = vrot.lane.b32.xlu0 %v1070, 64
        %v1311 = vpop.permute.xlu0 %1310
        %1312 = vrot.lane.b32.xlu0 %v1072, 64
        %v1313 = vpop.permute.xlu0 %1312
        %1314 = vrot.lane.b32.xlu0 %v1075, 64
        %v1315 = vpop.permute.xlu0 %1314
        %1316 = vrot.lane.b32.xlu0 %v1077, 64
        %v1317 = vpop.permute.xlu0 %1316
        %1318 = vrot.lane.b32.xlu0 %v1080, 64
        %v1319 = vpop.permute.xlu0 %1318
        %1320 = vrot.lane.b32.xlu0 %v1082, 64
        %v1321 = vpop.permute.xlu0 %1320
        %1322 = vrot.lane.b32.xlu0 %v1085, 64
        %v1323 = vpop.permute.xlu0 %1322
        %1324 = vrot.lane.b32.xlu0 %v1087, 64
        %v1325 = vpop.permute.xlu0 %1324
        %1326 = vrot.lane.b32.xlu0 %v1090, 64
        %v1327 = vpop.permute.xlu0 %1326
        %1328 = vrot.lane.b32.xlu0 %v1092, 64
        %v1329 = vpop.permute.xlu0 %1328
        %1330 = vrot.lane.b32.xlu0 %v1095, 64
        %v1331 = vpop.permute.xlu0 %1330
        %1332 = vrot.lane.b32.xlu0 %v1097, 64
        %v1333 = vpop.permute.xlu0 %1332
        %1366 = vrot.lane.b32.xlu0 %v871, 96
        %v1367 = vpop.permute.xlu0 %1366
        %1368 = vrot.lane.b32.xlu0 %v775, 96
        %v1369 = vpop.permute.xlu0 %1368
        %1370 = vrot.lane.b32.xlu0 %v872, 96
        %v1371 = vpop.permute.xlu0 %1370
        %1372 = vrot.lane.b32.xlu0 %v778, 96
        %v1373 = vpop.permute.xlu0 %1372
        %1374 = vrot.lane.b32.xlu0 %v873, 96
        %v1375 = vpop.permute.xlu0 %1374
        %1376 = vrot.lane.b32.xlu0 %v781, 96
        %v1377 = vpop.permute.xlu0 %1376
        %1378 = vrot.lane.b32.xlu0 %v874, 96
        %v1379 = vpop.permute.xlu0 %1378
        %1380 = vrot.lane.b32.xlu0 %v784, 96
        %v1381 = vpop.permute.xlu0 %1380
        %1382 = vrot.lane.b32.xlu0 %v875, 96
        %v1383 = vpop.permute.xlu0 %1382
        %1384 = vrot.lane.b32.xlu0 %v787, 96
        %v1385 = vpop.permute.xlu0 %1384
        %1386 = vrot.lane.b32.xlu0 %v876, 96
        %v1387 = vpop.permute.xlu0 %1386
        %1388 = vrot.lane.b32.xlu0 %v790, 96
        %v1389 = vpop.permute.xlu0 %1388
        %1390 = vrot.lane.b32.xlu0 %v877, 96
        %v1391 = vpop.permute.xlu0 %1390
        %1392 = vrot.lane.b32.xlu0 %v793, 96
        %v1393 = vpop.permute.xlu0 %1392
        %1394 = vrot.lane.b32.xlu0 %v878, 96
        %v1395 = vpop.permute.xlu0 %1394
        %1396 = vrot.lane.b32.xlu0 %v796, 96
        %v1397 = vpop.permute.xlu0 %1396
        %1398 = vrot.lane.b32.xlu0 %v879, 96
        %v1399 = vpop.permute.xlu0 %1398
        %1400 = vrot.lane.b32.xlu0 %v799, 96
        %v1401 = vpop.permute.xlu0 %1400
        %1402 = vrot.lane.b32.xlu0 %v880, 96
        %v1403 = vpop.permute.xlu0 %1402
        %1404 = vrot.lane.b32.xlu0 %v802, 96
        %v1405 = vpop.permute.xlu0 %1404
        %1406 = vrot.lane.b32.xlu0 %v881, 96
        %v1407 = vpop.permute.xlu0 %1406
        %1408 = vrot.lane.b32.xlu0 %v805, 96
        %v1409 = vpop.permute.xlu0 %1408
        %1410 = vrot.lane.b32.xlu0 %v882, 96
        %v1411 = vpop.permute.xlu0 %1410
        %1412 = vrot.lane.b32.xlu0 %v808, 96
        %v1413 = vpop.permute.xlu0 %1412
        %1414 = vrot.lane.b32.xlu0 %v883, 96
        %v1415 = vpop.permute.xlu0 %1414
        %1416 = vrot.lane.b32.xlu0 %v811, 96
        %v1417 = vpop.permute.xlu0 %1416
        %1418 = vrot.lane.b32.xlu0 %v884, 96
        %v1419 = vpop.permute.xlu0 %1418
        %1420 = vrot.lane.b32.xlu0 %v814, 96
        %v1421 = vpop.permute.xlu0 %1420
        %1422 = vrot.lane.b32.xlu0 %v885, 96
        %v1423 = vpop.permute.xlu0 %1422
        %1424 = vrot.lane.b32.xlu0 %v817, 96
        %v1425 = vpop.permute.xlu0 %1424
        %1426 = vrot.lane.b32.xlu0 %v886, 96
        %v1427 = vpop.permute.xlu0 %1426
        %1428 = vrot.lane.b32.xlu0 %v820, 96
        %v1429 = vpop.permute.xlu0 %1428
        %1462 = vrot.lane.b32.xlu0 %v1025, 32
        %v1463 = vpop.permute.xlu0 %1462
        %1464 = vrot.lane.b32.xlu0 %v1027, 32
        %v1465 = vpop.permute.xlu0 %1464
        %1466 = vrot.lane.b32.xlu0 %v1030, 32
        %v1467 = vpop.permute.xlu0 %1466
        %1468 = vrot.lane.b32.xlu0 %v1032, 32
        %v1469 = vpop.permute.xlu0 %1468
        %1470 = vrot.lane.b32.xlu0 %v1035, 32
        %v1471 = vpop.permute.xlu0 %1470
        %1472 = vrot.lane.b32.xlu0 %v1037, 32
        %v1473 = vpop.permute.xlu0 %1472
        %1474 = vrot.lane.b32.xlu0 %v1040, 32
        %v1475 = vpop.permute.xlu0 %1474
        %1476 = vrot.lane.b32.xlu0 %v1042, 32
        %v1477 = vpop.permute.xlu0 %1476
        %1478 = vrot.lane.b32.xlu0 %v1045, 32
        %v1479 = vpop.permute.xlu0 %1478
        %1480 = vrot.lane.b32.xlu0 %v1047, 32
        %v1481 = vpop.permute.xlu0 %1480
        %1482 = vrot.lane.b32.xlu0 %v1050, 32
        %v1483 = vpop.permute.xlu0 %1482
        %1484 = vrot.lane.b32.xlu0 %v1052, 32
        %v1485 = vpop.permute.xlu0 %1484
        %1486 = vrot.lane.b32.xlu0 %v1055, 32
        %v1487 = vpop.permute.xlu0 %1486
        %1488 = vrot.lane.b32.xlu0 %v1057, 32
        %v1489 = vpop.permute.xlu0 %1488
        %1490 = vrot.lane.b32.xlu0 %v1060, 32
        %v1491 = vpop.permute.xlu0 %1490
        %1492 = vrot.lane.b32.xlu0 %v1062, 32
        %v1493 = vpop.permute.xlu0 %1492
        %1494 = vrot.lane.b32.xlu0 %v1065, 32
        %v1495 = vpop.permute.xlu0 %1494
        %1496 = vrot.lane.b32.xlu0 %v1067, 32
        %v1497 = vpop.permute.xlu0 %1496
        %1498 = vrot.lane.b32.xlu0 %v1070, 32
        %v1499 = vpop.permute.xlu0 %1498
        %1500 = vrot.lane.b32.xlu0 %v1072, 32
        %v1501 = vpop.permute.xlu0 %1500
        %1502 = vrot.lane.b32.xlu0 %v1075, 32
        %v1503 = vpop.permute.xlu0 %1502
        %1504 = vrot.lane.b32.xlu0 %v1077, 32
        %v1505 = vpop.permute.xlu0 %1504
        %1506 = vrot.lane.b32.xlu0 %v1080, 32
        %v1507 = vpop.permute.xlu0 %1506
        %1508 = vrot.lane.b32.xlu0 %v1082, 32
        %v1509 = vpop.permute.xlu0 %1508
        %1510 = vrot.lane.b32.xlu0 %v1085, 32
        %v1511 = vpop.permute.xlu0 %1510
        %1512 = vrot.lane.b32.xlu0 %v1087, 32
        %v1513 = vpop.permute.xlu0 %1512
        %1514 = vrot.lane.b32.xlu0 %v1090, 32
        %v1515 = vpop.permute.xlu0 %1514
        %1516 = vrot.lane.b32.xlu0 %v1092, 32
        %v1517 = vpop.permute.xlu0 %1516
        %1518 = vrot.lane.b32.xlu0 %v1095, 32
        %v1519 = vpop.permute.xlu0 %1518
        %1520 = vrot.lane.b32.xlu0 %v1097, 32
        %v1521 = vpop.permute.xlu0 %1520
        %1522 = vrot.lane.b32.xlu0 %v1139, 32
        %v1523 = vpop.permute.xlu0 %1522
        %1524 = vrot.lane.b32.xlu0 %v1141, 32
        %v1525 = vpop.permute.xlu0 %1524
        %1558 = vrot.lane.b32.xlu0 %v872, 64
        %v1559 = vpop.permute.xlu0 %1558
        %1560 = vrot.lane.b32.xlu0 %v778, 64
        %v1561 = vpop.permute.xlu0 %1560
        %1562 = vrot.lane.b32.xlu0 %v873, 64
        %v1563 = vpop.permute.xlu0 %1562
        %1564 = vrot.lane.b32.xlu0 %v781, 64
        %v1565 = vpop.permute.xlu0 %1564
        %1566 = vrot.lane.b32.xlu0 %v874, 64
        %v1567 = vpop.permute.xlu0 %1566
        %1568 = vrot.lane.b32.xlu0 %v784, 64
        %v1569 = vpop.permute.xlu0 %1568
        %1570 = vrot.lane.b32.xlu0 %v875, 64
        %v1571 = vpop.permute.xlu0 %1570
        %1572 = vrot.lane.b32.xlu0 %v787, 64
        %v1573 = vpop.permute.xlu0 %1572
        %1574 = vrot.lane.b32.xlu0 %v876, 64
        %v1575 = vpop.permute.xlu0 %1574
        %1576 = vrot.lane.b32.xlu0 %v790, 64
        %v1577 = vpop.permute.xlu0 %1576
        %1578 = vrot.lane.b32.xlu0 %v877, 64
        %v1579 = vpop.permute.xlu0 %1578
        %1580 = vrot.lane.b32.xlu0 %v793, 64
        %v1581 = vpop.permute.xlu0 %1580
        %1582 = vrot.lane.b32.xlu0 %v878, 64
        %v1583 = vpop.permute.xlu0 %1582
        %1584 = vrot.lane.b32.xlu0 %v796, 64
        %v1585 = vpop.permute.xlu0 %1584
        %1586 = vrot.lane.b32.xlu0 %v879, 64
        %v1587 = vpop.permute.xlu0 %1586
        %1588 = vrot.lane.b32.xlu0 %v799, 64
        %v1589 = vpop.permute.xlu0 %1588
        %1590 = vrot.lane.b32.xlu0 %v880, 64
        %v1591 = vpop.permute.xlu0 %1590
        %1592 = vrot.lane.b32.xlu0 %v802, 64
        %v1593 = vpop.permute.xlu0 %1592
        %1594 = vrot.lane.b32.xlu0 %v881, 64
        %v1595 = vpop.permute.xlu0 %1594
        %1596 = vrot.lane.b32.xlu0 %v805, 64
        %v1597 = vpop.permute.xlu0 %1596
        %1598 = vrot.lane.b32.xlu0 %v882, 64
        %v1599 = vpop.permute.xlu0 %1598
        %1600 = vrot.lane.b32.xlu0 %v808, 64
        %v1601 = vpop.permute.xlu0 %1600
        %1602 = vrot.lane.b32.xlu0 %v883, 64
        %v1603 = vpop.permute.xlu0 %1602
        %1604 = vrot.lane.b32.xlu0 %v811, 64
        %v1605 = vpop.permute.xlu0 %1604
        %1606 = vrot.lane.b32.xlu0 %v884, 64
        %v1607 = vpop.permute.xlu0 %1606
        %1608 = vrot.lane.b32.xlu0 %v814, 64
        %v1609 = vpop.permute.xlu0 %1608
        %1610 = vrot.lane.b32.xlu0 %v885, 64
        %v1611 = vpop.permute.xlu0 %1610
        %1612 = vrot.lane.b32.xlu0 %v817, 64
        %v1613 = vpop.permute.xlu0 %1612
        %1614 = vrot.lane.b32.xlu0 %v886, 64
        %v1615 = vpop.permute.xlu0 %1614
        %1616 = vrot.lane.b32.xlu0 %v820, 64
        %v1617 = vpop.permute.xlu0 %1616
        %1618 = vrot.lane.b32.xlu0 %v870, 64
        %v1619 = vpop.permute.xlu0 %1618
        %1620 = vrot.lane.b32.xlu0 %v772, 64
        %v1621 = vpop.permute.xlu0 %1620
        %1654 = vrot.lane.b32.xlu0 %v949, 96
        %v1655 = vpop.permute.xlu0 %1654
        %1656 = vrot.lane.b32.xlu0 %v951, 96
        %v1657 = vpop.permute.xlu0 %1656
        %1658 = vrot.lane.b32.xlu0 %v954, 96
        %v1659 = vpop.permute.xlu0 %1658
        %1660 = vrot.lane.b32.xlu0 %v956, 96
        %v1661 = vpop.permute.xlu0 %1660
        %1662 = vrot.lane.b32.xlu0 %v959, 96
        %v1663 = vpop.permute.xlu0 %1662
        %1664 = vrot.lane.b32.xlu0 %v961, 96
        %v1665 = vpop.permute.xlu0 %1664
        %1666 = vrot.lane.b32.xlu0 %v964, 96
        %v1667 = vpop.permute.xlu0 %1666
        %1668 = vrot.lane.b32.xlu0 %v966, 96
        %v1669 = vpop.permute.xlu0 %1668
        %1670 = vrot.lane.b32.xlu0 %v969, 96
        %v1671 = vpop.permute.xlu0 %1670
        %1672 = vrot.lane.b32.xlu0 %v971, 96
        %v1673 = vpop.permute.xlu0 %1672
        %1674 = vrot.lane.b32.xlu0 %v974, 96
        %v1675 = vpop.permute.xlu0 %1674
        %1676 = vrot.lane.b32.xlu0 %v976, 96
        %v1677 = vpop.permute.xlu0 %1676
        %1678 = vrot.lane.b32.xlu0 %v979, 96
        %v1679 = vpop.permute.xlu0 %1678
        %1680 = vrot.lane.b32.xlu0 %v981, 96
        %v1681 = vpop.permute.xlu0 %1680
        %1682 = vrot.lane.b32.xlu0 %v984, 96
        %v1683 = vpop.permute.xlu0 %1682
        %1684 = vrot.lane.b32.xlu0 %v986, 96
        %v1685 = vpop.permute.xlu0 %1684
        %1686 = vrot.lane.b32.xlu0 %v989, 96
        %v1687 = vpop.permute.xlu0 %1686
        %1688 = vrot.lane.b32.xlu0 %v991, 96
        %v1689 = vpop.permute.xlu0 %1688
        %1690 = vrot.lane.b32.xlu0 %v994, 96
        %v1691 = vpop.permute.xlu0 %1690
        %1692 = vrot.lane.b32.xlu0 %v996, 96
        %v1693 = vpop.permute.xlu0 %1692
        %1694 = vrot.lane.b32.xlu0 %v999, 96
        %v1695 = vpop.permute.xlu0 %1694
        %1696 = vrot.lane.b32.xlu0 %v1001, 96
        %v1697 = vpop.permute.xlu0 %1696
        %1698 = vrot.lane.b32.xlu0 %v1004, 96
        %v1699 = vpop.permute.xlu0 %1698
        %1700 = vrot.lane.b32.xlu0 %v1006, 96
        %v1701 = vpop.permute.xlu0 %1700
        %1702 = vrot.lane.b32.xlu0 %v1009, 96
        %v1703 = vpop.permute.xlu0 %1702
        %1704 = vrot.lane.b32.xlu0 %v1011, 96
        %v1705 = vpop.permute.xlu0 %1704
        %1706 = vrot.lane.b32.xlu0 %v1014, 96
        %v1707 = vpop.permute.xlu0 %1706
        %1708 = vrot.lane.b32.xlu0 %v1016, 96
        %v1709 = vpop.permute.xlu0 %1708
        %1710 = vrot.lane.b32.xlu0 %v1102, 96
        %v1711 = vpop.permute.xlu0 %1710
        %1712 = vrot.lane.b32.xlu0 %v1104, 96
        %v1713 = vpop.permute.xlu0 %1712
        %1714 = vrot.lane.b32.xlu0 %v939, 96
        %v1715 = vpop.permute.xlu0 %1714
        %1716 = vrot.lane.b32.xlu0 %v941, 96
        %v1717 = vpop.permute.xlu0 %1716
        %vm1750 = vcmask 261120
        %v1751 = vsel %vm1750, %v870, %v1175
        %v1752 = vsel %vm1750, %v772, %v1177
        %v1753 = vsel %vm1750, %v871, %v1179
        %v1754 = vsel %vm1750, %v775, %v1181
        %v1755 = vsel %vm1750, %v872, %v1183
        %v1756 = vsel %vm1750, %v778, %v1185
        %v1757 = vsel %vm1750, %v873, %v1187
        %v1758 = vsel %vm1750, %v781, %v1189
        %v1759 = vsel %vm1750, %v874, %v1191
        %v1760 = vsel %vm1750, %v784, %v1193
        %v1761 = vsel %vm1750, %v875, %v1195
        %v1762 = vsel %vm1750, %v787, %v1197
        %v1763 = vsel %vm1750, %v876, %v1199
        %v1764 = vsel %vm1750, %v790, %v1201
        %v1765 = vsel %vm1750, %v877, %v1203
        %v1766 = vsel %vm1750, %v793, %v1205
        %v1767 = vsel %vm1750, %v878, %v1207
        %v1768 = vsel %vm1750, %v796, %v1209
        %v1769 = vsel %vm1750, %v879, %v1211
        %v1770 = vsel %vm1750, %v799, %v1213
        %v1771 = vsel %vm1750, %v880, %v1215
        %v1772 = vsel %vm1750, %v802, %v1217
        %v1773 = vsel %vm1750, %v881, %v1219
        %v1774 = vsel %vm1750, %v805, %v1221
        %v1775 = vsel %vm1750, %v882, %v1223
        %v1776 = vsel %vm1750, %v808, %v1225
        %v1777 = vsel %vm1750, %v883, %v1227
        %v1778 = vsel %vm1750, %v811, %v1229
        %v1779 = vsel %vm1750, %v884, %v1231
        %v1780 = vsel %vm1750, %v814, %v1233
        %v1781 = vsel %vm1750, %v885, %v1235
        %v1782 = vsel %vm1750, %v817, %v1237
        %vm1783 = vcmask 523264
        %v1784 = vsel %vm1783, %v1751, %v1271
        %v1785 = vsel %vm1783, %v1752, %v1273
        %v1786 = vsel %vm1783, %v1753, %v1275
        %v1787 = vsel %vm1783, %v1754, %v1277
        %v1788 = vsel %vm1783, %v1755, %v1279
        %v1789 = vsel %vm1783, %v1756, %v1281
        %v1790 = vsel %vm1783, %v1757, %v1283
        %v1791 = vsel %vm1783, %v1758, %v1285
        %v1792 = vsel %vm1783, %v1759, %v1287
        %v1793 = vsel %vm1783, %v1760, %v1289
        %v1794 = vsel %vm1783, %v1761, %v1291
        %v1795 = vsel %vm1783, %v1762, %v1293
        %v1796 = vsel %vm1783, %v1763, %v1295
        %v1797 = vsel %vm1783, %v1764, %v1297
        %v1798 = vsel %vm1783, %v1765, %v1299
        %v1799 = vsel %vm1783, %v1766, %v1301
        %v1800 = vsel %vm1783, %v1767, %v1303
        %v1801 = vsel %vm1783, %v1768, %v1305
        %v1802 = vsel %vm1783, %v1769, %v1307
        %v1803 = vsel %vm1783, %v1770, %v1309
        %v1804 = vsel %vm1783, %v1771, %v1311
        %v1805 = vsel %vm1783, %v1772, %v1313
        %v1806 = vsel %vm1783, %v1773, %v1315
        %v1807 = vsel %vm1783, %v1774, %v1317
        %v1808 = vsel %vm1783, %v1775, %v1319
        %v1809 = vsel %vm1783, %v1776, %v1321
        %v1810 = vsel %vm1783, %v1777, %v1323
        %v1811 = vsel %vm1783, %v1778, %v1325
        %v1812 = vsel %vm1783, %v1779, %v1327
        %v1813 = vsel %vm1783, %v1780, %v1329
        %v1814 = vsel %vm1783, %v1781, %v1331
        %v1815 = vsel %vm1783, %v1782, %v1333
        %vm1816 = vcmask 785408
        %v1817 = vsel %vm1816, %v1784, %v1367
        %v1818 = vsel %vm1816, %v1785, %v1369
        %v1819 = vsel %vm1816, %v1786, %v1371
        %v1820 = vsel %vm1816, %v1787, %v1373
        %v1821 = vsel %vm1816, %v1788, %v1375
        %v1822 = vsel %vm1816, %v1789, %v1377
        %v1823 = vsel %vm1816, %v1790, %v1379
        %v1824 = vsel %vm1816, %v1791, %v1381
        %v1825 = vsel %vm1816, %v1792, %v1383
        %v1826 = vsel %vm1816, %v1793, %v1385
        %v1827 = vsel %vm1816, %v1794, %v1387
        %v1828 = vsel %vm1816, %v1795, %v1389
        %v1829 = vsel %vm1816, %v1796, %v1391
        %v1830 = vsel %vm1816, %v1797, %v1393
        %v1831 = vsel %vm1816, %v1798, %v1395
        %v1832 = vsel %vm1816, %v1799, %v1397
        %v1833 = vsel %vm1816, %v1800, %v1399
        %v1834 = vsel %vm1816, %v1801, %v1401
        %v1835 = vsel %vm1816, %v1802, %v1403
        %v1836 = vsel %vm1816, %v1803, %v1405
        %v1837 = vsel %vm1816, %v1804, %v1407
        %v1838 = vsel %vm1816, %v1805, %v1409
        %v1839 = vsel %vm1816, %v1806, %v1411
        %v1840 = vsel %vm1816, %v1807, %v1413
        %v1841 = vsel %vm1816, %v1808, %v1415
        %v1842 = vsel %vm1816, %v1809, %v1417
        %v1843 = vsel %vm1816, %v1810, %v1419
        %v1844 = vsel %vm1816, %v1811, %v1421
        %v1845 = vsel %vm1816, %v1812, %v1423
        %v1846 = vsel %vm1816, %v1813, %v1425
        %v1847 = vsel %vm1816, %v1814, %v1427
        %v1848 = vsel %vm1816, %v1815, %v1429
        %v1849 = vsel %vm1750, %v944, %v1463
        %v1850 = vsel %vm1750, %v946, %v1465
        %v1851 = vsel %vm1750, %v949, %v1467
        %v1852 = vsel %vm1750, %v951, %v1469
        %v1853 = vsel %vm1750, %v954, %v1471
        %v1854 = vsel %vm1750, %v956, %v1473
        %v1855 = vsel %vm1750, %v959, %v1475
        %v1856 = vsel %vm1750, %v961, %v1477
        %v1857 = vsel %vm1750, %v964, %v1479
        %v1858 = vsel %vm1750, %v966, %v1481
        %v1859 = vsel %vm1750, %v969, %v1483
        %v1860 = vsel %vm1750, %v971, %v1485
        %v1861 = vsel %vm1750, %v974, %v1487
        %v1862 = vsel %vm1750, %v976, %v1489
        %v1863 = vsel %vm1750, %v979, %v1491
        %v1864 = vsel %vm1750, %v981, %v1493
        %v1865 = vsel %vm1750, %v984, %v1495
        %v1866 = vsel %vm1750, %v986, %v1497
        %v1867 = vsel %vm1750, %v989, %v1499
        %v1868 = vsel %vm1750, %v991, %v1501
        %v1869 = vsel %vm1750, %v994, %v1503
        %v1870 = vsel %vm1750, %v996, %v1505
        %v1871 = vsel %vm1750, %v999, %v1507
        %v1872 = vsel %vm1750, %v1001, %v1509
        %v1873 = vsel %vm1750, %v1004, %v1511
        %v1874 = vsel %vm1750, %v1006, %v1513
        %v1875 = vsel %vm1750, %v1009, %v1515
        %v1876 = vsel %vm1750, %v1011, %v1517
        %v1877 = vsel %vm1750, %v1014, %v1519
        %v1878 = vsel %vm1750, %v1016, %v1521
        %v1879 = vsel %vm1750, %v1102, %v1523
        %v1880 = vsel %vm1750, %v1104, %v1525
        %v1881 = vsel %vm1783, %v1849, %v1559
        %v1882 = vsel %vm1783, %v1850, %v1561
        %v1883 = vsel %vm1783, %v1851, %v1563
        %v1884 = vsel %vm1783, %v1852, %v1565
        %v1885 = vsel %vm1783, %v1853, %v1567
        %v1886 = vsel %vm1783, %v1854, %v1569
        %v1887 = vsel %vm1783, %v1855, %v1571
        %v1888 = vsel %vm1783, %v1856, %v1573
        %v1889 = vsel %vm1783, %v1857, %v1575
        %v1890 = vsel %vm1783, %v1858, %v1577
        %v1891 = vsel %vm1783, %v1859, %v1579
        %v1892 = vsel %vm1783, %v1860, %v1581
        %v1893 = vsel %vm1783, %v1861, %v1583
        %v1894 = vsel %vm1783, %v1862, %v1585
        %v1895 = vsel %vm1783, %v1863, %v1587
        %v1896 = vsel %vm1783, %v1864, %v1589
        %v1897 = vsel %vm1783, %v1865, %v1591
        %v1898 = vsel %vm1783, %v1866, %v1593
        %v1899 = vsel %vm1783, %v1867, %v1595
        %v1900 = vsel %vm1783, %v1868, %v1597
        %v1901 = vsel %vm1783, %v1869, %v1599
        %v1902 = vsel %vm1783, %v1870, %v1601
        %v1903 = vsel %vm1783, %v1871, %v1603
        %v1904 = vsel %vm1783, %v1872, %v1605
        %v1905 = vsel %vm1783, %v1873, %v1607
        %v1906 = vsel %vm1783, %v1874, %v1609
        %v1907 = vsel %vm1783, %v1875, %v1611
        %v1908 = vsel %vm1783, %v1876, %v1613
        %v1909 = vsel %vm1783, %v1877, %v1615
        %v1910 = vsel %vm1783, %v1878, %v1617
        %v1911 = vsel %vm1783, %v1879, %v1619
        %v1912 = vsel %vm1783, %v1880, %v1621
        %v1913 = vsel %vm1816, %v1881, %v1655
        %v1914 = vsel %vm1816, %v1882, %v1657
        %v1915 = vsel %vm1816, %v1883, %v1659
        %v1916 = vsel %vm1816, %v1884, %v1661
        %v1917 = vsel %vm1816, %v1885, %v1663
        %v1918 = vsel %vm1816, %v1886, %v1665
        %v1919 = vsel %vm1816, %v1887, %v1667
        %v1920 = vsel %vm1816, %v1888, %v1669
        %v1921 = vsel %vm1816, %v1889, %v1671
        %v1922 = vsel %vm1816, %v1890, %v1673
        %v1923 = vsel %vm1816, %v1891, %v1675
        %v1924 = vsel %vm1816, %v1892, %v1677
        %v1925 = vsel %vm1816, %v1893, %v1679
        %v1926 = vsel %vm1816, %v1894, %v1681
        %v1927 = vsel %vm1816, %v1895, %v1683
        %v1928 = vsel %vm1816, %v1896, %v1685
        %v1929 = vsel %vm1816, %v1897, %v1687
        %v1930 = vsel %vm1816, %v1898, %v1689
        %v1931 = vsel %vm1816, %v1899, %v1691
        %v1932 = vsel %vm1816, %v1900, %v1693
        %v1933 = vsel %vm1816, %v1901, %v1695
        %v1934 = vsel %vm1816, %v1902, %v1697
        %v1935 = vsel %vm1816, %v1903, %v1699
        %v1936 = vsel %vm1816, %v1904, %v1701
        %v1937 = vsel %vm1816, %v1905, %v1703
        %v1938 = vsel %vm1816, %v1906, %v1705
        %v1939 = vsel %vm1816, %v1907, %v1707
        %v1940 = vsel %vm1816, %v1908, %v1709
        %v1941 = vsel %vm1816, %v1909, %v1711
        %v1942 = vsel %vm1816, %v1910, %v1713
        %v1943 = vsel %vm1816, %v1911, %v1715
        %v1944 = vsel %vm1816, %v1912, %v1717
        %v1945 = vpack.c.bf16 %v1818, %v1817
        %v1946 = vpack.c.bf16 %v1914, %v1913
        %v1947 = vpack.c.bf16 %v1032, %v1030
        %v1948 = vpack.c.bf16 %v1820, %v1819
        %v1949 = vpack.c.bf16 %v1916, %v1915
        %v1950 = vpack.c.bf16 %v1037, %v1035
        %v1951 = vpack.c.bf16 %v1822, %v1821
        %v1952 = vpack.c.bf16 %v1918, %v1917
        %v1953 = vpack.c.bf16 %v1042, %v1040
        %v1954 = vpack.c.bf16 %v1824, %v1823
        %v1955 = vpack.c.bf16 %v1920, %v1919
        %v1956 = vpack.c.bf16 %v1047, %v1045
        %v1957 = vpack.c.bf16 %v1826, %v1825
        %v1958 = vpack.c.bf16 %v1922, %v1921
        %v1959 = vpack.c.bf16 %v1052, %v1050
        %v1960 = vpack.c.bf16 %v1828, %v1827
        %v1961 = vpack.c.bf16 %v1924, %v1923
        %v1962 = vpack.c.bf16 %v1057, %v1055
        %v1963 = vpack.c.bf16 %v1830, %v1829
        %v1964 = vpack.c.bf16 %v1926, %v1925
        %v1965 = vpack.c.bf16 %v1062, %v1060
        %v1966 = vpack.c.bf16 %v1832, %v1831
        %v1967 = vpack.c.bf16 %v1928, %v1927
        %v1968 = vpack.c.bf16 %v1067, %v1065
        %v1969 = vpack.c.bf16 %v1834, %v1833
        %v1970 = vpack.c.bf16 %v1930, %v1929
        %v1971 = vpack.c.bf16 %v1072, %v1070
        %v1972 = vpack.c.bf16 %v1836, %v1835
        %v1973 = vpack.c.bf16 %v1932, %v1931
        %v1974 = vpack.c.bf16 %v1077, %v1075
        %v1975 = vpack.c.bf16 %v1838, %v1837
        %v1976 = vpack.c.bf16 %v1934, %v1933
        %v1977 = vpack.c.bf16 %v1082, %v1080
        %v1978 = vpack.c.bf16 %v1840, %v1839
        %v1979 = vpack.c.bf16 %v1936, %v1935
        %v1980 = vpack.c.bf16 %v1087, %v1085
        %v1981 = vpack.c.bf16 %v1842, %v1841
        %v1982 = vpack.c.bf16 %v1938, %v1937
        %v1983 = vpack.c.bf16 %v1092, %v1090
        %v1984 = vpack.c.bf16 %v1844, %v1843
        %v1985 = vpack.c.bf16 %v1940, %v1939
        %v1986 = vpack.c.bf16 %v1097, %v1095
        %v1987 = vpack.c.bf16 %v1846, %v1845
        %v1988 = vpack.c.bf16 %v1942, %v1941
        %v1989 = vpack.c.bf16 %v1141, %v1139
        %v1990 = vpack.c.bf16 %v1848, %v1847
        %v1991 = vpack.c.bf16 %v1944, %v1943
        %v1992 = vpack.c.bf16 %v1022, %v1020
        %v1993 = vld [vmem:[%s4] sm:$0xf]
        %v1994 = vld [vmem:[%s4 + $0x4] sm:$0xf]
        %v1995 = vld [vmem:[%s4 + $0x8] sm:$0xf]
        %v1996 = vld [vmem:[%s4 + $0xc] sm:$0xf]
        %v1997 = vld [vmem:[%s4 + $0x10] sm:$0xf]
        %v1998 = vld [vmem:[%s4 + $0x14] sm:$0xf]
        %v1999 = vld [vmem:[%s4 + $0x18] sm:$0xf]
        %v2000 = vld [vmem:[%s4 + $0x1c] sm:$0xf]
        %v2001 = vld [vmem:[%s4 + $0x20] sm:$0xf]
        %v2002 = vld [vmem:[%s4 + $0x24] sm:$0xf]
        %v2003 = vld [vmem:[%s4 + $0x28] sm:$0xf]
        %v2004 = vld [vmem:[%s4 + $0x2c] sm:$0xf]
        %v2005 = vld [vmem:[%s4 + $0x30] sm:$0xf]
        %v2006 = vld [vmem:[%s4 + $0x34] sm:$0xf]
        %v2007 = vld [vmem:[%s4 + $0x38] sm:$0xf]
        %v2008 = vld [vmem:[%s4 + $0x3c] sm:$0xf]
        %v2009 = vld [vmem:[%s4 + $0x40] sm:$0xf]
        %v2010 = vld [vmem:[%s4 + $0x44] sm:$0xf]
        %v2011 = vld [vmem:[%s4 + $0x48] sm:$0xf]
        %v2012 = vld [vmem:[%s4 + $0x4c] sm:$0xf]
        %v2013 = vld [vmem:[%s4 + $0x50] sm:$0xf]
        %v2014 = vld [vmem:[%s4 + $0x54] sm:$0xf]
        %v2015 = vld [vmem:[%s4 + $0x58] sm:$0xf]
        %v2016 = vld [vmem:[%s4 + $0x5c] sm:$0xf]
        %v2017 = vld [vmem:[%s4 + $0x60] sm:$0xf]
        %v2018 = vld [vmem:[%s4 + $0x64] sm:$0xf]
        %v2019 = vld [vmem:[%s4 + $0x68] sm:$0xf]
        %v2020 = vld [vmem:[%s4 + $0x6c] sm:$0xf]
        %v2021 = vld [vmem:[%s4 + $0x70] sm:$0xf]
        %v2022 = vld [vmem:[%s4 + $0x74] sm:$0xf]
        %v2023 = vld [vmem:[%s4 + $0x78] sm:$0xf]
        %v2024 = vld [vmem:[%s4 + $0x7c] sm:$0xf]
        %v2025 = vld [vmem:[%s4 + $0x80] sm:$0xf]
        %v2026 = vld [vmem:[%s4 + $0x84] sm:$0xf]
        %v2027 = vld [vmem:[%s4 + $0x88] sm:$0xf]
        %v2028 = vld [vmem:[%s4 + $0x8c] sm:$0xf]
        %v2029 = vld [vmem:[%s5] sm:$0x1]
        %v2031 = vperm.slane %v2029, 0
        %v2069 = vunpack.c.l.b16 %v1993
        %v2070 = vunpack.c.l.b16 %v1994
        %v2071 = vunpack.c.l.b16 %v1995
        %v2072 = vunpack.c.l.b16 %v1996
        %v2073 = vunpack.c.l.b16 %v1997
        %v2074 = vunpack.c.l.b16 %v1998
        %v2075 = vunpack.c.l.b16 %v1999
        %v2076 = vunpack.c.l.b16 %v2000
        %v2077 = vunpack.c.l.b16 %v2001
        %v2078 = vunpack.c.l.b16 %v2002
        %v2079 = vunpack.c.l.b16 %v2003
        %v2080 = vunpack.c.l.b16 %v2004
        %v2081 = vunpack.c.l.b16 %v2005
        %v2082 = vunpack.c.l.b16 %v2006
        %v2083 = vunpack.c.l.b16 %v2007
        %v2084 = vunpack.c.l.b16 %v2008
        %v2085 = vunpack.c.l.b16 %v2009
        %v2086 = vunpack.c.l.b16 %v2010
        %v2087 = vunpack.c.l.b16 %v2011
        %v2088 = vunpack.c.l.b16 %v2012
        %v2089 = vunpack.c.l.b16 %v2013
        %v2090 = vunpack.c.l.b16 %v2014
        %v2091 = vunpack.c.l.b16 %v2015
        %v2092 = vunpack.c.l.b16 %v2016
        %v2093 = vunpack.c.l.b16 %v2017
        %v2094 = vunpack.c.l.b16 %v2018
        %v2095 = vunpack.c.l.b16 %v2019
        %v2096 = vunpack.c.l.b16 %v2020
        %v2097 = vunpack.c.l.b16 %v2021
        %v2098 = vunpack.c.l.b16 %v2022
        %v2099 = vunpack.c.l.b16 %v2023
        %v2100 = vunpack.c.l.b16 %v2024
        %v2101 = vunpack.c.l.b16 %v2025
        %v2102 = vunpack.c.l.b16 %v2026
        %v2103 = vunpack.c.l.b16 %v2027
        %v2104 = vunpack.c.l.b16 %v2028
        %v2105 = vpack.c.b16 %v2070, %v2069
        %v2106 = vpack.c.b16 %v2072, %v2071
        %v2107 = vpack.c.b16 %v2074, %v2073
        %v2108 = vpack.c.b16 %v2076, %v2075
        %v2109 = vpack.c.b16 %v2078, %v2077
        %v2110 = vpack.c.b16 %v2080, %v2079
        %v2111 = vpack.c.b16 %v2082, %v2081
        %v2112 = vpack.c.b16 %v2084, %v2083
        %v2113 = vpack.c.b16 %v2086, %v2085
        %v2114 = vpack.c.b16 %v2088, %v2087
        %v2115 = vpack.c.b16 %v2090, %v2089
        %v2116 = vpack.c.b16 %v2092, %v2091
        %v2117 = vpack.c.b16 %v2094, %v2093
        %v2118 = vpack.c.b16 %v2096, %v2095
        %v2119 = vpack.c.b16 %v2098, %v2097
        %v2120 = vpack.c.b16 %v2100, %v2099
        %v2121 = vpack.c.b16 %v2102, %v2101
        %v2122 = vpack.c.b16 %v2104, %v2103
        %v2142 = vsel %vm1750, %v1947, 0
        %v2145 = vsel %vm1750, %v1950, 0
        %v2148 = vsel %vm1750, %v1953, 0
        %v2151 = vsel %vm1750, %v1956, 0
        %v2154 = vsel %vm1750, %v1959, 0
        %v2157 = vsel %vm1750, %v1962, 0
        %v2160 = vsel %vm1750, %v1965, 0
        %v2163 = vsel %vm1750, %v1968, 0
        %v2166 = vsel %vm1750, %v1971, 0
        %v2169 = vsel %vm1750, %v1974, 0
        %v2172 = vsel %vm1750, %v1977, 0
        %v2175 = vsel %vm1750, %v1980, 0
        %v2178 = vsel %vm1750, %v1983, 0
        %v2181 = vsel %vm1750, %v1986, 0
        %v2184 = vsel %vm1750, %v1989, 0
        %v2187 = vsel %vm1750, %v1992, 0
        %2189 = vmatpush.bf16.msra.mxu0 %v2112
        %2190 = vmatpush.bf16.msra.mxu0 %v2111
        %2191 = vmatpush.bf16.msra.mxu0 %v2110
        %2192 = vmatpush.bf16.msra.mxu0 %v2109
        %2193 = vmatpush.bf16.msra.mxu0 %v2108
        %2194 = vmatpush.bf16.msra.mxu0 %v2107
        %2195 = vmatpush.bf16.msra.mxu0 %v2106
        %2196 = vmatpush.bf16.msra.mxu0 %v2105
        %2197 = vmatmul.bf16.gmra.mxu0 %v1945
        %v2198 = vpop.f32.mrf.mxu0
        %v2199 = vadd.f32 %v2031, %v2198
        %v2200 = vpop.f32.mrf.mxu0
        %v2201 = vadd.f32 %v2031, %v2200
        %2202 = vmatmul.bf16.gmra.mxu0 %v1948
        %v2203 = vpop.f32.mrf.mxu0
        %v2204 = vadd.f32 %v2031, %v2203
        %v2205 = vpop.f32.mrf.mxu0
        %v2206 = vadd.f32 %v2031, %v2205
        %2207 = vmatmul.bf16.gmra.mxu0 %v1951
        %v2208 = vpop.f32.mrf.mxu0
        %v2209 = vadd.f32 %v2031, %v2208
        %v2210 = vpop.f32.mrf.mxu0
        %v2211 = vadd.f32 %v2031, %v2210
        %2212 = vmatmul.bf16.gmra.mxu0 %v1954
        %v2213 = vpop.f32.mrf.mxu0
        %v2214 = vadd.f32 %v2031, %v2213
        %v2215 = vpop.f32.mrf.mxu0
        %v2216 = vadd.f32 %v2031, %v2215
        %2217 = vmatmul.bf16.gmra.mxu0 %v1957
        %v2218 = vpop.f32.mrf.mxu0
        %v2219 = vadd.f32 %v2031, %v2218
        %v2220 = vpop.f32.mrf.mxu0
        %v2221 = vadd.f32 %v2031, %v2220
        %2222 = vmatmul.bf16.gmra.mxu0 %v1960
        %v2223 = vpop.f32.mrf.mxu0
        %v2224 = vadd.f32 %v2031, %v2223
        %v2225 = vpop.f32.mrf.mxu0
        %v2226 = vadd.f32 %v2031, %v2225
        %2227 = vmatmul.bf16.gmra.mxu0 %v1963
        %v2228 = vpop.f32.mrf.mxu0
        %v2229 = vadd.f32 %v2031, %v2228
        %v2230 = vpop.f32.mrf.mxu0
        %v2231 = vadd.f32 %v2031, %v2230
        %2232 = vmatmul.bf16.gmra.mxu0 %v1966
        %v2233 = vpop.f32.mrf.mxu0
        %v2234 = vadd.f32 %v2031, %v2233
        %v2235 = vpop.f32.mrf.mxu0
        %v2236 = vadd.f32 %v2031, %v2235
        %2237 = vmatmul.bf16.gmra.mxu0 %v1969
        %v2238 = vpop.f32.mrf.mxu0
        %v2239 = vadd.f32 %v2031, %v2238
        %v2240 = vpop.f32.mrf.mxu0
        %v2241 = vadd.f32 %v2031, %v2240
        %2242 = vmatmul.bf16.gmra.mxu0 %v1972
        %v2243 = vpop.f32.mrf.mxu0
        %v2244 = vadd.f32 %v2031, %v2243
        %v2245 = vpop.f32.mrf.mxu0
        %v2246 = vadd.f32 %v2031, %v2245
        %2247 = vmatmul.bf16.gmra.mxu0 %v1975
        %v2248 = vpop.f32.mrf.mxu0
        %v2249 = vadd.f32 %v2031, %v2248
        %v2250 = vpop.f32.mrf.mxu0
        %v2251 = vadd.f32 %v2031, %v2250
        %2252 = vmatmul.bf16.gmra.mxu0 %v1978
        %v2253 = vpop.f32.mrf.mxu0
        %v2254 = vadd.f32 %v2031, %v2253
        %v2255 = vpop.f32.mrf.mxu0
        %v2256 = vadd.f32 %v2031, %v2255
        %2257 = vmatmul.bf16.gmra.mxu0 %v1981
        %v2258 = vpop.f32.mrf.mxu0
        %v2259 = vadd.f32 %v2031, %v2258
        %v2260 = vpop.f32.mrf.mxu0
        %v2261 = vadd.f32 %v2031, %v2260
        %2262 = vmatmul.bf16.gmra.mxu0 %v1984
        %v2263 = vpop.f32.mrf.mxu0
        %v2264 = vadd.f32 %v2031, %v2263
        %v2265 = vpop.f32.mrf.mxu0
        %v2266 = vadd.f32 %v2031, %v2265
        %2267 = vmatmul.bf16.gmra.mxu0 %v1987
        %v2268 = vpop.f32.mrf.mxu0
        %v2269 = vadd.f32 %v2031, %v2268
        %v2270 = vpop.f32.mrf.mxu0
        %v2271 = vadd.f32 %v2031, %v2270
        %2272 = vmatmul.bf16.gmra.mxu0 %v1990
        %v2273 = vpop.f32.mrf.mxu0
        %v2274 = vadd.f32 %v2031, %v2273
        %v2275 = vpop.f32.mrf.mxu0
        %v2276 = vadd.f32 %v2031, %v2275
        %2277 = vdwg.mxu0
        %2278 = vmatpush.bf16.msra.mxu0 %v2120
        %2279 = vmatpush.bf16.msra.mxu0 %v2119
        %2280 = vmatpush.bf16.msra.mxu0 %v2118
        %2281 = vmatpush.bf16.msra.mxu0 %v2117
        %2282 = vmatpush.bf16.msra.mxu0 %v2116
        %2283 = vmatpush.bf16.msra.mxu0 %v2115
        %2284 = vmatpush.bf16.msra.mxu0 %v2114
        %2285 = vmatpush.bf16.msra.mxu0 %v2113
        %2286 = vmatmul.bf16.gmra.mxu0 %v1946
        %v2287 = vpop.f32.mrf.mxu0
        %v2288 = vadd.f32 %v2199, %v2287
        %v2289 = vpop.f32.mrf.mxu0
        %v2290 = vadd.f32 %v2201, %v2289
        %2291 = vmatmul.bf16.gmra.mxu0 %v1949
        %v2292 = vpop.f32.mrf.mxu0
        %v2293 = vadd.f32 %v2204, %v2292
        %v2294 = vpop.f32.mrf.mxu0
        %v2295 = vadd.f32 %v2206, %v2294
        %2296 = vmatmul.bf16.gmra.mxu0 %v1952
        %v2297 = vpop.f32.mrf.mxu0
        %v2298 = vadd.f32 %v2209, %v2297
        %v2299 = vpop.f32.mrf.mxu0
        %v2300 = vadd.f32 %v2211, %v2299
        %2301 = vmatmul.bf16.gmra.mxu0 %v1955
        %v2302 = vpop.f32.mrf.mxu0
        %v2303 = vadd.f32 %v2214, %v2302
        %v2304 = vpop.f32.mrf.mxu0
        %v2305 = vadd.f32 %v2216, %v2304
        %2306 = vmatmul.bf16.gmra.mxu0 %v1958
        %v2307 = vpop.f32.mrf.mxu0
        %v2308 = vadd.f32 %v2219, %v2307
        %v2309 = vpop.f32.mrf.mxu0
        %v2310 = vadd.f32 %v2221, %v2309
        %2311 = vmatmul.bf16.gmra.mxu0 %v1961
        %v2312 = vpop.f32.mrf.mxu0
        %v2313 = vadd.f32 %v2224, %v2312
        %v2314 = vpop.f32.mrf.mxu0
        %v2315 = vadd.f32 %v2226, %v2314
        %2316 = vmatmul.bf16.gmra.mxu0 %v1964
        %v2317 = vpop.f32.mrf.mxu0
        %v2318 = vadd.f32 %v2229, %v2317
        %v2319 = vpop.f32.mrf.mxu0
        %v2320 = vadd.f32 %v2231, %v2319
        %2321 = vmatmul.bf16.gmra.mxu0 %v1967
        %v2322 = vpop.f32.mrf.mxu0
        %v2323 = vadd.f32 %v2234, %v2322
        %v2324 = vpop.f32.mrf.mxu0
        %v2325 = vadd.f32 %v2236, %v2324
        %2326 = vmatmul.bf16.gmra.mxu0 %v1970
        %v2327 = vpop.f32.mrf.mxu0
        %v2328 = vadd.f32 %v2239, %v2327
        %v2329 = vpop.f32.mrf.mxu0
        %v2330 = vadd.f32 %v2241, %v2329
        %2331 = vmatmul.bf16.gmra.mxu0 %v1973
        %v2332 = vpop.f32.mrf.mxu0
        %v2333 = vadd.f32 %v2244, %v2332
        %v2334 = vpop.f32.mrf.mxu0
        %v2335 = vadd.f32 %v2246, %v2334
        %2336 = vmatmul.bf16.gmra.mxu0 %v1976
        %v2337 = vpop.f32.mrf.mxu0
        %v2338 = vadd.f32 %v2249, %v2337
        %v2339 = vpop.f32.mrf.mxu0
        %v2340 = vadd.f32 %v2251, %v2339
        %2341 = vmatmul.bf16.gmra.mxu0 %v1979
        %v2342 = vpop.f32.mrf.mxu0
        %v2343 = vadd.f32 %v2254, %v2342
        %v2344 = vpop.f32.mrf.mxu0
        %v2345 = vadd.f32 %v2256, %v2344
        %2346 = vmatmul.bf16.gmra.mxu0 %v1982
        %v2347 = vpop.f32.mrf.mxu0
        %v2348 = vadd.f32 %v2259, %v2347
        %v2349 = vpop.f32.mrf.mxu0
        %v2350 = vadd.f32 %v2261, %v2349
        %2351 = vmatmul.bf16.gmra.mxu0 %v1985
        %v2352 = vpop.f32.mrf.mxu0
        %v2353 = vadd.f32 %v2264, %v2352
        %v2354 = vpop.f32.mrf.mxu0
        %v2355 = vadd.f32 %v2266, %v2354
        %2356 = vmatmul.bf16.gmra.mxu0 %v1988
        %v2357 = vpop.f32.mrf.mxu0
        %v2358 = vadd.f32 %v2269, %v2357
        %v2359 = vpop.f32.mrf.mxu0
        %v2360 = vadd.f32 %v2271, %v2359
        %2361 = vmatmul.bf16.gmra.mxu0 %v1991
        %v2362 = vpop.f32.mrf.mxu0
        %v2363 = vadd.f32 %v2274, %v2362
        %v2364 = vpop.f32.mrf.mxu0
        %v2365 = vadd.f32 %v2276, %v2364
        %2366 = vdwg.mxu0
        %2367 = vmatpush.bf16.msra.mxu0 0
        %2368 = vmatpush.bf16.msra.mxu0 0
        %2369 = vmatpush.bf16.msra.mxu0 0
        %2370 = vmatpush.bf16.msra.mxu0 0
        %2371 = vmatpush.bf16.msra.mxu0 0
        %2372 = vmatpush.bf16.msra.mxu0 0
        %2373 = vmatpush.bf16.msra.mxu0 %v2122
        %2374 = vmatpush.bf16.msra.mxu0 %v2121
        %2375 = vmatmul.bf16.gmra.mxu0 %v2142
        %v2376 = vpop.f32.mrf.mxu0
        %v2377 = vadd.f32 %v2288, %v2376
        %v2378 = vpop.f32.mrf.mxu0
        %v2379 = vadd.f32 %v2290, %v2378
        %2380 = vmatmul.bf16.gmra.mxu0 %v2145
        %v2381 = vpop.f32.mrf.mxu0
        %v2382 = vadd.f32 %v2293, %v2381
        %v2383 = vpop.f32.mrf.mxu0
        %v2384 = vadd.f32 %v2295, %v2383
        %2385 = vmatmul.bf16.gmra.mxu0 %v2148
        %v2386 = vpop.f32.mrf.mxu0
        %v2387 = vadd.f32 %v2298, %v2386
        %v2388 = vpop.f32.mrf.mxu0
        %v2389 = vadd.f32 %v2300, %v2388
        %2390 = vmatmul.bf16.gmra.mxu0 %v2151
        %v2391 = vpop.f32.mrf.mxu0
        %v2392 = vadd.f32 %v2303, %v2391
        %v2393 = vpop.f32.mrf.mxu0
        %v2394 = vadd.f32 %v2305, %v2393
        %2395 = vmatmul.bf16.gmra.mxu0 %v2154
        %v2396 = vpop.f32.mrf.mxu0
        %v2397 = vadd.f32 %v2308, %v2396
        %v2398 = vpop.f32.mrf.mxu0
        %v2399 = vadd.f32 %v2310, %v2398
        %2400 = vmatmul.bf16.gmra.mxu0 %v2157
        %v2401 = vpop.f32.mrf.mxu0
        %v2402 = vadd.f32 %v2313, %v2401
        %v2403 = vpop.f32.mrf.mxu0
        %v2404 = vadd.f32 %v2315, %v2403
        %2405 = vmatmul.bf16.gmra.mxu0 %v2160
        %v2406 = vpop.f32.mrf.mxu0
        %v2407 = vadd.f32 %v2318, %v2406
        %v2408 = vpop.f32.mrf.mxu0
        %v2409 = vadd.f32 %v2320, %v2408
        %2410 = vmatmul.bf16.gmra.mxu0 %v2163
        %v2411 = vpop.f32.mrf.mxu0
        %v2412 = vadd.f32 %v2323, %v2411
        %v2413 = vpop.f32.mrf.mxu0
        %v2414 = vadd.f32 %v2325, %v2413
        %2415 = vmatmul.bf16.gmra.mxu0 %v2166
        %v2416 = vpop.f32.mrf.mxu0
        %v2417 = vadd.f32 %v2328, %v2416
        %v2418 = vpop.f32.mrf.mxu0
        %v2419 = vadd.f32 %v2330, %v2418
        %2420 = vmatmul.bf16.gmra.mxu0 %v2169
        %v2421 = vpop.f32.mrf.mxu0
        %v2422 = vadd.f32 %v2333, %v2421
        %v2423 = vpop.f32.mrf.mxu0
        %v2424 = vadd.f32 %v2335, %v2423
        %2425 = vmatmul.bf16.gmra.mxu0 %v2172
        %v2426 = vpop.f32.mrf.mxu0
        %v2427 = vadd.f32 %v2338, %v2426
        %v2428 = vpop.f32.mrf.mxu0
        %v2429 = vadd.f32 %v2340, %v2428
        %2430 = vmatmul.bf16.gmra.mxu0 %v2175
        %v2431 = vpop.f32.mrf.mxu0
        %v2432 = vadd.f32 %v2343, %v2431
        %v2433 = vpop.f32.mrf.mxu0
        %v2434 = vadd.f32 %v2345, %v2433
        %2435 = vmatmul.bf16.gmra.mxu0 %v2178
        %v2436 = vpop.f32.mrf.mxu0
        %v2437 = vadd.f32 %v2348, %v2436
        %v2438 = vpop.f32.mrf.mxu0
        %v2439 = vadd.f32 %v2350, %v2438
        %2440 = vmatmul.bf16.gmra.mxu0 %v2181
        %v2441 = vpop.f32.mrf.mxu0
        %v2442 = vadd.f32 %v2353, %v2441
        %v2443 = vpop.f32.mrf.mxu0
        %v2444 = vadd.f32 %v2355, %v2443
        %2445 = vmatmul.bf16.gmra.mxu0 %v2184
        %v2446 = vpop.f32.mrf.mxu0
        %v2447 = vadd.f32 %v2358, %v2446
        %v2448 = vpop.f32.mrf.mxu0
        %v2449 = vadd.f32 %v2360, %v2448
        %2450 = vmatmul.bf16.gmra.mxu0 %v2187
        %v2451 = vpop.f32.mrf.mxu0
        %v2452 = vadd.f32 %v2363, %v2451
        %v2453 = vpop.f32.mrf.mxu0
        %v2454 = vadd.f32 %v2365, %v2453
        %2455 = vdwg.mxu0
        %v2456 = vld [vmem:[%s6] sm:$0xff]
        %v2457 = vld [vmem:[%s6 + $0x8] sm:$0xff]
        %v2458 = vld [vmem:[%s6 + $0x10] sm:$0xff]
        %v2459 = vld [vmem:[%s6 + $0x18] sm:$0xff]
        %v2460 = vld [vmem:[%s6 + $0x20] sm:$0xff]
        %v2461 = vld [vmem:[%s6 + $0x28] sm:$0xff]
        %v2462 = vld [vmem:[%s6 + $0x30] sm:$0xff]
        %v2463 = vld [vmem:[%s6 + $0x38] sm:$0xff]
        %v2464 = vld [vmem:[%s6 + $0x40] sm:$0xff]
        %v2465 = vld [vmem:[%s6 + $0x48] sm:$0xff]
        %v2466 = vld [vmem:[%s6 + $0x50] sm:$0xff]
        %v2467 = vld [vmem:[%s6 + $0x58] sm:$0xff]
        %v2468 = vld [vmem:[%s6 + $0x60] sm:$0xff]
        %v2469 = vld [vmem:[%s6 + $0x68] sm:$0xff]
        %v2470 = vld [vmem:[%s6 + $0x70] sm:$0xff]
        %v2471 = vld [vmem:[%s6 + $0x78] sm:$0xff]
        %v2472 = vld [vmem:[%s6 + $0x80] sm:$0xff]
        %v2473 = vld [vmem:[%s6 + $0x88] sm:$0xff]
        %v2474 = vld [vmem:[%s6 + $0x90] sm:$0xff]
        %v2475 = vld [vmem:[%s6 + $0x98] sm:$0xff]
        %v2476 = vld [vmem:[%s6 + $0xa0] sm:$0xff]
        %v2477 = vld [vmem:[%s6 + $0xa8] sm:$0xff]
        %v2478 = vld [vmem:[%s6 + $0xb0] sm:$0xff]
        %v2479 = vld [vmem:[%s6 + $0xb8] sm:$0xff]
        %v2480 = vld [vmem:[%s6 + $0xc0] sm:$0xff]
        %v2481 = vld [vmem:[%s6 + $0xc8] sm:$0xff]
        %v2482 = vld [vmem:[%s6 + $0xd0] sm:$0xff]
        %v2483 = vld [vmem:[%s6 + $0xd8] sm:$0xff]
        %v2484 = vld [vmem:[%s6 + $0xe0] sm:$0xff]
        %v2485 = vld [vmem:[%s6 + $0xe8] sm:$0xff]
        %v2486 = vld [vmem:[%s6 + $0xf0] sm:$0xff]
        %v2487 = vld [vmem:[%s6 + $0xf8] sm:$0xff]
        %v2488 = vld [vmem:[%s7] sm:$0xff]
        %v2489 = vld [vmem:[%s7 + $0x8] sm:$0xff]
        %v2490 = vld [vmem:[%s7 + $0x10] sm:$0xff]
        %v2491 = vld [vmem:[%s7 + $0x18] sm:$0xff]
        %v2492 = vld [vmem:[%s7 + $0x20] sm:$0xff]
        %v2493 = vld [vmem:[%s7 + $0x28] sm:$0xff]
        %v2494 = vld [vmem:[%s7 + $0x30] sm:$0xff]
        %v2495 = vld [vmem:[%s7 + $0x38] sm:$0xff]
        %v2496 = vld [vmem:[%s7 + $0x40] sm:$0xff]
        %v2497 = vld [vmem:[%s7 + $0x48] sm:$0xff]
        %v2498 = vld [vmem:[%s7 + $0x50] sm:$0xff]
        %v2499 = vld [vmem:[%s7 + $0x58] sm:$0xff]
        %v2500 = vld [vmem:[%s7 + $0x60] sm:$0xff]
        %v2501 = vld [vmem:[%s7 + $0x68] sm:$0xff]
        %v2502 = vld [vmem:[%s7 + $0x70] sm:$0xff]
        %v2503 = vld [vmem:[%s7 + $0x78] sm:$0xff]
        %v2504 = vld [vmem:[%s7 + $0x80] sm:$0xff]
        %v2505 = vld [vmem:[%s7 + $0x88] sm:$0xff]
        %v2506 = vld [vmem:[%s7 + $0x90] sm:$0xff]
        %v2507 = vld [vmem:[%s7 + $0x98] sm:$0xff]
        %v2508 = vld [vmem:[%s7 + $0xa0] sm:$0xff]
        %v2509 = vld [vmem:[%s7 + $0xa8] sm:$0xff]
        %v2510 = vld [vmem:[%s7 + $0xb0] sm:$0xff]
        %v2511 = vld [vmem:[%s7 + $0xb8] sm:$0xff]
        %v2512 = vld [vmem:[%s7 + $0xc0] sm:$0xff]
        %v2513 = vld [vmem:[%s7 + $0xc8] sm:$0xff]
        %v2514 = vld [vmem:[%s7 + $0xd0] sm:$0xff]
        %v2515 = vld [vmem:[%s7 + $0xd8] sm:$0xff]
        %v2516 = vld [vmem:[%s7 + $0xe0] sm:$0xff]
        %v2517 = vld [vmem:[%s7 + $0xe8] sm:$0xff]
        %v2518 = vld [vmem:[%s7 + $0xf0] sm:$0xff]
        %v2519 = vld [vmem:[%s7 + $0xf8] sm:$0xff]
        %v2520 = vsel %vm1750, %v2377, 0.0
        %v2521 = vsel %vm1750, %v2379, 0.0
        %v2522 = vadd.f32 %v2520, %v2521
        %v2523 = vsel %vm1750, %v2382, 0.0
        %v2524 = vadd.f32 %v2522, %v2523
        %v2525 = vsel %vm1750, %v2384, 0.0
        %v2526 = vadd.f32 %v2524, %v2525
        %v2527 = vsel %vm1750, %v2387, 0.0
        %v2528 = vadd.f32 %v2526, %v2527
        %v2529 = vsel %vm1750, %v2389, 0.0
        %v2530 = vadd.f32 %v2528, %v2529
        %v2531 = vsel %vm1750, %v2392, 0.0
        %v2532 = vadd.f32 %v2530, %v2531
        %v2533 = vsel %vm1750, %v2394, 0.0
        %v2534 = vadd.f32 %v2532, %v2533
        %v2535 = vsel %vm1750, %v2397, 0.0
        %v2536 = vadd.f32 %v2534, %v2535
        %v2537 = vsel %vm1750, %v2399, 0.0
        %v2538 = vadd.f32 %v2536, %v2537
        %v2539 = vsel %vm1750, %v2402, 0.0
        %v2540 = vadd.f32 %v2538, %v2539
        %v2541 = vsel %vm1750, %v2404, 0.0
        %v2542 = vadd.f32 %v2540, %v2541
        %v2543 = vsel %vm1750, %v2407, 0.0
        %v2544 = vadd.f32 %v2542, %v2543
        %v2545 = vsel %vm1750, %v2409, 0.0
        %v2546 = vadd.f32 %v2544, %v2545
        %v2547 = vsel %vm1750, %v2412, 0.0
        %v2548 = vadd.f32 %v2546, %v2547
        %v2549 = vsel %vm1750, %v2414, 0.0
        %v2550 = vadd.f32 %v2548, %v2549
        %v2551 = vsel %vm1750, %v2417, 0.0
        %v2552 = vadd.f32 %v2550, %v2551
        %v2553 = vsel %vm1750, %v2419, 0.0
        %v2554 = vadd.f32 %v2552, %v2553
        %v2555 = vsel %vm1750, %v2422, 0.0
        %v2556 = vadd.f32 %v2554, %v2555
        %v2557 = vsel %vm1750, %v2424, 0.0
        %v2558 = vadd.f32 %v2556, %v2557
        %v2559 = vsel %vm1750, %v2427, 0.0
        %v2560 = vadd.f32 %v2558, %v2559
        %v2561 = vsel %vm1750, %v2429, 0.0
        %v2562 = vadd.f32 %v2560, %v2561
        %v2563 = vsel %vm1750, %v2432, 0.0
        %v2564 = vadd.f32 %v2562, %v2563
        %v2565 = vsel %vm1750, %v2434, 0.0
        %v2566 = vadd.f32 %v2564, %v2565
        %v2567 = vsel %vm1750, %v2437, 0.0
        %v2568 = vadd.f32 %v2566, %v2567
        %v2569 = vsel %vm1750, %v2439, 0.0
        %v2570 = vadd.f32 %v2568, %v2569
        %v2571 = vsel %vm1750, %v2442, 0.0
        %v2572 = vadd.f32 %v2570, %v2571
        %v2573 = vsel %vm1750, %v2444, 0.0
        %v2574 = vadd.f32 %v2572, %v2573
        %v2575 = vsel %vm1750, %v2447, 0.0
        %v2576 = vadd.f32 %v2574, %v2575
        %v2577 = vsel %vm1750, %v2449, 0.0
        %v2578 = vadd.f32 %v2576, %v2577
        %v2579 = vsel %vm1750, %v2452, 0.0
        %v2580 = vadd.f32 %v2578, %v2579
        %v2581 = vsel %vm1750, %v2454, 0.0
        %v2582 = vadd.f32 %v2580, %v2581
        %2583 = vadd.xlane.f32.xlu0 %v2582
        %v2584 = vpop.xlane.xlu0 %2583
        %v2585 = vrot.slane %v2584, 4
        %v2586 = vadd.f32 %v2584, %v2585
        %v2587 = vrot.slane %v2586, 2
        %v2588 = vadd.f32 %v2586, %v2587
        %v2589 = vrot.slane %v2588, 1
        %v2590 = vadd.f32 %v2588, %v2589
        %s2591 = vtos %v2590
        %s2592 = smul.f32 %s2591, 0.00012207031
        %v2593 = vmul.f32 %v2377, %v2377
        %v2594 = vmul.f32 %v2379, %v2379
        %v2595 = vmul.f32 %v2382, %v2382
        %v2596 = vmul.f32 %v2384, %v2384
        %v2597 = vmul.f32 %v2387, %v2387
        %v2598 = vmul.f32 %v2389, %v2389
        %v2599 = vmul.f32 %v2392, %v2392
        %v2600 = vmul.f32 %v2394, %v2394
        %v2601 = vmul.f32 %v2397, %v2397
        %v2602 = vmul.f32 %v2399, %v2399
        %v2603 = vmul.f32 %v2402, %v2402
        %v2604 = vmul.f32 %v2404, %v2404
        %v2605 = vmul.f32 %v2407, %v2407
        %v2606 = vmul.f32 %v2409, %v2409
        %v2607 = vmul.f32 %v2412, %v2412
        %v2608 = vmul.f32 %v2414, %v2414
        %v2609 = vmul.f32 %v2417, %v2417
        %v2610 = vmul.f32 %v2419, %v2419
        %v2611 = vmul.f32 %v2422, %v2422
        %v2612 = vmul.f32 %v2424, %v2424
        %v2613 = vmul.f32 %v2427, %v2427
        %v2614 = vmul.f32 %v2429, %v2429
        %v2615 = vmul.f32 %v2432, %v2432
        %v2616 = vmul.f32 %v2434, %v2434
        %v2617 = vmul.f32 %v2437, %v2437
        %v2618 = vmul.f32 %v2439, %v2439
        %v2619 = vmul.f32 %v2442, %v2442
        %v2620 = vmul.f32 %v2444, %v2444
        %v2621 = vmul.f32 %v2447, %v2447
        %v2622 = vmul.f32 %v2449, %v2449
        %v2623 = vmul.f32 %v2452, %v2452
        %v2624 = vmul.f32 %v2454, %v2454
        %v2625 = vsel %vm1750, %v2593, 0.0
        %v2626 = vsel %vm1750, %v2594, 0.0
        %v2627 = vadd.f32 %v2625, %v2626
        %v2628 = vsel %vm1750, %v2595, 0.0
        %v2629 = vadd.f32 %v2627, %v2628
        %v2630 = vsel %vm1750, %v2596, 0.0
        %v2631 = vadd.f32 %v2629, %v2630
        %v2632 = vsel %vm1750, %v2597, 0.0
        %v2633 = vadd.f32 %v2631, %v2632
        %v2634 = vsel %vm1750, %v2598, 0.0
        %v2635 = vadd.f32 %v2633, %v2634
        %v2636 = vsel %vm1750, %v2599, 0.0
        %v2637 = vadd.f32 %v2635, %v2636
        %v2638 = vsel %vm1750, %v2600, 0.0
        %v2639 = vadd.f32 %v2637, %v2638
        %v2640 = vsel %vm1750, %v2601, 0.0
        %v2641 = vadd.f32 %v2639, %v2640
        %v2642 = vsel %vm1750, %v2602, 0.0
        %v2643 = vadd.f32 %v2641, %v2642
        %v2644 = vsel %vm1750, %v2603, 0.0
        %v2645 = vadd.f32 %v2643, %v2644
        %v2646 = vsel %vm1750, %v2604, 0.0
        %v2647 = vadd.f32 %v2645, %v2646
        %v2648 = vsel %vm1750, %v2605, 0.0
        %v2649 = vadd.f32 %v2647, %v2648
        %v2650 = vsel %vm1750, %v2606, 0.0
        %v2651 = vadd.f32 %v2649, %v2650
        %v2652 = vsel %vm1750, %v2607, 0.0
        %v2653 = vadd.f32 %v2651, %v2652
        %v2654 = vsel %vm1750, %v2608, 0.0
        %v2655 = vadd.f32 %v2653, %v2654
        %v2656 = vsel %vm1750, %v2609, 0.0
        %v2657 = vadd.f32 %v2655, %v2656
        %v2658 = vsel %vm1750, %v2610, 0.0
        %v2659 = vadd.f32 %v2657, %v2658
        %v2660 = vsel %vm1750, %v2611, 0.0
        %v2661 = vadd.f32 %v2659, %v2660
        %v2662 = vsel %vm1750, %v2612, 0.0
        %v2663 = vadd.f32 %v2661, %v2662
        %v2664 = vsel %vm1750, %v2613, 0.0
        %v2665 = vadd.f32 %v2663, %v2664
        %v2666 = vsel %vm1750, %v2614, 0.0
        %v2667 = vadd.f32 %v2665, %v2666
        %v2668 = vsel %vm1750, %v2615, 0.0
        %v2669 = vadd.f32 %v2667, %v2668
        %v2670 = vsel %vm1750, %v2616, 0.0
        %v2671 = vadd.f32 %v2669, %v2670
        %v2672 = vsel %vm1750, %v2617, 0.0
        %v2673 = vadd.f32 %v2671, %v2672
        %v2674 = vsel %vm1750, %v2618, 0.0
        %v2675 = vadd.f32 %v2673, %v2674
        %v2676 = vsel %vm1750, %v2619, 0.0
        %v2677 = vadd.f32 %v2675, %v2676
        %v2678 = vsel %vm1750, %v2620, 0.0
        %v2679 = vadd.f32 %v2677, %v2678
        %v2680 = vsel %vm1750, %v2621, 0.0
        %v2681 = vadd.f32 %v2679, %v2680
        %v2682 = vsel %vm1750, %v2622, 0.0
        %v2683 = vadd.f32 %v2681, %v2682
        %v2684 = vsel %vm1750, %v2623, 0.0
        %v2685 = vadd.f32 %v2683, %v2684
        %v2686 = vsel %vm1750, %v2624, 0.0
        %v2687 = vadd.f32 %v2685, %v2686
        %2688 = vadd.xlane.f32.xlu0 %v2687
        %v2689 = vpop.xlane.xlu0 %2688
        %v2690 = vrot.slane %v2689, 4
        %v2691 = vadd.f32 %v2689, %v2690
        %v2692 = vrot.slane %v2691, 2
        %v2693 = vadd.f32 %v2691, %v2692
        %v2694 = vrot.slane %v2693, 1
        %v2695 = vadd.f32 %v2693, %v2694
        %s2696 = vtos %v2695
        %s2697 = smul.f32 %s2696, 0.00012207031
        %s2698 = smul.f32 %s2592, %s2592
        %s2699 = ssub.f32 %s2697, %s2698
        %s2700 = sadd.f32 %s2699, 1e-05
        %v2701 = vstv %s2700
        %v2702 = vrsqrt.pop %v2701
        %v2703 = vmul.f32 %v2702, %v2701
        %v2704 = vmul.f32 %v2703, %v2702
        %v2705 = vmul.f32 0.5, %v2704
        %v2706 = vsub.f32 1.5, %v2705
        %v2707 = vmul.f32 %v2702, %v2706
        %vm2708 = vweird.f32 %v2701
        %vm2709 = vweird.f32 %v2702
        %vm2710 = vmor %vm2708, %vm2709
        %v2711 = vsel %vm2710, %v2702, %v2707
        %s2712 = vtos %v2711
        %v2713 = vstv %s2592
        %v2714 = vsub.f32 %v2377, %v2713
        %v2715 = vsub.f32 %v2379, %v2713
        %v2716 = vsub.f32 %v2382, %v2713
        %v2717 = vsub.f32 %v2384, %v2713
        %v2718 = vsub.f32 %v2387, %v2713
        %v2719 = vsub.f32 %v2389, %v2713
        %v2720 = vsub.f32 %v2392, %v2713
        %v2721 = vsub.f32 %v2394, %v2713
        %v2722 = vsub.f32 %v2397, %v2713
        %v2723 = vsub.f32 %v2399, %v2713
        %v2724 = vsub.f32 %v2402, %v2713
        %v2725 = vsub.f32 %v2404, %v2713
        %v2726 = vsub.f32 %v2407, %v2713
        %v2727 = vsub.f32 %v2409, %v2713
        %v2728 = vsub.f32 %v2412, %v2713
        %v2729 = vsub.f32 %v2414, %v2713
        %v2730 = vsub.f32 %v2417, %v2713
        %v2731 = vsub.f32 %v2419, %v2713
        %v2732 = vsub.f32 %v2422, %v2713
        %v2733 = vsub.f32 %v2424, %v2713
        %v2734 = vsub.f32 %v2427, %v2713
        %v2735 = vsub.f32 %v2429, %v2713
        %v2736 = vsub.f32 %v2432, %v2713
        %v2737 = vsub.f32 %v2434, %v2713
        %v2738 = vsub.f32 %v2437, %v2713
        %v2739 = vsub.f32 %v2439, %v2713
        %v2740 = vsub.f32 %v2442, %v2713
        %v2741 = vsub.f32 %v2444, %v2713
        %v2742 = vsub.f32 %v2447, %v2713
        %v2743 = vsub.f32 %v2449, %v2713
        %v2744 = vsub.f32 %v2452, %v2713
        %v2745 = vsub.f32 %v2454, %v2713
        %v2746 = vstv %s2712
        %v2747 = vmul.f32 %v2714, %v2746
        %v2748 = vmul.f32 %v2715, %v2746
        %v2749 = vmul.f32 %v2716, %v2746
        %v2750 = vmul.f32 %v2717, %v2746
        %v2751 = vmul.f32 %v2718, %v2746
        %v2752 = vmul.f32 %v2719, %v2746
        %v2753 = vmul.f32 %v2720, %v2746
        %v2754 = vmul.f32 %v2721, %v2746
        %v2755 = vmul.f32 %v2722, %v2746
        %v2756 = vmul.f32 %v2723, %v2746
        %v2757 = vmul.f32 %v2724, %v2746
        %v2758 = vmul.f32 %v2725, %v2746
        %v2759 = vmul.f32 %v2726, %v2746
        %v2760 = vmul.f32 %v2727, %v2746
        %v2761 = vmul.f32 %v2728, %v2746
        %v2762 = vmul.f32 %v2729, %v2746
        %v2763 = vmul.f32 %v2730, %v2746
        %v2764 = vmul.f32 %v2731, %v2746
        %v2765 = vmul.f32 %v2732, %v2746
        %v2766 = vmul.f32 %v2733, %v2746
        %v2767 = vmul.f32 %v2734, %v2746
        %v2768 = vmul.f32 %v2735, %v2746
        %v2769 = vmul.f32 %v2736, %v2746
        %v2770 = vmul.f32 %v2737, %v2746
        %v2771 = vmul.f32 %v2738, %v2746
        %v2772 = vmul.f32 %v2739, %v2746
        %v2773 = vmul.f32 %v2740, %v2746
        %v2774 = vmul.f32 %v2741, %v2746
        %v2775 = vmul.f32 %v2742, %v2746
        %v2776 = vmul.f32 %v2743, %v2746
        %v2777 = vmul.f32 %v2744, %v2746
        %v2778 = vmul.f32 %v2745, %v2746
        %v2779 = vmul.f32 %v2747, %v2456
        %v2780 = vmul.f32 %v2748, %v2457
        %v2781 = vmul.f32 %v2749, %v2458
        %v2782 = vmul.f32 %v2750, %v2459
        %v2783 = vmul.f32 %v2751, %v2460
        %v2784 = vmul.f32 %v2752, %v2461
        %v2785 = vmul.f32 %v2753, %v2462
        %v2786 = vmul.f32 %v2754, %v2463
        %v2787 = vmul.f32 %v2755, %v2464
        %v2788 = vmul.f32 %v2756, %v2465
        %v2789 = vmul.f32 %v2757, %v2466
        %v2790 = vmul.f32 %v2758, %v2467
        %v2791 = vmul.f32 %v2759, %v2468
        %v2792 = vmul.f32 %v2760, %v2469
        %v2793 = vmul.f32 %v2761, %v2470
        %v2794 = vmul.f32 %v2762, %v2471
        %v2795 = vmul.f32 %v2763, %v2472
        %v2796 = vmul.f32 %v2764, %v2473
        %v2797 = vmul.f32 %v2765, %v2474
        %v2798 = vmul.f32 %v2766, %v2475
        %v2799 = vmul.f32 %v2767, %v2476
        %v2800 = vmul.f32 %v2768, %v2477
        %v2801 = vmul.f32 %v2769, %v2478
        %v2802 = vmul.f32 %v2770, %v2479
        %v2803 = vmul.f32 %v2771, %v2480
        %v2804 = vmul.f32 %v2772, %v2481
        %v2805 = vmul.f32 %v2773, %v2482
        %v2806 = vmul.f32 %v2774, %v2483
        %v2807 = vmul.f32 %v2775, %v2484
        %v2808 = vmul.f32 %v2776, %v2485
        %v2809 = vmul.f32 %v2777, %v2486
        %v2810 = vmul.f32 %v2778, %v2487
        %v2811 = vadd.f32 %v2779, %v2488
        %v2812 = vadd.f32 %v2780, %v2489
        %v2813 = vadd.f32 %v2781, %v2490
        %v2814 = vadd.f32 %v2782, %v2491
        %v2815 = vadd.f32 %v2783, %v2492
        %v2816 = vadd.f32 %v2784, %v2493
        %v2817 = vadd.f32 %v2785, %v2494
        %v2818 = vadd.f32 %v2786, %v2495
        %v2819 = vadd.f32 %v2787, %v2496
        %v2820 = vadd.f32 %v2788, %v2497
        %v2821 = vadd.f32 %v2789, %v2498
        %v2822 = vadd.f32 %v2790, %v2499
        %v2823 = vadd.f32 %v2791, %v2500
        %v2824 = vadd.f32 %v2792, %v2501
        %v2825 = vadd.f32 %v2793, %v2502
        %v2826 = vadd.f32 %v2794, %v2503
        %v2827 = vadd.f32 %v2795, %v2504
        %v2828 = vadd.f32 %v2796, %v2505
        %v2829 = vadd.f32 %v2797, %v2506
        %v2830 = vadd.f32 %v2798, %v2507
        %v2831 = vadd.f32 %v2799, %v2508
        %v2832 = vadd.f32 %v2800, %v2509
        %v2833 = vadd.f32 %v2801, %v2510
        %v2834 = vadd.f32 %v2802, %v2511
        %v2835 = vadd.f32 %v2803, %v2512
        %v2836 = vadd.f32 %v2804, %v2513
        %v2837 = vadd.f32 %v2805, %v2514
        %v2838 = vadd.f32 %v2806, %v2515
        %v2839 = vadd.f32 %v2807, %v2516
        %v2840 = vadd.f32 %v2808, %v2517
        %v2841 = vadd.f32 %v2809, %v2518
        %v2842 = vadd.f32 %v2810, %v2519
        %v2843 = vld [vmem:[%s8] sm:$0xff]
        %v2844 = vld [vmem:[%s8 + $0x8] sm:$0xff]
        %v2845 = vld [vmem:[%s8 + $0x10] sm:$0xff]
        %v2846 = vld [vmem:[%s8 + $0x18] sm:$0xff]
        %v2847 = vld [vmem:[%s8 + $0x20] sm:$0xff]
        %v2848 = vld [vmem:[%s8 + $0x28] sm:$0xff]
        %v2849 = vld [vmem:[%s8 + $0x30] sm:$0xff]
        %v2850 = vld [vmem:[%s8 + $0x38] sm:$0xff]
        %v2851 = vld [vmem:[%s8 + $0x40] sm:$0xff]
        %v2852 = vld [vmem:[%s8 + $0x48] sm:$0xff]
        %v2853 = vld [vmem:[%s8 + $0x50] sm:$0xff]
        %v2854 = vld [vmem:[%s8 + $0x58] sm:$0xff]
        %v2855 = vld [vmem:[%s8 + $0x60] sm:$0xff]
        %v2856 = vld [vmem:[%s8 + $0x68] sm:$0xff]
        %v2857 = vld [vmem:[%s8 + $0x70] sm:$0xff]
        %v2858 = vld [vmem:[%s8 + $0x78] sm:$0xff]
        %v2859 = vld [vmem:[%s8 + $0x80] sm:$0xff]
        %v2860 = vld [vmem:[%s8 + $0x88] sm:$0xff]
        %v2861 = vld [vmem:[%s8 + $0x90] sm:$0xff]
        %v2862 = vld [vmem:[%s8 + $0x98] sm:$0xff]
        %v2863 = vld [vmem:[%s8 + $0xa0] sm:$0xff]
        %v2864 = vld [vmem:[%s8 + $0xa8] sm:$0xff]
        %v2865 = vld [vmem:[%s8 + $0xb0] sm:$0xff]
        %v2866 = vld [vmem:[%s8 + $0xb8] sm:$0xff]
        %v2867 = vld [vmem:[%s8 + $0xc0] sm:$0xff]
        %v2868 = vld [vmem:[%s8 + $0xc8] sm:$0xff]
        %v2869 = vld [vmem:[%s8 + $0xd0] sm:$0xff]
        %v2870 = vld [vmem:[%s8 + $0xd8] sm:$0xff]
        %v2871 = vld [vmem:[%s8 + $0xe0] sm:$0xff]
        %v2872 = vld [vmem:[%s8 + $0xe8] sm:$0xff]
        %v2873 = vld [vmem:[%s8 + $0xf0] sm:$0xff]
        %v2874 = vld [vmem:[%s8 + $0xf8] sm:$0xff]
        %v2875 = vld [vmem:[%s9] sm:$0xff]
        %v2876 = vld [vmem:[%s9 + $0x8] sm:$0xff]
        %v2877 = vld [vmem:[%s9 + $0x10] sm:$0xff]
        %v2878 = vld [vmem:[%s9 + $0x18] sm:$0xff]
        %v2879 = vld [vmem:[%s9 + $0x20] sm:$0xff]
        %v2880 = vld [vmem:[%s9 + $0x28] sm:$0xff]
        %v2881 = vld [vmem:[%s9 + $0x30] sm:$0xff]
        %v2882 = vld [vmem:[%s9 + $0x38] sm:$0xff]
        %v2883 = vld [vmem:[%s9 + $0x40] sm:$0xff]
        %v2884 = vld [vmem:[%s9 + $0x48] sm:$0xff]
        %v2885 = vld [vmem:[%s9 + $0x50] sm:$0xff]
        %v2886 = vld [vmem:[%s9 + $0x58] sm:$0xff]
        %v2887 = vld [vmem:[%s9 + $0x60] sm:$0xff]
        %v2888 = vld [vmem:[%s9 + $0x68] sm:$0xff]
        %v2889 = vld [vmem:[%s9 + $0x70] sm:$0xff]
        %v2890 = vld [vmem:[%s9 + $0x78] sm:$0xff]
        %v2891 = vld [vmem:[%s9 + $0x80] sm:$0xff]
        %v2892 = vld [vmem:[%s9 + $0x88] sm:$0xff]
        %v2893 = vld [vmem:[%s9 + $0x90] sm:$0xff]
        %v2894 = vld [vmem:[%s9 + $0x98] sm:$0xff]
        %v2895 = vld [vmem:[%s9 + $0xa0] sm:$0xff]
        %v2896 = vld [vmem:[%s9 + $0xa8] sm:$0xff]
        %v2897 = vld [vmem:[%s9 + $0xb0] sm:$0xff]
        %v2898 = vld [vmem:[%s9 + $0xb8] sm:$0xff]
        %v2899 = vld [vmem:[%s9 + $0xc0] sm:$0xff]
        %v2900 = vld [vmem:[%s9 + $0xc8] sm:$0xff]
        %v2901 = vld [vmem:[%s9 + $0xd0] sm:$0xff]
        %v2902 = vld [vmem:[%s9 + $0xd8] sm:$0xff]
        %v2903 = vld [vmem:[%s9 + $0xe0] sm:$0xff]
        %v2904 = vld [vmem:[%s9 + $0xe8] sm:$0xff]
        %v2905 = vld [vmem:[%s9 + $0xf0] sm:$0xff]
        %v2906 = vld [vmem:[%s9 + $0xf8] sm:$0xff]
        %2939 = vrot.lane.b32.xlu0 %v2377, 96
        %v2940 = vpop.permute.xlu0 %2939
        %2941 = vrot.lane.b32.xlu0 %v2379, 96
        %v2942 = vpop.permute.xlu0 %2941
        %2943 = vrot.lane.b32.xlu0 %v2382, 96
        %v2944 = vpop.permute.xlu0 %2943
        %2945 = vrot.lane.b32.xlu0 %v2384, 96
        %v2946 = vpop.permute.xlu0 %2945
        %2947 = vrot.lane.b32.xlu0 %v2387, 96
        %v2948 = vpop.permute.xlu0 %2947
        %2949 = vrot.lane.b32.xlu0 %v2389, 96
        %v2950 = vpop.permute.xlu0 %2949
        %2951 = vrot.lane.b32.xlu0 %v2392, 96
        %v2952 = vpop.permute.xlu0 %2951
        %2953 = vrot.lane.b32.xlu0 %v2394, 96
        %v2954 = vpop.permute.xlu0 %2953
        %2955 = vrot.lane.b32.xlu0 %v2397, 96
        %v2956 = vpop.permute.xlu0 %2955
        %2957 = vrot.lane.b32.xlu0 %v2399, 96
        %v2958 = vpop.permute.xlu0 %2957
        %2959 = vrot.lane.b32.xlu0 %v2402, 96
        %v2960 = vpop.permute.xlu0 %2959
        %2961 = vrot.lane.b32.xlu0 %v2404, 96
        %v2962 = vpop.permute.xlu0 %2961
        %2963 = vrot.lane.b32.xlu0 %v2407, 96
        %v2964 = vpop.permute.xlu0 %2963
        %2965 = vrot.lane.b32.xlu0 %v2409, 96
        %v2966 = vpop.permute.xlu0 %2965
        %2967 = vrot.lane.b32.xlu0 %v2412, 96
        %v2968 = vpop.permute.xlu0 %2967
        %2969 = vrot.lane.b32.xlu0 %v2414, 96
        %v2970 = vpop.permute.xlu0 %2969
        %2971 = vrot.lane.b32.xlu0 %v2417, 96
        %v2972 = vpop.permute.xlu0 %2971
        %2973 = vrot.lane.b32.xlu0 %v2419, 96
        %v2974 = vpop.permute.xlu0 %2973
        %2975 = vrot.lane.b32.xlu0 %v2422, 96
        %v2976 = vpop.permute.xlu0 %2975
        %2977 = vrot.lane.b32.xlu0 %v2424, 96
        %v2978 = vpop.permute.xlu0 %2977
        %2979 = vrot.lane.b32.xlu0 %v2427, 96
        %v2980 = vpop.permute.xlu0 %2979
        %2981 = vrot.lane.b32.xlu0 %v2429, 96
        %v2982 = vpop.permute.xlu0 %2981
        %2983 = vrot.lane.b32.xlu0 %v2432, 96
        %v2984 = vpop.permute.xlu0 %2983
        %2985 = vrot.lane.b32.xlu0 %v2434, 96
        %v2986 = vpop.permute.xlu0 %2985
        %2987 = vrot.lane.b32.xlu0 %v2437, 96
        %v2988 = vpop.permute.xlu0 %2987
        %2989 = vrot.lane.b32.xlu0 %v2439, 96
        %v2990 = vpop.permute.xlu0 %2989
        %2991 = vrot.lane.b32.xlu0 %v2442, 96
        %v2992 = vpop.permute.xlu0 %2991
        %2993 = vrot.lane.b32.xlu0 %v2444, 96
        %v2994 = vpop.permute.xlu0 %2993
        %2995 = vrot.lane.b32.xlu0 %v2447, 96
        %v2996 = vpop.permute.xlu0 %2995
        %2997 = vrot.lane.b32.xlu0 %v2449, 96
        %v2998 = vpop.permute.xlu0 %2997
        %2999 = vrot.lane.b32.xlu0 %v2452, 96
        %v3000 = vpop.permute.xlu0 %2999
        %3001 = vrot.lane.b32.xlu0 %v2454, 96
        %v3002 = vpop.permute.xlu0 %3001
        %v3035 = vsel %vm1816, %v2940, 0.0
        %v3036 = vsel %vm1816, %v2942, 0.0
        %v3037 = vadd.f32 %v3035, %v3036
        %v3038 = vsel %vm1816, %v2944, 0.0
        %v3039 = vadd.f32 %v3037, %v3038
        %v3040 = vsel %vm1816, %v2946, 0.0
        %v3041 = vadd.f32 %v3039, %v3040
        %v3042 = vsel %vm1816, %v2948, 0.0
        %v3043 = vadd.f32 %v3041, %v3042
        %v3044 = vsel %vm1816, %v2950, 0.0
        %v3045 = vadd.f32 %v3043, %v3044
        %v3046 = vsel %vm1816, %v2952, 0.0
        %v3047 = vadd.f32 %v3045, %v3046
        %v3048 = vsel %vm1816, %v2954, 0.0
        %v3049 = vadd.f32 %v3047, %v3048
        %v3050 = vsel %vm1816, %v2956, 0.0
        %v3051 = vadd.f32 %v3049, %v3050
        %v3052 = vsel %vm1816, %v2958, 0.0
        %v3053 = vadd.f32 %v3051, %v3052
        %v3054 = vsel %vm1816, %v2960, 0.0
        %v3055 = vadd.f32 %v3053, %v3054
        %v3056 = vsel %vm1816, %v2962, 0.0
        %v3057 = vadd.f32 %v3055, %v3056
        %v3058 = vsel %vm1816, %v2964, 0.0
        %v3059 = vadd.f32 %v3057, %v3058
        %v3060 = vsel %vm1816, %v2966, 0.0
        %v3061 = vadd.f32 %v3059, %v3060
        %v3062 = vsel %vm1816, %v2968, 0.0
        %v3063 = vadd.f32 %v3061, %v3062
        %v3064 = vsel %vm1816, %v2970, 0.0
        %v3065 = vadd.f32 %v3063, %v3064
        %v3066 = vsel %vm1816, %v2972, 0.0
        %v3067 = vadd.f32 %v3065, %v3066
        %v3068 = vsel %vm1816, %v2974, 0.0
        %v3069 = vadd.f32 %v3067, %v3068
        %v3070 = vsel %vm1816, %v2976, 0.0
        %v3071 = vadd.f32 %v3069, %v3070
        %v3072 = vsel %vm1816, %v2978, 0.0
        %v3073 = vadd.f32 %v3071, %v3072
        %v3074 = vsel %vm1816, %v2980, 0.0
        %v3075 = vadd.f32 %v3073, %v3074
        %v3076 = vsel %vm1816, %v2982, 0.0
        %v3077 = vadd.f32 %v3075, %v3076
        %v3078 = vsel %vm1816, %v2984, 0.0
        %v3079 = vadd.f32 %v3077, %v3078
        %v3080 = vsel %vm1816, %v2986, 0.0
        %v3081 = vadd.f32 %v3079, %v3080
        %v3082 = vsel %vm1816, %v2988, 0.0
        %v3083 = vadd.f32 %v3081, %v3082
        %v3084 = vsel %vm1816, %v2990, 0.0
        %v3085 = vadd.f32 %v3083, %v3084
        %v3086 = vsel %vm1816, %v2992, 0.0
        %v3087 = vadd.f32 %v3085, %v3086
        %v3088 = vsel %vm1816, %v2994, 0.0
        %v3089 = vadd.f32 %v3087, %v3088
        %v3090 = vsel %vm1816, %v2996, 0.0
        %v3091 = vadd.f32 %v3089, %v3090
        %v3092 = vsel %vm1816, %v2998, 0.0
        %v3093 = vadd.f32 %v3091, %v3092
        %v3094 = vsel %vm1816, %v3000, 0.0
        %v3095 = vadd.f32 %v3093, %v3094
        %v3096 = vsel %vm1816, %v3002, 0.0
        %v3097 = vadd.f32 %v3095, %v3096
        %3098 = vadd.xlane.f32.xlu0 %v3097
        %v3099 = vpop.xlane.xlu0 %3098
        %v3100 = vrot.slane %v3099, 4
        %v3101 = vadd.f32 %v3099, %v3100
        %v3102 = vrot.slane %v3101, 2
        %v3103 = vadd.f32 %v3101, %v3102
        %v3104 = vrot.slane %v3103, 1
        %v3105 = vadd.f32 %v3103, %v3104
        %s3106 = vtos %v3105
        %s3107 = smul.f32 %s3106, 4.0690105e-05
        %3140 = vrot.lane.b32.xlu0 %v2593, 96
        %v3141 = vpop.permute.xlu0 %3140
        %3142 = vrot.lane.b32.xlu0 %v2594, 96
        %v3143 = vpop.permute.xlu0 %3142
        %3144 = vrot.lane.b32.xlu0 %v2595, 96
        %v3145 = vpop.permute.xlu0 %3144
        %3146 = vrot.lane.b32.xlu0 %v2596, 96
        %v3147 = vpop.permute.xlu0 %3146
        %3148 = vrot.lane.b32.xlu0 %v2597, 96
        %v3149 = vpop.permute.xlu0 %3148
        %3150 = vrot.lane.b32.xlu0 %v2598, 96
        %v3151 = vpop.permute.xlu0 %3150
        %3152 = vrot.lane.b32.xlu0 %v2599, 96
        %v3153 = vpop.permute.xlu0 %3152
        %3154 = vrot.lane.b32.xlu0 %v2600, 96
        %v3155 = vpop.permute.xlu0 %3154
        %3156 = vrot.lane.b32.xlu0 %v2601, 96
        %v3157 = vpop.permute.xlu0 %3156
        %3158 = vrot.lane.b32.xlu0 %v2602, 96
        %v3159 = vpop.permute.xlu0 %3158
        %3160 = vrot.lane.b32.xlu0 %v2603, 96
        %v3161 = vpop.permute.xlu0 %3160
        %3162 = vrot.lane.b32.xlu0 %v2604, 96
        %v3163 = vpop.permute.xlu0 %3162
        %3164 = vrot.lane.b32.xlu0 %v2605, 96
        %v3165 = vpop.permute.xlu0 %3164
        %3166 = vrot.lane.b32.xlu0 %v2606, 96
        %v3167 = vpop.permute.xlu0 %3166
        %3168 = vrot.lane.b32.xlu0 %v2607, 96
        %v3169 = vpop.permute.xlu0 %3168
        %3170 = vrot.lane.b32.xlu0 %v2608, 96
        %v3171 = vpop.permute.xlu0 %3170
        %3172 = vrot.lane.b32.xlu0 %v2609, 96
        %v3173 = vpop.permute.xlu0 %3172
        %3174 = vrot.lane.b32.xlu0 %v2610, 96
        %v3175 = vpop.permute.xlu0 %3174
        %3176 = vrot.lane.b32.xlu0 %v2611, 96
        %v3177 = vpop.permute.xlu0 %3176
        %3178 = vrot.lane.b32.xlu0 %v2612, 96
        %v3179 = vpop.permute.xlu0 %3178
        %3180 = vrot.lane.b32.xlu0 %v2613, 96
        %v3181 = vpop.permute.xlu0 %3180
        %3182 = vrot.lane.b32.xlu0 %v2614, 96
        %v3183 = vpop.permute.xlu0 %3182
        %3184 = vrot.lane.b32.xlu0 %v2615, 96
        %v3185 = vpop.permute.xlu0 %3184
        %3186 = vrot.lane.b32.xlu0 %v2616, 96
        %v3187 = vpop.permute.xlu0 %3186
        %3188 = vrot.lane.b32.xlu0 %v2617, 96
        %v3189 = vpop.permute.xlu0 %3188
        %3190 = vrot.lane.b32.xlu0 %v2618, 96
        %v3191 = vpop.permute.xlu0 %3190
        %3192 = vrot.lane.b32.xlu0 %v2619, 96
        %v3193 = vpop.permute.xlu0 %3192
        %3194 = vrot.lane.b32.xlu0 %v2620, 96
        %v3195 = vpop.permute.xlu0 %3194
        %3196 = vrot.lane.b32.xlu0 %v2621, 96
        %v3197 = vpop.permute.xlu0 %3196
        %3198 = vrot.lane.b32.xlu0 %v2622, 96
        %v3199 = vpop.permute.xlu0 %3198
        %3200 = vrot.lane.b32.xlu0 %v2623, 96
        %v3201 = vpop.permute.xlu0 %3200
        %3202 = vrot.lane.b32.xlu0 %v2624, 96
        %v3203 = vpop.permute.xlu0 %3202
        %v3236 = vsel %vm1816, %v3141, 0.0
        %v3237 = vsel %vm1816, %v3143, 0.0
        %v3238 = vadd.f32 %v3236, %v3237
        %v3239 = vsel %vm1816, %v3145, 0.0
        %v3240 = vadd.f32 %v3238, %v3239
        %v3241 = vsel %vm1816, %v3147, 0.0
        %v3242 = vadd.f32 %v3240, %v3241
        %v3243 = vsel %vm1816, %v3149, 0.0
        %v3244 = vadd.f32 %v3242, %v3243
        %v3245 = vsel %vm1816, %v3151, 0.0
        %v3246 = vadd.f32 %v3244, %v3245
        %v3247 = vsel %vm1816, %v3153, 0.0
        %v3248 = vadd.f32 %v3246, %v3247
        %v3249 = vsel %vm1816, %v3155, 0.0
        %v3250 = vadd.f32 %v3248, %v3249
        %v3251 = vsel %vm1816, %v3157, 0.0
        %v3252 = vadd.f32 %v3250, %v3251
        %v3253 = vsel %vm1816, %v3159, 0.0
        %v3254 = vadd.f32 %v3252, %v3253
        %v3255 = vsel %vm1816, %v3161, 0.0
        %v3256 = vadd.f32 %v3254, %v3255
        %v3257 = vsel %vm1816, %v3163, 0.0
        %v3258 = vadd.f32 %v3256, %v3257
        %v3259 = vsel %vm1816, %v3165, 0.0
        %v3260 = vadd.f32 %v3258, %v3259
        %v3261 = vsel %vm1816, %v3167, 0.0
        %v3262 = vadd.f32 %v3260, %v3261
        %v3263 = vsel %vm1816, %v3169, 0.0
        %v3264 = vadd.f32 %v3262, %v3263
        %v3265 = vsel %vm1816, %v3171, 0.0
        %v3266 = vadd.f32 %v3264, %v3265
        %v3267 = vsel %vm1816, %v3173, 0.0
        %v3268 = vadd.f32 %v3266, %v3267
        %v3269 = vsel %vm1816, %v3175, 0.0
        %v3270 = vadd.f32 %v3268, %v3269
        %v3271 = vsel %vm1816, %v3177, 0.0
        %v3272 = vadd.f32 %v3270, %v3271
        %v3273 = vsel %vm1816, %v3179, 0.0
        %v3274 = vadd.f32 %v3272, %v3273
        %v3275 = vsel %vm1816, %v3181, 0.0
        %v3276 = vadd.f32 %v3274, %v3275
        %v3277 = vsel %vm1816, %v3183, 0.0
        %v3278 = vadd.f32 %v3276, %v3277
        %v3279 = vsel %vm1816, %v3185, 0.0
        %v3280 = vadd.f32 %v3278, %v3279
        %v3281 = vsel %vm1816, %v3187, 0.0
        %v3282 = vadd.f32 %v3280, %v3281
        %v3283 = vsel %vm1816, %v3189, 0.0
        %v3284 = vadd.f32 %v3282, %v3283
        %v3285 = vsel %vm1816, %v3191, 0.0
        %v3286 = vadd.f32 %v3284, %v3285
        %v3287 = vsel %vm1816, %v3193, 0.0
        %v3288 = vadd.f32 %v3286, %v3287
        %v3289 = vsel %vm1816, %v3195, 0.0
        %v3290 = vadd.f32 %v3288, %v3289
        %v3291 = vsel %vm1816, %v3197, 0.0
        %v3292 = vadd.f32 %v3290, %v3291
        %v3293 = vsel %vm1816, %v3199, 0.0
        %v3294 = vadd.f32 %v3292, %v3293
        %v3295 = vsel %vm1816, %v3201, 0.0
        %v3296 = vadd.f32 %v3294, %v3295
        %v3297 = vsel %vm1816, %v3203, 0.0
        %v3298 = vadd.f32 %v3296, %v3297
        %3299 = vadd.xlane.f32.xlu0 %v3298
        %v3300 = vpop.xlane.xlu0 %3299
        %v3301 = vrot.slane %v3300, 4
        %v3302 = vadd.f32 %v3300, %v3301
        %v3303 = vrot.slane %v3302, 2
        %v3304 = vadd.f32 %v3302, %v3303
        %v3305 = vrot.slane %v3304, 1
        %v3306 = vadd.f32 %v3304, %v3305
        %s3307 = vtos %v3306
        %s3308 = smul.f32 %s3307, 4.0690105e-05
        %s3309 = smul.f32 %s3107, %s3107
        %s3310 = ssub.f32 %s3308, %s3309
        %s3311 = sadd.f32 %s3310, 1e-05
        %v3312 = vstv %s3311
        %v3313 = vrsqrt.pop %v3312
        %v3314 = vmul.f32 %v3313, %v3312
        %v3315 = vmul.f32 %v3314, %v3313
        %v3316 = vmul.f32 0.5, %v3315
        %v3317 = vsub.f32 1.5, %v3316
        %v3318 = vmul.f32 %v3313, %v3317
        %vm3319 = vweird.f32 %v3312
        %vm3320 = vweird.f32 %v3313
        %vm3321 = vmor %vm3319, %vm3320
        %v3322 = vsel %vm3321, %v3313, %v3318
        %s3323 = vtos %v3322
        %v3324 = vstv %s3107
        %v3325 = vsub.f32 %v2377, %v3324
        %v3326 = vsub.f32 %v2379, %v3324
        %v3327 = vsub.f32 %v2382, %v3324
        %v3328 = vsub.f32 %v2384, %v3324
        %v3329 = vsub.f32 %v2387, %v3324
        %v3330 = vsub.f32 %v2389, %v3324
        %v3331 = vsub.f32 %v2392, %v3324
        %v3332 = vsub.f32 %v2394, %v3324
        %v3333 = vsub.f32 %v2397, %v3324
        %v3334 = vsub.f32 %v2399, %v3324
        %v3335 = vsub.f32 %v2402, %v3324
        %v3336 = vsub.f32 %v2404, %v3324
        %v3337 = vsub.f32 %v2407, %v3324
        %v3338 = vsub.f32 %v2409, %v3324
        %v3339 = vsub.f32 %v2412, %v3324
        %v3340 = vsub.f32 %v2414, %v3324
        %v3341 = vsub.f32 %v2417, %v3324
        %v3342 = vsub.f32 %v2419, %v3324
        %v3343 = vsub.f32 %v2422, %v3324
        %v3344 = vsub.f32 %v2424, %v3324
        %v3345 = vsub.f32 %v2427, %v3324
        %v3346 = vsub.f32 %v2429, %v3324
        %v3347 = vsub.f32 %v2432, %v3324
        %v3348 = vsub.f32 %v2434, %v3324
        %v3349 = vsub.f32 %v2437, %v3324
        %v3350 = vsub.f32 %v2439, %v3324
        %v3351 = vsub.f32 %v2442, %v3324
        %v3352 = vsub.f32 %v2444, %v3324
        %v3353 = vsub.f32 %v2447, %v3324
        %v3354 = vsub.f32 %v2449, %v3324
        %v3355 = vsub.f32 %v2452, %v3324
        %v3356 = vsub.f32 %v2454, %v3324
        %v3357 = vstv %s3323
        %v3358 = vmul.f32 %v3325, %v3357
        %v3359 = vmul.f32 %v3326, %v3357
        %v3360 = vmul.f32 %v3327, %v3357
        %v3361 = vmul.f32 %v3328, %v3357
        %v3362 = vmul.f32 %v3329, %v3357
        %v3363 = vmul.f32 %v3330, %v3357
        %v3364 = vmul.f32 %v3331, %v3357
        %v3365 = vmul.f32 %v3332, %v3357
        %v3366 = vmul.f32 %v3333, %v3357
        %v3367 = vmul.f32 %v3334, %v3357
        %v3368 = vmul.f32 %v3335, %v3357
        %v3369 = vmul.f32 %v3336, %v3357
        %v3370 = vmul.f32 %v3337, %v3357
        %v3371 = vmul.f32 %v3338, %v3357
        %v3372 = vmul.f32 %v3339, %v3357
        %v3373 = vmul.f32 %v3340, %v3357
        %v3374 = vmul.f32 %v3341, %v3357
        %v3375 = vmul.f32 %v3342, %v3357
        %v3376 = vmul.f32 %v3343, %v3357
        %v3377 = vmul.f32 %v3344, %v3357
        %v3378 = vmul.f32 %v3345, %v3357
        %v3379 = vmul.f32 %v3346, %v3357
        %v3380 = vmul.f32 %v3347, %v3357
        %v3381 = vmul.f32 %v3348, %v3357
        %v3382 = vmul.f32 %v3349, %v3357
        %v3383 = vmul.f32 %v3350, %v3357
        %v3384 = vmul.f32 %v3351, %v3357
        %v3385 = vmul.f32 %v3352, %v3357
        %v3386 = vmul.f32 %v3353, %v3357
        %v3387 = vmul.f32 %v3354, %v3357
        %v3388 = vmul.f32 %v3355, %v3357
        %v3389 = vmul.f32 %v3356, %v3357
        %3422 = vrot.lane.b32.xlu0 %v2843, 32
        %v3423 = vpop.permute.xlu0 %3422
        %3424 = vrot.lane.b32.xlu0 %v2844, 32
        %v3425 = vpop.permute.xlu0 %3424
        %3426 = vrot.lane.b32.xlu0 %v2845, 32
        %v3427 = vpop.permute.xlu0 %3426
        %3428 = vrot.lane.b32.xlu0 %v2846, 32
        %v3429 = vpop.permute.xlu0 %3428
        %3430 = vrot.lane.b32.xlu0 %v2847, 32
        %v3431 = vpop.permute.xlu0 %3430
        %3432 = vrot.lane.b32.xlu0 %v2848, 32
        %v3433 = vpop.permute.xlu0 %3432
        %3434 = vrot.lane.b32.xlu0 %v2849, 32
        %v3435 = vpop.permute.xlu0 %3434
        %3436 = vrot.lane.b32.xlu0 %v2850, 32
        %v3437 = vpop.permute.xlu0 %3436
        %3438 = vrot.lane.b32.xlu0 %v2851, 32
        %v3439 = vpop.permute.xlu0 %3438
        %3440 = vrot.lane.b32.xlu0 %v2852, 32
        %v3441 = vpop.permute.xlu0 %3440
        %3442 = vrot.lane.b32.xlu0 %v2853, 32
        %v3443 = vpop.permute.xlu0 %3442
        %3444 = vrot.lane.b32.xlu0 %v2854, 32
        %v3445 = vpop.permute.xlu0 %3444
        %3446 = vrot.lane.b32.xlu0 %v2855, 32
        %v3447 = vpop.permute.xlu0 %3446
        %3448 = vrot.lane.b32.xlu0 %v2856, 32
        %v3449 = vpop.permute.xlu0 %3448
        %3450 = vrot.lane.b32.xlu0 %v2857, 32
        %v3451 = vpop.permute.xlu0 %3450
        %3452 = vrot.lane.b32.xlu0 %v2858, 32
        %v3453 = vpop.permute.xlu0 %3452
        %3454 = vrot.lane.b32.xlu0 %v2859, 32
        %v3455 = vpop.permute.xlu0 %3454
        %3456 = vrot.lane.b32.xlu0 %v2860, 32
        %v3457 = vpop.permute.xlu0 %3456
        %3458 = vrot.lane.b32.xlu0 %v2861, 32
        %v3459 = vpop.permute.xlu0 %3458
        %3460 = vrot.lane.b32.xlu0 %v2862, 32
        %v3461 = vpop.permute.xlu0 %3460
        %3462 = vrot.lane.b32.xlu0 %v2863, 32
        %v3463 = vpop.permute.xlu0 %3462
        %3464 = vrot.lane.b32.xlu0 %v2864, 32
        %v3465 = vpop.permute.xlu0 %3464
        %3466 = vrot.lane.b32.xlu0 %v2865, 32
        %v3467 = vpop.permute.xlu0 %3466
        %3468 = vrot.lane.b32.xlu0 %v2866, 32
        %v3469 = vpop.permute.xlu0 %3468
        %3470 = vrot.lane.b32.xlu0 %v2867, 32
        %v3471 = vpop.permute.xlu0 %3470
        %3472 = vrot.lane.b32.xlu0 %v2868, 32
        %v3473 = vpop.permute.xlu0 %3472
        %3474 = vrot.lane.b32.xlu0 %v2869, 32
        %v3475 = vpop.permute.xlu0 %3474
        %3476 = vrot.lane.b32.xlu0 %v2870, 32
        %v3477 = vpop.permute.xlu0 %3476
        %3478 = vrot.lane.b32.xlu0 %v2871, 32
        %v3479 = vpop.permute.xlu0 %3478
        %3480 = vrot.lane.b32.xlu0 %v2872, 32
        %v3481 = vpop.permute.xlu0 %3480
        %3482 = vrot.lane.b32.xlu0 %v2873, 32
        %v3483 = vpop.permute.xlu0 %3482
        %3484 = vrot.lane.b32.xlu0 %v2874, 32
        %v3485 = vpop.permute.xlu0 %3484
        %v3518 = vmul.f32 %v3358, %v3423
        %v3519 = vmul.f32 %v3359, %v3425
        %v3520 = vmul.f32 %v3360, %v3427
        %v3521 = vmul.f32 %v3361, %v3429
        %v3522 = vmul.f32 %v3362, %v3431
        %v3523 = vmul.f32 %v3363, %v3433
        %v3524 = vmul.f32 %v3364, %v3435
        %v3525 = vmul.f32 %v3365, %v3437
        %v3526 = vmul.f32 %v3366, %v3439
        %v3527 = vmul.f32 %v3367, %v3441
        %v3528 = vmul.f32 %v3368, %v3443
        %v3529 = vmul.f32 %v3369, %v3445
        %v3530 = vmul.f32 %v3370, %v3447
        %v3531 = vmul.f32 %v3371, %v3449
        %v3532 = vmul.f32 %v3372, %v3451
        %v3533 = vmul.f32 %v3373, %v3453
        %v3534 = vmul.f32 %v3374, %v3455
        %v3535 = vmul.f32 %v3375, %v3457
        %v3536 = vmul.f32 %v3376, %v3459
        %v3537 = vmul.f32 %v3377, %v3461
        %v3538 = vmul.f32 %v3378, %v3463
        %v3539 = vmul.f32 %v3379, %v3465
        %v3540 = vmul.f32 %v3380, %v3467
        %v3541 = vmul.f32 %v3381, %v3469
        %v3542 = vmul.f32 %v3382, %v3471
        %v3543 = vmul.f32 %v3383, %v3473
        %v3544 = vmul.f32 %v3384, %v3475
        %v3545 = vmul.f32 %v3385, %v3477
        %v3546 = vmul.f32 %v3386, %v3479
        %v3547 = vmul.f32 %v3387, %v3481
        %v3548 = vmul.f32 %v3388, %v3483
        %v3549 = vmul.f32 %v3389, %v3485
        %3582 = vrot.lane.b32.xlu0 %v2875, 32
        %v3583 = vpop.permute.xlu0 %3582
        %3584 = vrot.lane.b32.xlu0 %v2876, 32
        %v3585 = vpop.permute.xlu0 %3584
        %3586 = vrot.lane.b32.xlu0 %v2877, 32
        %v3587 = vpop.permute.xlu0 %3586
        %3588 = vrot.lane.b32.xlu0 %v2878, 32
        %v3589 = vpop.permute.xlu0 %3588
        %3590 = vrot.lane.b32.xlu0 %v2879, 32
        %v3591 = vpop.permute.xlu0 %3590
        %3592 = vrot.lane.b32.xlu0 %v2880, 32
        %v3593 = vpop.permute.xlu0 %3592
        %3594 = vrot.lane.b32.xlu0 %v2881, 32
        %v3595 = vpop.permute.xlu0 %3594
        %3596 = vrot.lane.b32.xlu0 %v2882, 32
        %v3597 = vpop.permute.xlu0 %3596
        %3598 = vrot.lane.b32.xlu0 %v2883, 32
        %v3599 = vpop.permute.xlu0 %3598
        %3600 = vrot.lane.b32.xlu0 %v2884, 32
        %v3601 = vpop.permute.xlu0 %3600
        %3602 = vrot.lane.b32.xlu0 %v2885, 32
        %v3603 = vpop.permute.xlu0 %3602
        %3604 = vrot.lane.b32.xlu0 %v2886, 32
        %v3605 = vpop.permute.xlu0 %3604
        %3606 = vrot.lane.b32.xlu0 %v2887, 32
        %v3607 = vpop.permute.xlu0 %3606
        %3608 = vrot.lane.b32.xlu0 %v2888, 32
        %v3609 = vpop.permute.xlu0 %3608
        %3610 = vrot.lane.b32.xlu0 %v2889, 32
        %v3611 = vpop.permute.xlu0 %3610
        %3612 = vrot.lane.b32.xlu0 %v2890, 32
        %v3613 = vpop.permute.xlu0 %3612
        %3614 = vrot.lane.b32.xlu0 %v2891, 32
        %v3615 = vpop.permute.xlu0 %3614
        %3616 = vrot.lane.b32.xlu0 %v2892, 32
        %v3617 = vpop.permute.xlu0 %3616
        %3618 = vrot.lane.b32.xlu0 %v2893, 32
        %v3619 = vpop.permute.xlu0 %3618
        %3620 = vrot.lane.b32.xlu0 %v2894, 32
        %v3621 = vpop.permute.xlu0 %3620
        %3622 = vrot.lane.b32.xlu0 %v2895, 32
        %v3623 = vpop.permute.xlu0 %3622
        %3624 = vrot.lane.b32.xlu0 %v2896, 32
        %v3625 = vpop.permute.xlu0 %3624
        %3626 = vrot.lane.b32.xlu0 %v2897, 32
        %v3627 = vpop.permute.xlu0 %3626
        %3628 = vrot.lane.b32.xlu0 %v2898, 32
        %v3629 = vpop.permute.xlu0 %3628
        %3630 = vrot.lane.b32.xlu0 %v2899, 32
        %v3631 = vpop.permute.xlu0 %3630
        %3632 = vrot.lane.b32.xlu0 %v2900, 32
        %v3633 = vpop.permute.xlu0 %3632
        %3634 = vrot.lane.b32.xlu0 %v2901, 32
        %v3635 = vpop.permute.xlu0 %3634
        %3636 = vrot.lane.b32.xlu0 %v2902, 32
        %v3637 = vpop.permute.xlu0 %3636
        %3638 = vrot.lane.b32.xlu0 %v2903, 32
        %v3639 = vpop.permute.xlu0 %3638
        %3640 = vrot.lane.b32.xlu0 %v2904, 32
        %v3641 = vpop.permute.xlu0 %3640
        %3642 = vrot.lane.b32.xlu0 %v2905, 32
        %v3643 = vpop.permute.xlu0 %3642
        %3644 = vrot.lane.b32.xlu0 %v2906, 32
        %v3645 = vpop.permute.xlu0 %3644
        %v3678 = vadd.f32 %v3518, %v3583
        %v3679 = vadd.f32 %v3519, %v3585
        %v3680 = vadd.f32 %v3520, %v3587
        %v3681 = vadd.f32 %v3521, %v3589
        %v3682 = vadd.f32 %v3522, %v3591
        %v3683 = vadd.f32 %v3523, %v3593
        %v3684 = vadd.f32 %v3524, %v3595
        %v3685 = vadd.f32 %v3525, %v3597
        %v3686 = vadd.f32 %v3526, %v3599
        %v3687 = vadd.f32 %v3527, %v3601
        %v3688 = vadd.f32 %v3528, %v3603
        %v3689 = vadd.f32 %v3529, %v3605
        %v3690 = vadd.f32 %v3530, %v3607
        %v3691 = vadd.f32 %v3531, %v3609
        %v3692 = vadd.f32 %v3532, %v3611
        %v3693 = vadd.f32 %v3533, %v3613
        %v3694 = vadd.f32 %v3534, %v3615
        %v3695 = vadd.f32 %v3535, %v3617
        %v3696 = vadd.f32 %v3536, %v3619
        %v3697 = vadd.f32 %v3537, %v3621
        %v3698 = vadd.f32 %v3538, %v3623
        %v3699 = vadd.f32 %v3539, %v3625
        %v3700 = vadd.f32 %v3540, %v3627
        %v3701 = vadd.f32 %v3541, %v3629
        %v3702 = vadd.f32 %v3542, %v3631
        %v3703 = vadd.f32 %v3543, %v3633
        %v3704 = vadd.f32 %v3544, %v3635
        %v3705 = vadd.f32 %v3545, %v3637
        %v3706 = vadd.f32 %v3546, %v3639
        %v3707 = vadd.f32 %v3547, %v3641
        %v3708 = vadd.f32 %v3548, %v3643
        %v3709 = vadd.f32 %v3549, %v3645
        %v3742 = vrot.slane %v705, 7
        %v3743 = vrot.slane %v706, 7
        %v3744 = vsel %vm770, %v3742, %v3743
        %v3745 = vrot.slane %v707, 7
        %v3746 = vrot.slane %v708, 7
        %v3747 = vsel %vm770, %v3745, %v3746
        %v3748 = vrot.slane %v709, 7
        %v3749 = vrot.slane %v710, 7
        %v3750 = vsel %vm770, %v3748, %v3749
        %v3751 = vrot.slane %v711, 7
        %v3752 = vrot.slane %v712, 7
        %v3753 = vsel %vm770, %v3751, %v3752
        %v3754 = vrot.slane %v713, 7
        %v3755 = vrot.slane %v714, 7
        %v3756 = vsel %vm770, %v3754, %v3755
        %v3757 = vrot.slane %v715, 7
        %v3758 = vrot.slane %v716, 7
        %v3759 = vsel %vm770, %v3757, %v3758
        %v3760 = vrot.slane %v717, 7
        %v3761 = vrot.slane %v718, 7
        %v3762 = vsel %vm770, %v3760, %v3761
        %v3763 = vrot.slane %v719, 7
        %v3764 = vrot.slane %v720, 7
        %v3765 = vsel %vm770, %v3763, %v3764
        %v3766 = vrot.slane %v721, 7
        %v3767 = vrot.slane %v722, 7
        %v3768 = vsel %vm770, %v3766, %v3767
        %v3769 = vrot.slane %v723, 7
        %v3770 = vrot.slane %v724, 7
        %v3771 = vsel %vm770, %v3769, %v3770
        %v3772 = vrot.slane %v725, 7
        %v3773 = vrot.slane %v726, 7
        %v3774 = vsel %vm770, %v3772, %v3773
        %v3775 = vrot.slane %v727, 7
        %v3776 = vrot.slane %v728, 7
        %v3777 = vsel %vm770, %v3775, %v3776
        %v3778 = vrot.slane %v729, 7
        %v3779 = vrot.slane %v730, 7
        %v3780 = vsel %vm770, %v3778, %v3779
        %v3781 = vrot.slane %v731, 7
        %v3782 = vrot.slane %v732, 7
        %v3783 = vsel %vm770, %v3781, %v3782
        %v3784 = vrot.slane %v733, 7
        %v3785 = vrot.slane %v734, 7
        %v3786 = vsel %vm770, %v3784, %v3785
        %v3787 = vrot.slane %v735, 7
        %v3788 = vrot.slane %v736, 7
        %v3789 = vsel %vm770, %v3787, %v3788
        %v3837 = vsel %vm770, 0.0, %v3742
        %v3838 = vsel %vm770, 0.0, %v3745
        %v3839 = vsel %vm770, 0.0, %v3748
        %v3840 = vsel %vm770, 0.0, %v3751
        %v3841 = vsel %vm770, 0.0, %v3754
        %v3842 = vsel %vm770, 0.0, %v3757
        %v3843 = vsel %vm770, 0.0, %v3760
        %v3844 = vsel %vm770, 0.0, %v3763
        %v3845 = vsel %vm770, 0.0, %v3766
        %v3846 = vsel %vm770, 0.0, %v3769
        %v3847 = vsel %vm770, 0.0, %v3772
        %v3848 = vsel %vm770, 0.0, %v3775
        %v3849 = vsel %vm770, 0.0, %v3778
        %v3850 = vsel %vm770, 0.0, %v3781
        %v3851 = vsel %vm770, 0.0, %v3784
        %v3852 = vsel %vm770, 0.0, %v3787
        %v3853 = vsel %vm770, %v3743, 0.0
        %v3854 = vsel %vm770, %v3746, 0.0
        %v3855 = vsel %vm770, %v3749, 0.0
        %v3856 = vsel %vm770, %v3752, 0.0
        %v3857 = vsel %vm770, %v3755, 0.0
        %v3858 = vsel %vm770, %v3758, 0.0
        %v3859 = vsel %vm770, %v3761, 0.0
        %v3860 = vsel %vm770, %v3764, 0.0
        %v3861 = vsel %vm770, %v3767, 0.0
        %v3862 = vsel %vm770, %v3770, 0.0
        %v3863 = vsel %vm770, %v3773, 0.0
        %v3864 = vsel %vm770, %v3776, 0.0
        %v3865 = vsel %vm770, %v3779, 0.0
        %v3866 = vsel %vm770, %v3782, 0.0
        %v3867 = vsel %vm770, %v3785, 0.0
        %v3868 = vsel %vm770, %v3788, 0.0
        %v3899 = vrot.slane %v3837, 1
        %v3900 = vrot.slane %v3744, 1
        %v3901 = vsel %vm936, %v3899, %v3900
        %v3902 = vrot.slane %v3853, 1
        %v3903 = vsel %vm936, %v3900, %v3902
        %v3904 = vrot.slane %v3838, 1
        %v3905 = vrot.slane %v3747, 1
        %v3906 = vsel %vm936, %v3904, %v3905
        %v3907 = vrot.slane %v3854, 1
        %v3908 = vsel %vm936, %v3905, %v3907
        %v3909 = vrot.slane %v3839, 1
        %v3910 = vrot.slane %v3750, 1
        %v3911 = vsel %vm936, %v3909, %v3910
        %v3912 = vrot.slane %v3855, 1
        %v3913 = vsel %vm936, %v3910, %v3912
        %v3914 = vrot.slane %v3840, 1
        %v3915 = vrot.slane %v3753, 1
        %v3916 = vsel %vm936, %v3914, %v3915
        %v3917 = vrot.slane %v3856, 1
        %v3918 = vsel %vm936, %v3915, %v3917
        %v3919 = vrot.slane %v3841, 1
        %v3920 = vrot.slane %v3756, 1
        %v3921 = vsel %vm936, %v3919, %v3920
        %v3922 = vrot.slane %v3857, 1
        %v3923 = vsel %vm936, %v3920, %v3922
        %v3924 = vrot.slane %v3842, 1
        %v3925 = vrot.slane %v3759, 1
        %v3926 = vsel %vm936, %v3924, %v3925
        %v3927 = vrot.slane %v3858, 1
        %v3928 = vsel %vm936, %v3925, %v3927
        %v3929 = vrot.slane %v3843, 1
        %v3930 = vrot.slane %v3762, 1
        %v3931 = vsel %vm936, %v3929, %v3930
        %v3932 = vrot.slane %v3859, 1
        %v3933 = vsel %vm936, %v3930, %v3932
        %v3934 = vrot.slane %v3844, 1
        %v3935 = vrot.slane %v3765, 1
        %v3936 = vsel %vm936, %v3934, %v3935
        %v3937 = vrot.slane %v3860, 1
        %v3938 = vsel %vm936, %v3935, %v3937
        %v3939 = vrot.slane %v3845, 1
        %v3940 = vrot.slane %v3768, 1
        %v3941 = vsel %vm936, %v3939, %v3940
        %v3942 = vrot.slane %v3861, 1
        %v3943 = vsel %vm936, %v3940, %v3942
        %v3944 = vrot.slane %v3846, 1
        %v3945 = vrot.slane %v3771, 1
        %v3946 = vsel %vm936, %v3944, %v3945
        %v3947 = vrot.slane %v3862, 1
        %v3948 = vsel %vm936, %v3945, %v3947
        %v3949 = vrot.slane %v3847, 1
        %v3950 = vrot.slane %v3774, 1
        %v3951 = vsel %vm936, %v3949, %v3950
        %v3952 = vrot.slane %v3863, 1
        %v3953 = vsel %vm936, %v3950, %v3952
        %v3954 = vrot.slane %v3848, 1
        %v3955 = vrot.slane %v3777, 1
        %v3956 = vsel %vm936, %v3954, %v3955
        %v3957 = vrot.slane %v3864, 1
        %v3958 = vsel %vm936, %v3955, %v3957
        %v3959 = vrot.slane %v3849, 1
        %v3960 = vrot.slane %v3780, 1
        %v3961 = vsel %vm936, %v3959, %v3960
        %v3962 = vrot.slane %v3865, 1
        %v3963 = vsel %vm936, %v3960, %v3962
        %v3964 = vrot.slane %v3850, 1
        %v3965 = vrot.slane %v3783, 1
        %v3966 = vsel %vm936, %v3964, %v3965
        %v3967 = vrot.slane %v3866, 1
        %v3968 = vsel %vm936, %v3965, %v3967
        %v3969 = vrot.slane %v3851, 1
        %v3970 = vrot.slane %v3786, 1
        %v3971 = vsel %vm936, %v3969, %v3970
        %v3972 = vrot.slane %v3867, 1
        %v3973 = vsel %vm936, %v3970, %v3972
        %v3974 = vrot.slane %v3837, 2
        %v3975 = vrot.slane %v3744, 2
        %v3976 = vsel %vm1017, %v3974, %v3975
        %v3977 = vrot.slane %v3853, 2
        %v3978 = vsel %vm1017, %v3975, %v3977
        %v3979 = vrot.slane %v3838, 2
        %v3980 = vrot.slane %v3747, 2
        %v3981 = vsel %vm1017, %v3979, %v3980
        %v3982 = vrot.slane %v3854, 2
        %v3983 = vsel %vm1017, %v3980, %v3982
        %v3984 = vrot.slane %v3839, 2
        %v3985 = vrot.slane %v3750, 2
        %v3986 = vsel %vm1017, %v3984, %v3985
        %v3987 = vrot.slane %v3855, 2
        %v3988 = vsel %vm1017, %v3985, %v3987
        %v3989 = vrot.slane %v3840, 2
        %v3990 = vrot.slane %v3753, 2
        %v3991 = vsel %vm1017, %v3989, %v3990
        %v3992 = vrot.slane %v3856, 2
        %v3993 = vsel %vm1017, %v3990, %v3992
        %v3994 = vrot.slane %v3841, 2
        %v3995 = vrot.slane %v3756, 2
        %v3996 = vsel %vm1017, %v3994, %v3995
        %v3997 = vrot.slane %v3857, 2
        %v3998 = vsel %vm1017, %v3995, %v3997
        %v3999 = vrot.slane %v3842, 2
        %v4000 = vrot.slane %v3759, 2
        %v4001 = vsel %vm1017, %v3999, %v4000
        %v4002 = vrot.slane %v3858, 2
        %v4003 = vsel %vm1017, %v4000, %v4002
        %v4004 = vrot.slane %v3843, 2
        %v4005 = vrot.slane %v3762, 2
        %v4006 = vsel %vm1017, %v4004, %v4005
        %v4007 = vrot.slane %v3859, 2
        %v4008 = vsel %vm1017, %v4005, %v4007
        %v4009 = vrot.slane %v3844, 2
        %v4010 = vrot.slane %v3765, 2
        %v4011 = vsel %vm1017, %v4009, %v4010
        %v4012 = vrot.slane %v3860, 2
        %v4013 = vsel %vm1017, %v4010, %v4012
        %v4014 = vrot.slane %v3845, 2
        %v4015 = vrot.slane %v3768, 2
        %v4016 = vsel %vm1017, %v4014, %v4015
        %v4017 = vrot.slane %v3861, 2
        %v4018 = vsel %vm1017, %v4015, %v4017
        %v4019 = vrot.slane %v3846, 2
        %v4020 = vrot.slane %v3771, 2
        %v4021 = vsel %vm1017, %v4019, %v4020
        %v4022 = vrot.slane %v3862, 2
        %v4023 = vsel %vm1017, %v4020, %v4022
        %v4024 = vrot.slane %v3847, 2
        %v4025 = vrot.slane %v3774, 2
        %v4026 = vsel %vm1017, %v4024, %v4025
        %v4027 = vrot.slane %v3863, 2
        %v4028 = vsel %vm1017, %v4025, %v4027
        %v4029 = vrot.slane %v3848, 2
        %v4030 = vrot.slane %v3777, 2
        %v4031 = vsel %vm1017, %v4029, %v4030
        %v4032 = vrot.slane %v3864, 2
        %v4033 = vsel %vm1017, %v4030, %v4032
        %v4034 = vrot.slane %v3849, 2
        %v4035 = vrot.slane %v3780, 2
        %v4036 = vsel %vm1017, %v4034, %v4035
        %v4037 = vrot.slane %v3865, 2
        %v4038 = vsel %vm1017, %v4035, %v4037
        %v4039 = vrot.slane %v3850, 2
        %v4040 = vrot.slane %v3783, 2
        %v4041 = vsel %vm1017, %v4039, %v4040
        %v4042 = vrot.slane %v3866, 2
        %v4043 = vsel %vm1017, %v4040, %v4042
        %v4044 = vrot.slane %v3851, 2
        %v4045 = vrot.slane %v3786, 2
        %v4046 = vsel %vm1017, %v4044, %v4045
        %v4047 = vrot.slane %v3867, 2
        %v4048 = vsel %vm1017, %v4045, %v4047
        %v4051 = vrot.slane %v3852, 1
        %v4052 = vrot.slane %v3789, 1
        %v4053 = vsel %vm936, %v4051, %v4052
        %v4054 = vrot.slane %v3868, 1
        %v4055 = vsel %vm936, %v4052, %v4054
        %v4088 = vrot.slane %v3852, 2
        %v4089 = vrot.slane %v3789, 2
        %v4090 = vsel %vm1017, %v4088, %v4089
        %v4091 = vrot.slane %v3868, 2
        %v4092 = vsel %vm1017, %v4089, %v4091
        %4123 = vrot.lane.b32.xlu0 %v3901, 32
        %v4124 = vpop.permute.xlu0 %4123
        %4125 = vrot.lane.b32.xlu0 %v3903, 32
        %v4126 = vpop.permute.xlu0 %4125
        %4127 = vrot.lane.b32.xlu0 %v3906, 32
        %v4128 = vpop.permute.xlu0 %4127
        %4129 = vrot.lane.b32.xlu0 %v3908, 32
        %v4130 = vpop.permute.xlu0 %4129
        %4131 = vrot.lane.b32.xlu0 %v3911, 32
        %v4132 = vpop.permute.xlu0 %4131
        %4133 = vrot.lane.b32.xlu0 %v3913, 32
        %v4134 = vpop.permute.xlu0 %4133
        %4135 = vrot.lane.b32.xlu0 %v3916, 32
        %v4136 = vpop.permute.xlu0 %4135
        %4137 = vrot.lane.b32.xlu0 %v3918, 32
        %v4138 = vpop.permute.xlu0 %4137
        %4139 = vrot.lane.b32.xlu0 %v3921, 32
        %v4140 = vpop.permute.xlu0 %4139
        %4141 = vrot.lane.b32.xlu0 %v3923, 32
        %v4142 = vpop.permute.xlu0 %4141
        %4143 = vrot.lane.b32.xlu0 %v3926, 32
        %v4144 = vpop.permute.xlu0 %4143
        %4145 = vrot.lane.b32.xlu0 %v3928, 32
        %v4146 = vpop.permute.xlu0 %4145
        %4147 = vrot.lane.b32.xlu0 %v3931, 32
        %v4148 = vpop.permute.xlu0 %4147
        %4149 = vrot.lane.b32.xlu0 %v3933, 32
        %v4150 = vpop.permute.xlu0 %4149
        %4151 = vrot.lane.b32.xlu0 %v3936, 32
        %v4152 = vpop.permute.xlu0 %4151
        %4153 = vrot.lane.b32.xlu0 %v3938, 32
        %v4154 = vpop.permute.xlu0 %4153
        %4155 = vrot.lane.b32.xlu0 %v3941, 32
        %v4156 = vpop.permute.xlu0 %4155
        %4157 = vrot.lane.b32.xlu0 %v3943, 32
        %v4158 = vpop.permute.xlu0 %4157
        %4159 = vrot.lane.b32.xlu0 %v3946, 32
        %v4160 = vpop.permute.xlu0 %4159
        %4161 = vrot.lane.b32.xlu0 %v3948, 32
        %v4162 = vpop.permute.xlu0 %4161
        %4163 = vrot.lane.b32.xlu0 %v3951, 32
        %v4164 = vpop.permute.xlu0 %4163
        %4165 = vrot.lane.b32.xlu0 %v3953, 32
        %v4166 = vpop.permute.xlu0 %4165
        %4167 = vrot.lane.b32.xlu0 %v3956, 32
        %v4168 = vpop.permute.xlu0 %4167
        %4169 = vrot.lane.b32.xlu0 %v3958, 32
        %v4170 = vpop.permute.xlu0 %4169
        %4171 = vrot.lane.b32.xlu0 %v3961, 32
        %v4172 = vpop.permute.xlu0 %4171
        %4173 = vrot.lane.b32.xlu0 %v3963, 32
        %v4174 = vpop.permute.xlu0 %4173
        %4175 = vrot.lane.b32.xlu0 %v3966, 32
        %v4176 = vpop.permute.xlu0 %4175
        %4177 = vrot.lane.b32.xlu0 %v3968, 32
        %v4178 = vpop.permute.xlu0 %4177
        %4179 = vrot.lane.b32.xlu0 %v3971, 32
        %v4180 = vpop.permute.xlu0 %4179
        %4181 = vrot.lane.b32.xlu0 %v3973, 32
        %v4182 = vpop.permute.xlu0 %4181
        %4213 = vrot.lane.b32.xlu0 %v3976, 64
        %v4214 = vpop.permute.xlu0 %4213
        %4215 = vrot.lane.b32.xlu0 %v3978, 64
        %v4216 = vpop.permute.xlu0 %4215
        %4217 = vrot.lane.b32.xlu0 %v3981, 64
        %v4218 = vpop.permute.xlu0 %4217
        %4219 = vrot.lane.b32.xlu0 %v3983, 64
        %v4220 = vpop.permute.xlu0 %4219
        %4221 = vrot.lane.b32.xlu0 %v3986, 64
        %v4222 = vpop.permute.xlu0 %4221
        %4223 = vrot.lane.b32.xlu0 %v3988, 64
        %v4224 = vpop.permute.xlu0 %4223
        %4225 = vrot.lane.b32.xlu0 %v3991, 64
        %v4226 = vpop.permute.xlu0 %4225
        %4227 = vrot.lane.b32.xlu0 %v3993, 64
        %v4228 = vpop.permute.xlu0 %4227
        %4229 = vrot.lane.b32.xlu0 %v3996, 64
        %v4230 = vpop.permute.xlu0 %4229
        %4231 = vrot.lane.b32.xlu0 %v3998, 64
        %v4232 = vpop.permute.xlu0 %4231
        %4233 = vrot.lane.b32.xlu0 %v4001, 64
        %v4234 = vpop.permute.xlu0 %4233
        %4235 = vrot.lane.b32.xlu0 %v4003, 64
        %v4236 = vpop.permute.xlu0 %4235
        %4237 = vrot.lane.b32.xlu0 %v4006, 64
        %v4238 = vpop.permute.xlu0 %4237
        %4239 = vrot.lane.b32.xlu0 %v4008, 64
        %v4240 = vpop.permute.xlu0 %4239
        %4241 = vrot.lane.b32.xlu0 %v4011, 64
        %v4242 = vpop.permute.xlu0 %4241
        %4243 = vrot.lane.b32.xlu0 %v4013, 64
        %v4244 = vpop.permute.xlu0 %4243
        %4245 = vrot.lane.b32.xlu0 %v4016, 64
        %v4246 = vpop.permute.xlu0 %4245
        %4247 = vrot.lane.b32.xlu0 %v4018, 64
        %v4248 = vpop.permute.xlu0 %4247
        %4249 = vrot.lane.b32.xlu0 %v4021, 64
        %v4250 = vpop.permute.xlu0 %4249
        %4251 = vrot.lane.b32.xlu0 %v4023, 64
        %v4252 = vpop.permute.xlu0 %4251
        %4253 = vrot.lane.b32.xlu0 %v4026, 64
        %v4254 = vpop.permute.xlu0 %4253
        %4255 = vrot.lane.b32.xlu0 %v4028, 64
        %v4256 = vpop.permute.xlu0 %4255
        %4257 = vrot.lane.b32.xlu0 %v4031, 64
        %v4258 = vpop.permute.xlu0 %4257
        %4259 = vrot.lane.b32.xlu0 %v4033, 64
        %v4260 = vpop.permute.xlu0 %4259
        %4261 = vrot.lane.b32.xlu0 %v4036, 64
        %v4262 = vpop.permute.xlu0 %4261
        %4263 = vrot.lane.b32.xlu0 %v4038, 64
        %v4264 = vpop.permute.xlu0 %4263
        %4265 = vrot.lane.b32.xlu0 %v4041, 64
        %v4266 = vpop.permute.xlu0 %4265
        %4267 = vrot.lane.b32.xlu0 %v4043, 64
        %v4268 = vpop.permute.xlu0 %4267
        %4269 = vrot.lane.b32.xlu0 %v4046, 64
        %v4270 = vpop.permute.xlu0 %4269
        %4271 = vrot.lane.b32.xlu0 %v4048, 64
        %v4272 = vpop.permute.xlu0 %4271
        %4303 = vrot.lane.b32.xlu0 %v3837, 96
        %v4304 = vpop.permute.xlu0 %4303
        %4305 = vrot.lane.b32.xlu0 %v3744, 96
        %v4306 = vpop.permute.xlu0 %4305
        %4307 = vrot.lane.b32.xlu0 %v3838, 96
        %v4308 = vpop.permute.xlu0 %4307
        %4309 = vrot.lane.b32.xlu0 %v3747, 96
        %v4310 = vpop.permute.xlu0 %4309
        %4311 = vrot.lane.b32.xlu0 %v3839, 96
        %v4312 = vpop.permute.xlu0 %4311
        %4313 = vrot.lane.b32.xlu0 %v3750, 96
        %v4314 = vpop.permute.xlu0 %4313
        %4315 = vrot.lane.b32.xlu0 %v3840, 96
        %v4316 = vpop.permute.xlu0 %4315
        %4317 = vrot.lane.b32.xlu0 %v3753, 96
        %v4318 = vpop.permute.xlu0 %4317
        %4319 = vrot.lane.b32.xlu0 %v3841, 96
        %v4320 = vpop.permute.xlu0 %4319
        %4321 = vrot.lane.b32.xlu0 %v3756, 96
        %v4322 = vpop.permute.xlu0 %4321
        %4323 = vrot.lane.b32.xlu0 %v3842, 96
        %v4324 = vpop.permute.xlu0 %4323
        %4325 = vrot.lane.b32.xlu0 %v3759, 96
        %v4326 = vpop.permute.xlu0 %4325
        %4327 = vrot.lane.b32.xlu0 %v3843, 96
        %v4328 = vpop.permute.xlu0 %4327
        %4329 = vrot.lane.b32.xlu0 %v3762, 96
        %v4330 = vpop.permute.xlu0 %4329
        %4331 = vrot.lane.b32.xlu0 %v3844, 96
        %v4332 = vpop.permute.xlu0 %4331
        %4333 = vrot.lane.b32.xlu0 %v3765, 96
        %v4334 = vpop.permute.xlu0 %4333
        %4335 = vrot.lane.b32.xlu0 %v3845, 96
        %v4336 = vpop.permute.xlu0 %4335
        %4337 = vrot.lane.b32.xlu0 %v3768, 96
        %v4338 = vpop.permute.xlu0 %4337
        %4339 = vrot.lane.b32.xlu0 %v3846, 96
        %v4340 = vpop.permute.xlu0 %4339
        %4341 = vrot.lane.b32.xlu0 %v3771, 96
        %v4342 = vpop.permute.xlu0 %4341
        %4343 = vrot.lane.b32.xlu0 %v3847, 96
        %v4344 = vpop.permute.xlu0 %4343
        %4345 = vrot.lane.b32.xlu0 %v3774, 96
        %v4346 = vpop.permute.xlu0 %4345
        %4347 = vrot.lane.b32.xlu0 %v3848, 96
        %v4348 = vpop.permute.xlu0 %4347
        %4349 = vrot.lane.b32.xlu0 %v3777, 96
        %v4350 = vpop.permute.xlu0 %4349
        %4351 = vrot.lane.b32.xlu0 %v3849, 96
        %v4352 = vpop.permute.xlu0 %4351
        %4353 = vrot.lane.b32.xlu0 %v3780, 96
        %v4354 = vpop.permute.xlu0 %4353
        %4355 = vrot.lane.b32.xlu0 %v3850, 96
        %v4356 = vpop.permute.xlu0 %4355
        %4357 = vrot.lane.b32.xlu0 %v3783, 96
        %v4358 = vpop.permute.xlu0 %4357
        %4359 = vrot.lane.b32.xlu0 %v3851, 96
        %v4360 = vpop.permute.xlu0 %4359
        %4361 = vrot.lane.b32.xlu0 %v3786, 96
        %v4362 = vpop.permute.xlu0 %4361
        %4363 = vrot.lane.b32.xlu0 %v3852, 96
        %v4364 = vpop.permute.xlu0 %4363
        %4365 = vrot.lane.b32.xlu0 %v3789, 96
        %v4366 = vpop.permute.xlu0 %4365
        %4399 = vrot.lane.b32.xlu0 %v3976, 32
        %v4400 = vpop.permute.xlu0 %4399
        %4401 = vrot.lane.b32.xlu0 %v3978, 32
        %v4402 = vpop.permute.xlu0 %4401
        %4403 = vrot.lane.b32.xlu0 %v3981, 32
        %v4404 = vpop.permute.xlu0 %4403
        %4405 = vrot.lane.b32.xlu0 %v3983, 32
        %v4406 = vpop.permute.xlu0 %4405
        %4407 = vrot.lane.b32.xlu0 %v3986, 32
        %v4408 = vpop.permute.xlu0 %4407
        %4409 = vrot.lane.b32.xlu0 %v3988, 32
        %v4410 = vpop.permute.xlu0 %4409
        %4411 = vrot.lane.b32.xlu0 %v3991, 32
        %v4412 = vpop.permute.xlu0 %4411
        %4413 = vrot.lane.b32.xlu0 %v3993, 32
        %v4414 = vpop.permute.xlu0 %4413
        %4415 = vrot.lane.b32.xlu0 %v3996, 32
        %v4416 = vpop.permute.xlu0 %4415
        %4417 = vrot.lane.b32.xlu0 %v3998, 32
        %v4418 = vpop.permute.xlu0 %4417
        %4419 = vrot.lane.b32.xlu0 %v4001, 32
        %v4420 = vpop.permute.xlu0 %4419
        %4421 = vrot.lane.b32.xlu0 %v4003, 32
        %v4422 = vpop.permute.xlu0 %4421
        %4423 = vrot.lane.b32.xlu0 %v4006, 32
        %v4424 = vpop.permute.xlu0 %4423
        %4425 = vrot.lane.b32.xlu0 %v4008, 32
        %v4426 = vpop.permute.xlu0 %4425
        %4427 = vrot.lane.b32.xlu0 %v4011, 32
        %v4428 = vpop.permute.xlu0 %4427
        %4429 = vrot.lane.b32.xlu0 %v4013, 32
        %v4430 = vpop.permute.xlu0 %4429
        %4431 = vrot.lane.b32.xlu0 %v4016, 32
        %v4432 = vpop.permute.xlu0 %4431
        %4433 = vrot.lane.b32.xlu0 %v4018, 32
        %v4434 = vpop.permute.xlu0 %4433
        %4435 = vrot.lane.b32.xlu0 %v4021, 32
        %v4436 = vpop.permute.xlu0 %4435
        %4437 = vrot.lane.b32.xlu0 %v4023, 32
        %v4438 = vpop.permute.xlu0 %4437
        %4439 = vrot.lane.b32.xlu0 %v4026, 32
        %v4440 = vpop.permute.xlu0 %4439
        %4441 = vrot.lane.b32.xlu0 %v4028, 32
        %v4442 = vpop.permute.xlu0 %4441
        %4443 = vrot.lane.b32.xlu0 %v4031, 32
        %v4444 = vpop.permute.xlu0 %4443
        %4445 = vrot.lane.b32.xlu0 %v4033, 32
        %v4446 = vpop.permute.xlu0 %4445
        %4447 = vrot.lane.b32.xlu0 %v4036, 32
        %v4448 = vpop.permute.xlu0 %4447
        %4449 = vrot.lane.b32.xlu0 %v4038, 32
        %v4450 = vpop.permute.xlu0 %4449
        %4451 = vrot.lane.b32.xlu0 %v4041, 32
        %v4452 = vpop.permute.xlu0 %4451
        %4453 = vrot.lane.b32.xlu0 %v4043, 32
        %v4454 = vpop.permute.xlu0 %4453
        %4455 = vrot.lane.b32.xlu0 %v4046, 32
        %v4456 = vpop.permute.xlu0 %4455
        %4457 = vrot.lane.b32.xlu0 %v4048, 32
        %v4458 = vpop.permute.xlu0 %4457
        %4459 = vrot.lane.b32.xlu0 %v4090, 32
        %v4460 = vpop.permute.xlu0 %4459
        %4461 = vrot.lane.b32.xlu0 %v4092, 32
        %v4462 = vpop.permute.xlu0 %4461
        %4495 = vrot.lane.b32.xlu0 %v3838, 64
        %v4496 = vpop.permute.xlu0 %4495
        %4497 = vrot.lane.b32.xlu0 %v3747, 64
        %v4498 = vpop.permute.xlu0 %4497
        %4499 = vrot.lane.b32.xlu0 %v3839, 64
        %v4500 = vpop.permute.xlu0 %4499
        %4501 = vrot.lane.b32.xlu0 %v3750, 64
        %v4502 = vpop.permute.xlu0 %4501
        %4503 = vrot.lane.b32.xlu0 %v3840, 64
        %v4504 = vpop.permute.xlu0 %4503
        %4505 = vrot.lane.b32.xlu0 %v3753, 64
        %v4506 = vpop.permute.xlu0 %4505
        %4507 = vrot.lane.b32.xlu0 %v3841, 64
        %v4508 = vpop.permute.xlu0 %4507
        %4509 = vrot.lane.b32.xlu0 %v3756, 64
        %v4510 = vpop.permute.xlu0 %4509
        %4511 = vrot.lane.b32.xlu0 %v3842, 64
        %v4512 = vpop.permute.xlu0 %4511
        %4513 = vrot.lane.b32.xlu0 %v3759, 64
        %v4514 = vpop.permute.xlu0 %4513
        %4515 = vrot.lane.b32.xlu0 %v3843, 64
        %v4516 = vpop.permute.xlu0 %4515
        %4517 = vrot.lane.b32.xlu0 %v3762, 64
        %v4518 = vpop.permute.xlu0 %4517
        %4519 = vrot.lane.b32.xlu0 %v3844, 64
        %v4520 = vpop.permute.xlu0 %4519
        %4521 = vrot.lane.b32.xlu0 %v3765, 64
        %v4522 = vpop.permute.xlu0 %4521
        %4523 = vrot.lane.b32.xlu0 %v3845, 64
        %v4524 = vpop.permute.xlu0 %4523
        %4525 = vrot.lane.b32.xlu0 %v3768, 64
        %v4526 = vpop.permute.xlu0 %4525
        %4527 = vrot.lane.b32.xlu0 %v3846, 64
        %v4528 = vpop.permute.xlu0 %4527
        %4529 = vrot.lane.b32.xlu0 %v3771, 64
        %v4530 = vpop.permute.xlu0 %4529
        %4531 = vrot.lane.b32.xlu0 %v3847, 64
        %v4532 = vpop.permute.xlu0 %4531
        %4533 = vrot.lane.b32.xlu0 %v3774, 64
        %v4534 = vpop.permute.xlu0 %4533
        %4535 = vrot.lane.b32.xlu0 %v3848, 64
        %v4536 = vpop.permute.xlu0 %4535
        %4537 = vrot.lane.b32.xlu0 %v3777, 64
        %v4538 = vpop.permute.xlu0 %4537
        %4539 = vrot.lane.b32.xlu0 %v3849, 64
        %v4540 = vpop.permute.xlu0 %4539
        %4541 = vrot.lane.b32.xlu0 %v3780, 64
        %v4542 = vpop.permute.xlu0 %4541
        %4543 = vrot.lane.b32.xlu0 %v3850, 64
        %v4544 = vpop.permute.xlu0 %4543
        %4545 = vrot.lane.b32.xlu0 %v3783, 64
        %v4546 = vpop.permute.xlu0 %4545
        %4547 = vrot.lane.b32.xlu0 %v3851, 64
        %v4548 = vpop.permute.xlu0 %4547
        %4549 = vrot.lane.b32.xlu0 %v3786, 64
        %v4550 = vpop.permute.xlu0 %4549
        %4551 = vrot.lane.b32.xlu0 %v3852, 64
        %v4552 = vpop.permute.xlu0 %4551
        %4553 = vrot.lane.b32.xlu0 %v3789, 64
        %v4554 = vpop.permute.xlu0 %4553
        %4585 = vrot.lane.b32.xlu0 %v3906, 96
        %v4586 = vpop.permute.xlu0 %4585
        %4587 = vrot.lane.b32.xlu0 %v3908, 96
        %v4588 = vpop.permute.xlu0 %4587
        %4589 = vrot.lane.b32.xlu0 %v3911, 96
        %v4590 = vpop.permute.xlu0 %4589
        %4591 = vrot.lane.b32.xlu0 %v3913, 96
        %v4592 = vpop.permute.xlu0 %4591
        %4593 = vrot.lane.b32.xlu0 %v3916, 96
        %v4594 = vpop.permute.xlu0 %4593
        %4595 = vrot.lane.b32.xlu0 %v3918, 96
        %v4596 = vpop.permute.xlu0 %4595
        %4597 = vrot.lane.b32.xlu0 %v3921, 96
        %v4598 = vpop.permute.xlu0 %4597
        %4599 = vrot.lane.b32.xlu0 %v3923, 96
        %v4600 = vpop.permute.xlu0 %4599
        %4601 = vrot.lane.b32.xlu0 %v3926, 96
        %v4602 = vpop.permute.xlu0 %4601
        %4603 = vrot.lane.b32.xlu0 %v3928, 96
        %v4604 = vpop.permute.xlu0 %4603
        %4605 = vrot.lane.b32.xlu0 %v3931, 96
        %v4606 = vpop.permute.xlu0 %4605
        %4607 = vrot.lane.b32.xlu0 %v3933, 96
        %v4608 = vpop.permute.xlu0 %4607
        %4609 = vrot.lane.b32.xlu0 %v3936, 96
        %v4610 = vpop.permute.xlu0 %4609
        %4611 = vrot.lane.b32.xlu0 %v3938, 96
        %v4612 = vpop.permute.xlu0 %4611
        %4613 = vrot.lane.b32.xlu0 %v3941, 96
        %v4614 = vpop.permute.xlu0 %4613
        %4615 = vrot.lane.b32.xlu0 %v3943, 96
        %v4616 = vpop.permute.xlu0 %4615
        %4617 = vrot.lane.b32.xlu0 %v3946, 96
        %v4618 = vpop.permute.xlu0 %4617
        %4619 = vrot.lane.b32.xlu0 %v3948, 96
        %v4620 = vpop.permute.xlu0 %4619
        %4621 = vrot.lane.b32.xlu0 %v3951, 96
        %v4622 = vpop.permute.xlu0 %4621
        %4623 = vrot.lane.b32.xlu0 %v3953, 96
        %v4624 = vpop.permute.xlu0 %4623
        %4625 = vrot.lane.b32.xlu0 %v3956, 96
        %v4626 = vpop.permute.xlu0 %4625
        %4627 = vrot.lane.b32.xlu0 %v3958, 96
        %v4628 = vpop.permute.xlu0 %4627
        %4629 = vrot.lane.b32.xlu0 %v3961, 96
        %v4630 = vpop.permute.xlu0 %4629
        %4631 = vrot.lane.b32.xlu0 %v3963, 96
        %v4632 = vpop.permute.xlu0 %4631
        %4633 = vrot.lane.b32.xlu0 %v3966, 96
        %v4634 = vpop.permute.xlu0 %4633
        %4635 = vrot.lane.b32.xlu0 %v3968, 96
        %v4636 = vpop.permute.xlu0 %4635
        %4637 = vrot.lane.b32.xlu0 %v3971, 96
        %v4638 = vpop.permute.xlu0 %4637
        %4639 = vrot.lane.b32.xlu0 %v3973, 96
        %v4640 = vpop.permute.xlu0 %4639
        %4641 = vrot.lane.b32.xlu0 %v4053, 96
        %v4642 = vpop.permute.xlu0 %4641
        %4643 = vrot.lane.b32.xlu0 %v4055, 96
        %v4644 = vpop.permute.xlu0 %4643
        %v4675 = vsel %vm1750, %v3837, %v4124
        %v4676 = vsel %vm1750, %v3744, %v4126
        %v4677 = vsel %vm1750, %v3838, %v4128
        %v4678 = vsel %vm1750, %v3747, %v4130
        %v4679 = vsel %vm1750, %v3839, %v4132
        %v4680 = vsel %vm1750, %v3750, %v4134
        %v4681 = vsel %vm1750, %v3840, %v4136
        %v4682 = vsel %vm1750, %v3753, %v4138
        %v4683 = vsel %vm1750, %v3841, %v4140
        %v4684 = vsel %vm1750, %v3756, %v4142
        %v4685 = vsel %vm1750, %v3842, %v4144
        %v4686 = vsel %vm1750, %v3759, %v4146
        %v4687 = vsel %vm1750, %v3843, %v4148
        %v4688 = vsel %vm1750, %v3762, %v4150
        %v4689 = vsel %vm1750, %v3844, %v4152
        %v4690 = vsel %vm1750, %v3765, %v4154
        %v4691 = vsel %vm1750, %v3845, %v4156
        %v4692 = vsel %vm1750, %v3768, %v4158
        %v4693 = vsel %vm1750, %v3846, %v4160
        %v4694 = vsel %vm1750, %v3771, %v4162
        %v4695 = vsel %vm1750, %v3847, %v4164
        %v4696 = vsel %vm1750, %v3774, %v4166
        %v4697 = vsel %vm1750, %v3848, %v4168
        %v4698 = vsel %vm1750, %v3777, %v4170
        %v4699 = vsel %vm1750, %v3849, %v4172
        %v4700 = vsel %vm1750, %v3780, %v4174
        %v4701 = vsel %vm1750, %v3850, %v4176
        %v4702 = vsel %vm1750, %v3783, %v4178
        %v4703 = vsel %vm1750, %v3851, %v4180
        %v4704 = vsel %vm1750, %v3786, %v4182
        %v4705 = vsel %vm1783, %v4675, %v4214
        %v4706 = vsel %vm1783, %v4676, %v4216
        %v4707 = vsel %vm1783, %v4677, %v4218
        %v4708 = vsel %vm1783, %v4678, %v4220
        %v4709 = vsel %vm1783, %v4679, %v4222
        %v4710 = vsel %vm1783, %v4680, %v4224
        %v4711 = vsel %vm1783, %v4681, %v4226
        %v4712 = vsel %vm1783, %v4682, %v4228
        %v4713 = vsel %vm1783, %v4683, %v4230
        %v4714 = vsel %vm1783, %v4684, %v4232
        %v4715 = vsel %vm1783, %v4685, %v4234
        %v4716 = vsel %vm1783, %v4686, %v4236
        %v4717 = vsel %vm1783, %v4687, %v4238
        %v4718 = vsel %vm1783, %v4688, %v4240
        %v4719 = vsel %vm1783, %v4689, %v4242
        %v4720 = vsel %vm1783, %v4690, %v4244
        %v4721 = vsel %vm1783, %v4691, %v4246
        %v4722 = vsel %vm1783, %v4692, %v4248
        %v4723 = vsel %vm1783, %v4693, %v4250
        %v4724 = vsel %vm1783, %v4694, %v4252
        %v4725 = vsel %vm1783, %v4695, %v4254
        %v4726 = vsel %vm1783, %v4696, %v4256
        %v4727 = vsel %vm1783, %v4697, %v4258
        %v4728 = vsel %vm1783, %v4698, %v4260
        %v4729 = vsel %vm1783, %v4699, %v4262
        %v4730 = vsel %vm1783, %v4700, %v4264
        %v4731 = vsel %vm1783, %v4701, %v4266
        %v4732 = vsel %vm1783, %v4702, %v4268
        %v4733 = vsel %vm1783, %v4703, %v4270
        %v4734 = vsel %vm1783, %v4704, %v4272
        %v4735 = vsel %vm1816, %v1784, %v4304
        %v4736 = vsel %vm1816, %v1785, %v4306
        %v4737 = vsel %vm1816, %v4705, %v4308
        %v4738 = vsel %vm1816, %v4706, %v4310
        %v4739 = vsel %vm1816, %v4707, %v4312
        %v4740 = vsel %vm1816, %v4708, %v4314
        %v4741 = vsel %vm1816, %v4709, %v4316
        %v4742 = vsel %vm1816, %v4710, %v4318
        %v4743 = vsel %vm1816, %v4711, %v4320
        %v4744 = vsel %vm1816, %v4712, %v4322
        %v4745 = vsel %vm1816, %v4713, %v4324
        %v4746 = vsel %vm1816, %v4714, %v4326
        %v4747 = vsel %vm1816, %v4715, %v4328
        %v4748 = vsel %vm1816, %v4716, %v4330
        %v4749 = vsel %vm1816, %v4717, %v4332
        %v4750 = vsel %vm1816, %v4718, %v4334
        %v4751 = vsel %vm1816, %v4719, %v4336
        %v4752 = vsel %vm1816, %v4720, %v4338
        %v4753 = vsel %vm1816, %v4721, %v4340
        %v4754 = vsel %vm1816, %v4722, %v4342
        %v4755 = vsel %vm1816, %v4723, %v4344
        %v4756 = vsel %vm1816, %v4724, %v4346
        %v4757 = vsel %vm1816, %v4725, %v4348
        %v4758 = vsel %vm1816, %v4726, %v4350
        %v4759 = vsel %vm1816, %v4727, %v4352
        %v4760 = vsel %vm1816, %v4728, %v4354
        %v4761 = vsel %vm1816, %v4729, %v4356
        %v4762 = vsel %vm1816, %v4730, %v4358
        %v4763 = vsel %vm1816, %v4731, %v4360
        %v4764 = vsel %vm1816, %v4732, %v4362
        %v4765 = vsel %vm1816, %v4733, %v4364
        %v4766 = vsel %vm1816, %v4734, %v4366
        %v4767 = vsel %vm1750, %v3901, %v4400
        %v4768 = vsel %vm1750, %v3903, %v4402
        %v4769 = vsel %vm1750, %v3906, %v4404
        %v4770 = vsel %vm1750, %v3908, %v4406
        %v4771 = vsel %vm1750, %v3911, %v4408
        %v4772 = vsel %vm1750, %v3913, %v4410
        %v4773 = vsel %vm1750, %v3916, %v4412
        %v4774 = vsel %vm1750, %v3918, %v4414
        %v4775 = vsel %vm1750, %v3921, %v4416
        %v4776 = vsel %vm1750, %v3923, %v4418
        %v4777 = vsel %vm1750, %v3926, %v4420
        %v4778 = vsel %vm1750, %v3928, %v4422
        %v4779 = vsel %vm1750, %v3931, %v4424
        %v4780 = vsel %vm1750, %v3933, %v4426
        %v4781 = vsel %vm1750, %v3936, %v4428
        %v4782 = vsel %vm1750, %v3938, %v4430
        %v4783 = vsel %vm1750, %v3941, %v4432
        %v4784 = vsel %vm1750, %v3943, %v4434
        %v4785 = vsel %vm1750, %v3946, %v4436
        %v4786 = vsel %vm1750, %v3948, %v4438
        %v4787 = vsel %vm1750, %v3951, %v4440
        %v4788 = vsel %vm1750, %v3953, %v4442
        %v4789 = vsel %vm1750, %v3956, %v4444
        %v4790 = vsel %vm1750, %v3958, %v4446
        %v4791 = vsel %vm1750, %v3961, %v4448
        %v4792 = vsel %vm1750, %v3963, %v4450
        %v4793 = vsel %vm1750, %v3966, %v4452
        %v4794 = vsel %vm1750, %v3968, %v4454
        %v4795 = vsel %vm1750, %v3971, %v4456
        %v4796 = vsel %vm1750, %v3973, %v4458
        %v4797 = vsel %vm1750, %v4053, %v4460
        %v4798 = vsel %vm1750, %v4055, %v4462
        %v4799 = vsel %vm1783, %v4767, %v4496
        %v4800 = vsel %vm1783, %v4768, %v4498
        %v4801 = vsel %vm1783, %v4769, %v4500
        %v4802 = vsel %vm1783, %v4770, %v4502
        %v4803 = vsel %vm1783, %v4771, %v4504
        %v4804 = vsel %vm1783, %v4772, %v4506
        %v4805 = vsel %vm1783, %v4773, %v4508
        %v4806 = vsel %vm1783, %v4774, %v4510
        %v4807 = vsel %vm1783, %v4775, %v4512
        %v4808 = vsel %vm1783, %v4776, %v4514
        %v4809 = vsel %vm1783, %v4777, %v4516
        %v4810 = vsel %vm1783, %v4778, %v4518
        %v4811 = vsel %vm1783, %v4779, %v4520
        %v4812 = vsel %vm1783, %v4780, %v4522
        %v4813 = vsel %vm1783, %v4781, %v4524
        %v4814 = vsel %vm1783, %v4782, %v4526
        %v4815 = vsel %vm1783, %v4783, %v4528
        %v4816 = vsel %vm1783, %v4784, %v4530
        %v4817 = vsel %vm1783, %v4785, %v4532
        %v4818 = vsel %vm1783, %v4786, %v4534
        %v4819 = vsel %vm1783, %v4787, %v4536
        %v4820 = vsel %vm1783, %v4788, %v4538
        %v4821 = vsel %vm1783, %v4789, %v4540
        %v4822 = vsel %vm1783, %v4790, %v4542
        %v4823 = vsel %vm1783, %v4791, %v4544
        %v4824 = vsel %vm1783, %v4792, %v4546
        %v4825 = vsel %vm1783, %v4793, %v4548
        %v4826 = vsel %vm1783, %v4794, %v4550
        %v4827 = vsel %vm1783, %v4795, %v4552
        %v4828 = vsel %vm1783, %v4796, %v4554
        %v4829 = vsel %vm1783, %v4797, %v1619
        %v4830 = vsel %vm1783, %v4798, %v1621
        %v4831 = vsel %vm1816, %v4799, %v4586
        %v4832 = vsel %vm1816, %v4800, %v4588
        %v4833 = vsel %vm1816, %v4801, %v4590
        %v4834 = vsel %vm1816, %v4802, %v4592
        %v4835 = vsel %vm1816, %v4803, %v4594
        %v4836 = vsel %vm1816, %v4804, %v4596
        %v4837 = vsel %vm1816, %v4805, %v4598
        %v4838 = vsel %vm1816, %v4806, %v4600
        %v4839 = vsel %vm1816, %v4807, %v4602
        %v4840 = vsel %vm1816, %v4808, %v4604
        %v4841 = vsel %vm1816, %v4809, %v4606
        %v4842 = vsel %vm1816, %v4810, %v4608
        %v4843 = vsel %vm1816, %v4811, %v4610
        %v4844 = vsel %vm1816, %v4812, %v4612
        %v4845 = vsel %vm1816, %v4813, %v4614
        %v4846 = vsel %vm1816, %v4814, %v4616
        %v4847 = vsel %vm1816, %v4815, %v4618
        %v4848 = vsel %vm1816, %v4816, %v4620
        %v4849 = vsel %vm1816, %v4817, %v4622
        %v4850 = vsel %vm1816, %v4818, %v4624
        %v4851 = vsel %vm1816, %v4819, %v4626
        %v4852 = vsel %vm1816, %v4820, %v4628
        %v4853 = vsel %vm1816, %v4821, %v4630
        %v4854 = vsel %vm1816, %v4822, %v4632
        %v4855 = vsel %vm1816, %v4823, %v4634
        %v4856 = vsel %vm1816, %v4824, %v4636
        %v4857 = vsel %vm1816, %v4825, %v4638
        %v4858 = vsel %vm1816, %v4826, %v4640
        %v4859 = vsel %vm1816, %v4827, %v4642
        %v4860 = vsel %vm1816, %v4828, %v4644
        %v4861 = vsel %vm1816, %v4829, %v1715
        %v4862 = vsel %vm1816, %v4830, %v1717
        %v4863 = vpack.c.bf16 %v4736, %v4735
        %v4864 = vpack.c.bf16 %v4832, %v4831
        %v4865 = vpack.c.bf16 %v3983, %v3981
        %v4866 = vpack.c.bf16 %v4738, %v4737
        %v4867 = vpack.c.bf16 %v4834, %v4833
        %v4868 = vpack.c.bf16 %v3988, %v3986
        %v4869 = vpack.c.bf16 %v4740, %v4739
        %v4870 = vpack.c.bf16 %v4836, %v4835
        %v4871 = vpack.c.bf16 %v3993, %v3991
        %v4872 = vpack.c.bf16 %v4742, %v4741
        %v4873 = vpack.c.bf16 %v4838, %v4837
        %v4874 = vpack.c.bf16 %v3998, %v3996
        %v4875 = vpack.c.bf16 %v4744, %v4743
        %v4876 = vpack.c.bf16 %v4840, %v4839
        %v4877 = vpack.c.bf16 %v4003, %v4001
        %v4878 = vpack.c.bf16 %v4746, %v4745
        %v4879 = vpack.c.bf16 %v4842, %v4841
        %v4880 = vpack.c.bf16 %v4008, %v4006
        %v4881 = vpack.c.bf16 %v4748, %v4747
        %v4882 = vpack.c.bf16 %v4844, %v4843
        %v4883 = vpack.c.bf16 %v4013, %v4011
        %v4884 = vpack.c.bf16 %v4750, %v4749
        %v4885 = vpack.c.bf16 %v4846, %v4845
        %v4886 = vpack.c.bf16 %v4018, %v4016
        %v4887 = vpack.c.bf16 %v4752, %v4751
        %v4888 = vpack.c.bf16 %v4848, %v4847
        %v4889 = vpack.c.bf16 %v4023, %v4021
        %v4890 = vpack.c.bf16 %v4754, %v4753
        %v4891 = vpack.c.bf16 %v4850, %v4849
        %v4892 = vpack.c.bf16 %v4028, %v4026
        %v4893 = vpack.c.bf16 %v4756, %v4755
        %v4894 = vpack.c.bf16 %v4852, %v4851
        %v4895 = vpack.c.bf16 %v4033, %v4031
        %v4896 = vpack.c.bf16 %v4758, %v4757
        %v4897 = vpack.c.bf16 %v4854, %v4853
        %v4898 = vpack.c.bf16 %v4038, %v4036
        %v4899 = vpack.c.bf16 %v4760, %v4759
        %v4900 = vpack.c.bf16 %v4856, %v4855
        %v4901 = vpack.c.bf16 %v4043, %v4041
        %v4902 = vpack.c.bf16 %v4762, %v4761
        %v4903 = vpack.c.bf16 %v4858, %v4857
        %v4904 = vpack.c.bf16 %v4048, %v4046
        %v4905 = vpack.c.bf16 %v4764, %v4763
        %v4906 = vpack.c.bf16 %v4860, %v4859
        %v4907 = vpack.c.bf16 %v4092, %v4090
        %v4908 = vpack.c.bf16 %v4766, %v4765
        %v4909 = vpack.c.bf16 %v4862, %v4861
        %v4910 = vld [vmem:[%s10] sm:$0xf]
        %v4911 = vld [vmem:[%s10 + $0x4] sm:$0xf]
        %v4912 = vld [vmem:[%s10 + $0x8] sm:$0xf]
        %v4913 = vld [vmem:[%s10 + $0xc] sm:$0xf]
        %v4914 = vld [vmem:[%s10 + $0x10] sm:$0xf]
        %v4915 = vld [vmem:[%s10 + $0x14] sm:$0xf]
        %v4916 = vld [vmem:[%s10 + $0x18] sm:$0xf]
        %v4917 = vld [vmem:[%s10 + $0x1c] sm:$0xf]
        %v4918 = vld [vmem:[%s10 + $0x20] sm:$0xf]
        %v4919 = vld [vmem:[%s10 + $0x24] sm:$0xf]
        %v4920 = vld [vmem:[%s10 + $0x28] sm:$0xf]
        %v4921 = vld [vmem:[%s10 + $0x2c] sm:$0xf]
        %v4922 = vld [vmem:[%s10 + $0x30] sm:$0xf]
        %v4923 = vld [vmem:[%s10 + $0x34] sm:$0xf]
        %v4924 = vld [vmem:[%s10 + $0x38] sm:$0xf]
        %v4925 = vld [vmem:[%s10 + $0x3c] sm:$0xf]
        %v4926 = vld [vmem:[%s10 + $0x40] sm:$0xf]
        %v4927 = vld [vmem:[%s10 + $0x44] sm:$0xf]
        %v4928 = vld [vmem:[%s10 + $0x48] sm:$0xf]
        %v4929 = vld [vmem:[%s10 + $0x4c] sm:$0xf]
        %v4930 = vld [vmem:[%s10 + $0x50] sm:$0xf]
        %v4931 = vld [vmem:[%s10 + $0x54] sm:$0xf]
        %v4932 = vld [vmem:[%s10 + $0x58] sm:$0xf]
        %v4933 = vld [vmem:[%s10 + $0x5c] sm:$0xf]
        %v4934 = vld [vmem:[%s10 + $0x60] sm:$0xf]
        %v4935 = vld [vmem:[%s10 + $0x64] sm:$0xf]
        %v4936 = vld [vmem:[%s10 + $0x68] sm:$0xf]
        %v4937 = vld [vmem:[%s10 + $0x6c] sm:$0xf]
        %v4938 = vld [vmem:[%s10 + $0x70] sm:$0xf]
        %v4939 = vld [vmem:[%s10 + $0x74] sm:$0xf]
        %v4940 = vld [vmem:[%s10 + $0x78] sm:$0xf]
        %v4941 = vld [vmem:[%s10 + $0x7c] sm:$0xf]
        %v4942 = vld [vmem:[%s10 + $0x80] sm:$0xf]
        %v4943 = vld [vmem:[%s10 + $0x84] sm:$0xf]
        %v4944 = vld [vmem:[%s10 + $0x88] sm:$0xf]
        %v4945 = vld [vmem:[%s10 + $0x8c] sm:$0xf]
        %v4946 = vld [vmem:[%s11] sm:$0x1]
        %v4948 = vperm.slane %v4946, 0
        %v4986 = vunpack.c.l.b16 %v4910
        %v4987 = vunpack.c.l.b16 %v4911
        %v4988 = vunpack.c.l.b16 %v4912
        %v4989 = vunpack.c.l.b16 %v4913
        %v4990 = vunpack.c.l.b16 %v4914
        %v4991 = vunpack.c.l.b16 %v4915
        %v4992 = vunpack.c.l.b16 %v4916
        %v4993 = vunpack.c.l.b16 %v4917
        %v4994 = vunpack.c.l.b16 %v4918
        %v4995 = vunpack.c.l.b16 %v4919
        %v4996 = vunpack.c.l.b16 %v4920
        %v4997 = vunpack.c.l.b16 %v4921
        %v4998 = vunpack.c.l.b16 %v4922
        %v4999 = vunpack.c.l.b16 %v4923
        %v5000 = vunpack.c.l.b16 %v4924
        %v5001 = vunpack.c.l.b16 %v4925
        %v5002 = vunpack.c.l.b16 %v4926
        %v5003 = vunpack.c.l.b16 %v4927
        %v5004 = vunpack.c.l.b16 %v4928
        %v5005 = vunpack.c.l.b16 %v4929
        %v5006 = vunpack.c.l.b16 %v4930
        %v5007 = vunpack.c.l.b16 %v4931
        %v5008 = vunpack.c.l.b16 %v4932
        %v5009 = vunpack.c.l.b16 %v4933
        %v5010 = vunpack.c.l.b16 %v4934
        %v5011 = vunpack.c.l.b16 %v4935
        %v5012 = vunpack.c.l.b16 %v4936
        %v5013 = vunpack.c.l.b16 %v4937
        %v5014 = vunpack.c.l.b16 %v4938
        %v5015 = vunpack.c.l.b16 %v4939
        %v5016 = vunpack.c.l.b16 %v4940
        %v5017 = vunpack.c.l.b16 %v4941
        %v5018 = vunpack.c.l.b16 %v4942
        %v5019 = vunpack.c.l.b16 %v4943
        %v5020 = vunpack.c.l.b16 %v4944
        %v5021 = vunpack.c.l.b16 %v4945
        %v5022 = vpack.c.b16 %v4987, %v4986
        %v5023 = vpack.c.b16 %v4989, %v4988
        %v5024 = vpack.c.b16 %v4991, %v4990
        %v5025 = vpack.c.b16 %v4993, %v4992
        %v5026 = vpack.c.b16 %v4995, %v4994
        %v5027 = vpack.c.b16 %v4997, %v4996
        %v5028 = vpack.c.b16 %v4999, %v4998
        %v5029 = vpack.c.b16 %v5001, %v5000
        %v5030 = vpack.c.b16 %v5003, %v5002
        %v5031 = vpack.c.b16 %v5005, %v5004
        %v5032 = vpack.c.b16 %v5007, %v5006
        %v5033 = vpack.c.b16 %v5009, %v5008
        %v5034 = vpack.c.b16 %v5011, %v5010
        %v5035 = vpack.c.b16 %v5013, %v5012
        %v5036 = vpack.c.b16 %v5015, %v5014
        %v5037 = vpack.c.b16 %v5017, %v5016
        %v5038 = vpack.c.b16 %v5019, %v5018
        %v5039 = vpack.c.b16 %v5021, %v5020
        %v5059 = vsel %vm1750, %v4865, 0
        %v5062 = vsel %vm1750, %v4868, 0
        %v5065 = vsel %vm1750, %v4871, 0
        %v5068 = vsel %vm1750, %v4874, 0
        %v5071 = vsel %vm1750, %v4877, 0
        %v5074 = vsel %vm1750, %v4880, 0
        %v5077 = vsel %vm1750, %v4883, 0
        %v5080 = vsel %vm1750, %v4886, 0
        %v5083 = vsel %vm1750, %v4889, 0
        %v5086 = vsel %vm1750, %v4892, 0
        %v5089 = vsel %vm1750, %v4895, 0
        %v5092 = vsel %vm1750, %v4898, 0
        %v5095 = vsel %vm1750, %v4901, 0
        %v5098 = vsel %vm1750, %v4904, 0
        %v5101 = vsel %vm1750, %v4907, 0
        %5103 = vmatpush.bf16.msra.mxu0 %v5029
        %5104 = vmatpush.bf16.msra.mxu0 %v5028
        %5105 = vmatpush.bf16.msra.mxu0 %v5027
        %5106 = vmatpush.bf16.msra.mxu0 %v5026
        %5107 = vmatpush.bf16.msra.mxu0 %v5025
        %5108 = vmatpush.bf16.msra.mxu0 %v5024
        %5109 = vmatpush.bf16.msra.mxu0 %v5023
        %5110 = vmatpush.bf16.msra.mxu0 %v5022
        %5111 = vmatmul.bf16.gmra.mxu0 %v4863
        %v5112 = vpop.f32.mrf.mxu0
        %v5113 = vadd.f32 %v4948, %v5112
        %v5114 = vpop.f32.mrf.mxu0
        %v5115 = vadd.f32 %v4948, %v5114
        %5116 = vmatmul.bf16.gmra.mxu0 %v4866
        %v5117 = vpop.f32.mrf.mxu0
        %v5118 = vadd.f32 %v4948, %v5117
        %v5119 = vpop.f32.mrf.mxu0
        %v5120 = vadd.f32 %v4948, %v5119
        %5121 = vmatmul.bf16.gmra.mxu0 %v4869
        %v5122 = vpop.f32.mrf.mxu0
        %v5123 = vadd.f32 %v4948, %v5122
        %v5124 = vpop.f32.mrf.mxu0
        %v5125 = vadd.f32 %v4948, %v5124
        %5126 = vmatmul.bf16.gmra.mxu0 %v4872
        %v5127 = vpop.f32.mrf.mxu0
        %v5128 = vadd.f32 %v4948, %v5127
        %v5129 = vpop.f32.mrf.mxu0
        %v5130 = vadd.f32 %v4948, %v5129
        %5131 = vmatmul.bf16.gmra.mxu0 %v4875
        %v5132 = vpop.f32.mrf.mxu0
        %v5133 = vadd.f32 %v4948, %v5132
        %v5134 = vpop.f32.mrf.mxu0
        %v5135 = vadd.f32 %v4948, %v5134
        %5136 = vmatmul.bf16.gmra.mxu0 %v4878
        %v5137 = vpop.f32.mrf.mxu0
        %v5138 = vadd.f32 %v4948, %v5137
        %v5139 = vpop.f32.mrf.mxu0
        %v5140 = vadd.f32 %v4948, %v5139
        %5141 = vmatmul.bf16.gmra.mxu0 %v4881
        %v5142 = vpop.f32.mrf.mxu0
        %v5143 = vadd.f32 %v4948, %v5142
        %v5144 = vpop.f32.mrf.mxu0
        %v5145 = vadd.f32 %v4948, %v5144
        %5146 = vmatmul.bf16.gmra.mxu0 %v4884
        %v5147 = vpop.f32.mrf.mxu0
        %v5148 = vadd.f32 %v4948, %v5147
        %v5149 = vpop.f32.mrf.mxu0
        %v5150 = vadd.f32 %v4948, %v5149
        %5151 = vmatmul.bf16.gmra.mxu0 %v4887
        %v5152 = vpop.f32.mrf.mxu0
        %v5153 = vadd.f32 %v4948, %v5152
        %v5154 = vpop.f32.mrf.mxu0
        %v5155 = vadd.f32 %v4948, %v5154
        %5156 = vmatmul.bf16.gmra.mxu0 %v4890
        %v5157 = vpop.f32.mrf.mxu0
        %v5158 = vadd.f32 %v4948, %v5157
        %v5159 = vpop.f32.mrf.mxu0
        %v5160 = vadd.f32 %v4948, %v5159
        %5161 = vmatmul.bf16.gmra.mxu0 %v4893
        %v5162 = vpop.f32.mrf.mxu0
        %v5163 = vadd.f32 %v4948, %v5162
        %v5164 = vpop.f32.mrf.mxu0
        %v5165 = vadd.f32 %v4948, %v5164
        %5166 = vmatmul.bf16.gmra.mxu0 %v4896
        %v5167 = vpop.f32.mrf.mxu0
        %v5168 = vadd.f32 %v4948, %v5167
        %v5169 = vpop.f32.mrf.mxu0
        %v5170 = vadd.f32 %v4948, %v5169
        %5171 = vmatmul.bf16.gmra.mxu0 %v4899
        %v5172 = vpop.f32.mrf.mxu0
        %v5173 = vadd.f32 %v4948, %v5172
        %v5174 = vpop.f32.mrf.mxu0
        %v5175 = vadd.f32 %v4948, %v5174
        %5176 = vmatmul.bf16.gmra.mxu0 %v4902
        %v5177 = vpop.f32.mrf.mxu0
        %v5178 = vadd.f32 %v4948, %v5177
        %v5179 = vpop.f32.mrf.mxu0
        %v5180 = vadd.f32 %v4948, %v5179
        %5181 = vmatmul.bf16.gmra.mxu0 %v4905
        %v5182 = vpop.f32.mrf.mxu0
        %v5183 = vadd.f32 %v4948, %v5182
        %v5184 = vpop.f32.mrf.mxu0
        %v5185 = vadd.f32 %v4948, %v5184
        %5186 = vmatmul.bf16.gmra.mxu0 %v4908
        %v5187 = vpop.f32.mrf.mxu0
        %v5188 = vadd.f32 %v4948, %v5187
        %v5189 = vpop.f32.mrf.mxu0
        %v5190 = vadd.f32 %v4948, %v5189
        %5191 = vdwg.mxu0
        %5192 = vmatpush.bf16.msra.mxu0 %v5037
        %5193 = vmatpush.bf16.msra.mxu0 %v5036
        %5194 = vmatpush.bf16.msra.mxu0 %v5035
        %5195 = vmatpush.bf16.msra.mxu0 %v5034
        %5196 = vmatpush.bf16.msra.mxu0 %v5033
        %5197 = vmatpush.bf16.msra.mxu0 %v5032
        %5198 = vmatpush.bf16.msra.mxu0 %v5031
        %5199 = vmatpush.bf16.msra.mxu0 %v5030
        %5200 = vmatmul.bf16.gmra.mxu0 %v4864
        %v5201 = vpop.f32.mrf.mxu0
        %v5202 = vadd.f32 %v5113, %v5201
        %v5203 = vpop.f32.mrf.mxu0
        %v5204 = vadd.f32 %v5115, %v5203
        %5205 = vmatmul.bf16.gmra.mxu0 %v4867
        %v5206 = vpop.f32.mrf.mxu0
        %v5207 = vadd.f32 %v5118, %v5206
        %v5208 = vpop.f32.mrf.mxu0
        %v5209 = vadd.f32 %v5120, %v5208
        %5210 = vmatmul.bf16.gmra.mxu0 %v4870
        %v5211 = vpop.f32.mrf.mxu0
        %v5212 = vadd.f32 %v5123, %v5211
        %v5213 = vpop.f32.mrf.mxu0
        %v5214 = vadd.f32 %v5125, %v5213
        %5215 = vmatmul.bf16.gmra.mxu0 %v4873
        %v5216 = vpop.f32.mrf.mxu0
        %v5217 = vadd.f32 %v5128, %v5216
        %v5218 = vpop.f32.mrf.mxu0
        %v5219 = vadd.f32 %v5130, %v5218
        %5220 = vmatmul.bf16.gmra.mxu0 %v4876
        %v5221 = vpop.f32.mrf.mxu0
        %v5222 = vadd.f32 %v5133, %v5221
        %v5223 = vpop.f32.mrf.mxu0
        %v5224 = vadd.f32 %v5135, %v5223
        %5225 = vmatmul.bf16.gmra.mxu0 %v4879
        %v5226 = vpop.f32.mrf.mxu0
        %v5227 = vadd.f32 %v5138, %v5226
        %v5228 = vpop.f32.mrf.mxu0
        %v5229 = vadd.f32 %v5140, %v5228
        %5230 = vmatmul.bf16.gmra.mxu0 %v4882
        %v5231 = vpop.f32.mrf.mxu0
        %v5232 = vadd.f32 %v5143, %v5231
        %v5233 = vpop.f32.mrf.mxu0
        %v5234 = vadd.f32 %v5145, %v5233
        %5235 = vmatmul.bf16.gmra.mxu0 %v4885
        %v5236 = vpop.f32.mrf.mxu0
        %v5237 = vadd.f32 %v5148, %v5236
        %v5238 = vpop.f32.mrf.mxu0
        %v5239 = vadd.f32 %v5150, %v5238
        %5240 = vmatmul.bf16.gmra.mxu0 %v4888
        %v5241 = vpop.f32.mrf.mxu0
        %v5242 = vadd.f32 %v5153, %v5241
        %v5243 = vpop.f32.mrf.mxu0
        %v5244 = vadd.f32 %v5155, %v5243
        %5245 = vmatmul.bf16.gmra.mxu0 %v4891
        %v5246 = vpop.f32.mrf.mxu0
        %v5247 = vadd.f32 %v5158, %v5246
        %v5248 = vpop.f32.mrf.mxu0
        %v5249 = vadd.f32 %v5160, %v5248
        %5250 = vmatmul.bf16.gmra.mxu0 %v4894
        %v5251 = vpop.f32.mrf.mxu0
        %v5252 = vadd.f32 %v5163, %v5251
        %v5253 = vpop.f32.mrf.mxu0
        %v5254 = vadd.f32 %v5165, %v5253
        %5255 = vmatmul.bf16.gmra.mxu0 %v4897
        %v5256 = vpop.f32.mrf.mxu0
        %v5257 = vadd.f32 %v5168, %v5256
        %v5258 = vpop.f32.mrf.mxu0
        %v5259 = vadd.f32 %v5170, %v5258
        %5260 = vmatmul.bf16.gmra.mxu0 %v4900
        %v5261 = vpop.f32.mrf.mxu0
        %v5262 = vadd.f32 %v5173, %v5261
        %v5263 = vpop.f32.mrf.mxu0
        %v5264 = vadd.f32 %v5175, %v5263
        %5265 = vmatmul.bf16.gmra.mxu0 %v4903
        %v5266 = vpop.f32.mrf.mxu0
        %v5267 = vadd.f32 %v5178, %v5266
        %v5268 = vpop.f32.mrf.mxu0
        %v5269 = vadd.f32 %v5180, %v5268
        %5270 = vmatmul.bf16.gmra.mxu0 %v4906
        %v5271 = vpop.f32.mrf.mxu0
        %v5272 = vadd.f32 %v5183, %v5271
        %v5273 = vpop.f32.mrf.mxu0
        %v5274 = vadd.f32 %v5185, %v5273
        %5275 = vmatmul.bf16.gmra.mxu0 %v4909
        %v5276 = vpop.f32.mrf.mxu0
        %v5277 = vadd.f32 %v5188, %v5276
        %v5278 = vpop.f32.mrf.mxu0
        %v5279 = vadd.f32 %v5190, %v5278
        %5280 = vdwg.mxu0
        %5281 = vmatpush.bf16.msra.mxu0 0
        %5282 = vmatpush.bf16.msra.mxu0 0
        %5283 = vmatpush.bf16.msra.mxu0 0
        %5284 = vmatpush.bf16.msra.mxu0 0
        %5285 = vmatpush.bf16.msra.mxu0 0
        %5286 = vmatpush.bf16.msra.mxu0 0
        %5287 = vmatpush.bf16.msra.mxu0 %v5039
        %5288 = vmatpush.bf16.msra.mxu0 %v5038
        %5289 = vmatmul.bf16.gmra.mxu0 %v5059
        %v5290 = vpop.f32.mrf.mxu0
        %v5291 = vadd.f32 %v5202, %v5290
        %v5292 = vpop.f32.mrf.mxu0
        %v5293 = vadd.f32 %v5204, %v5292
        %5294 = vmatmul.bf16.gmra.mxu0 %v5062
        %v5295 = vpop.f32.mrf.mxu0
        %v5296 = vadd.f32 %v5207, %v5295
        %v5297 = vpop.f32.mrf.mxu0
        %v5298 = vadd.f32 %v5209, %v5297
        %5299 = vmatmul.bf16.gmra.mxu0 %v5065
        %v5300 = vpop.f32.mrf.mxu0
        %v5301 = vadd.f32 %v5212, %v5300
        %v5302 = vpop.f32.mrf.mxu0
        %v5303 = vadd.f32 %v5214, %v5302
        %5304 = vmatmul.bf16.gmra.mxu0 %v5068
        %v5305 = vpop.f32.mrf.mxu0
        %v5306 = vadd.f32 %v5217, %v5305
        %v5307 = vpop.f32.mrf.mxu0
        %v5308 = vadd.f32 %v5219, %v5307
        %5309 = vmatmul.bf16.gmra.mxu0 %v5071
        %v5310 = vpop.f32.mrf.mxu0
        %v5311 = vadd.f32 %v5222, %v5310
        %v5312 = vpop.f32.mrf.mxu0
        %v5313 = vadd.f32 %v5224, %v5312
        %5314 = vmatmul.bf16.gmra.mxu0 %v5074
        %v5315 = vpop.f32.mrf.mxu0
        %v5316 = vadd.f32 %v5227, %v5315
        %v5317 = vpop.f32.mrf.mxu0
        %v5318 = vadd.f32 %v5229, %v5317
        %5319 = vmatmul.bf16.gmra.mxu0 %v5077
        %v5320 = vpop.f32.mrf.mxu0
        %v5321 = vadd.f32 %v5232, %v5320
        %v5322 = vpop.f32.mrf.mxu0
        %v5323 = vadd.f32 %v5234, %v5322
        %5324 = vmatmul.bf16.gmra.mxu0 %v5080
        %v5325 = vpop.f32.mrf.mxu0
        %v5326 = vadd.f32 %v5237, %v5325
        %v5327 = vpop.f32.mrf.mxu0
        %v5328 = vadd.f32 %v5239, %v5327
        %5329 = vmatmul.bf16.gmra.mxu0 %v5083
        %v5330 = vpop.f32.mrf.mxu0
        %v5331 = vadd.f32 %v5242, %v5330
        %v5332 = vpop.f32.mrf.mxu0
        %v5333 = vadd.f32 %v5244, %v5332
        %5334 = vmatmul.bf16.gmra.mxu0 %v5086
        %v5335 = vpop.f32.mrf.mxu0
        %v5336 = vadd.f32 %v5247, %v5335
        %v5337 = vpop.f32.mrf.mxu0
        %v5338 = vadd.f32 %v5249, %v5337
        %5339 = vmatmul.bf16.gmra.mxu0 %v5089
        %v5340 = vpop.f32.mrf.mxu0
        %v5341 = vadd.f32 %v5252, %v5340
        %v5342 = vpop.f32.mrf.mxu0
        %v5343 = vadd.f32 %v5254, %v5342
        %5344 = vmatmul.bf16.gmra.mxu0 %v5092
        %v5345 = vpop.f32.mrf.mxu0
        %v5346 = vadd.f32 %v5257, %v5345
        %v5347 = vpop.f32.mrf.mxu0
        %v5348 = vadd.f32 %v5259, %v5347
        %5349 = vmatmul.bf16.gmra.mxu0 %v5095
        %v5350 = vpop.f32.mrf.mxu0
        %v5351 = vadd.f32 %v5262, %v5350
        %v5352 = vpop.f32.mrf.mxu0
        %v5353 = vadd.f32 %v5264, %v5352
        %5354 = vmatmul.bf16.gmra.mxu0 %v5098
        %v5355 = vpop.f32.mrf.mxu0
        %v5356 = vadd.f32 %v5267, %v5355
        %v5357 = vpop.f32.mrf.mxu0
        %v5358 = vadd.f32 %v5269, %v5357
        %5359 = vmatmul.bf16.gmra.mxu0 %v5101
        %v5360 = vpop.f32.mrf.mxu0
        %v5361 = vadd.f32 %v5272, %v5360
        %v5362 = vpop.f32.mrf.mxu0
        %v5363 = vadd.f32 %v5274, %v5362
        %5364 = vmatmul.bf16.gmra.mxu0 %v2187
        %v5365 = vpop.f32.mrf.mxu0
        %v5366 = vadd.f32 %v5277, %v5365
        %v5367 = vpop.f32.mrf.mxu0
        %v5368 = vadd.f32 %v5279, %v5367
        %5369 = vdwg.mxu0
        %v5370 = vld [vmem:[%s12] sm:$0xff]
        %v5371 = vld [vmem:[%s12 + $0x8] sm:$0xff]
        %v5372 = vld [vmem:[%s12 + $0x10] sm:$0xff]
        %v5373 = vld [vmem:[%s12 + $0x18] sm:$0xff]
        %v5374 = vld [vmem:[%s12 + $0x20] sm:$0xff]
        %v5375 = vld [vmem:[%s12 + $0x28] sm:$0xff]
        %v5376 = vld [vmem:[%s12 + $0x30] sm:$0xff]
        %v5377 = vld [vmem:[%s12 + $0x38] sm:$0xff]
        %v5378 = vld [vmem:[%s12 + $0x40] sm:$0xff]
        %v5379 = vld [vmem:[%s12 + $0x48] sm:$0xff]
        %v5380 = vld [vmem:[%s12 + $0x50] sm:$0xff]
        %v5381 = vld [vmem:[%s12 + $0x58] sm:$0xff]
        %v5382 = vld [vmem:[%s12 + $0x60] sm:$0xff]
        %v5383 = vld [vmem:[%s12 + $0x68] sm:$0xff]
        %v5384 = vld [vmem:[%s12 + $0x70] sm:$0xff]
        %v5385 = vld [vmem:[%s12 + $0x78] sm:$0xff]
        %v5386 = vld [vmem:[%s12 + $0x80] sm:$0xff]
        %v5387 = vld [vmem:[%s12 + $0x88] sm:$0xff]
        %v5388 = vld [vmem:[%s12 + $0x90] sm:$0xff]
        %v5389 = vld [vmem:[%s12 + $0x98] sm:$0xff]
        %v5390 = vld [vmem:[%s12 + $0xa0] sm:$0xff]
        %v5391 = vld [vmem:[%s12 + $0xa8] sm:$0xff]
        %v5392 = vld [vmem:[%s12 + $0xb0] sm:$0xff]
        %v5393 = vld [vmem:[%s12 + $0xb8] sm:$0xff]
        %v5394 = vld [vmem:[%s12 + $0xc0] sm:$0xff]
        %v5395 = vld [vmem:[%s12 + $0xc8] sm:$0xff]
        %v5396 = vld [vmem:[%s12 + $0xd0] sm:$0xff]
        %v5397 = vld [vmem:[%s12 + $0xd8] sm:$0xff]
        %v5398 = vld [vmem:[%s12 + $0xe0] sm:$0xff]
        %v5399 = vld [vmem:[%s12 + $0xe8] sm:$0xff]
        %v5400 = vld [vmem:[%s12 + $0xf0] sm:$0xff]
        %v5401 = vld [vmem:[%s12 + $0xf8] sm:$0xff]
        %v5402 = vld [vmem:[%s13] sm:$0xff]
        %v5403 = vld [vmem:[%s13 + $0x8] sm:$0xff]
        %v5404 = vld [vmem:[%s13 + $0x10] sm:$0xff]
        %v5405 = vld [vmem:[%s13 + $0x18] sm:$0xff]
        %v5406 = vld [vmem:[%s13 + $0x20] sm:$0xff]
        %v5407 = vld [vmem:[%s13 + $0x28] sm:$0xff]
        %v5408 = vld [vmem:[%s13 + $0x30] sm:$0xff]
        %v5409 = vld [vmem:[%s13 + $0x38] sm:$0xff]
        %v5410 = vld [vmem:[%s13 + $0x40] sm:$0xff]
        %v5411 = vld [vmem:[%s13 + $0x48] sm:$0xff]
        %v5412 = vld [vmem:[%s13 + $0x50] sm:$0xff]
        %v5413 = vld [vmem:[%s13 + $0x58] sm:$0xff]
        %v5414 = vld [vmem:[%s13 + $0x60] sm:$0xff]
        %v5415 = vld [vmem:[%s13 + $0x68] sm:$0xff]
        %v5416 = vld [vmem:[%s13 + $0x70] sm:$0xff]
        %v5417 = vld [vmem:[%s13 + $0x78] sm:$0xff]
        %v5418 = vld [vmem:[%s13 + $0x80] sm:$0xff]
        %v5419 = vld [vmem:[%s13 + $0x88] sm:$0xff]
        %v5420 = vld [vmem:[%s13 + $0x90] sm:$0xff]
        %v5421 = vld [vmem:[%s13 + $0x98] sm:$0xff]
        %v5422 = vld [vmem:[%s13 + $0xa0] sm:$0xff]
        %v5423 = vld [vmem:[%s13 + $0xa8] sm:$0xff]
        %v5424 = vld [vmem:[%s13 + $0xb0] sm:$0xff]
        %v5425 = vld [vmem:[%s13 + $0xb8] sm:$0xff]
        %v5426 = vld [vmem:[%s13 + $0xc0] sm:$0xff]
        %v5427 = vld [vmem:[%s13 + $0xc8] sm:$0xff]
        %v5428 = vld [vmem:[%s13 + $0xd0] sm:$0xff]
        %v5429 = vld [vmem:[%s13 + $0xd8] sm:$0xff]
        %v5430 = vld [vmem:[%s13 + $0xe0] sm:$0xff]
        %v5431 = vld [vmem:[%s13 + $0xe8] sm:$0xff]
        %v5432 = vld [vmem:[%s13 + $0xf0] sm:$0xff]
        %v5433 = vld [vmem:[%s13 + $0xf8] sm:$0xff]
        %v5434 = vsel %vm1750, %v5291, 0.0
        %v5435 = vsel %vm1750, %v5293, 0.0
        %v5436 = vadd.f32 %v5434, %v5435
        %v5437 = vsel %vm1750, %v5296, 0.0
        %v5438 = vadd.f32 %v5436, %v5437
        %v5439 = vsel %vm1750, %v5298, 0.0
        %v5440 = vadd.f32 %v5438, %v5439
        %v5441 = vsel %vm1750, %v5301, 0.0
        %v5442 = vadd.f32 %v5440, %v5441
        %v5443 = vsel %vm1750, %v5303, 0.0
        %v5444 = vadd.f32 %v5442, %v5443
        %v5445 = vsel %vm1750, %v5306, 0.0
        %v5446 = vadd.f32 %v5444, %v5445
        %v5447 = vsel %vm1750, %v5308, 0.0
        %v5448 = vadd.f32 %v5446, %v5447
        %v5449 = vsel %vm1750, %v5311, 0.0
        %v5450 = vadd.f32 %v5448, %v5449
        %v5451 = vsel %vm1750, %v5313, 0.0
        %v5452 = vadd.f32 %v5450, %v5451
        %v5453 = vsel %vm1750, %v5316, 0.0
        %v5454 = vadd.f32 %v5452, %v5453
        %v5455 = vsel %vm1750, %v5318, 0.0
        %v5456 = vadd.f32 %v5454, %v5455
        %v5457 = vsel %vm1750, %v5321, 0.0
        %v5458 = vadd.f32 %v5456, %v5457
        %v5459 = vsel %vm1750, %v5323, 0.0
        %v5460 = vadd.f32 %v5458, %v5459
        %v5461 = vsel %vm1750, %v5326, 0.0
        %v5462 = vadd.f32 %v5460, %v5461
        %v5463 = vsel %vm1750, %v5328, 0.0
        %v5464 = vadd.f32 %v5462, %v5463
        %v5465 = vsel %vm1750, %v5331, 0.0
        %v5466 = vadd.f32 %v5464, %v5465
        %v5467 = vsel %vm1750, %v5333, 0.0
        %v5468 = vadd.f32 %v5466, %v5467
        %v5469 = vsel %vm1750, %v5336, 0.0
        %v5470 = vadd.f32 %v5468, %v5469
        %v5471 = vsel %vm1750, %v5338, 0.0
        %v5472 = vadd.f32 %v5470, %v5471
        %v5473 = vsel %vm1750, %v5341, 0.0
        %v5474 = vadd.f32 %v5472, %v5473
        %v5475 = vsel %vm1750, %v5343, 0.0
        %v5476 = vadd.f32 %v5474, %v5475
        %v5477 = vsel %vm1750, %v5346, 0.0
        %v5478 = vadd.f32 %v5476, %v5477
        %v5479 = vsel %vm1750, %v5348, 0.0
        %v5480 = vadd.f32 %v5478, %v5479
        %v5481 = vsel %vm1750, %v5351, 0.0
        %v5482 = vadd.f32 %v5480, %v5481
        %v5483 = vsel %vm1750, %v5353, 0.0
        %v5484 = vadd.f32 %v5482, %v5483
        %v5485 = vsel %vm1750, %v5356, 0.0
        %v5486 = vadd.f32 %v5484, %v5485
        %v5487 = vsel %vm1750, %v5358, 0.0
        %v5488 = vadd.f32 %v5486, %v5487
        %v5489 = vsel %vm1750, %v5361, 0.0
        %v5490 = vadd.f32 %v5488, %v5489
        %v5491 = vsel %vm1750, %v5363, 0.0
        %v5492 = vadd.f32 %v5490, %v5491
        %v5493 = vsel %vm1750, %v5366, 0.0
        %v5494 = vadd.f32 %v5492, %v5493
        %v5495 = vsel %vm1750, %v5368, 0.0
        %v5496 = vadd.f32 %v5494, %v5495
        %5497 = vadd.xlane.f32.xlu0 %v5496
        %v5498 = vpop.xlane.xlu0 %5497
        %v5499 = vrot.slane %v5498, 4
        %v5500 = vadd.f32 %v5498, %v5499
        %v5501 = vrot.slane %v5500, 2
        %v5502 = vadd.f32 %v5500, %v5501
        %v5503 = vrot.slane %v5502, 1
        %v5504 = vadd.f32 %v5502, %v5503
        %s5505 = vtos %v5504
        %s5506 = smul.f32 %s5505, 0.00012207031
        %v5507 = vmul.f32 %v5291, %v5291
        %v5508 = vmul.f32 %v5293, %v5293
        %v5509 = vmul.f32 %v5296, %v5296
        %v5510 = vmul.f32 %v5298, %v5298
        %v5511 = vmul.f32 %v5301, %v5301
        %v5512 = vmul.f32 %v5303, %v5303
        %v5513 = vmul.f32 %v5306, %v5306
        %v5514 = vmul.f32 %v5308, %v5308
        %v5515 = vmul.f32 %v5311, %v5311
        %v5516 = vmul.f32 %v5313, %v5313
        %v5517 = vmul.f32 %v5316, %v5316
        %v5518 = vmul.f32 %v5318, %v5318
        %v5519 = vmul.f32 %v5321, %v5321
        %v5520 = vmul.f32 %v5323, %v5323
        %v5521 = vmul.f32 %v5326, %v5326
        %v5522 = vmul.f32 %v5328, %v5328
        %v5523 = vmul.f32 %v5331, %v5331
        %v5524 = vmul.f32 %v5333, %v5333
        %v5525 = vmul.f32 %v5336, %v5336
        %v5526 = vmul.f32 %v5338, %v5338
        %v5527 = vmul.f32 %v5341, %v5341
        %v5528 = vmul.f32 %v5343, %v5343
        %v5529 = vmul.f32 %v5346, %v5346
        %v5530 = vmul.f32 %v5348, %v5348
        %v5531 = vmul.f32 %v5351, %v5351
        %v5532 = vmul.f32 %v5353, %v5353
        %v5533 = vmul.f32 %v5356, %v5356
        %v5534 = vmul.f32 %v5358, %v5358
        %v5535 = vmul.f32 %v5361, %v5361
        %v5536 = vmul.f32 %v5363, %v5363
        %v5537 = vmul.f32 %v5366, %v5366
        %v5538 = vmul.f32 %v5368, %v5368
        %v5539 = vsel %vm1750, %v5507, 0.0
        %v5540 = vsel %vm1750, %v5508, 0.0
        %v5541 = vadd.f32 %v5539, %v5540
        %v5542 = vsel %vm1750, %v5509, 0.0
        %v5543 = vadd.f32 %v5541, %v5542
        %v5544 = vsel %vm1750, %v5510, 0.0
        %v5545 = vadd.f32 %v5543, %v5544
        %v5546 = vsel %vm1750, %v5511, 0.0
        %v5547 = vadd.f32 %v5545, %v5546
        %v5548 = vsel %vm1750, %v5512, 0.0
        %v5549 = vadd.f32 %v5547, %v5548
        %v5550 = vsel %vm1750, %v5513, 0.0
        %v5551 = vadd.f32 %v5549, %v5550
        %v5552 = vsel %vm1750, %v5514, 0.0
        %v5553 = vadd.f32 %v5551, %v5552
        %v5554 = vsel %vm1750, %v5515, 0.0
        %v5555 = vadd.f32 %v5553, %v5554
        %v5556 = vsel %vm1750, %v5516, 0.0
        %v5557 = vadd.f32 %v5555, %v5556
        %v5558 = vsel %vm1750, %v5517, 0.0
        %v5559 = vadd.f32 %v5557, %v5558
        %v5560 = vsel %vm1750, %v5518, 0.0
        %v5561 = vadd.f32 %v5559, %v5560
        %v5562 = vsel %vm1750, %v5519, 0.0
        %v5563 = vadd.f32 %v5561, %v5562
        %v5564 = vsel %vm1750, %v5520, 0.0
        %v5565 = vadd.f32 %v5563, %v5564
        %v5566 = vsel %vm1750, %v5521, 0.0
        %v5567 = vadd.f32 %v5565, %v5566
        %v5568 = vsel %vm1750, %v5522, 0.0
        %v5569 = vadd.f32 %v5567, %v5568
        %v5570 = vsel %vm1750, %v5523, 0.0
        %v5571 = vadd.f32 %v5569, %v5570
        %v5572 = vsel %vm1750, %v5524, 0.0
        %v5573 = vadd.f32 %v5571, %v5572
        %v5574 = vsel %vm1750, %v5525, 0.0
        %v5575 = vadd.f32 %v5573, %v5574
        %v5576 = vsel %vm1750, %v5526, 0.0
        %v5577 = vadd.f32 %v5575, %v5576
        %v5578 = vsel %vm1750, %v5527, 0.0
        %v5579 = vadd.f32 %v5577, %v5578
        %v5580 = vsel %vm1750, %v5528, 0.0
        %v5581 = vadd.f32 %v5579, %v5580
        %v5582 = vsel %vm1750, %v5529, 0.0
        %v5583 = vadd.f32 %v5581, %v5582
        %v5584 = vsel %vm1750, %v5530, 0.0
        %v5585 = vadd.f32 %v5583, %v5584
        %v5586 = vsel %vm1750, %v5531, 0.0
        %v5587 = vadd.f32 %v5585, %v5586
        %v5588 = vsel %vm1750, %v5532, 0.0
        %v5589 = vadd.f32 %v5587, %v5588
        %v5590 = vsel %vm1750, %v5533, 0.0
        %v5591 = vadd.f32 %v5589, %v5590
        %v5592 = vsel %vm1750, %v5534, 0.0
        %v5593 = vadd.f32 %v5591, %v5592
        %v5594 = vsel %vm1750, %v5535, 0.0
        %v5595 = vadd.f32 %v5593, %v5594
        %v5596 = vsel %vm1750, %v5536, 0.0
        %v5597 = vadd.f32 %v5595, %v5596
        %v5598 = vsel %vm1750, %v5537, 0.0
        %v5599 = vadd.f32 %v5597, %v5598
        %v5600 = vsel %vm1750, %v5538, 0.0
        %v5601 = vadd.f32 %v5599, %v5600
        %5602 = vadd.xlane.f32.xlu0 %v5601
        %v5603 = vpop.xlane.xlu0 %5602
        %v5604 = vrot.slane %v5603, 4
        %v5605 = vadd.f32 %v5603, %v5604
        %v5606 = vrot.slane %v5605, 2
        %v5607 = vadd.f32 %v5605, %v5606
        %v5608 = vrot.slane %v5607, 1
        %v5609 = vadd.f32 %v5607, %v5608
        %s5610 = vtos %v5609
        %s5611 = smul.f32 %s5610, 0.00012207031
        %s5612 = smul.f32 %s5506, %s5506
        %s5613 = ssub.f32 %s5611, %s5612
        %s5614 = sadd.f32 %s5613, 1e-05
        %v5615 = vstv %s5614
        %v5616 = vrsqrt.pop %v5615
        %v5617 = vmul.f32 %v5616, %v5615
        %v5618 = vmul.f32 %v5617, %v5616
        %v5619 = vmul.f32 0.5, %v5618
        %v5620 = vsub.f32 1.5, %v5619
        %v5621 = vmul.f32 %v5616, %v5620
        %vm5622 = vweird.f32 %v5615
        %vm5623 = vweird.f32 %v5616
        %vm5624 = vmor %vm5622, %vm5623
        %v5625 = vsel %vm5624, %v5616, %v5621
        %s5626 = vtos %v5625
        %v5627 = vstv %s5506
        %v5628 = vsub.f32 %v5291, %v5627
        %v5629 = vsub.f32 %v5293, %v5627
        %v5630 = vsub.f32 %v5296, %v5627
        %v5631 = vsub.f32 %v5298, %v5627
        %v5632 = vsub.f32 %v5301, %v5627
        %v5633 = vsub.f32 %v5303, %v5627
        %v5634 = vsub.f32 %v5306, %v5627
        %v5635 = vsub.f32 %v5308, %v5627
        %v5636 = vsub.f32 %v5311, %v5627
        %v5637 = vsub.f32 %v5313, %v5627
        %v5638 = vsub.f32 %v5316, %v5627
        %v5639 = vsub.f32 %v5318, %v5627
        %v5640 = vsub.f32 %v5321, %v5627
        %v5641 = vsub.f32 %v5323, %v5627
        %v5642 = vsub.f32 %v5326, %v5627
        %v5643 = vsub.f32 %v5328, %v5627
        %v5644 = vsub.f32 %v5331, %v5627
        %v5645 = vsub.f32 %v5333, %v5627
        %v5646 = vsub.f32 %v5336, %v5627
        %v5647 = vsub.f32 %v5338, %v5627
        %v5648 = vsub.f32 %v5341, %v5627
        %v5649 = vsub.f32 %v5343, %v5627
        %v5650 = vsub.f32 %v5346, %v5627
        %v5651 = vsub.f32 %v5348, %v5627
        %v5652 = vsub.f32 %v5351, %v5627
        %v5653 = vsub.f32 %v5353, %v5627
        %v5654 = vsub.f32 %v5356, %v5627
        %v5655 = vsub.f32 %v5358, %v5627
        %v5656 = vsub.f32 %v5361, %v5627
        %v5657 = vsub.f32 %v5363, %v5627
        %v5658 = vsub.f32 %v5366, %v5627
        %v5659 = vsub.f32 %v5368, %v5627
        %v5660 = vstv %s5626
        %v5661 = vmul.f32 %v5628, %v5660
        %v5662 = vmul.f32 %v5629, %v5660
        %v5663 = vmul.f32 %v5630, %v5660
        %v5664 = vmul.f32 %v5631, %v5660
        %v5665 = vmul.f32 %v5632, %v5660
        %v5666 = vmul.f32 %v5633, %v5660
        %v5667 = vmul.f32 %v5634, %v5660
        %v5668 = vmul.f32 %v5635, %v5660
        %v5669 = vmul.f32 %v5636, %v5660
        %v5670 = vmul.f32 %v5637, %v5660
        %v5671 = vmul.f32 %v5638, %v5660
        %v5672 = vmul.f32 %v5639, %v5660
        %v5673 = vmul.f32 %v5640, %v5660
        %v5674 = vmul.f32 %v5641, %v5660
        %v5675 = vmul.f32 %v5642, %v5660
        %v5676 = vmul.f32 %v5643, %v5660
        %v5677 = vmul.f32 %v5644, %v5660
        %v5678 = vmul.f32 %v5645, %v5660
        %v5679 = vmul.f32 %v5646, %v5660
        %v5680 = vmul.f32 %v5647, %v5660
        %v5681 = vmul.f32 %v5648, %v5660
        %v5682 = vmul.f32 %v5649, %v5660
        %v5683 = vmul.f32 %v5650, %v5660
        %v5684 = vmul.f32 %v5651, %v5660
        %v5685 = vmul.f32 %v5652, %v5660
        %v5686 = vmul.f32 %v5653, %v5660
        %v5687 = vmul.f32 %v5654, %v5660
        %v5688 = vmul.f32 %v5655, %v5660
        %v5689 = vmul.f32 %v5656, %v5660
        %v5690 = vmul.f32 %v5657, %v5660
        %v5691 = vmul.f32 %v5658, %v5660
        %v5692 = vmul.f32 %v5659, %v5660
        %v5693 = vmul.f32 %v5661, %v5370
        %v5694 = vmul.f32 %v5662, %v5371
        %v5695 = vmul.f32 %v5663, %v5372
        %v5696 = vmul.f32 %v5664, %v5373
        %v5697 = vmul.f32 %v5665, %v5374
        %v5698 = vmul.f32 %v5666, %v5375
        %v5699 = vmul.f32 %v5667, %v5376
        %v5700 = vmul.f32 %v5668, %v5377
        %v5701 = vmul.f32 %v5669, %v5378
        %v5702 = vmul.f32 %v5670, %v5379
        %v5703 = vmul.f32 %v5671, %v5380
        %v5704 = vmul.f32 %v5672, %v5381
        %v5705 = vmul.f32 %v5673, %v5382
        %v5706 = vmul.f32 %v5674, %v5383
        %v5707 = vmul.f32 %v5675, %v5384
        %v5708 = vmul.f32 %v5676, %v5385
        %v5709 = vmul.f32 %v5677, %v5386
        %v5710 = vmul.f32 %v5678, %v5387
        %v5711 = vmul.f32 %v5679, %v5388
        %v5712 = vmul.f32 %v5680, %v5389
        %v5713 = vmul.f32 %v5681, %v5390
        %v5714 = vmul.f32 %v5682, %v5391
        %v5715 = vmul.f32 %v5683, %v5392
        %v5716 = vmul.f32 %v5684, %v5393
        %v5717 = vmul.f32 %v5685, %v5394
        %v5718 = vmul.f32 %v5686, %v5395
        %v5719 = vmul.f32 %v5687, %v5396
        %v5720 = vmul.f32 %v5688, %v5397
        %v5721 = vmul.f32 %v5689, %v5398
        %v5722 = vmul.f32 %v5690, %v5399
        %v5723 = vmul.f32 %v5691, %v5400
        %v5724 = vmul.f32 %v5692, %v5401
        %v5725 = vadd.f32 %v5693, %v5402
        %v5726 = vadd.f32 %v5694, %v5403
        %v5727 = vadd.f32 %v5695, %v5404
        %v5728 = vadd.f32 %v5696, %v5405
        %v5729 = vadd.f32 %v5697, %v5406
        %v5730 = vadd.f32 %v5698, %v5407
        %v5731 = vadd.f32 %v5699, %v5408
        %v5732 = vadd.f32 %v5700, %v5409
        %v5733 = vadd.f32 %v5701, %v5410
        %v5734 = vadd.f32 %v5702, %v5411
        %v5735 = vadd.f32 %v5703, %v5412
        %v5736 = vadd.f32 %v5704, %v5413
        %v5737 = vadd.f32 %v5705, %v5414
        %v5738 = vadd.f32 %v5706, %v5415
        %v5739 = vadd.f32 %v5707, %v5416
        %v5740 = vadd.f32 %v5708, %v5417
        %v5741 = vadd.f32 %v5709, %v5418
        %v5742 = vadd.f32 %v5710, %v5419
        %v5743 = vadd.f32 %v5711, %v5420
        %v5744 = vadd.f32 %v5712, %v5421
        %v5745 = vadd.f32 %v5713, %v5422
        %v5746 = vadd.f32 %v5714, %v5423
        %v5747 = vadd.f32 %v5715, %v5424
        %v5748 = vadd.f32 %v5716, %v5425
        %v5749 = vadd.f32 %v5717, %v5426
        %v5750 = vadd.f32 %v5718, %v5427
        %v5751 = vadd.f32 %v5719, %v5428
        %v5752 = vadd.f32 %v5720, %v5429
        %v5753 = vadd.f32 %v5721, %v5430
        %v5754 = vadd.f32 %v5722, %v5431
        %v5755 = vadd.f32 %v5723, %v5432
        %v5756 = vadd.f32 %v5724, %v5433
        %v5757 = vld [vmem:[%s666] sm:$0xff]
        %v5758 = vld [vmem:[%s666 + $0x8] sm:$0xff]
        %v5759 = vld [vmem:[%s666 + $0x10] sm:$0xff]
        %v5760 = vld [vmem:[%s666 + $0x18] sm:$0xff]
        %v5761 = vld [vmem:[%s666 + $0x20] sm:$0xff]
        %v5762 = vld [vmem:[%s666 + $0x28] sm:$0xff]
        %v5763 = vld [vmem:[%s666 + $0x30] sm:$0xff]
        %v5764 = vld [vmem:[%s666 + $0x38] sm:$0xff]
        %v5765 = vld [vmem:[%s666 + $0x40] sm:$0xff]
        %v5766 = vld [vmem:[%s666 + $0x48] sm:$0xff]
        %v5767 = vld [vmem:[%s666 + $0x50] sm:$0xff]
        %v5768 = vld [vmem:[%s666 + $0x58] sm:$0xff]
        %v5769 = vld [vmem:[%s666 + $0x60] sm:$0xff]
        %v5770 = vld [vmem:[%s666 + $0x68] sm:$0xff]
        %v5771 = vld [vmem:[%s666 + $0x70] sm:$0xff]
        %v5772 = vld [vmem:[%s666 + $0x78] sm:$0xff]
        %v5773 = vld [vmem:[%s666 + $0x80] sm:$0xff]
        %v5774 = vld [vmem:[%s666 + $0x88] sm:$0xff]
        %v5775 = vld [vmem:[%s666 + $0x90] sm:$0xff]
        %v5776 = vld [vmem:[%s666 + $0x98] sm:$0xff]
        %v5777 = vld [vmem:[%s666 + $0xa0] sm:$0xff]
        %v5778 = vld [vmem:[%s666 + $0xa8] sm:$0xff]
        %v5779 = vld [vmem:[%s666 + $0xb0] sm:$0xff]
        %v5780 = vld [vmem:[%s666 + $0xb8] sm:$0xff]
        %v5781 = vld [vmem:[%s666 + $0xc0] sm:$0xff]
        %v5782 = vld [vmem:[%s666 + $0xc8] sm:$0xff]
        %v5783 = vld [vmem:[%s666 + $0xd0] sm:$0xff]
        %v5784 = vld [vmem:[%s666 + $0xd8] sm:$0xff]
        %v5785 = vld [vmem:[%s666 + $0xe0] sm:$0xff]
        %v5786 = vld [vmem:[%s666 + $0xe8] sm:$0xff]
        %v5787 = vld [vmem:[%s666 + $0xf0] sm:$0xff]
        %v5788 = vld [vmem:[%s666 + $0xf8] sm:$0xff]
        %v5789 = vld [vmem:[%s666 + $0x100] sm:$0xff]
        %v5790 = vld [vmem:[%s666 + $0x108] sm:$0xff]
        %v5791 = vld [vmem:[%s666 + $0x110] sm:$0xff]
        %v5792 = vld [vmem:[%s666 + $0x118] sm:$0xff]
        %v5793 = vld [vmem:[%s666 + $0x120] sm:$0xff]
        %v5794 = vld [vmem:[%s666 + $0x128] sm:$0xff]
        %v5795 = vld [vmem:[%s666 + $0x130] sm:$0xff]
        %v5796 = vld [vmem:[%s666 + $0x138] sm:$0xff]
        %v5797 = vld [vmem:[%s666 + $0x140] sm:$0xff]
        %v5798 = vld [vmem:[%s666 + $0x148] sm:$0xff]
        %v5799 = vld [vmem:[%s666 + $0x150] sm:$0xff]
        %v5800 = vld [vmem:[%s666 + $0x158] sm:$0xff]
        %v5801 = vld [vmem:[%s666 + $0x160] sm:$0xff]
        %v5802 = vld [vmem:[%s666 + $0x168] sm:$0xff]
        %v5803 = vld [vmem:[%s666 + $0x170] sm:$0xff]
        %v5804 = vld [vmem:[%s666 + $0x178] sm:$0xff]
        %v5805 = vld [vmem:[%s666 + $0x180] sm:$0xff]
        %v5806 = vld [vmem:[%s666 + $0x188] sm:$0xff]
        %v5807 = vld [vmem:[%s666 + $0x190] sm:$0xff]
        %v5808 = vld [vmem:[%s666 + $0x198] sm:$0xff]
        %v5809 = vld [vmem:[%s666 + $0x1a0] sm:$0xff]
        %v5810 = vld [vmem:[%s666 + $0x1a8] sm:$0xff]
        %v5811 = vld [vmem:[%s666 + $0x1b0] sm:$0xff]
        %v5812 = vld [vmem:[%s666 + $0x1b8] sm:$0xff]
        %v5813 = vld [vmem:[%s666 + $0x1c0] sm:$0xff]
        %v5814 = vld [vmem:[%s666 + $0x1c8] sm:$0xff]
        %v5815 = vld [vmem:[%s666 + $0x1d0] sm:$0xff]
        %v5816 = vld [vmem:[%s666 + $0x1d8] sm:$0xff]
        %v5817 = vld [vmem:[%s666 + $0x1e0] sm:$0xff]
        %v5818 = vld [vmem:[%s666 + $0x1e8] sm:$0xff]
        %v5819 = vld [vmem:[%s666 + $0x1f0] sm:$0xff]
        %v5820 = vld [vmem:[%s666 + $0x1f8] sm:$0xff]
        %v5821 = vld [vmem:[%s666 + $0x200] sm:$0xff]
        %v5822 = vld [vmem:[%s666 + $0x208] sm:$0xff]
        %v5823 = vld [vmem:[%s666 + $0x210] sm:$0xff]
        %v5824 = vld [vmem:[%s666 + $0x218] sm:$0xff]
        %v5825 = vld [vmem:[%s666 + $0x220] sm:$0xff]
        %v5826 = vld [vmem:[%s666 + $0x228] sm:$0xff]
        %v5827 = vld [vmem:[%s666 + $0x230] sm:$0xff]
        %v5828 = vld [vmem:[%s666 + $0x238] sm:$0xff]
        %v5829 = vld [vmem:[%s666 + $0x240] sm:$0xff]
        %v5830 = vld [vmem:[%s666 + $0x248] sm:$0xff]
        %v5831 = vld [vmem:[%s666 + $0x250] sm:$0xff]
        %v5832 = vld [vmem:[%s666 + $0x258] sm:$0xff]
        %v5833 = vld [vmem:[%s666 + $0x260] sm:$0xff]
        %v5834 = vld [vmem:[%s666 + $0x268] sm:$0xff]
        %v5835 = vld [vmem:[%s666 + $0x270] sm:$0xff]
        %v5836 = vld [vmem:[%s666 + $0x278] sm:$0xff]
        %v5837 = vld [vmem:[%s666 + $0x280] sm:$0xff]
        %v5838 = vld [vmem:[%s666 + $0x288] sm:$0xff]
        %v5839 = vld [vmem:[%s666 + $0x290] sm:$0xff]
        %v5840 = vld [vmem:[%s666 + $0x298] sm:$0xff]
        %v5841 = vld [vmem:[%s666 + $0x2a0] sm:$0xff]
        %v5842 = vld [vmem:[%s666 + $0x2a8] sm:$0xff]
        %v5843 = vld [vmem:[%s666 + $0x2b0] sm:$0xff]
        %v5844 = vld [vmem:[%s666 + $0x2b8] sm:$0xff]
        %v5845 = vld [vmem:[%s666 + $0x2c0] sm:$0xff]
        %v5846 = vld [vmem:[%s666 + $0x2c8] sm:$0xff]
        %v5847 = vld [vmem:[%s666 + $0x2d0] sm:$0xff]
        %v5848 = vld [vmem:[%s666 + $0x2d8] sm:$0xff]
        %v5849 = vld [vmem:[%s666 + $0x2e0] sm:$0xff]
        %v5850 = vld [vmem:[%s666 + $0x2e8] sm:$0xff]
        %v5851 = vld [vmem:[%s666 + $0x2f0] sm:$0xff]
        %v5852 = vld [vmem:[%s666 + $0x2f8] sm:$0xff]
        %v5853 = vld [vmem:[%s666 + $0x300] sm:$0xff]
        %v5854 = vld [vmem:[%s666 + $0x308] sm:$0xff]
        %v5855 = vld [vmem:[%s666 + $0x310] sm:$0xff]
        %v5856 = vld [vmem:[%s666 + $0x318] sm:$0xff]
        %v5857 = vld [vmem:[%s666 + $0x320] sm:$0xff]
        %v5858 = vld [vmem:[%s666 + $0x328] sm:$0xff]
        %v5859 = vld [vmem:[%s666 + $0x330] sm:$0xff]
        %v5860 = vld [vmem:[%s666 + $0x338] sm:$0xff]
        %v5861 = vld [vmem:[%s666 + $0x340] sm:$0xff]
        %v5862 = vld [vmem:[%s666 + $0x348] sm:$0xff]
        %v5863 = vld [vmem:[%s666 + $0x350] sm:$0xff]
        %v5864 = vld [vmem:[%s666 + $0x358] sm:$0xff]
        %v5865 = vld [vmem:[%s666 + $0x360] sm:$0xff]
        %v5866 = vld [vmem:[%s666 + $0x368] sm:$0xff]
        %v5867 = vld [vmem:[%s666 + $0x370] sm:$0xff]
        %v5868 = vld [vmem:[%s666 + $0x378] sm:$0xff]
        %v5869 = vld [vmem:[%s666 + $0x380] sm:$0xff]
        %v5870 = vld [vmem:[%s666 + $0x388] sm:$0xff]
        %v5871 = vld [vmem:[%s666 + $0x390] sm:$0xff]
        %v5872 = vld [vmem:[%s666 + $0x398] sm:$0xff]
        %v5873 = vld [vmem:[%s666 + $0x3a0] sm:$0xff]
        %v5874 = vld [vmem:[%s666 + $0x3a8] sm:$0xff]
        %v5875 = vld [vmem:[%s666 + $0x3b0] sm:$0xff]
        %v5876 = vld [vmem:[%s666 + $0x3b8] sm:$0xff]
        %v5877 = vld [vmem:[%s666 + $0x3c0] sm:$0xff]
        %v5878 = vld [vmem:[%s666 + $0x3c8] sm:$0xff]
        %v5879 = vld [vmem:[%s666 + $0x3d0] sm:$0xff]
        %v5880 = vld [vmem:[%s666 + $0x3d8] sm:$0xff]
        %v5881 = vld [vmem:[%s666 + $0x3e0] sm:$0xff]
        %v5882 = vld [vmem:[%s666 + $0x3e8] sm:$0xff]
        %v5883 = vld [vmem:[%s666 + $0x3f0] sm:$0xff]
        %v5884 = vld [vmem:[%s666 + $0x3f8] sm:$0xff]
        %v5885 = vld [vmem:[%s671] sm:$0xff]
        %v5886 = vld [vmem:[%s671 + $0x8] sm:$0xff]
        %v5887 = vld [vmem:[%s671 + $0x10] sm:$0xff]
        %v5888 = vld [vmem:[%s671 + $0x18] sm:$0xff]
        %v5889 = vld [vmem:[%s671 + $0x20] sm:$0xff]
        %v5890 = vld [vmem:[%s671 + $0x28] sm:$0xff]
        %v5891 = vld [vmem:[%s671 + $0x30] sm:$0xff]
        %v5892 = vld [vmem:[%s671 + $0x38] sm:$0xff]
        %v5893 = vld [vmem:[%s671 + $0x40] sm:$0xff]
        %v5894 = vld [vmem:[%s671 + $0x48] sm:$0xff]
        %v5895 = vld [vmem:[%s671 + $0x50] sm:$0xff]
        %v5896 = vld [vmem:[%s671 + $0x58] sm:$0xff]
        %v5897 = vld [vmem:[%s671 + $0x60] sm:$0xff]
        %v5898 = vld [vmem:[%s671 + $0x68] sm:$0xff]
        %v5899 = vld [vmem:[%s671 + $0x70] sm:$0xff]
        %v5900 = vld [vmem:[%s671 + $0x78] sm:$0xff]
        %v5901 = vld [vmem:[%s671 + $0x80] sm:$0xff]
        %v5902 = vld [vmem:[%s671 + $0x88] sm:$0xff]
        %v5903 = vld [vmem:[%s671 + $0x90] sm:$0xff]
        %v5904 = vld [vmem:[%s671 + $0x98] sm:$0xff]
        %v5905 = vld [vmem:[%s671 + $0xa0] sm:$0xff]
        %v5906 = vld [vmem:[%s671 + $0xa8] sm:$0xff]
        %v5907 = vld [vmem:[%s671 + $0xb0] sm:$0xff]
        %v5908 = vld [vmem:[%s671 + $0xb8] sm:$0xff]
        %v5909 = vld [vmem:[%s671 + $0xc0] sm:$0xff]
        %v5910 = vld [vmem:[%s671 + $0xc8] sm:$0xff]
        %v5911 = vld [vmem:[%s671 + $0xd0] sm:$0xff]
        %v5912 = vld [vmem:[%s671 + $0xd8] sm:$0xff]
        %v5913 = vld [vmem:[%s671 + $0xe0] sm:$0xff]
        %v5914 = vld [vmem:[%s671 + $0xe8] sm:$0xff]
        %v5915 = vld [vmem:[%s671 + $0xf0] sm:$0xff]
        %v5916 = vld [vmem:[%s671 + $0xf8] sm:$0xff]
        %v5917 = vld [vmem:[%s671 + $0x100] sm:$0xff]
        %v5918 = vld [vmem:[%s671 + $0x108] sm:$0xff]
        %v5919 = vld [vmem:[%s671 + $0x110] sm:$0xff]
        %v5920 = vld [vmem:[%s671 + $0x118] sm:$0xff]
        %v5921 = vld [vmem:[%s671 + $0x120] sm:$0xff]
        %v5922 = vld [vmem:[%s671 + $0x128] sm:$0xff]
        %v5923 = vld [vmem:[%s671 + $0x130] sm:$0xff]
        %v5924 = vld [vmem:[%s671 + $0x138] sm:$0xff]
        %v5925 = vld [vmem:[%s671 + $0x140] sm:$0xff]
        %v5926 = vld [vmem:[%s671 + $0x148] sm:$0xff]
        %v5927 = vld [vmem:[%s671 + $0x150] sm:$0xff]
        %v5928 = vld [vmem:[%s671 + $0x158] sm:$0xff]
        %v5929 = vld [vmem:[%s671 + $0x160] sm:$0xff]
        %v5930 = vld [vmem:[%s671 + $0x168] sm:$0xff]
        %v5931 = vld [vmem:[%s671 + $0x170] sm:$0xff]
        %v5932 = vld [vmem:[%s671 + $0x178] sm:$0xff]
        %v5933 = vld [vmem:[%s671 + $0x180] sm:$0xff]
        %v5934 = vld [vmem:[%s671 + $0x188] sm:$0xff]
        %v5935 = vld [vmem:[%s671 + $0x190] sm:$0xff]
        %v5936 = vld [vmem:[%s671 + $0x198] sm:$0xff]
        %v5937 = vld [vmem:[%s671 + $0x1a0] sm:$0xff]
        %v5938 = vld [vmem:[%s671 + $0x1a8] sm:$0xff]
        %v5939 = vld [vmem:[%s671 + $0x1b0] sm:$0xff]
        %v5940 = vld [vmem:[%s671 + $0x1b8] sm:$0xff]
        %v5941 = vld [vmem:[%s671 + $0x1c0] sm:$0xff]
        %v5942 = vld [vmem:[%s671 + $0x1c8] sm:$0xff]
        %v5943 = vld [vmem:[%s671 + $0x1d0] sm:$0xff]
        %v5944 = vld [vmem:[%s671 + $0x1d8] sm:$0xff]
        %v5945 = vld [vmem:[%s671 + $0x1e0] sm:$0xff]
        %v5946 = vld [vmem:[%s671 + $0x1e8] sm:$0xff]
        %v5947 = vld [vmem:[%s671 + $0x1f0] sm:$0xff]
        %v5948 = vld [vmem:[%s671 + $0x1f8] sm:$0xff]
        %v5949 = vld [vmem:[%s671 + $0x200] sm:$0xff]
        %v5950 = vld [vmem:[%s671 + $0x208] sm:$0xff]
        %v5951 = vld [vmem:[%s671 + $0x210] sm:$0xff]
        %v5952 = vld [vmem:[%s671 + $0x218] sm:$0xff]
        %v5953 = vld [vmem:[%s671 + $0x220] sm:$0xff]
        %v5954 = vld [vmem:[%s671 + $0x228] sm:$0xff]
        %v5955 = vld [vmem:[%s671 + $0x230] sm:$0xff]
        %v5956 = vld [vmem:[%s671 + $0x238] sm:$0xff]
        %v5957 = vld [vmem:[%s671 + $0x240] sm:$0xff]
        %v5958 = vld [vmem:[%s671 + $0x248] sm:$0xff]
        %v5959 = vld [vmem:[%s671 + $0x250] sm:$0xff]
        %v5960 = vld [vmem:[%s671 + $0x258] sm:$0xff]
        %v5961 = vld [vmem:[%s671 + $0x260] sm:$0xff]
        %v5962 = vld [vmem:[%s671 + $0x268] sm:$0xff]
        %v5963 = vld [vmem:[%s671 + $0x270] sm:$0xff]
        %v5964 = vld [vmem:[%s671 + $0x278] sm:$0xff]
        %v5965 = vld [vmem:[%s671 + $0x280] sm:$0xff]
        %v5966 = vld [vmem:[%s671 + $0x288] sm:$0xff]
        %v5967 = vld [vmem:[%s671 + $0x290] sm:$0xff]
        %v5968 = vld [vmem:[%s671 + $0x298] sm:$0xff]
        %v5969 = vld [vmem:[%s671 + $0x2a0] sm:$0xff]
        %v5970 = vld [vmem:[%s671 + $0x2a8] sm:$0xff]
        %v5971 = vld [vmem:[%s671 + $0x2b0] sm:$0xff]
        %v5972 = vld [vmem:[%s671 + $0x2b8] sm:$0xff]
        %v5973 = vld [vmem:[%s671 + $0x2c0] sm:$0xff]
        %v5974 = vld [vmem:[%s671 + $0x2c8] sm:$0xff]
        %v5975 = vld [vmem:[%s671 + $0x2d0] sm:$0xff]
        %v5976 = vld [vmem:[%s671 + $0x2d8] sm:$0xff]
        %v5977 = vld [vmem:[%s671 + $0x2e0] sm:$0xff]
        %v5978 = vld [vmem:[%s671 + $0x2e8] sm:$0xff]
        %v5979 = vld [vmem:[%s671 + $0x2f0] sm:$0xff]
        %v5980 = vld [vmem:[%s671 + $0x2f8] sm:$0xff]
        %v5981 = vld [vmem:[%s671 + $0x300] sm:$0xff]
        %v5982 = vld [vmem:[%s671 + $0x308] sm:$0xff]
        %v5983 = vld [vmem:[%s671 + $0x310] sm:$0xff]
        %v5984 = vld [vmem:[%s671 + $0x318] sm:$0xff]
        %v5985 = vld [vmem:[%s671 + $0x320] sm:$0xff]
        %v5986 = vld [vmem:[%s671 + $0x328] sm:$0xff]
        %v5987 = vld [vmem:[%s671 + $0x330] sm:$0xff]
        %v5988 = vld [vmem:[%s671 + $0x338] sm:$0xff]
        %v5989 = vld [vmem:[%s671 + $0x340] sm:$0xff]
        %v5990 = vld [vmem:[%s671 + $0x348] sm:$0xff]
        %v5991 = vld [vmem:[%s671 + $0x350] sm:$0xff]
        %v5992 = vld [vmem:[%s671 + $0x358] sm:$0xff]
        %v5993 = vld [vmem:[%s671 + $0x360] sm:$0xff]
        %v5994 = vld [vmem:[%s671 + $0x368] sm:$0xff]
        %v5995 = vld [vmem:[%s671 + $0x370] sm:$0xff]
        %v5996 = vld [vmem:[%s671 + $0x378] sm:$0xff]
        %v5997 = vld [vmem:[%s671 + $0x380] sm:$0xff]
        %v5998 = vld [vmem:[%s671 + $0x388] sm:$0xff]
        %v5999 = vld [vmem:[%s671 + $0x390] sm:$0xff]
        %v6000 = vld [vmem:[%s671 + $0x398] sm:$0xff]
        %v6001 = vld [vmem:[%s671 + $0x3a0] sm:$0xff]
        %v6002 = vld [vmem:[%s671 + $0x3a8] sm:$0xff]
        %v6003 = vld [vmem:[%s671 + $0x3b0] sm:$0xff]
        %v6004 = vld [vmem:[%s671 + $0x3b8] sm:$0xff]
        %v6005 = vld [vmem:[%s671 + $0x3c0] sm:$0xff]
        %v6006 = vld [vmem:[%s671 + $0x3c8] sm:$0xff]
        %v6007 = vld [vmem:[%s671 + $0x3d0] sm:$0xff]
        %v6008 = vld [vmem:[%s671 + $0x3d8] sm:$0xff]
        %v6009 = vld [vmem:[%s671 + $0x3e0] sm:$0xff]
        %v6010 = vld [vmem:[%s671 + $0x3e8] sm:$0xff]
        %v6011 = vld [vmem:[%s671 + $0x3f0] sm:$0xff]
        %v6012 = vld [vmem:[%s671 + $0x3f8] sm:$0xff]
        %v6013 = vmul.f32 %v5757, %v2811
        %v6014 = vmul.f32 %v5758, %v2812
        %v6015 = vmul.f32 %v5759, %v2813
        %v6016 = vmul.f32 %v5760, %v2814
        %v6017 = vmul.f32 %v5761, %v2815
        %v6018 = vmul.f32 %v5762, %v2816
        %v6019 = vmul.f32 %v5763, %v2817
        %v6020 = vmul.f32 %v5764, %v2818
        %v6021 = vmul.f32 %v5765, %v2819
        %v6022 = vmul.f32 %v5766, %v2820
        %v6023 = vmul.f32 %v5767, %v2821
        %v6024 = vmul.f32 %v5768, %v2822
        %v6025 = vmul.f32 %v5769, %v2823
        %v6026 = vmul.f32 %v5770, %v2824
        %v6027 = vmul.f32 %v5771, %v2825
        %v6028 = vmul.f32 %v5772, %v2826
        %v6029 = vmul.f32 %v5773, %v2827
        %v6030 = vmul.f32 %v5774, %v2828
        %v6031 = vmul.f32 %v5775, %v2829
        %v6032 = vmul.f32 %v5776, %v2830
        %v6033 = vmul.f32 %v5777, %v2831
        %v6034 = vmul.f32 %v5778, %v2832
        %v6035 = vmul.f32 %v5779, %v2833
        %v6036 = vmul.f32 %v5780, %v2834
        %v6037 = vmul.f32 %v5781, %v2835
        %v6038 = vmul.f32 %v5782, %v2836
        %v6039 = vmul.f32 %v5783, %v2837
        %v6040 = vmul.f32 %v5784, %v2838
        %v6041 = vmul.f32 %v5785, %v2839
        %v6042 = vmul.f32 %v5786, %v2840
        %v6043 = vmul.f32 %v5787, %v2841
        %v6044 = vmul.f32 %v5788, %v2842
        %v6045 = vsel %vm1750, %v6013, 0.0
        %v6046 = vsel %vm1750, %v6014, 0.0
        %v6047 = vadd.f32 %v6045, %v6046
        %v6048 = vsel %vm1750, %v6015, 0.0
        %v6049 = vadd.f32 %v6047, %v6048
        %v6050 = vsel %vm1750, %v6016, 0.0
        %v6051 = vadd.f32 %v6049, %v6050
        %v6052 = vsel %vm1750, %v6017, 0.0
        %v6053 = vadd.f32 %v6051, %v6052
        %v6054 = vsel %vm1750, %v6018, 0.0
        %v6055 = vadd.f32 %v6053, %v6054
        %v6056 = vsel %vm1750, %v6019, 0.0
        %v6057 = vadd.f32 %v6055, %v6056
        %v6058 = vsel %vm1750, %v6020, 0.0
        %v6059 = vadd.f32 %v6057, %v6058
        %v6060 = vsel %vm1750, %v6021, 0.0
        %v6061 = vadd.f32 %v6059, %v6060
        %v6062 = vsel %vm1750, %v6022, 0.0
        %v6063 = vadd.f32 %v6061, %v6062
        %v6064 = vsel %vm1750, %v6023, 0.0
        %v6065 = vadd.f32 %v6063, %v6064
        %v6066 = vsel %vm1750, %v6024, 0.0
        %v6067 = vadd.f32 %v6065, %v6066
        %v6068 = vsel %vm1750, %v6025, 0.0
        %v6069 = vadd.f32 %v6067, %v6068
        %v6070 = vsel %vm1750, %v6026, 0.0
        %v6071 = vadd.f32 %v6069, %v6070
        %v6072 = vsel %vm1750, %v6027, 0.0
        %v6073 = vadd.f32 %v6071, %v6072
        %v6074 = vsel %vm1750, %v6028, 0.0
        %v6075 = vadd.f32 %v6073, %v6074
        %v6076 = vsel %vm1750, %v6029, 0.0
        %v6077 = vadd.f32 %v6075, %v6076
        %v6078 = vsel %vm1750, %v6030, 0.0
        %v6079 = vadd.f32 %v6077, %v6078
        %v6080 = vsel %vm1750, %v6031, 0.0
        %v6081 = vadd.f32 %v6079, %v6080
        %v6082 = vsel %vm1750, %v6032, 0.0
        %v6083 = vadd.f32 %v6081, %v6082
        %v6084 = vsel %vm1750, %v6033, 0.0
        %v6085 = vadd.f32 %v6083, %v6084
        %v6086 = vsel %vm1750, %v6034, 0.0
        %v6087 = vadd.f32 %v6085, %v6086
        %v6088 = vsel %vm1750, %v6035, 0.0
        %v6089 = vadd.f32 %v6087, %v6088
        %v6090 = vsel %vm1750, %v6036, 0.0
        %v6091 = vadd.f32 %v6089, %v6090
        %v6092 = vsel %vm1750, %v6037, 0.0
        %v6093 = vadd.f32 %v6091, %v6092
        %v6094 = vsel %vm1750, %v6038, 0.0
        %v6095 = vadd.f32 %v6093, %v6094
        %v6096 = vsel %vm1750, %v6039, 0.0
        %v6097 = vadd.f32 %v6095, %v6096
        %v6098 = vsel %vm1750, %v6040, 0.0
        %v6099 = vadd.f32 %v6097, %v6098
        %v6100 = vsel %vm1750, %v6041, 0.0
        %v6101 = vadd.f32 %v6099, %v6100
        %v6102 = vsel %vm1750, %v6042, 0.0
        %v6103 = vadd.f32 %v6101, %v6102
        %v6104 = vsel %vm1750, %v6043, 0.0
        %v6105 = vadd.f32 %v6103, %v6104
        %v6106 = vsel %vm1750, %v6044, 0.0
        %v6107 = vadd.f32 %v6105, %v6106
        %6108 = vadd.xlane.f32.xlu0 %v6107
        %v6109 = vpop.xlane.xlu0 %6108
        %v6110 = vrot.slane %v6109, 4
        %v6111 = vadd.f32 %v6109, %v6110
        %v6112 = vrot.slane %v6111, 2
        %v6113 = vadd.f32 %v6111, %v6112
        %v6114 = vrot.slane %v6113, 1
        %v6115 = vadd.f32 %v6113, %v6114
        %s6116 = vtos %v6115
        %s6117 = smul.f32 %s6116, 0.011048543
        %v6118 = vmul.f32 %v5789, %v2811
        %v6119 = vmul.f32 %v5790, %v2812
        %v6120 = vmul.f32 %v5791, %v2813
        %v6121 = vmul.f32 %v5792, %v2814
        %v6122 = vmul.f32 %v5793, %v2815
        %v6123 = vmul.f32 %v5794, %v2816
        %v6124 = vmul.f32 %v5795, %v2817
        %v6125 = vmul.f32 %v5796, %v2818
        %v6126 = vmul.f32 %v5797, %v2819
        %v6127 = vmul.f32 %v5798, %v2820
        %v6128 = vmul.f32 %v5799, %v2821
        %v6129 = vmul.f32 %v5800, %v2822
        %v6130 = vmul.f32 %v5801, %v2823
        %v6131 = vmul.f32 %v5802, %v2824
        %v6132 = vmul.f32 %v5803, %v2825
        %v6133 = vmul.f32 %v5804, %v2826
        %v6134 = vmul.f32 %v5805, %v2827
        %v6135 = vmul.f32 %v5806, %v2828
        %v6136 = vmul.f32 %v5807, %v2829
        %v6137 = vmul.f32 %v5808, %v2830
        %v6138 = vmul.f32 %v5809, %v2831
        %v6139 = vmul.f32 %v5810, %v2832
        %v6140 = vmul.f32 %v5811, %v2833
        %v6141 = vmul.f32 %v5812, %v2834
        %v6142 = vmul.f32 %v5813, %v2835
        %v6143 = vmul.f32 %v5814, %v2836
        %v6144 = vmul.f32 %v5815, %v2837
        %v6145 = vmul.f32 %v5816, %v2838
        %v6146 = vmul.f32 %v5817, %v2839
        %v6147 = vmul.f32 %v5818, %v2840
        %v6148 = vmul.f32 %v5819, %v2841
        %v6149 = vmul.f32 %v5820, %v2842
        %v6150 = vsel %vm1750, %v6118, 0.0
        %v6151 = vsel %vm1750, %v6119, 0.0
        %v6152 = vadd.f32 %v6150, %v6151
        %v6153 = vsel %vm1750, %v6120, 0.0
        %v6154 = vadd.f32 %v6152, %v6153
        %v6155 = vsel %vm1750, %v6121, 0.0
        %v6156 = vadd.f32 %v6154, %v6155
        %v6157 = vsel %vm1750, %v6122, 0.0
        %v6158 = vadd.f32 %v6156, %v6157
        %v6159 = vsel %vm1750, %v6123, 0.0
        %v6160 = vadd.f32 %v6158, %v6159
        %v6161 = vsel %vm1750, %v6124, 0.0
        %v6162 = vadd.f32 %v6160, %v6161
        %v6163 = vsel %vm1750, %v6125, 0.0
        %v6164 = vadd.f32 %v6162, %v6163
        %v6165 = vsel %vm1750, %v6126, 0.0
        %v6166 = vadd.f32 %v6164, %v6165
        %v6167 = vsel %vm1750, %v6127, 0.0
        %v6168 = vadd.f32 %v6166, %v6167
        %v6169 = vsel %vm1750, %v6128, 0.0
        %v6170 = vadd.f32 %v6168, %v6169
        %v6171 = vsel %vm1750, %v6129, 0.0
        %v6172 = vadd.f32 %v6170, %v6171
        %v6173 = vsel %vm1750, %v6130, 0.0
        %v6174 = vadd.f32 %v6172, %v6173
        %v6175 = vsel %vm1750, %v6131, 0.0
        %v6176 = vadd.f32 %v6174, %v6175
        %v6177 = vsel %vm1750, %v6132, 0.0
        %v6178 = vadd.f32 %v6176, %v6177
        %v6179 = vsel %vm1750, %v6133, 0.0
        %v6180 = vadd.f32 %v6178, %v6179
        %v6181 = vsel %vm1750, %v6134, 0.0
        %v6182 = vadd.f32 %v6180, %v6181
        %v6183 = vsel %vm1750, %v6135, 0.0
        %v6184 = vadd.f32 %v6182, %v6183
        %v6185 = vsel %vm1750, %v6136, 0.0
        %v6186 = vadd.f32 %v6184, %v6185
        %v6187 = vsel %vm1750, %v6137, 0.0
        %v6188 = vadd.f32 %v6186, %v6187
        %v6189 = vsel %vm1750, %v6138, 0.0
        %v6190 = vadd.f32 %v6188, %v6189
        %v6191 = vsel %vm1750, %v6139, 0.0
        %v6192 = vadd.f32 %v6190, %v6191
        %v6193 = vsel %vm1750, %v6140, 0.0
        %v6194 = vadd.f32 %v6192, %v6193
        %v6195 = vsel %vm1750, %v6141, 0.0
        %v6196 = vadd.f32 %v6194, %v6195
        %v6197 = vsel %vm1750, %v6142, 0.0
        %v6198 = vadd.f32 %v6196, %v6197
        %v6199 = vsel %vm1750, %v6143, 0.0
        %v6200 = vadd.f32 %v6198, %v6199
        %v6201 = vsel %vm1750, %v6144, 0.0
        %v6202 = vadd.f32 %v6200, %v6201
        %v6203 = vsel %vm1750, %v6145, 0.0
        %v6204 = vadd.f32 %v6202, %v6203
        %v6205 = vsel %vm1750, %v6146, 0.0
        %v6206 = vadd.f32 %v6204, %v6205
        %v6207 = vsel %vm1750, %v6147, 0.0
        %v6208 = vadd.f32 %v6206, %v6207
        %v6209 = vsel %vm1750, %v6148, 0.0
        %v6210 = vadd.f32 %v6208, %v6209
        %v6211 = vsel %vm1750, %v6149, 0.0
        %v6212 = vadd.f32 %v6210, %v6211
        %6213 = vadd.xlane.f32.xlu0 %v6212
        %v6214 = vpop.xlane.xlu0 %6213
        %v6215 = vrot.slane %v6214, 4
        %v6216 = vadd.f32 %v6214, %v6215
        %v6217 = vrot.slane %v6216, 2
        %v6218 = vadd.f32 %v6216, %v6217
        %v6219 = vrot.slane %v6218, 1
        %v6220 = vadd.f32 %v6218, %v6219
        %s6221 = vtos %v6220
        %s6222 = smul.f32 %s6221, 0.011048543
        %v6223 = vmul.f32 %v5821, %v2811
        %v6224 = vmul.f32 %v5822, %v2812
        %v6225 = vmul.f32 %v5823, %v2813
        %v6226 = vmul.f32 %v5824, %v2814
        %v6227 = vmul.f32 %v5825, %v2815
        %v6228 = vmul.f32 %v5826, %v2816
        %v6229 = vmul.f32 %v5827, %v2817
        %v6230 = vmul.f32 %v5828, %v2818
        %v6231 = vmul.f32 %v5829, %v2819
        %v6232 = vmul.f32 %v5830, %v2820
        %v6233 = vmul.f32 %v5831, %v2821
        %v6234 = vmul.f32 %v5832, %v2822
        %v6235 = vmul.f32 %v5833, %v2823
        %v6236 = vmul.f32 %v5834, %v2824
        %v6237 = vmul.f32 %v5835, %v2825
        %v6238 = vmul.f32 %v5836, %v2826
        %v6239 = vmul.f32 %v5837, %v2827
        %v6240 = vmul.f32 %v5838, %v2828
        %v6241 = vmul.f32 %v5839, %v2829
        %v6242 = vmul.f32 %v5840, %v2830
        %v6243 = vmul.f32 %v5841, %v2831
        %v6244 = vmul.f32 %v5842, %v2832
        %v6245 = vmul.f32 %v5843, %v2833
        %v6246 = vmul.f32 %v5844, %v2834
        %v6247 = vmul.f32 %v5845, %v2835
        %v6248 = vmul.f32 %v5846, %v2836
        %v6249 = vmul.f32 %v5847, %v2837
        %v6250 = vmul.f32 %v5848, %v2838
        %v6251 = vmul.f32 %v5849, %v2839
        %v6252 = vmul.f32 %v5850, %v2840
        %v6253 = vmul.f32 %v5851, %v2841
        %v6254 = vmul.f32 %v5852, %v2842
        %v6255 = vsel %vm1750, %v6223, 0.0
        %v6256 = vsel %vm1750, %v6224, 0.0
        %v6257 = vadd.f32 %v6255, %v6256
        %v6258 = vsel %vm1750, %v6225, 0.0
        %v6259 = vadd.f32 %v6257, %v6258
        %v6260 = vsel %vm1750, %v6226, 0.0
        %v6261 = vadd.f32 %v6259, %v6260
        %v6262 = vsel %vm1750, %v6227, 0.0
        %v6263 = vadd.f32 %v6261, %v6262
        %v6264 = vsel %vm1750, %v6228, 0.0
        %v6265 = vadd.f32 %v6263, %v6264
        %v6266 = vsel %vm1750, %v6229, 0.0
        %v6267 = vadd.f32 %v6265, %v6266
        %v6268 = vsel %vm1750, %v6230, 0.0
        %v6269 = vadd.f32 %v6267, %v6268
        %v6270 = vsel %vm1750, %v6231, 0.0
        %v6271 = vadd.f32 %v6269, %v6270
        %v6272 = vsel %vm1750, %v6232, 0.0
        %v6273 = vadd.f32 %v6271, %v6272
        %v6274 = vsel %vm1750, %v6233, 0.0
        %v6275 = vadd.f32 %v6273, %v6274
        %v6276 = vsel %vm1750, %v6234, 0.0
        %v6277 = vadd.f32 %v6275, %v6276
        %v6278 = vsel %vm1750, %v6235, 0.0
        %v6279 = vadd.f32 %v6277, %v6278
        %v6280 = vsel %vm1750, %v6236, 0.0
        %v6281 = vadd.f32 %v6279, %v6280
        %v6282 = vsel %vm1750, %v6237, 0.0
        %v6283 = vadd.f32 %v6281, %v6282
        %v6284 = vsel %vm1750, %v6238, 0.0
        %v6285 = vadd.f32 %v6283, %v6284
        %v6286 = vsel %vm1750, %v6239, 0.0
        %v6287 = vadd.f32 %v6285, %v6286
        %v6288 = vsel %vm1750, %v6240, 0.0
        %v6289 = vadd.f32 %v6287, %v6288
        %v6290 = vsel %vm1750, %v6241, 0.0
        %v6291 = vadd.f32 %v6289, %v6290
        %v6292 = vsel %vm1750, %v6242, 0.0
        %v6293 = vadd.f32 %v6291, %v6292
        %v6294 = vsel %vm1750, %v6243, 0.0
        %v6295 = vadd.f32 %v6293, %v6294
        %v6296 = vsel %vm1750, %v6244, 0.0
        %v6297 = vadd.f32 %v6295, %v6296
        %v6298 = vsel %vm1750, %v6245, 0.0
        %v6299 = vadd.f32 %v6297, %v6298
        %v6300 = vsel %vm1750, %v6246, 0.0
        %v6301 = vadd.f32 %v6299, %v6300
        %v6302 = vsel %vm1750, %v6247, 0.0
        %v6303 = vadd.f32 %v6301, %v6302
        %v6304 = vsel %vm1750, %v6248, 0.0
        %v6305 = vadd.f32 %v6303, %v6304
        %v6306 = vsel %vm1750, %v6249, 0.0
        %v6307 = vadd.f32 %v6305, %v6306
        %v6308 = vsel %vm1750, %v6250, 0.0
        %v6309 = vadd.f32 %v6307, %v6308
        %v6310 = vsel %vm1750, %v6251, 0.0
        %v6311 = vadd.f32 %v6309, %v6310
        %v6312 = vsel %vm1750, %v6252, 0.0
        %v6313 = vadd.f32 %v6311, %v6312
        %v6314 = vsel %vm1750, %v6253, 0.0
        %v6315 = vadd.f32 %v6313, %v6314
        %v6316 = vsel %vm1750, %v6254, 0.0
        %v6317 = vadd.f32 %v6315, %v6316
        %6318 = vadd.xlane.f32.xlu0 %v6317
        %v6319 = vpop.xlane.xlu0 %6318
        %v6320 = vrot.slane %v6319, 4
        %v6321 = vadd.f32 %v6319, %v6320
        %v6322 = vrot.slane %v6321, 2
        %v6323 = vadd.f32 %v6321, %v6322
        %v6324 = vrot.slane %v6323, 1
        %v6325 = vadd.f32 %v6323, %v6324
        %s6326 = vtos %v6325
        %s6327 = smul.f32 %s6326, 0.011048543
        %v6328 = vmul.f32 %v5853, %v2811
        %v6329 = vmul.f32 %v5854, %v2812
        %v6330 = vmul.f32 %v5855, %v2813
        %v6331 = vmul.f32 %v5856, %v2814
        %v6332 = vmul.f32 %v5857, %v2815
        %v6333 = vmul.f32 %v5858, %v2816
        %v6334 = vmul.f32 %v5859, %v2817
        %v6335 = vmul.f32 %v5860, %v2818
        %v6336 = vmul.f32 %v5861, %v2819
        %v6337 = vmul.f32 %v5862, %v2820
        %v6338 = vmul.f32 %v5863, %v2821
        %v6339 = vmul.f32 %v5864, %v2822
        %v6340 = vmul.f32 %v5865, %v2823
        %v6341 = vmul.f32 %v5866, %v2824
        %v6342 = vmul.f32 %v5867, %v2825
        %v6343 = vmul.f32 %v5868, %v2826
        %v6344 = vmul.f32 %v5869, %v2827
        %v6345 = vmul.f32 %v5870, %v2828
        %v6346 = vmul.f32 %v5871, %v2829
        %v6347 = vmul.f32 %v5872, %v2830
        %v6348 = vmul.f32 %v5873, %v2831
        %v6349 = vmul.f32 %v5874, %v2832
        %v6350 = vmul.f32 %v5875, %v2833
        %v6351 = vmul.f32 %v5876, %v2834
        %v6352 = vmul.f32 %v5877, %v2835
        %v6353 = vmul.f32 %v5878, %v2836
        %v6354 = vmul.f32 %v5879, %v2837
        %v6355 = vmul.f32 %v5880, %v2838
        %v6356 = vmul.f32 %v5881, %v2839
        %v6357 = vmul.f32 %v5882, %v2840
        %v6358 = vmul.f32 %v5883, %v2841
        %v6359 = vmul.f32 %v5884, %v2842
        %v6360 = vsel %vm1750, %v6328, 0.0
        %v6361 = vsel %vm1750, %v6329, 0.0
        %v6362 = vadd.f32 %v6360, %v6361
        %v6363 = vsel %vm1750, %v6330, 0.0
        %v6364 = vadd.f32 %v6362, %v6363
        %v6365 = vsel %vm1750, %v6331, 0.0
        %v6366 = vadd.f32 %v6364, %v6365
        %v6367 = vsel %vm1750, %v6332, 0.0
        %v6368 = vadd.f32 %v6366, %v6367
        %v6369 = vsel %vm1750, %v6333, 0.0
        %v6370 = vadd.f32 %v6368, %v6369
        %v6371 = vsel %vm1750, %v6334, 0.0
        %v6372 = vadd.f32 %v6370, %v6371
        %v6373 = vsel %vm1750, %v6335, 0.0
        %v6374 = vadd.f32 %v6372, %v6373
        %v6375 = vsel %vm1750, %v6336, 0.0
        %v6376 = vadd.f32 %v6374, %v6375
        %v6377 = vsel %vm1750, %v6337, 0.0
        %v6378 = vadd.f32 %v6376, %v6377
        %v6379 = vsel %vm1750, %v6338, 0.0
        %v6380 = vadd.f32 %v6378, %v6379
        %v6381 = vsel %vm1750, %v6339, 0.0
        %v6382 = vadd.f32 %v6380, %v6381
        %v6383 = vsel %vm1750, %v6340, 0.0
        %v6384 = vadd.f32 %v6382, %v6383
        %v6385 = vsel %vm1750, %v6341, 0.0
        %v6386 = vadd.f32 %v6384, %v6385
        %v6387 = vsel %vm1750, %v6342, 0.0
        %v6388 = vadd.f32 %v6386, %v6387
        %v6389 = vsel %vm1750, %v6343, 0.0
        %v6390 = vadd.f32 %v6388, %v6389
        %v6391 = vsel %vm1750, %v6344, 0.0
        %v6392 = vadd.f32 %v6390, %v6391
        %v6393 = vsel %vm1750, %v6345, 0.0
        %v6394 = vadd.f32 %v6392, %v6393
        %v6395 = vsel %vm1750, %v6346, 0.0
        %v6396 = vadd.f32 %v6394, %v6395
        %v6397 = vsel %vm1750, %v6347, 0.0
        %v6398 = vadd.f32 %v6396, %v6397
        %v6399 = vsel %vm1750, %v6348, 0.0
        %v6400 = vadd.f32 %v6398, %v6399
        %v6401 = vsel %vm1750, %v6349, 0.0
        %v6402 = vadd.f32 %v6400, %v6401
        %v6403 = vsel %vm1750, %v6350, 0.0
        %v6404 = vadd.f32 %v6402, %v6403
        %v6405 = vsel %vm1750, %v6351, 0.0
        %v6406 = vadd.f32 %v6404, %v6405
        %v6407 = vsel %vm1750, %v6352, 0.0
        %v6408 = vadd.f32 %v6406, %v6407
        %v6409 = vsel %vm1750, %v6353, 0.0
        %v6410 = vadd.f32 %v6408, %v6409
        %v6411 = vsel %vm1750, %v6354, 0.0
        %v6412 = vadd.f32 %v6410, %v6411
        %v6413 = vsel %vm1750, %v6355, 0.0
        %v6414 = vadd.f32 %v6412, %v6413
        %v6415 = vsel %vm1750, %v6356, 0.0
        %v6416 = vadd.f32 %v6414, %v6415
        %v6417 = vsel %vm1750, %v6357, 0.0
        %v6418 = vadd.f32 %v6416, %v6417
        %v6419 = vsel %vm1750, %v6358, 0.0
        %v6420 = vadd.f32 %v6418, %v6419
        %v6421 = vsel %vm1750, %v6359, 0.0
        %v6422 = vadd.f32 %v6420, %v6421
        %6423 = vadd.xlane.f32.xlu0 %v6422
        %v6424 = vpop.xlane.xlu0 %6423
        %v6425 = vrot.slane %v6424, 4
        %v6426 = vadd.f32 %v6424, %v6425
        %v6427 = vrot.slane %v6426, 2
        %v6428 = vadd.f32 %v6426, %v6427
        %v6429 = vrot.slane %v6428, 1
        %v6430 = vadd.f32 %v6428, %v6429
        %s6431 = vtos %v6430
        %s6432 = smul.f32 %s6431, 0.011048543
        %s6433 = smax.f32 %s6117, %s6222
        %s6434 = smax.f32 %s6433, %s6327
        %s6435 = smax.f32 %s6434, %s6432
        %s6436 = ssub.f32 %s6117, %s6435
        %v6437 = vstv %s6436
        %v6438 = vmul.f32 %v6437, 1.442695
        %v6439 = vpow.pop %v6438
        %s6440 = vtos %v6439
        %s6441 = ssub.f32 %s6222, %s6435
        %v6442 = vstv %s6441
        %v6443 = vmul.f32 %v6442, 1.442695
        %v6444 = vpow.pop %v6443
        %s6445 = vtos %v6444
        %s6446 = ssub.f32 %s6327, %s6435
        %v6447 = vstv %s6446
        %v6448 = vmul.f32 %v6447, 1.442695
        %v6449 = vpow.pop %v6448
        %s6450 = vtos %v6449
        %s6451 = ssub.f32 %s6432, %s6435
        %v6452 = vstv %s6451
        %v6453 = vmul.f32 %v6452, 1.442695
        %v6454 = vpow.pop %v6453
        %s6455 = vtos %v6454
        %s6456 = sadd.f32 %s6440, %s6445
        %s6457 = sadd.f32 %s6456, %s6450
        %s6458 = sadd.f32 %s6457, %s6455
        %v6459 = vstv %s6458
        %v6460 = vrcp.pop %v6459
        %v6461 = vmul.f32 %v6459, %v6460
        %v6462 = vsub.f32 1.0, %v6461
        %v6463 = vmul.f32 %v6460, %v6462
        %v6464 = vadd.f32 %v6460, %v6463
        %vm6465 = vweird.f32 %v6459
        %vm6466 = vweird.f32 %v6460
        %vm6467 = vmor %vm6465, %vm6466
        %v6468 = vsel %vm6467, %v6460, %v6464
        %v6469 = vand.u32 2147483647, %v6459
        %vm6470 = vcmp.eq.f32.partialorder %v6469, 8.507059e+37
        %v6471 = vand.u32 %v6459, 2147483648
        %v6472 = vor.u32 1.1754944e-38, %v6471
        %v6473 = vsel %vm6470, %v6472, %v6468
        %s6474 = vtos %v6473
        %s6475 = smul.f32 %s6440, %s6474
        %v6476 = vstv %s6475
        %v6477 = vmul.f32 %v5885, %v6476
        %v6478 = vmul.f32 %v5886, %v6476
        %v6479 = vmul.f32 %v5887, %v6476
        %v6480 = vmul.f32 %v5888, %v6476
        %v6481 = vmul.f32 %v5889, %v6476
        %v6482 = vmul.f32 %v5890, %v6476
        %v6483 = vmul.f32 %v5891, %v6476
        %v6484 = vmul.f32 %v5892, %v6476
        %v6485 = vmul.f32 %v5893, %v6476
        %v6486 = vmul.f32 %v5894, %v6476
        %v6487 = vmul.f32 %v5895, %v6476
        %v6488 = vmul.f32 %v5896, %v6476
        %v6489 = vmul.f32 %v5897, %v6476
        %v6490 = vmul.f32 %v5898, %v6476
        %v6491 = vmul.f32 %v5899, %v6476
        %v6492 = vmul.f32 %v5900, %v6476
        %v6493 = vmul.f32 %v5901, %v6476
        %v6494 = vmul.f32 %v5902, %v6476
        %v6495 = vmul.f32 %v5903, %v6476
        %v6496 = vmul.f32 %v5904, %v6476
        %v6497 = vmul.f32 %v5905, %v6476
        %v6498 = vmul.f32 %v5906, %v6476
        %v6499 = vmul.f32 %v5907, %v6476
        %v6500 = vmul.f32 %v5908, %v6476
        %v6501 = vmul.f32 %v5909, %v6476
        %v6502 = vmul.f32 %v5910, %v6476
        %v6503 = vmul.f32 %v5911, %v6476
        %v6504 = vmul.f32 %v5912, %v6476
        %v6505 = vmul.f32 %v5913, %v6476
        %v6506 = vmul.f32 %v5914, %v6476
        %v6507 = vmul.f32 %v5915, %v6476
        %v6508 = vmul.f32 %v5916, %v6476
        %s6509 = smul.f32 %s6445, %s6474
        %v6510 = vstv %s6509
        %v6511 = vmul.f32 %v5917, %v6510
        %v6512 = vmul.f32 %v5918, %v6510
        %v6513 = vmul.f32 %v5919, %v6510
        %v6514 = vmul.f32 %v5920, %v6510
        %v6515 = vmul.f32 %v5921, %v6510
        %v6516 = vmul.f32 %v5922, %v6510
        %v6517 = vmul.f32 %v5923, %v6510
        %v6518 = vmul.f32 %v5924, %v6510
        %v6519 = vmul.f32 %v5925, %v6510
        %v6520 = vmul.f32 %v5926, %v6510
        %v6521 = vmul.f32 %v5927, %v6510
        %v6522 = vmul.f32 %v5928, %v6510
        %v6523 = vmul.f32 %v5929, %v6510
        %v6524 = vmul.f32 %v5930, %v6510
        %v6525 = vmul.f32 %v5931, %v6510
        %v6526 = vmul.f32 %v5932, %v6510
        %v6527 = vmul.f32 %v5933, %v6510
        %v6528 = vmul.f32 %v5934, %v6510
        %v6529 = vmul.f32 %v5935, %v6510
        %v6530 = vmul.f32 %v5936, %v6510
        %v6531 = vmul.f32 %v5937, %v6510
        %v6532 = vmul.f32 %v5938, %v6510
        %v6533 = vmul.f32 %v5939, %v6510
        %v6534 = vmul.f32 %v5940, %v6510
        %v6535 = vmul.f32 %v5941, %v6510
        %v6536 = vmul.f32 %v5942, %v6510
        %v6537 = vmul.f32 %v5943, %v6510
        %v6538 = vmul.f32 %v5944, %v6510
        %v6539 = vmul.f32 %v5945, %v6510
        %v6540 = vmul.f32 %v5946, %v6510
        %v6541 = vmul.f32 %v5947, %v6510
        %v6542 = vmul.f32 %v5948, %v6510
        %v6543 = vadd.f32 %v6477, %v6511
        %v6544 = vadd.f32 %v6478, %v6512
        %v6545 = vadd.f32 %v6479, %v6513
        %v6546 = vadd.f32 %v6480, %v6514
        %v6547 = vadd.f32 %v6481, %v6515
        %v6548 = vadd.f32 %v6482, %v6516
        %v6549 = vadd.f32 %v6483, %v6517
        %v6550 = vadd.f32 %v6484, %v6518
        %v6551 = vadd.f32 %v6485, %v6519
        %v6552 = vadd.f32 %v6486, %v6520
        %v6553 = vadd.f32 %v6487, %v6521
        %v6554 = vadd.f32 %v6488, %v6522
        %v6555 = vadd.f32 %v6489, %v6523
        %v6556 = vadd.f32 %v6490, %v6524
        %v6557 = vadd.f32 %v6491, %v6525
        %v6558 = vadd.f32 %v6492, %v6526
        %v6559 = vadd.f32 %v6493, %v6527
        %v6560 = vadd.f32 %v6494, %v6528
        %v6561 = vadd.f32 %v6495, %v6529
        %v6562 = vadd.f32 %v6496, %v6530
        %v6563 = vadd.f32 %v6497, %v6531
        %v6564 = vadd.f32 %v6498, %v6532
        %v6565 = vadd.f32 %v6499, %v6533
        %v6566 = vadd.f32 %v6500, %v6534
        %v6567 = vadd.f32 %v6501, %v6535
        %v6568 = vadd.f32 %v6502, %v6536
        %v6569 = vadd.f32 %v6503, %v6537
        %v6570 = vadd.f32 %v6504, %v6538
        %v6571 = vadd.f32 %v6505, %v6539
        %v6572 = vadd.f32 %v6506, %v6540
        %v6573 = vadd.f32 %v6507, %v6541
        %v6574 = vadd.f32 %v6508, %v6542
        %s6575 = smul.f32 %s6450, %s6474
        %v6576 = vstv %s6575
        %v6577 = vmul.f32 %v5949, %v6576
        %v6578 = vmul.f32 %v5950, %v6576
        %v6579 = vmul.f32 %v5951, %v6576
        %v6580 = vmul.f32 %v5952, %v6576
        %v6581 = vmul.f32 %v5953, %v6576
        %v6582 = vmul.f32 %v5954, %v6576
        %v6583 = vmul.f32 %v5955, %v6576
        %v6584 = vmul.f32 %v5956, %v6576
        %v6585 = vmul.f32 %v5957, %v6576
        %v6586 = vmul.f32 %v5958, %v6576
        %v6587 = vmul.f32 %v5959, %v6576
        %v6588 = vmul.f32 %v5960, %v6576
        %v6589 = vmul.f32 %v5961, %v6576
        %v6590 = vmul.f32 %v5962, %v6576
        %v6591 = vmul.f32 %v5963, %v6576
        %v6592 = vmul.f32 %v5964, %v6576
        %v6593 = vmul.f32 %v5965, %v6576
        %v6594 = vmul.f32 %v5966, %v6576
        %v6595 = vmul.f32 %v5967, %v6576
        %v6596 = vmul.f32 %v5968, %v6576
        %v6597 = vmul.f32 %v5969, %v6576
        %v6598 = vmul.f32 %v5970, %v6576
        %v6599 = vmul.f32 %v5971, %v6576
        %v6600 = vmul.f32 %v5972, %v6576
        %v6601 = vmul.f32 %v5973, %v6576
        %v6602 = vmul.f32 %v5974, %v6576
        %v6603 = vmul.f32 %v5975, %v6576
        %v6604 = vmul.f32 %v5976, %v6576
        %v6605 = vmul.f32 %v5977, %v6576
        %v6606 = vmul.f32 %v5978, %v6576
        %v6607 = vmul.f32 %v5979, %v6576
        %v6608 = vmul.f32 %v5980, %v6576
        %v6609 = vadd.f32 %v6543, %v6577
        %v6610 = vadd.f32 %v6544, %v6578
        %v6611 = vadd.f32 %v6545, %v6579
        %v6612 = vadd.f32 %v6546, %v6580
        %v6613 = vadd.f32 %v6547, %v6581
        %v6614 = vadd.f32 %v6548, %v6582
        %v6615 = vadd.f32 %v6549, %v6583
        %v6616 = vadd.f32 %v6550, %v6584
        %v6617 = vadd.f32 %v6551, %v6585
        %v6618 = vadd.f32 %v6552, %v6586
        %v6619 = vadd.f32 %v6553, %v6587
        %v6620 = vadd.f32 %v6554, %v6588
        %v6621 = vadd.f32 %v6555, %v6589
        %v6622 = vadd.f32 %v6556, %v6590
        %v6623 = vadd.f32 %v6557, %v6591
        %v6624 = vadd.f32 %v6558, %v6592
        %v6625 = vadd.f32 %v6559, %v6593
        %v6626 = vadd.f32 %v6560, %v6594
        %v6627 = vadd.f32 %v6561, %v6595
        %v6628 = vadd.f32 %v6562, %v6596
        %v6629 = vadd.f32 %v6563, %v6597
        %v6630 = vadd.f32 %v6564, %v6598
        %v6631 = vadd.f32 %v6565, %v6599
        %v6632 = vadd.f32 %v6566, %v6600
        %v6633 = vadd.f32 %v6567, %v6601
        %v6634 = vadd.f32 %v6568, %v6602
        %v6635 = vadd.f32 %v6569, %v6603
        %v6636 = vadd.f32 %v6570, %v6604
        %v6637 = vadd.f32 %v6571, %v6605
        %v6638 = vadd.f32 %v6572, %v6606
        %v6639 = vadd.f32 %v6573, %v6607
        %v6640 = vadd.f32 %v6574, %v6608
        %s6641 = smul.f32 %s6455, %s6474
        %v6642 = vstv %s6641
        %v6643 = vmul.f32 %v5981, %v6642
        %v6644 = vmul.f32 %v5982, %v6642
        %v6645 = vmul.f32 %v5983, %v6642
        %v6646 = vmul.f32 %v5984, %v6642
        %v6647 = vmul.f32 %v5985, %v6642
        %v6648 = vmul.f32 %v5986, %v6642
        %v6649 = vmul.f32 %v5987, %v6642
        %v6650 = vmul.f32 %v5988, %v6642
        %v6651 = vmul.f32 %v5989, %v6642
        %v6652 = vmul.f32 %v5990, %v6642
        %v6653 = vmul.f32 %v5991, %v6642
        %v6654 = vmul.f32 %v5992, %v6642
        %v6655 = vmul.f32 %v5993, %v6642
        %v6656 = vmul.f32 %v5994, %v6642
        %v6657 = vmul.f32 %v5995, %v6642
        %v6658 = vmul.f32 %v5996, %v6642
        %v6659 = vmul.f32 %v5997, %v6642
        %v6660 = vmul.f32 %v5998, %v6642
        %v6661 = vmul.f32 %v5999, %v6642
        %v6662 = vmul.f32 %v6000, %v6642
        %v6663 = vmul.f32 %v6001, %v6642
        %v6664 = vmul.f32 %v6002, %v6642
        %v6665 = vmul.f32 %v6003, %v6642
        %v6666 = vmul.f32 %v6004, %v6642
        %v6667 = vmul.f32 %v6005, %v6642
        %v6668 = vmul.f32 %v6006, %v6642
        %v6669 = vmul.f32 %v6007, %v6642
        %v6670 = vmul.f32 %v6008, %v6642
        %v6671 = vmul.f32 %v6009, %v6642
        %v6672 = vmul.f32 %v6010, %v6642
        %v6673 = vmul.f32 %v6011, %v6642
        %v6674 = vmul.f32 %v6012, %v6642
        %v6675 = vadd.f32 %v6609, %v6643
        %v6676 = vadd.f32 %v6610, %v6644
        %v6677 = vadd.f32 %v6611, %v6645
        %v6678 = vadd.f32 %v6612, %v6646
        %v6679 = vadd.f32 %v6613, %v6647
        %v6680 = vadd.f32 %v6614, %v6648
        %v6681 = vadd.f32 %v6615, %v6649
        %v6682 = vadd.f32 %v6616, %v6650
        %v6683 = vadd.f32 %v6617, %v6651
        %v6684 = vadd.f32 %v6618, %v6652
        %v6685 = vadd.f32 %v6619, %v6653
        %v6686 = vadd.f32 %v6620, %v6654
        %v6687 = vadd.f32 %v6621, %v6655
        %v6688 = vadd.f32 %v6622, %v6656
        %v6689 = vadd.f32 %v6623, %v6657
        %v6690 = vadd.f32 %v6624, %v6658
        %v6691 = vadd.f32 %v6625, %v6659
        %v6692 = vadd.f32 %v6626, %v6660
        %v6693 = vadd.f32 %v6627, %v6661
        %v6694 = vadd.f32 %v6628, %v6662
        %v6695 = vadd.f32 %v6629, %v6663
        %v6696 = vadd.f32 %v6630, %v6664
        %v6697 = vadd.f32 %v6631, %v6665
        %v6698 = vadd.f32 %v6632, %v6666
        %v6699 = vadd.f32 %v6633, %v6667
        %v6700 = vadd.f32 %v6634, %v6668
        %v6701 = vadd.f32 %v6635, %v6669
        %v6702 = vadd.f32 %v6636, %v6670
        %v6703 = vadd.f32 %v6637, %v6671
        %v6704 = vadd.f32 %v6638, %v6672
        %v6705 = vadd.f32 %v6639, %v6673
        %v6706 = vadd.f32 %v6640, %v6674
        %v6707 = vxor.u32 %v5725, 2147483648
        %v6708 = vxor.u32 %v5726, 2147483648
        %v6709 = vxor.u32 %v5727, 2147483648
        %v6710 = vxor.u32 %v5728, 2147483648
        %v6711 = vxor.u32 %v5729, 2147483648
        %v6712 = vxor.u32 %v5730, 2147483648
        %v6713 = vxor.u32 %v5731, 2147483648
        %v6714 = vxor.u32 %v5732, 2147483648
        %v6715 = vxor.u32 %v5733, 2147483648
        %v6716 = vxor.u32 %v5734, 2147483648
        %v6717 = vxor.u32 %v5735, 2147483648
        %v6718 = vxor.u32 %v5736, 2147483648
        %v6719 = vxor.u32 %v5737, 2147483648
        %v6720 = vxor.u32 %v5738, 2147483648
        %v6721 = vxor.u32 %v5739, 2147483648
        %v6722 = vxor.u32 %v5740, 2147483648
        %v6723 = vxor.u32 %v5741, 2147483648
        %v6724 = vxor.u32 %v5742, 2147483648
        %v6725 = vxor.u32 %v5743, 2147483648
        %v6726 = vxor.u32 %v5744, 2147483648
        %v6727 = vxor.u32 %v5745, 2147483648
        %v6728 = vxor.u32 %v5746, 2147483648
        %v6729 = vxor.u32 %v5747, 2147483648
        %v6730 = vxor.u32 %v5748, 2147483648
        %v6731 = vxor.u32 %v5749, 2147483648
        %v6732 = vxor.u32 %v5750, 2147483648
        %v6733 = vxor.u32 %v5751, 2147483648
        %v6734 = vxor.u32 %v5752, 2147483648
        %v6735 = vxor.u32 %v5753, 2147483648
        %v6736 = vxor.u32 %v5754, 2147483648
        %v6737 = vxor.u32 %v5755, 2147483648
        %v6738 = vxor.u32 %v5756, 2147483648
        %v6739 = vmul.f32 %v6707, 1.442695
        %v6740 = vpow.pop %v6739
        %v6741 = vmul.f32 %v6708, 1.442695
        %v6742 = vpow.pop %v6741
        %v6743 = vmul.f32 %v6709, 1.442695
        %v6744 = vpow.pop %v6743
        %v6745 = vmul.f32 %v6710, 1.442695
        %v6746 = vpow.pop %v6745
        %v6747 = vmul.f32 %v6711, 1.442695
        %v6748 = vpow.pop %v6747
        %v6749 = vmul.f32 %v6712, 1.442695
        %v6750 = vpow.pop %v6749
        %v6751 = vmul.f32 %v6713, 1.442695
        %v6752 = vpow.pop %v6751
        %v6753 = vmul.f32 %v6714, 1.442695
        %v6754 = vpow.pop %v6753
        %v6755 = vmul.f32 %v6715, 1.442695
        %v6756 = vpow.pop %v6755
        %v6757 = vmul.f32 %v6716, 1.442695
        %v6758 = vpow.pop %v6757
        %v6759 = vmul.f32 %v6717, 1.442695
        %v6760 = vpow.pop %v6759
        %v6761 = vmul.f32 %v6718, 1.442695
        %v6762 = vpow.pop %v6761
        %v6763 = vmul.f32 %v6719, 1.442695
        %v6764 = vpow.pop %v6763
        %v6765 = vmul.f32 %v6720, 1.442695
        %v6766 = vpow.pop %v6765
        %v6767 = vmul.f32 %v6721, 1.442695
        %v6768 = vpow.pop %v6767
        %v6769 = vmul.f32 %v6722, 1.442695
        %v6770 = vpow.pop %v6769
        %v6771 = vmul.f32 %v6723, 1.442695
        %v6772 = vpow.pop %v6771
        %v6773 = vmul.f32 %v6724, 1.442695
        %v6774 = vpow.pop %v6773
        %v6775 = vmul.f32 %v6725, 1.442695
        %v6776 = vpow.pop %v6775
        %v6777 = vmul.f32 %v6726, 1.442695
        %v6778 = vpow.pop %v6777
        %v6779 = vmul.f32 %v6727, 1.442695
        %v6780 = vpow.pop %v6779
        %v6781 = vmul.f32 %v6728, 1.442695
        %v6782 = vpow.pop %v6781
        %v6783 = vmul.f32 %v6729, 1.442695
        %v6784 = vpow.pop %v6783
        %v6785 = vmul.f32 %v6730, 1.442695
        %v6786 = vpow.pop %v6785
        %v6787 = vmul.f32 %v6731, 1.442695
        %v6788 = vpow.pop %v6787
        %v6789 = vmul.f32 %v6732, 1.442695
        %v6790 = vpow.pop %v6789
        %v6791 = vmul.f32 %v6733, 1.442695
        %v6792 = vpow.pop %v6791
        %v6793 = vmul.f32 %v6734, 1.442695
        %v6794 = vpow.pop %v6793
        %v6795 = vmul.f32 %v6735, 1.442695
        %v6796 = vpow.pop %v6795
        %v6797 = vmul.f32 %v6736, 1.442695
        %v6798 = vpow.pop %v6797
        %v6799 = vmul.f32 %v6737, 1.442695
        %v6800 = vpow.pop %v6799
        %v6801 = vmul.f32 %v6738, 1.442695
        %v6802 = vpow.pop %v6801
        %v6803 = vadd.f32 %v6740, 1.0
        %v6804 = vadd.f32 %v6742, 1.0
        %v6805 = vadd.f32 %v6744, 1.0
        %v6806 = vadd.f32 %v6746, 1.0
        %v6807 = vadd.f32 %v6748, 1.0
        %v6808 = vadd.f32 %v6750, 1.0
        %v6809 = vadd.f32 %v6752, 1.0
        %v6810 = vadd.f32 %v6754, 1.0
        %v6811 = vadd.f32 %v6756, 1.0
        %v6812 = vadd.f32 %v6758, 1.0
        %v6813 = vadd.f32 %v6760, 1.0
        %v6814 = vadd.f32 %v6762, 1.0
        %v6815 = vadd.f32 %v6764, 1.0
        %v6816 = vadd.f32 %v6766, 1.0
        %v6817 = vadd.f32 %v6768, 1.0
        %v6818 = vadd.f32 %v6770, 1.0
        %v6819 = vadd.f32 %v6772, 1.0
        %v6820 = vadd.f32 %v6774, 1.0
        %v6821 = vadd.f32 %v6776, 1.0
        %v6822 = vadd.f32 %v6778, 1.0
        %v6823 = vadd.f32 %v6780, 1.0
        %v6824 = vadd.f32 %v6782, 1.0
        %v6825 = vadd.f32 %v6784, 1.0
        %v6826 = vadd.f32 %v6786, 1.0
        %v6827 = vadd.f32 %v6788, 1.0
        %v6828 = vadd.f32 %v6790, 1.0
        %v6829 = vadd.f32 %v6792, 1.0
        %v6830 = vadd.f32 %v6794, 1.0
        %v6831 = vadd.f32 %v6796, 1.0
        %v6832 = vadd.f32 %v6798, 1.0
        %v6833 = vadd.f32 %v6800, 1.0
        %v6834 = vadd.f32 %v6802, 1.0
        %v6835 = vrcp.pop %v6803
        %v6836 = vmul.f32 %v6803, %v6835
        %v6837 = vsub.f32 1.0, %v6836
        %v6838 = vmul.f32 %v6835, %v6837
        %v6839 = vadd.f32 %v6835, %v6838
        %vm6840 = vweird.f32 %v6803
        %vm6841 = vweird.f32 %v6835
        %vm6842 = vmor %vm6840, %vm6841
        %v6843 = vsel %vm6842, %v6835, %v6839
        %v6844 = vand.u32 2147483647, %v6803
        %vm6845 = vcmp.eq.f32.partialorder %v6844, 8.507059e+37
        %v6846 = vand.u32 %v6803, 2147483648
        %v6847 = vor.u32 1.1754944e-38, %v6846
        %v6848 = vsel %vm6845, %v6847, %v6843
        %v6849 = vmul.f32 1.0, %v6848
        %v6850 = vrcp.pop %v6804
        %v6851 = vmul.f32 %v6804, %v6850
        %v6852 = vsub.f32 1.0, %v6851
        %v6853 = vmul.f32 %v6850, %v6852
        %v6854 = vadd.f32 %v6850, %v6853
        %vm6855 = vweird.f32 %v6804
        %vm6856 = vweird.f32 %v6850
        %vm6857 = vmor %vm6855, %vm6856
        %v6858 = vsel %vm6857, %v6850, %v6854
        %v6859 = vand.u32 2147483647, %v6804
        %vm6860 = vcmp.eq.f32.partialorder %v6859, 8.507059e+37
        %v6861 = vand.u32 %v6804, 2147483648
        %v6862 = vor.u32 1.1754944e-38, %v6861
        %v6863 = vsel %vm6860, %v6862, %v6858
        %v6864 = vmul.f32 1.0, %v6863
        %v6865 = vrcp.pop %v6805
        %v6866 = vmul.f32 %v6805, %v6865
        %v6867 = vsub.f32 1.0, %v6866
        %v6868 = vmul.f32 %v6865, %v6867
        %v6869 = vadd.f32 %v6865, %v6868
        %vm6870 = vweird.f32 %v6805
        %vm6871 = vweird.f32 %v6865
        %vm6872 = vmor %vm6870, %vm6871
        %v6873 = vsel %vm6872, %v6865, %v6869
        %v6874 = vand.u32 2147483647, %v6805
        %vm6875 = vcmp.eq.f32.partialorder %v6874, 8.507059e+37
        %v6876 = vand.u32 %v6805, 2147483648
        %v6877 = vor.u32 1.1754944e-38, %v6876
        %v6878 = vsel %vm6875, %v6877, %v6873
        %v6879 = vmul.f32 1.0, %v6878
        %v6880 = vrcp.pop %v6806
        %v6881 = vmul.f32 %v6806, %v6880
        %v6882 = vsub.f32 1.0, %v6881
        %v6883 = vmul.f32 %v6880, %v6882
        %v6884 = vadd.f32 %v6880, %v6883
        %vm6885 = vweird.f32 %v6806
        %vm6886 = vweird.f32 %v6880
        %vm6887 = vmor %vm6885, %vm6886
        %v6888 = vsel %vm6887, %v6880, %v6884
        %v6889 = vand.u32 2147483647, %v6806
        %vm6890 = vcmp.eq.f32.partialorder %v6889, 8.507059e+37
        %v6891 = vand.u32 %v6806, 2147483648
        %v6892 = vor.u32 1.1754944e-38, %v6891
        %v6893 = vsel %vm6890, %v6892, %v6888
        %v6894 = vmul.f32 1.0, %v6893
        %v6895 = vrcp.pop %v6807
        %v6896 = vmul.f32 %v6807, %v6895
        %v6897 = vsub.f32 1.0, %v6896
        %v6898 = vmul.f32 %v6895, %v6897
        %v6899 = vadd.f32 %v6895, %v6898
        %vm6900 = vweird.f32 %v6807
        %vm6901 = vweird.f32 %v6895
        %vm6902 = vmor %vm6900, %vm6901
        %v6903 = vsel %vm6902, %v6895, %v6899
        %v6904 = vand.u32 2147483647, %v6807
        %vm6905 = vcmp.eq.f32.partialorder %v6904, 8.507059e+37
        %v6906 = vand.u32 %v6807, 2147483648
        %v6907 = vor.u32 1.1754944e-38, %v6906
        %v6908 = vsel %vm6905, %v6907, %v6903
        %v6909 = vmul.f32 1.0, %v6908
        %v6910 = vrcp.pop %v6808
        %v6911 = vmul.f32 %v6808, %v6910
        %v6912 = vsub.f32 1.0, %v6911
        %v6913 = vmul.f32 %v6910, %v6912
        %v6914 = vadd.f32 %v6910, %v6913
        %vm6915 = vweird.f32 %v6808
        %vm6916 = vweird.f32 %v6910
        %vm6917 = vmor %vm6915, %vm6916
        %v6918 = vsel %vm6917, %v6910, %v6914
        %v6919 = vand.u32 2147483647, %v6808
        %vm6920 = vcmp.eq.f32.partialorder %v6919, 8.507059e+37
        %v6921 = vand.u32 %v6808, 2147483648
        %v6922 = vor.u32 1.1754944e-38, %v6921
        %v6923 = vsel %vm6920, %v6922, %v6918
        %v6924 = vmul.f32 1.0, %v6923
        %v6925 = vrcp.pop %v6809
        %v6926 = vmul.f32 %v6809, %v6925
        %v6927 = vsub.f32 1.0, %v6926
        %v6928 = vmul.f32 %v6925, %v6927
        %v6929 = vadd.f32 %v6925, %v6928
        %vm6930 = vweird.f32 %v6809
        %vm6931 = vweird.f32 %v6925
        %vm6932 = vmor %vm6930, %vm6931
        %v6933 = vsel %vm6932, %v6925, %v6929
        %v6934 = vand.u32 2147483647, %v6809
        %vm6935 = vcmp.eq.f32.partialorder %v6934, 8.507059e+37
        %v6936 = vand.u32 %v6809, 2147483648
        %v6937 = vor.u32 1.1754944e-38, %v6936
        %v6938 = vsel %vm6935, %v6937, %v6933
        %v6939 = vmul.f32 1.0, %v6938
        %v6940 = vrcp.pop %v6810
        %v6941 = vmul.f32 %v6810, %v6940
        %v6942 = vsub.f32 1.0, %v6941
        %v6943 = vmul.f32 %v6940, %v6942
        %v6944 = vadd.f32 %v6940, %v6943
        %vm6945 = vweird.f32 %v6810
        %vm6946 = vweird.f32 %v6940
        %vm6947 = vmor %vm6945, %vm6946
        %v6948 = vsel %vm6947, %v6940, %v6944
        %v6949 = vand.u32 2147483647, %v6810
        %vm6950 = vcmp.eq.f32.partialorder %v6949, 8.507059e+37
        %v6951 = vand.u32 %v6810, 2147483648
        %v6952 = vor.u32 1.1754944e-38, %v6951
        %v6953 = vsel %vm6950, %v6952, %v6948
        %v6954 = vmul.f32 1.0, %v6953
        %v6955 = vrcp.pop %v6811
        %v6956 = vmul.f32 %v6811, %v6955
        %v6957 = vsub.f32 1.0, %v6956
        %v6958 = vmul.f32 %v6955, %v6957
        %v6959 = vadd.f32 %v6955, %v6958
        %vm6960 = vweird.f32 %v6811
        %vm6961 = vweird.f32 %v6955
        %vm6962 = vmor %vm6960, %vm6961
        %v6963 = vsel %vm6962, %v6955, %v6959
        %v6964 = vand.u32 2147483647, %v6811
        %vm6965 = vcmp.eq.f32.partialorder %v6964, 8.507059e+37
        %v6966 = vand.u32 %v6811, 2147483648
        %v6967 = vor.u32 1.1754944e-38, %v6966
        %v6968 = vsel %vm6965, %v6967, %v6963
        %v6969 = vmul.f32 1.0, %v6968
        %v6970 = vrcp.pop %v6812
        %v6971 = vmul.f32 %v6812, %v6970
        %v6972 = vsub.f32 1.0, %v6971
        %v6973 = vmul.f32 %v6970, %v6972
        %v6974 = vadd.f32 %v6970, %v6973
        %vm6975 = vweird.f32 %v6812
        %vm6976 = vweird.f32 %v6970
        %vm6977 = vmor %vm6975, %vm6976
        %v6978 = vsel %vm6977, %v6970, %v6974
        %v6979 = vand.u32 2147483647, %v6812
        %vm6980 = vcmp.eq.f32.partialorder %v6979, 8.507059e+37
        %v6981 = vand.u32 %v6812, 2147483648
        %v6982 = vor.u32 1.1754944e-38, %v6981
        %v6983 = vsel %vm6980, %v6982, %v6978
        %v6984 = vmul.f32 1.0, %v6983
        %v6985 = vrcp.pop %v6813
        %v6986 = vmul.f32 %v6813, %v6985
        %v6987 = vsub.f32 1.0, %v6986
        %v6988 = vmul.f32 %v6985, %v6987
        %v6989 = vadd.f32 %v6985, %v6988
        %vm6990 = vweird.f32 %v6813
        %vm6991 = vweird.f32 %v6985
        %vm6992 = vmor %vm6990, %vm6991
        %v6993 = vsel %vm6992, %v6985, %v6989
        %v6994 = vand.u32 2147483647, %v6813
        %vm6995 = vcmp.eq.f32.partialorder %v6994, 8.507059e+37
        %v6996 = vand.u32 %v6813, 2147483648
        %v6997 = vor.u32 1.1754944e-38, %v6996
        %v6998 = vsel %vm6995, %v6997, %v6993
        %v6999 = vmul.f32 1.0, %v6998
        %v7000 = vrcp.pop %v6814
        %v7001 = vmul.f32 %v6814, %v7000
        %v7002 = vsub.f32 1.0, %v7001
        %v7003 = vmul.f32 %v7000, %v7002
        %v7004 = vadd.f32 %v7000, %v7003
        %vm7005 = vweird.f32 %v6814
        %vm7006 = vweird.f32 %v7000
        %vm7007 = vmor %vm7005, %vm7006
        %v7008 = vsel %vm7007, %v7000, %v7004
        %v7009 = vand.u32 2147483647, %v6814
        %vm7010 = vcmp.eq.f32.partialorder %v7009, 8.507059e+37
        %v7011 = vand.u32 %v6814, 2147483648
        %v7012 = vor.u32 1.1754944e-38, %v7011
        %v7013 = vsel %vm7010, %v7012, %v7008
        %v7014 = vmul.f32 1.0, %v7013
        %v7015 = vrcp.pop %v6815
        %v7016 = vmul.f32 %v6815, %v7015
        %v7017 = vsub.f32 1.0, %v7016
        %v7018 = vmul.f32 %v7015, %v7017
        %v7019 = vadd.f32 %v7015, %v7018
        %vm7020 = vweird.f32 %v6815
        %vm7021 = vweird.f32 %v7015
        %vm7022 = vmor %vm7020, %vm7021
        %v7023 = vsel %vm7022, %v7015, %v7019
        %v7024 = vand.u32 2147483647, %v6815
        %vm7025 = vcmp.eq.f32.partialorder %v7024, 8.507059e+37
        %v7026 = vand.u32 %v6815, 2147483648
        %v7027 = vor.u32 1.1754944e-38, %v7026
        %v7028 = vsel %vm7025, %v7027, %v7023
        %v7029 = vmul.f32 1.0, %v7028
        %v7030 = vrcp.pop %v6816
        %v7031 = vmul.f32 %v6816, %v7030
        %v7032 = vsub.f32 1.0, %v7031
        %v7033 = vmul.f32 %v7030, %v7032
        %v7034 = vadd.f32 %v7030, %v7033
        %vm7035 = vweird.f32 %v6816
        %vm7036 = vweird.f32 %v7030
        %vm7037 = vmor %vm7035, %vm7036
        %v7038 = vsel %vm7037, %v7030, %v7034
        %v7039 = vand.u32 2147483647, %v6816
        %vm7040 = vcmp.eq.f32.partialorder %v7039, 8.507059e+37
        %v7041 = vand.u32 %v6816, 2147483648
        %v7042 = vor.u32 1.1754944e-38, %v7041
        %v7043 = vsel %vm7040, %v7042, %v7038
        %v7044 = vmul.f32 1.0, %v7043
        %v7045 = vrcp.pop %v6817
        %v7046 = vmul.f32 %v6817, %v7045
        %v7047 = vsub.f32 1.0, %v7046
        %v7048 = vmul.f32 %v7045, %v7047
        %v7049 = vadd.f32 %v7045, %v7048
        %vm7050 = vweird.f32 %v6817
        %vm7051 = vweird.f32 %v7045
        %vm7052 = vmor %vm7050, %vm7051
        %v7053 = vsel %vm7052, %v7045, %v7049
        %v7054 = vand.u32 2147483647, %v6817
        %vm7055 = vcmp.eq.f32.partialorder %v7054, 8.507059e+37
        %v7056 = vand.u32 %v6817, 2147483648
        %v7057 = vor.u32 1.1754944e-38, %v7056
        %v7058 = vsel %vm7055, %v7057, %v7053
        %v7059 = vmul.f32 1.0, %v7058
        %v7060 = vrcp.pop %v6818
        %v7061 = vmul.f32 %v6818, %v7060
        %v7062 = vsub.f32 1.0, %v7061
        %v7063 = vmul.f32 %v7060, %v7062
        %v7064 = vadd.f32 %v7060, %v7063
        %vm7065 = vweird.f32 %v6818
        %vm7066 = vweird.f32 %v7060
        %vm7067 = vmor %vm7065, %vm7066
        %v7068 = vsel %vm7067, %v7060, %v7064
        %v7069 = vand.u32 2147483647, %v6818
        %vm7070 = vcmp.eq.f32.partialorder %v7069, 8.507059e+37
        %v7071 = vand.u32 %v6818, 2147483648
        %v7072 = vor.u32 1.1754944e-38, %v7071
        %v7073 = vsel %vm7070, %v7072, %v7068
        %v7074 = vmul.f32 1.0, %v7073
        %v7075 = vrcp.pop %v6819
        %v7076 = vmul.f32 %v6819, %v7075
        %v7077 = vsub.f32 1.0, %v7076
        %v7078 = vmul.f32 %v7075, %v7077
        %v7079 = vadd.f32 %v7075, %v7078
        %vm7080 = vweird.f32 %v6819
        %vm7081 = vweird.f32 %v7075
        %vm7082 = vmor %vm7080, %vm7081
        %v7083 = vsel %vm7082, %v7075, %v7079
        %v7084 = vand.u32 2147483647, %v6819
        %vm7085 = vcmp.eq.f32.partialorder %v7084, 8.507059e+37
        %v7086 = vand.u32 %v6819, 2147483648
        %v7087 = vor.u32 1.1754944e-38, %v7086
        %v7088 = vsel %vm7085, %v7087, %v7083
        %v7089 = vmul.f32 1.0, %v7088
        %v7090 = vrcp.pop %v6820
        %v7091 = vmul.f32 %v6820, %v7090
        %v7092 = vsub.f32 1.0, %v7091
        %v7093 = vmul.f32 %v7090, %v7092
        %v7094 = vadd.f32 %v7090, %v7093
        %vm7095 = vweird.f32 %v6820
        %vm7096 = vweird.f32 %v7090
        %vm7097 = vmor %vm7095, %vm7096
        %v7098 = vsel %vm7097, %v7090, %v7094
        %v7099 = vand.u32 2147483647, %v6820
        %vm7100 = vcmp.eq.f32.partialorder %v7099, 8.507059e+37
        %v7101 = vand.u32 %v6820, 2147483648
        %v7102 = vor.u32 1.1754944e-38, %v7101
        %v7103 = vsel %vm7100, %v7102, %v7098
        %v7104 = vmul.f32 1.0, %v7103
        %v7105 = vrcp.pop %v6821
        %v7106 = vmul.f32 %v6821, %v7105
        %v7107 = vsub.f32 1.0, %v7106
        %v7108 = vmul.f32 %v7105, %v7107
        %v7109 = vadd.f32 %v7105, %v7108
        %vm7110 = vweird.f32 %v6821
        %vm7111 = vweird.f32 %v7105
        %vm7112 = vmor %vm7110, %vm7111
        %v7113 = vsel %vm7112, %v7105, %v7109
        %v7114 = vand.u32 2147483647, %v6821
        %vm7115 = vcmp.eq.f32.partialorder %v7114, 8.507059e+37
        %v7116 = vand.u32 %v6821, 2147483648
        %v7117 = vor.u32 1.1754944e-38, %v7116
        %v7118 = vsel %vm7115, %v7117, %v7113
        %v7119 = vmul.f32 1.0, %v7118
        %v7120 = vrcp.pop %v6822
        %v7121 = vmul.f32 %v6822, %v7120
        %v7122 = vsub.f32 1.0, %v7121
        %v7123 = vmul.f32 %v7120, %v7122
        %v7124 = vadd.f32 %v7120, %v7123
        %vm7125 = vweird.f32 %v6822
        %vm7126 = vweird.f32 %v7120
        %vm7127 = vmor %vm7125, %vm7126
        %v7128 = vsel %vm7127, %v7120, %v7124
        %v7129 = vand.u32 2147483647, %v6822
        %vm7130 = vcmp.eq.f32.partialorder %v7129, 8.507059e+37
        %v7131 = vand.u32 %v6822, 2147483648
        %v7132 = vor.u32 1.1754944e-38, %v7131
        %v7133 = vsel %vm7130, %v7132, %v7128
        %v7134 = vmul.f32 1.0, %v7133
        %v7135 = vrcp.pop %v6823
        %v7136 = vmul.f32 %v6823, %v7135
        %v7137 = vsub.f32 1.0, %v7136
        %v7138 = vmul.f32 %v7135, %v7137
        %v7139 = vadd.f32 %v7135, %v7138
        %vm7140 = vweird.f32 %v6823
        %vm7141 = vweird.f32 %v7135
        %vm7142 = vmor %vm7140, %vm7141
        %v7143 = vsel %vm7142, %v7135, %v7139
        %v7144 = vand.u32 2147483647, %v6823
        %vm7145 = vcmp.eq.f32.partialorder %v7144, 8.507059e+37
        %v7146 = vand.u32 %v6823, 2147483648
        %v7147 = vor.u32 1.1754944e-38, %v7146
        %v7148 = vsel %vm7145, %v7147, %v7143
        %v7149 = vmul.f32 1.0, %v7148
        %v7150 = vrcp.pop %v6824
        %v7151 = vmul.f32 %v6824, %v7150
        %v7152 = vsub.f32 1.0, %v7151
        %v7153 = vmul.f32 %v7150, %v7152
        %v7154 = vadd.f32 %v7150, %v7153
        %vm7155 = vweird.f32 %v6824
        %vm7156 = vweird.f32 %v7150
        %vm7157 = vmor %vm7155, %vm7156
        %v7158 = vsel %vm7157, %v7150, %v7154
        %v7159 = vand.u32 2147483647, %v6824
        %vm7160 = vcmp.eq.f32.partialorder %v7159, 8.507059e+37
        %v7161 = vand.u32 %v6824, 2147483648
        %v7162 = vor.u32 1.1754944e-38, %v7161
        %v7163 = vsel %vm7160, %v7162, %v7158
        %v7164 = vmul.f32 1.0, %v7163
        %v7165 = vrcp.pop %v6825
        %v7166 = vmul.f32 %v6825, %v7165
        %v7167 = vsub.f32 1.0, %v7166
        %v7168 = vmul.f32 %v7165, %v7167
        %v7169 = vadd.f32 %v7165, %v7168
        %vm7170 = vweird.f32 %v6825
        %vm7171 = vweird.f32 %v7165
        %vm7172 = vmor %vm7170, %vm7171
        %v7173 = vsel %vm7172, %v7165, %v7169
        %v7174 = vand.u32 2147483647, %v6825
        %vm7175 = vcmp.eq.f32.partialorder %v7174, 8.507059e+37
        %v7176 = vand.u32 %v6825, 2147483648
        %v7177 = vor.u32 1.1754944e-38, %v7176
        %v7178 = vsel %vm7175, %v7177, %v7173
        %v7179 = vmul.f32 1.0, %v7178
        %v7180 = vrcp.pop %v6826
        %v7181 = vmul.f32 %v6826, %v7180
        %v7182 = vsub.f32 1.0, %v7181
        %v7183 = vmul.f32 %v7180, %v7182
        %v7184 = vadd.f32 %v7180, %v7183
        %vm7185 = vweird.f32 %v6826
        %vm7186 = vweird.f32 %v7180
        %vm7187 = vmor %vm7185, %vm7186
        %v7188 = vsel %vm7187, %v7180, %v7184
        %v7189 = vand.u32 2147483647, %v6826
        %vm7190 = vcmp.eq.f32.partialorder %v7189, 8.507059e+37
        %v7191 = vand.u32 %v6826, 2147483648
        %v7192 = vor.u32 1.1754944e-38, %v7191
        %v7193 = vsel %vm7190, %v7192, %v7188
        %v7194 = vmul.f32 1.0, %v7193
        %v7195 = vrcp.pop %v6827
        %v7196 = vmul.f32 %v6827, %v7195
        %v7197 = vsub.f32 1.0, %v7196
        %v7198 = vmul.f32 %v7195, %v7197
        %v7199 = vadd.f32 %v7195, %v7198
        %vm7200 = vweird.f32 %v6827
        %vm7201 = vweird.f32 %v7195
        %vm7202 = vmor %vm7200, %vm7201
        %v7203 = vsel %vm7202, %v7195, %v7199
        %v7204 = vand.u32 2147483647, %v6827
        %vm7205 = vcmp.eq.f32.partialorder %v7204, 8.507059e+37
        %v7206 = vand.u32 %v6827, 2147483648
        %v7207 = vor.u32 1.1754944e-38, %v7206
        %v7208 = vsel %vm7205, %v7207, %v7203
        %v7209 = vmul.f32 1.0, %v7208
        %v7210 = vrcp.pop %v6828
        %v7211 = vmul.f32 %v6828, %v7210
        %v7212 = vsub.f32 1.0, %v7211
        %v7213 = vmul.f32 %v7210, %v7212
        %v7214 = vadd.f32 %v7210, %v7213
        %vm7215 = vweird.f32 %v6828
        %vm7216 = vweird.f32 %v7210
        %vm7217 = vmor %vm7215, %vm7216
        %v7218 = vsel %vm7217, %v7210, %v7214
        %v7219 = vand.u32 2147483647, %v6828
        %vm7220 = vcmp.eq.f32.partialorder %v7219, 8.507059e+37
        %v7221 = vand.u32 %v6828, 2147483648
        %v7222 = vor.u32 1.1754944e-38, %v7221
        %v7223 = vsel %vm7220, %v7222, %v7218
        %v7224 = vmul.f32 1.0, %v7223
        %v7225 = vrcp.pop %v6829
        %v7226 = vmul.f32 %v6829, %v7225
        %v7227 = vsub.f32 1.0, %v7226
        %v7228 = vmul.f32 %v7225, %v7227
        %v7229 = vadd.f32 %v7225, %v7228
        %vm7230 = vweird.f32 %v6829
        %vm7231 = vweird.f32 %v7225
        %vm7232 = vmor %vm7230, %vm7231
        %v7233 = vsel %vm7232, %v7225, %v7229
        %v7234 = vand.u32 2147483647, %v6829
        %vm7235 = vcmp.eq.f32.partialorder %v7234, 8.507059e+37
        %v7236 = vand.u32 %v6829, 2147483648
        %v7237 = vor.u32 1.1754944e-38, %v7236
        %v7238 = vsel %vm7235, %v7237, %v7233
        %v7239 = vmul.f32 1.0, %v7238
        %v7240 = vrcp.pop %v6830
        %v7241 = vmul.f32 %v6830, %v7240
        %v7242 = vsub.f32 1.0, %v7241
        %v7243 = vmul.f32 %v7240, %v7242
        %v7244 = vadd.f32 %v7240, %v7243
        %vm7245 = vweird.f32 %v6830
        %vm7246 = vweird.f32 %v7240
        %vm7247 = vmor %vm7245, %vm7246
        %v7248 = vsel %vm7247, %v7240, %v7244
        %v7249 = vand.u32 2147483647, %v6830
        %vm7250 = vcmp.eq.f32.partialorder %v7249, 8.507059e+37
        %v7251 = vand.u32 %v6830, 2147483648
        %v7252 = vor.u32 1.1754944e-38, %v7251
        %v7253 = vsel %vm7250, %v7252, %v7248
        %v7254 = vmul.f32 1.0, %v7253
        %v7255 = vrcp.pop %v6831
        %v7256 = vmul.f32 %v6831, %v7255
        %v7257 = vsub.f32 1.0, %v7256
        %v7258 = vmul.f32 %v7255, %v7257
        %v7259 = vadd.f32 %v7255, %v7258
        %vm7260 = vweird.f32 %v6831
        %vm7261 = vweird.f32 %v7255
        %vm7262 = vmor %vm7260, %vm7261
        %v7263 = vsel %vm7262, %v7255, %v7259
        %v7264 = vand.u32 2147483647, %v6831
        %vm7265 = vcmp.eq.f32.partialorder %v7264, 8.507059e+37
        %v7266 = vand.u32 %v6831, 2147483648
        %v7267 = vor.u32 1.1754944e-38, %v7266
        %v7268 = vsel %vm7265, %v7267, %v7263
        %v7269 = vmul.f32 1.0, %v7268
        %v7270 = vrcp.pop %v6832
        %v7271 = vmul.f32 %v6832, %v7270
        %v7272 = vsub.f32 1.0, %v7271
        %v7273 = vmul.f32 %v7270, %v7272
        %v7274 = vadd.f32 %v7270, %v7273
        %vm7275 = vweird.f32 %v6832
        %vm7276 = vweird.f32 %v7270
        %vm7277 = vmor %vm7275, %vm7276
        %v7278 = vsel %vm7277, %v7270, %v7274
        %v7279 = vand.u32 2147483647, %v6832
        %vm7280 = vcmp.eq.f32.partialorder %v7279, 8.507059e+37
        %v7281 = vand.u32 %v6832, 2147483648
        %v7282 = vor.u32 1.1754944e-38, %v7281
        %v7283 = vsel %vm7280, %v7282, %v7278
        %v7284 = vmul.f32 1.0, %v7283
        %v7285 = vrcp.pop %v6833
        %v7286 = vmul.f32 %v6833, %v7285
        %v7287 = vsub.f32 1.0, %v7286
        %v7288 = vmul.f32 %v7285, %v7287
        %v7289 = vadd.f32 %v7285, %v7288
        %vm7290 = vweird.f32 %v6833
        %vm7291 = vweird.f32 %v7285
        %vm7292 = vmor %vm7290, %vm7291
        %v7293 = vsel %vm7292, %v7285, %v7289
        %v7294 = vand.u32 2147483647, %v6833
        %vm7295 = vcmp.eq.f32.partialorder %v7294, 8.507059e+37
        %v7296 = vand.u32 %v6833, 2147483648
        %v7297 = vor.u32 1.1754944e-38, %v7296
        %v7298 = vsel %vm7295, %v7297, %v7293
        %v7299 = vmul.f32 1.0, %v7298
        %v7300 = vrcp.pop %v6834
        %v7301 = vmul.f32 %v6834, %v7300
        %v7302 = vsub.f32 1.0, %v7301
        %v7303 = vmul.f32 %v7300, %v7302
        %v7304 = vadd.f32 %v7300, %v7303
        %vm7305 = vweird.f32 %v6834
        %vm7306 = vweird.f32 %v7300
        %vm7307 = vmor %vm7305, %vm7306
        %v7308 = vsel %vm7307, %v7300, %v7304
        %v7309 = vand.u32 2147483647, %v6834
        %vm7310 = vcmp.eq.f32.partialorder %v7309, 8.507059e+37
        %v7311 = vand.u32 %v6834, 2147483648
        %v7312 = vor.u32 1.1754944e-38, %v7311
        %v7313 = vsel %vm7310, %v7312, %v7308
        %v7314 = vmul.f32 1.0, %v7313
        %v7315 = vmul.f32 %v705, %v6849
        %v7316 = vmul.f32 %v706, %v6864
        %v7317 = vmul.f32 %v707, %v6879
        %v7318 = vmul.f32 %v708, %v6894
        %v7319 = vmul.f32 %v709, %v6909
        %v7320 = vmul.f32 %v710, %v6924
        %v7321 = vmul.f32 %v711, %v6939
        %v7322 = vmul.f32 %v712, %v6954
        %v7323 = vmul.f32 %v713, %v6969
        %v7324 = vmul.f32 %v714, %v6984
        %v7325 = vmul.f32 %v715, %v6999
        %v7326 = vmul.f32 %v716, %v7014
        %v7327 = vmul.f32 %v717, %v7029
        %v7328 = vmul.f32 %v718, %v7044
        %v7329 = vmul.f32 %v719, %v7059
        %v7330 = vmul.f32 %v720, %v7074
        %v7331 = vmul.f32 %v721, %v7089
        %v7332 = vmul.f32 %v722, %v7104
        %v7333 = vmul.f32 %v723, %v7119
        %v7334 = vmul.f32 %v724, %v7134
        %v7335 = vmul.f32 %v725, %v7149
        %v7336 = vmul.f32 %v726, %v7164
        %v7337 = vmul.f32 %v727, %v7179
        %v7338 = vmul.f32 %v728, %v7194
        %v7339 = vmul.f32 %v729, %v7209
        %v7340 = vmul.f32 %v730, %v7224
        %v7341 = vmul.f32 %v731, %v7239
        %v7342 = vmul.f32 %v732, %v7254
        %v7343 = vmul.f32 %v733, %v7269
        %v7344 = vmul.f32 %v734, %v7284
        %v7345 = vmul.f32 %v735, %v7299
        %v7346 = vmul.f32 %v736, %v7314
        %v7347 = vsub.f32 1.0, %v6849
        %v7348 = vsub.f32 1.0, %v6864
        %v7349 = vsub.f32 1.0, %v6879
        %v7350 = vsub.f32 1.0, %v6894
        %v7351 = vsub.f32 1.0, %v6909
        %v7352 = vsub.f32 1.0, %v6924
        %v7353 = vsub.f32 1.0, %v6939
        %v7354 = vsub.f32 1.0, %v6954
        %v7355 = vsub.f32 1.0, %v6969
        %v7356 = vsub.f32 1.0, %v6984
        %v7357 = vsub.f32 1.0, %v6999
        %v7358 = vsub.f32 1.0, %v7014
        %v7359 = vsub.f32 1.0, %v7029
        %v7360 = vsub.f32 1.0, %v7044
        %v7361 = vsub.f32 1.0, %v7059
        %v7362 = vsub.f32 1.0, %v7074
        %v7363 = vsub.f32 1.0, %v7089
        %v7364 = vsub.f32 1.0, %v7104
        %v7365 = vsub.f32 1.0, %v7119
        %v7366 = vsub.f32 1.0, %v7134
        %v7367 = vsub.f32 1.0, %v7149
        %v7368 = vsub.f32 1.0, %v7164
        %v7369 = vsub.f32 1.0, %v7179
        %v7370 = vsub.f32 1.0, %v7194
        %v7371 = vsub.f32 1.0, %v7209
        %v7372 = vsub.f32 1.0, %v7224
        %v7373 = vsub.f32 1.0, %v7239
        %v7374 = vsub.f32 1.0, %v7254
        %v7375 = vsub.f32 1.0, %v7269
        %v7376 = vsub.f32 1.0, %v7284
        %v7377 = vsub.f32 1.0, %v7299
        %v7378 = vsub.f32 1.0, %v7314
        %v7379 = vmul.f32 %v7347, %v6675
        %v7380 = vmul.f32 %v7348, %v6676
        %v7381 = vmul.f32 %v7349, %v6677
        %v7382 = vmul.f32 %v7350, %v6678
        %v7383 = vmul.f32 %v7351, %v6679
        %v7384 = vmul.f32 %v7352, %v6680
        %v7385 = vmul.f32 %v7353, %v6681
        %v7386 = vmul.f32 %v7354, %v6682
        %v7387 = vmul.f32 %v7355, %v6683
        %v7388 = vmul.f32 %v7356, %v6684
        %v7389 = vmul.f32 %v7357, %v6685
        %v7390 = vmul.f32 %v7358, %v6686
        %v7391 = vmul.f32 %v7359, %v6687
        %v7392 = vmul.f32 %v7360, %v6688
        %v7393 = vmul.f32 %v7361, %v6689
        %v7394 = vmul.f32 %v7362, %v6690
        %v7395 = vmul.f32 %v7363, %v6691
        %v7396 = vmul.f32 %v7364, %v6692
        %v7397 = vmul.f32 %v7365, %v6693
        %v7398 = vmul.f32 %v7366, %v6694
        %v7399 = vmul.f32 %v7367, %v6695
        %v7400 = vmul.f32 %v7368, %v6696
        %v7401 = vmul.f32 %v7369, %v6697
        %v7402 = vmul.f32 %v7370, %v6698
        %v7403 = vmul.f32 %v7371, %v6699
        %v7404 = vmul.f32 %v7372, %v6700
        %v7405 = vmul.f32 %v7373, %v6701
        %v7406 = vmul.f32 %v7374, %v6702
        %v7407 = vmul.f32 %v7375, %v6703
        %v7408 = vmul.f32 %v7376, %v6704
        %v7409 = vmul.f32 %v7377, %v6705
        %v7410 = vmul.f32 %v7378, %v6706
        %v7411 = vadd.f32 %v7315, %v7379
        %v7412 = vadd.f32 %v7316, %v7380
        %v7413 = vadd.f32 %v7317, %v7381
        %v7414 = vadd.f32 %v7318, %v7382
        %v7415 = vadd.f32 %v7319, %v7383
        %v7416 = vadd.f32 %v7320, %v7384
        %v7417 = vadd.f32 %v7321, %v7385
        %v7418 = vadd.f32 %v7322, %v7386
        %v7419 = vadd.f32 %v7323, %v7387
        %v7420 = vadd.f32 %v7324, %v7388
        %v7421 = vadd.f32 %v7325, %v7389
        %v7422 = vadd.f32 %v7326, %v7390
        %v7423 = vadd.f32 %v7327, %v7391
        %v7424 = vadd.f32 %v7328, %v7392
        %v7425 = vadd.f32 %v7329, %v7393
        %v7426 = vadd.f32 %v7330, %v7394
        %v7427 = vadd.f32 %v7331, %v7395
        %v7428 = vadd.f32 %v7332, %v7396
        %v7429 = vadd.f32 %v7333, %v7397
        %v7430 = vadd.f32 %v7334, %v7398
        %v7431 = vadd.f32 %v7335, %v7399
        %v7432 = vadd.f32 %v7336, %v7400
        %v7433 = vadd.f32 %v7337, %v7401
        %v7434 = vadd.f32 %v7338, %v7402
        %v7435 = vadd.f32 %v7339, %v7403
        %v7436 = vadd.f32 %v7340, %v7404
        %v7437 = vadd.f32 %v7341, %v7405
        %v7438 = vadd.f32 %v7342, %v7406
        %v7439 = vadd.f32 %v7343, %v7407
        %v7440 = vadd.f32 %v7344, %v7408
        %v7441 = vadd.f32 %v7345, %v7409
        %v7442 = vadd.f32 %v7346, %v7410
        %v7475 = vrot.slane %v7411, 7
        %v7476 = vrot.slane %v7412, 7
        %v7477 = vsel %vm770, %v7475, %v7476
        %v7478 = vrot.slane %v7413, 7
        %v7479 = vrot.slane %v7414, 7
        %v7480 = vsel %vm770, %v7478, %v7479
        %v7481 = vrot.slane %v7415, 7
        %v7482 = vrot.slane %v7416, 7
        %v7483 = vsel %vm770, %v7481, %v7482
        %v7484 = vrot.slane %v7417, 7
        %v7485 = vrot.slane %v7418, 7
        %v7486 = vsel %vm770, %v7484, %v7485
        %v7487 = vrot.slane %v7419, 7
        %v7488 = vrot.slane %v7420, 7
        %v7489 = vsel %vm770, %v7487, %v7488
        %v7490 = vrot.slane %v7421, 7
        %v7491 = vrot.slane %v7422, 7
        %v7492 = vsel %vm770, %v7490, %v7491
        %v7493 = vrot.slane %v7423, 7
        %v7494 = vrot.slane %v7424, 7
        %v7495 = vsel %vm770, %v7493, %v7494
        %v7496 = vrot.slane %v7425, 7
        %v7497 = vrot.slane %v7426, 7
        %v7498 = vsel %vm770, %v7496, %v7497
        %v7499 = vrot.slane %v7427, 7
        %v7500 = vrot.slane %v7428, 7
        %v7501 = vsel %vm770, %v7499, %v7500
        %v7502 = vrot.slane %v7429, 7
        %v7503 = vrot.slane %v7430, 7
        %v7504 = vsel %vm770, %v7502, %v7503
        %v7505 = vrot.slane %v7431, 7
        %v7506 = vrot.slane %v7432, 7
        %v7507 = vsel %vm770, %v7505, %v7506
        %v7508 = vrot.slane %v7433, 7
        %v7509 = vrot.slane %v7434, 7
        %v7510 = vsel %vm770, %v7508, %v7509
        %v7511 = vrot.slane %v7435, 7
        %v7512 = vrot.slane %v7436, 7
        %v7513 = vsel %vm770, %v7511, %v7512
        %v7514 = vrot.slane %v7437, 7
        %v7515 = vrot.slane %v7438, 7
        %v7516 = vsel %vm770, %v7514, %v7515
        %v7517 = vrot.slane %v7439, 7
        %v7518 = vrot.slane %v7440, 7
        %v7519 = vsel %vm770, %v7517, %v7518
        %v7520 = vrot.slane %v7441, 7
        %v7521 = vrot.slane %v7442, 7
        %v7522 = vsel %vm770, %v7520, %v7521
        %v7570 = vsel %vm770, 0.0, %v7475
        %v7571 = vsel %vm770, 0.0, %v7478
        %v7572 = vsel %vm770, 0.0, %v7481
        %v7573 = vsel %vm770, 0.0, %v7484
        %v7574 = vsel %vm770, 0.0, %v7487
        %v7575 = vsel %vm770, 0.0, %v7490
        %v7576 = vsel %vm770, 0.0, %v7493
        %v7577 = vsel %vm770, 0.0, %v7496
        %v7578 = vsel %vm770, 0.0, %v7499
        %v7579 = vsel %vm770, 0.0, %v7502
        %v7580 = vsel %vm770, 0.0, %v7505
        %v7581 = vsel %vm770, 0.0, %v7508
        %v7582 = vsel %vm770, 0.0, %v7511
        %v7583 = vsel %vm770, 0.0, %v7514
        %v7584 = vsel %vm770, 0.0, %v7517
        %v7585 = vsel %vm770, 0.0, %v7520
        %v7586 = vsel %vm770, %v7476, 0.0
        %v7587 = vsel %vm770, %v7479, 0.0
        %v7588 = vsel %vm770, %v7482, 0.0
        %v7589 = vsel %vm770, %v7485, 0.0
        %v7590 = vsel %vm770, %v7488, 0.0
        %v7591 = vsel %vm770, %v7491, 0.0
        %v7592 = vsel %vm770, %v7494, 0.0
        %v7593 = vsel %vm770, %v7497, 0.0
        %v7594 = vsel %vm770, %v7500, 0.0
        %v7595 = vsel %vm770, %v7503, 0.0
        %v7596 = vsel %vm770, %v7506, 0.0
        %v7597 = vsel %vm770, %v7509, 0.0
        %v7598 = vsel %vm770, %v7512, 0.0
        %v7599 = vsel %vm770, %v7515, 0.0
        %v7600 = vsel %vm770, %v7518, 0.0
        %v7601 = vsel %vm770, %v7521, 0.0
        %v7632 = vrot.slane %v7570, 1
        %v7633 = vrot.slane %v7477, 1
        %v7634 = vsel %vm936, %v7632, %v7633
        %v7635 = vrot.slane %v7586, 1
        %v7636 = vsel %vm936, %v7633, %v7635
        %v7637 = vrot.slane %v7571, 1
        %v7638 = vrot.slane %v7480, 1
        %v7639 = vsel %vm936, %v7637, %v7638
        %v7640 = vrot.slane %v7587, 1
        %v7641 = vsel %vm936, %v7638, %v7640
        %v7642 = vrot.slane %v7572, 1
        %v7643 = vrot.slane %v7483, 1
        %v7644 = vsel %vm936, %v7642, %v7643
        %v7645 = vrot.slane %v7588, 1
        %v7646 = vsel %vm936, %v7643, %v7645
        %v7647 = vrot.slane %v7573, 1
        %v7648 = vrot.slane %v7486, 1
        %v7649 = vsel %vm936, %v7647, %v7648
        %v7650 = vrot.slane %v7589, 1
        %v7651 = vsel %vm936, %v7648, %v7650
        %v7652 = vrot.slane %v7574, 1
        %v7653 = vrot.slane %v7489, 1
        %v7654 = vsel %vm936, %v7652, %v7653
        %v7655 = vrot.slane %v7590, 1
        %v7656 = vsel %vm936, %v7653, %v7655
        %v7657 = vrot.slane %v7575, 1
        %v7658 = vrot.slane %v7492, 1
        %v7659 = vsel %vm936, %v7657, %v7658
        %v7660 = vrot.slane %v7591, 1
        %v7661 = vsel %vm936, %v7658, %v7660
        %v7662 = vrot.slane %v7576, 1
        %v7663 = vrot.slane %v7495, 1
        %v7664 = vsel %vm936, %v7662, %v7663
        %v7665 = vrot.slane %v7592, 1
        %v7666 = vsel %vm936, %v7663, %v7665
        %v7667 = vrot.slane %v7577, 1
        %v7668 = vrot.slane %v7498, 1
        %v7669 = vsel %vm936, %v7667, %v7668
        %v7670 = vrot.slane %v7593, 1
        %v7671 = vsel %vm936, %v7668, %v7670
        %v7672 = vrot.slane %v7578, 1
        %v7673 = vrot.slane %v7501, 1
        %v7674 = vsel %vm936, %v7672, %v7673
        %v7675 = vrot.slane %v7594, 1
        %v7676 = vsel %vm936, %v7673, %v7675
        %v7677 = vrot.slane %v7579, 1
        %v7678 = vrot.slane %v7504, 1
        %v7679 = vsel %vm936, %v7677, %v7678
        %v7680 = vrot.slane %v7595, 1
        %v7681 = vsel %vm936, %v7678, %v7680
        %v7682 = vrot.slane %v7580, 1
        %v7683 = vrot.slane %v7507, 1
        %v7684 = vsel %vm936, %v7682, %v7683
        %v7685 = vrot.slane %v7596, 1
        %v7686 = vsel %vm936, %v7683, %v7685
        %v7687 = vrot.slane %v7581, 1
        %v7688 = vrot.slane %v7510, 1
        %v7689 = vsel %vm936, %v7687, %v7688
        %v7690 = vrot.slane %v7597, 1
        %v7691 = vsel %vm936, %v7688, %v7690
        %v7692 = vrot.slane %v7582, 1
        %v7693 = vrot.slane %v7513, 1
        %v7694 = vsel %vm936, %v7692, %v7693
        %v7695 = vrot.slane %v7598, 1
        %v7696 = vsel %vm936, %v7693, %v7695
        %v7697 = vrot.slane %v7583, 1
        %v7698 = vrot.slane %v7516, 1
        %v7699 = vsel %vm936, %v7697, %v7698
        %v7700 = vrot.slane %v7599, 1
        %v7701 = vsel %vm936, %v7698, %v7700
        %v7702 = vrot.slane %v7584, 1
        %v7703 = vrot.slane %v7519, 1
        %v7704 = vsel %vm936, %v7702, %v7703
        %v7705 = vrot.slane %v7600, 1
        %v7706 = vsel %vm936, %v7703, %v7705
        %v7707 = vrot.slane %v7570, 2
        %v7708 = vrot.slane %v7477, 2
        %v7709 = vsel %vm1017, %v7707, %v7708
        %v7710 = vrot.slane %v7586, 2
        %v7711 = vsel %vm1017, %v7708, %v7710
        %v7712 = vrot.slane %v7571, 2
        %v7713 = vrot.slane %v7480, 2
        %v7714 = vsel %vm1017, %v7712, %v7713
        %v7715 = vrot.slane %v7587, 2
        %v7716 = vsel %vm1017, %v7713, %v7715
        %v7717 = vrot.slane %v7572, 2
        %v7718 = vrot.slane %v7483, 2
        %v7719 = vsel %vm1017, %v7717, %v7718
        %v7720 = vrot.slane %v7588, 2
        %v7721 = vsel %vm1017, %v7718, %v7720
        %v7722 = vrot.slane %v7573, 2
        %v7723 = vrot.slane %v7486, 2
        %v7724 = vsel %vm1017, %v7722, %v7723
        %v7725 = vrot.slane %v7589, 2
        %v7726 = vsel %vm1017, %v7723, %v7725
        %v7727 = vrot.slane %v7574, 2
        %v7728 = vrot.slane %v7489, 2
        %v7729 = vsel %vm1017, %v7727, %v7728
        %v7730 = vrot.slane %v7590, 2
        %v7731 = vsel %vm1017, %v7728, %v7730
        %v7732 = vrot.slane %v7575, 2
        %v7733 = vrot.slane %v7492, 2
        %v7734 = vsel %vm1017, %v7732, %v7733
        %v7735 = vrot.slane %v7591, 2
        %v7736 = vsel %vm1017, %v7733, %v7735
        %v7737 = vrot.slane %v7576, 2
        %v7738 = vrot.slane %v7495, 2
        %v7739 = vsel %vm1017, %v7737, %v7738
        %v7740 = vrot.slane %v7592, 2
        %v7741 = vsel %vm1017, %v7738, %v7740
        %v7742 = vrot.slane %v7577, 2
        %v7743 = vrot.slane %v7498, 2
        %v7744 = vsel %vm1017, %v7742, %v7743
        %v7745 = vrot.slane %v7593, 2
        %v7746 = vsel %vm1017, %v7743, %v7745
        %v7747 = vrot.slane %v7578, 2
        %v7748 = vrot.slane %v7501, 2
        %v7749 = vsel %vm1017, %v7747, %v7748
        %v7750 = vrot.slane %v7594, 2
        %v7751 = vsel %vm1017, %v7748, %v7750
        %v7752 = vrot.slane %v7579, 2
        %v7753 = vrot.slane %v7504, 2
        %v7754 = vsel %vm1017, %v7752, %v7753
        %v7755 = vrot.slane %v7595, 2
        %v7756 = vsel %vm1017, %v7753, %v7755
        %v7757 = vrot.slane %v7580, 2
        %v7758 = vrot.slane %v7507, 2
        %v7759 = vsel %vm1017, %v7757, %v7758
        %v7760 = vrot.slane %v7596, 2
        %v7761 = vsel %vm1017, %v7758, %v7760
        %v7762 = vrot.slane %v7581, 2
        %v7763 = vrot.slane %v7510, 2
        %v7764 = vsel %vm1017, %v7762, %v7763
        %v7765 = vrot.slane %v7597, 2
        %v7766 = vsel %vm1017, %v7763, %v7765
        %v7767 = vrot.slane %v7582, 2
        %v7768 = vrot.slane %v7513, 2
        %v7769 = vsel %vm1017, %v7767, %v7768
        %v7770 = vrot.slane %v7598, 2
        %v7771 = vsel %vm1017, %v7768, %v7770
        %v7772 = vrot.slane %v7583, 2
        %v7773 = vrot.slane %v7516, 2
        %v7774 = vsel %vm1017, %v7772, %v7773
        %v7775 = vrot.slane %v7599, 2
        %v7776 = vsel %vm1017, %v7773, %v7775
        %v7777 = vrot.slane %v7584, 2
        %v7778 = vrot.slane %v7519, 2
        %v7779 = vsel %vm1017, %v7777, %v7778
        %v7780 = vrot.slane %v7600, 2
        %v7781 = vsel %vm1017, %v7778, %v7780
        %v7784 = vrot.slane %v7585, 1
        %v7785 = vrot.slane %v7522, 1
        %v7786 = vsel %vm936, %v7784, %v7785
        %v7787 = vrot.slane %v7601, 1
        %v7788 = vsel %vm936, %v7785, %v7787
        %v7821 = vrot.slane %v7585, 2
        %v7822 = vrot.slane %v7522, 2
        %v7823 = vsel %vm1017, %v7821, %v7822
        %v7824 = vrot.slane %v7601, 2
        %v7825 = vsel %vm1017, %v7822, %v7824
        %7856 = vrot.lane.b32.xlu0 %v7634, 32
        %v7857 = vpop.permute.xlu0 %7856
        %7858 = vrot.lane.b32.xlu0 %v7636, 32
        %v7859 = vpop.permute.xlu0 %7858
        %7860 = vrot.lane.b32.xlu0 %v7639, 32
        %v7861 = vpop.permute.xlu0 %7860
        %7862 = vrot.lane.b32.xlu0 %v7641, 32
        %v7863 = vpop.permute.xlu0 %7862
        %7864 = vrot.lane.b32.xlu0 %v7644, 32
        %v7865 = vpop.permute.xlu0 %7864
        %7866 = vrot.lane.b32.xlu0 %v7646, 32
        %v7867 = vpop.permute.xlu0 %7866
        %7868 = vrot.lane.b32.xlu0 %v7649, 32
        %v7869 = vpop.permute.xlu0 %7868
        %7870 = vrot.lane.b32.xlu0 %v7651, 32
        %v7871 = vpop.permute.xlu0 %7870
        %7872 = vrot.lane.b32.xlu0 %v7654, 32
        %v7873 = vpop.permute.xlu0 %7872
        %7874 = vrot.lane.b32.xlu0 %v7656, 32
        %v7875 = vpop.permute.xlu0 %7874
        %7876 = vrot.lane.b32.xlu0 %v7659, 32
        %v7877 = vpop.permute.xlu0 %7876
        %7878 = vrot.lane.b32.xlu0 %v7661, 32
        %v7879 = vpop.permute.xlu0 %7878
        %7880 = vrot.lane.b32.xlu0 %v7664, 32
        %v7881 = vpop.permute.xlu0 %7880
        %7882 = vrot.lane.b32.xlu0 %v7666, 32
        %v7883 = vpop.permute.xlu0 %7882
        %7884 = vrot.lane.b32.xlu0 %v7669, 32
        %v7885 = vpop.permute.xlu0 %7884
        %7886 = vrot.lane.b32.xlu0 %v7671, 32
        %v7887 = vpop.permute.xlu0 %7886
        %7888 = vrot.lane.b32.xlu0 %v7674, 32
        %v7889 = vpop.permute.xlu0 %7888
        %7890 = vrot.lane.b32.xlu0 %v7676, 32
        %v7891 = vpop.permute.xlu0 %7890
        %7892 = vrot.lane.b32.xlu0 %v7679, 32
        %v7893 = vpop.permute.xlu0 %7892
        %7894 = vrot.lane.b32.xlu0 %v7681, 32
        %v7895 = vpop.permute.xlu0 %7894
        %7896 = vrot.lane.b32.xlu0 %v7684, 32
        %v7897 = vpop.permute.xlu0 %7896
        %7898 = vrot.lane.b32.xlu0 %v7686, 32
        %v7899 = vpop.permute.xlu0 %7898
        %7900 = vrot.lane.b32.xlu0 %v7689, 32
        %v7901 = vpop.permute.xlu0 %7900
        %7902 = vrot.lane.b32.xlu0 %v7691, 32
        %v7903 = vpop.permute.xlu0 %7902
        %7904 = vrot.lane.b32.xlu0 %v7694, 32
        %v7905 = vpop.permute.xlu0 %7904
        %7906 = vrot.lane.b32.xlu0 %v7696, 32
        %v7907 = vpop.permute.xlu0 %7906
        %7908 = vrot.lane.b32.xlu0 %v7699, 32
        %v7909 = vpop.permute.xlu0 %7908
        %7910 = vrot.lane.b32.xlu0 %v7701, 32
        %v7911 = vpop.permute.xlu0 %7910
        %7912 = vrot.lane.b32.xlu0 %v7704, 32
        %v7913 = vpop.permute.xlu0 %7912
        %7914 = vrot.lane.b32.xlu0 %v7706, 32
        %v7915 = vpop.permute.xlu0 %7914
        %7946 = vrot.lane.b32.xlu0 %v7709, 64
        %v7947 = vpop.permute.xlu0 %7946
        %7948 = vrot.lane.b32.xlu0 %v7711, 64
        %v7949 = vpop.permute.xlu0 %7948
        %7950 = vrot.lane.b32.xlu0 %v7714, 64
        %v7951 = vpop.permute.xlu0 %7950
        %7952 = vrot.lane.b32.xlu0 %v7716, 64
        %v7953 = vpop.permute.xlu0 %7952
        %7954 = vrot.lane.b32.xlu0 %v7719, 64
        %v7955 = vpop.permute.xlu0 %7954
        %7956 = vrot.lane.b32.xlu0 %v7721, 64
        %v7957 = vpop.permute.xlu0 %7956
        %7958 = vrot.lane.b32.xlu0 %v7724, 64
        %v7959 = vpop.permute.xlu0 %7958
        %7960 = vrot.lane.b32.xlu0 %v7726, 64
        %v7961 = vpop.permute.xlu0 %7960
        %7962 = vrot.lane.b32.xlu0 %v7729, 64
        %v7963 = vpop.permute.xlu0 %7962
        %7964 = vrot.lane.b32.xlu0 %v7731, 64
        %v7965 = vpop.permute.xlu0 %7964
        %7966 = vrot.lane.b32.xlu0 %v7734, 64
        %v7967 = vpop.permute.xlu0 %7966
        %7968 = vrot.lane.b32.xlu0 %v7736, 64
        %v7969 = vpop.permute.xlu0 %7968
        %7970 = vrot.lane.b32.xlu0 %v7739, 64
        %v7971 = vpop.permute.xlu0 %7970
        %7972 = vrot.lane.b32.xlu0 %v7741, 64
        %v7973 = vpop.permute.xlu0 %7972
        %7974 = vrot.lane.b32.xlu0 %v7744, 64
        %v7975 = vpop.permute.xlu0 %7974
        %7976 = vrot.lane.b32.xlu0 %v7746, 64
        %v7977 = vpop.permute.xlu0 %7976
        %7978 = vrot.lane.b32.xlu0 %v7749, 64
        %v7979 = vpop.permute.xlu0 %7978
        %7980 = vrot.lane.b32.xlu0 %v7751, 64
        %v7981 = vpop.permute.xlu0 %7980
        %7982 = vrot.lane.b32.xlu0 %v7754, 64
        %v7983 = vpop.permute.xlu0 %7982
        %7984 = vrot.lane.b32.xlu0 %v7756, 64
        %v7985 = vpop.permute.xlu0 %7984
        %7986 = vrot.lane.b32.xlu0 %v7759, 64
        %v7987 = vpop.permute.xlu0 %7986
        %7988 = vrot.lane.b32.xlu0 %v7761, 64
        %v7989 = vpop.permute.xlu0 %7988
        %7990 = vrot.lane.b32.xlu0 %v7764, 64
        %v7991 = vpop.permute.xlu0 %7990
        %7992 = vrot.lane.b32.xlu0 %v7766, 64
        %v7993 = vpop.permute.xlu0 %7992
        %7994 = vrot.lane.b32.xlu0 %v7769, 64
        %v7995 = vpop.permute.xlu0 %7994
        %7996 = vrot.lane.b32.xlu0 %v7771, 64
        %v7997 = vpop.permute.xlu0 %7996
        %7998 = vrot.lane.b32.xlu0 %v7774, 64
        %v7999 = vpop.permute.xlu0 %7998
        %8000 = vrot.lane.b32.xlu0 %v7776, 64
        %v8001 = vpop.permute.xlu0 %8000
        %8002 = vrot.lane.b32.xlu0 %v7779, 64
        %v8003 = vpop.permute.xlu0 %8002
        %8004 = vrot.lane.b32.xlu0 %v7781, 64
        %v8005 = vpop.permute.xlu0 %8004
        %8036 = vrot.lane.b32.xlu0 %v7570, 96
        %v8037 = vpop.permute.xlu0 %8036
        %8038 = vrot.lane.b32.xlu0 %v7477, 96
        %v8039 = vpop.permute.xlu0 %8038
        %8040 = vrot.lane.b32.xlu0 %v7571, 96
        %v8041 = vpop.permute.xlu0 %8040
        %8042 = vrot.lane.b32.xlu0 %v7480, 96
        %v8043 = vpop.permute.xlu0 %8042
        %8044 = vrot.lane.b32.xlu0 %v7572, 96
        %v8045 = vpop.permute.xlu0 %8044
        %8046 = vrot.lane.b32.xlu0 %v7483, 96
        %v8047 = vpop.permute.xlu0 %8046
        %8048 = vrot.lane.b32.xlu0 %v7573, 96
        %v8049 = vpop.permute.xlu0 %8048
        %8050 = vrot.lane.b32.xlu0 %v7486, 96
        %v8051 = vpop.permute.xlu0 %8050
        %8052 = vrot.lane.b32.xlu0 %v7574, 96
        %v8053 = vpop.permute.xlu0 %8052
        %8054 = vrot.lane.b32.xlu0 %v7489, 96
        %v8055 = vpop.permute.xlu0 %8054
        %8056 = vrot.lane.b32.xlu0 %v7575, 96
        %v8057 = vpop.permute.xlu0 %8056
        %8058 = vrot.lane.b32.xlu0 %v7492, 96
        %v8059 = vpop.permute.xlu0 %8058
        %8060 = vrot.lane.b32.xlu0 %v7576, 96
        %v8061 = vpop.permute.xlu0 %8060
        %8062 = vrot.lane.b32.xlu0 %v7495, 96
        %v8063 = vpop.permute.xlu0 %8062
        %8064 = vrot.lane.b32.xlu0 %v7577, 96
        %v8065 = vpop.permute.xlu0 %8064
        %8066 = vrot.lane.b32.xlu0 %v7498, 96
        %v8067 = vpop.permute.xlu0 %8066
        %8068 = vrot.lane.b32.xlu0 %v7578, 96
        %v8069 = vpop.permute.xlu0 %8068
        %8070 = vrot.lane.b32.xlu0 %v7501, 96
        %v8071 = vpop.permute.xlu0 %8070
        %8072 = vrot.lane.b32.xlu0 %v7579, 96
        %v8073 = vpop.permute.xlu0 %8072
        %8074 = vrot.lane.b32.xlu0 %v7504, 96
        %v8075 = vpop.permute.xlu0 %8074
        %8076 = vrot.lane.b32.xlu0 %v7580, 96
        %v8077 = vpop.permute.xlu0 %8076
        %8078 = vrot.lane.b32.xlu0 %v7507, 96
        %v8079 = vpop.permute.xlu0 %8078
        %8080 = vrot.lane.b32.xlu0 %v7581, 96
        %v8081 = vpop.permute.xlu0 %8080
        %8082 = vrot.lane.b32.xlu0 %v7510, 96
        %v8083 = vpop.permute.xlu0 %8082
        %8084 = vrot.lane.b32.xlu0 %v7582, 96
        %v8085 = vpop.permute.xlu0 %8084
        %8086 = vrot.lane.b32.xlu0 %v7513, 96
        %v8087 = vpop.permute.xlu0 %8086
        %8088 = vrot.lane.b32.xlu0 %v7583, 96
        %v8089 = vpop.permute.xlu0 %8088
        %8090 = vrot.lane.b32.xlu0 %v7516, 96
        %v8091 = vpop.permute.xlu0 %8090
        %8092 = vrot.lane.b32.xlu0 %v7584, 96
        %v8093 = vpop.permute.xlu0 %8092
        %8094 = vrot.lane.b32.xlu0 %v7519, 96
        %v8095 = vpop.permute.xlu0 %8094
        %8096 = vrot.lane.b32.xlu0 %v7585, 96
        %v8097 = vpop.permute.xlu0 %8096
        %8098 = vrot.lane.b32.xlu0 %v7522, 96
        %v8099 = vpop.permute.xlu0 %8098
        %8132 = vrot.lane.b32.xlu0 %v7709, 32
        %v8133 = vpop.permute.xlu0 %8132
        %8134 = vrot.lane.b32.xlu0 %v7711, 32
        %v8135 = vpop.permute.xlu0 %8134
        %8136 = vrot.lane.b32.xlu0 %v7714, 32
        %v8137 = vpop.permute.xlu0 %8136
        %8138 = vrot.lane.b32.xlu0 %v7716, 32
        %v8139 = vpop.permute.xlu0 %8138
        %8140 = vrot.lane.b32.xlu0 %v7719, 32
        %v8141 = vpop.permute.xlu0 %8140
        %8142 = vrot.lane.b32.xlu0 %v7721, 32
        %v8143 = vpop.permute.xlu0 %8142
        %8144 = vrot.lane.b32.xlu0 %v7724, 32
        %v8145 = vpop.permute.xlu0 %8144
        %8146 = vrot.lane.b32.xlu0 %v7726, 32
        %v8147 = vpop.permute.xlu0 %8146
        %8148 = vrot.lane.b32.xlu0 %v7729, 32
        %v8149 = vpop.permute.xlu0 %8148
        %8150 = vrot.lane.b32.xlu0 %v7731, 32
        %v8151 = vpop.permute.xlu0 %8150
        %8152 = vrot.lane.b32.xlu0 %v7734, 32
        %v8153 = vpop.permute.xlu0 %8152
        %8154 = vrot.lane.b32.xlu0 %v7736, 32
        %v8155 = vpop.permute.xlu0 %8154
        %8156 = vrot.lane.b32.xlu0 %v7739, 32
        %v8157 = vpop.permute.xlu0 %8156
        %8158 = vrot.lane.b32.xlu0 %v7741, 32
        %v8159 = vpop.permute.xlu0 %8158
        %8160 = vrot.lane.b32.xlu0 %v7744, 32
        %v8161 = vpop.permute.xlu0 %8160
        %8162 = vrot.lane.b32.xlu0 %v7746, 32
        %v8163 = vpop.permute.xlu0 %8162
        %8164 = vrot.lane.b32.xlu0 %v7749, 32
        %v8165 = vpop.permute.xlu0 %8164
        %8166 = vrot.lane.b32.xlu0 %v7751, 32
        %v8167 = vpop.permute.xlu0 %8166
        %8168 = vrot.lane.b32.xlu0 %v7754, 32
        %v8169 = vpop.permute.xlu0 %8168
        %8170 = vrot.lane.b32.xlu0 %v7756, 32
        %v8171 = vpop.permute.xlu0 %8170
        %8172 = vrot.lane.b32.xlu0 %v7759, 32
        %v8173 = vpop.permute.xlu0 %8172
        %8174 = vrot.lane.b32.xlu0 %v7761, 32
        %v8175 = vpop.permute.xlu0 %8174
        %8176 = vrot.lane.b32.xlu0 %v7764, 32
        %v8177 = vpop.permute.xlu0 %8176
        %8178 = vrot.lane.b32.xlu0 %v7766, 32
        %v8179 = vpop.permute.xlu0 %8178
        %8180 = vrot.lane.b32.xlu0 %v7769, 32
        %v8181 = vpop.permute.xlu0 %8180
        %8182 = vrot.lane.b32.xlu0 %v7771, 32
        %v8183 = vpop.permute.xlu0 %8182
        %8184 = vrot.lane.b32.xlu0 %v7774, 32
        %v8185 = vpop.permute.xlu0 %8184
        %8186 = vrot.lane.b32.xlu0 %v7776, 32
        %v8187 = vpop.permute.xlu0 %8186
        %8188 = vrot.lane.b32.xlu0 %v7779, 32
        %v8189 = vpop.permute.xlu0 %8188
        %8190 = vrot.lane.b32.xlu0 %v7781, 32
        %v8191 = vpop.permute.xlu0 %8190
        %8192 = vrot.lane.b32.xlu0 %v7823, 32
        %v8193 = vpop.permute.xlu0 %8192
        %8194 = vrot.lane.b32.xlu0 %v7825, 32
        %v8195 = vpop.permute.xlu0 %8194
        %8228 = vrot.lane.b32.xlu0 %v7571, 64
        %v8229 = vpop.permute.xlu0 %8228
        %8230 = vrot.lane.b32.xlu0 %v7480, 64
        %v8231 = vpop.permute.xlu0 %8230
        %8232 = vrot.lane.b32.xlu0 %v7572, 64
        %v8233 = vpop.permute.xlu0 %8232
        %8234 = vrot.lane.b32.xlu0 %v7483, 64
        %v8235 = vpop.permute.xlu0 %8234
        %8236 = vrot.lane.b32.xlu0 %v7573, 64
        %v8237 = vpop.permute.xlu0 %8236
        %8238 = vrot.lane.b32.xlu0 %v7486, 64
        %v8239 = vpop.permute.xlu0 %8238
        %8240 = vrot.lane.b32.xlu0 %v7574, 64
        %v8241 = vpop.permute.xlu0 %8240
        %8242 = vrot.lane.b32.xlu0 %v7489, 64
        %v8243 = vpop.permute.xlu0 %8242
        %8244 = vrot.lane.b32.xlu0 %v7575, 64
        %v8245 = vpop.permute.xlu0 %8244
        %8246 = vrot.lane.b32.xlu0 %v7492, 64
        %v8247 = vpop.permute.xlu0 %8246
        %8248 = vrot.lane.b32.xlu0 %v7576, 64
        %v8249 = vpop.permute.xlu0 %8248
        %8250 = vrot.lane.b32.xlu0 %v7495, 64
        %v8251 = vpop.permute.xlu0 %8250
        %8252 = vrot.lane.b32.xlu0 %v7577, 64
        %v8253 = vpop.permute.xlu0 %8252
        %8254 = vrot.lane.b32.xlu0 %v7498, 64
        %v8255 = vpop.permute.xlu0 %8254
        %8256 = vrot.lane.b32.xlu0 %v7578, 64
        %v8257 = vpop.permute.xlu0 %8256
        %8258 = vrot.lane.b32.xlu0 %v7501, 64
        %v8259 = vpop.permute.xlu0 %8258
        %8260 = vrot.lane.b32.xlu0 %v7579, 64
        %v8261 = vpop.permute.xlu0 %8260
        %8262 = vrot.lane.b32.xlu0 %v7504, 64
        %v8263 = vpop.permute.xlu0 %8262
        %8264 = vrot.lane.b32.xlu0 %v7580, 64
        %v8265 = vpop.permute.xlu0 %8264
        %8266 = vrot.lane.b32.xlu0 %v7507, 64
        %v8267 = vpop.permute.xlu0 %8266
        %8268 = vrot.lane.b32.xlu0 %v7581, 64
        %v8269 = vpop.permute.xlu0 %8268
        %8270 = vrot.lane.b32.xlu0 %v7510, 64
        %v8271 = vpop.permute.xlu0 %8270
        %8272 = vrot.lane.b32.xlu0 %v7582, 64
        %v8273 = vpop.permute.xlu0 %8272
        %8274 = vrot.lane.b32.xlu0 %v7513, 64
        %v8275 = vpop.permute.xlu0 %8274
        %8276 = vrot.lane.b32.xlu0 %v7583, 64
        %v8277 = vpop.permute.xlu0 %8276
        %8278 = vrot.lane.b32.xlu0 %v7516, 64
        %v8279 = vpop.permute.xlu0 %8278
        %8280 = vrot.lane.b32.xlu0 %v7584, 64
        %v8281 = vpop.permute.xlu0 %8280
        %8282 = vrot.lane.b32.xlu0 %v7519, 64
        %v8283 = vpop.permute.xlu0 %8282
        %8284 = vrot.lane.b32.xlu0 %v7585, 64
        %v8285 = vpop.permute.xlu0 %8284
        %8286 = vrot.lane.b32.xlu0 %v7522, 64
        %v8287 = vpop.permute.xlu0 %8286
        %8318 = vrot.lane.b32.xlu0 %v7639, 96
        %v8319 = vpop.permute.xlu0 %8318
        %8320 = vrot.lane.b32.xlu0 %v7641, 96
        %v8321 = vpop.permute.xlu0 %8320
        %8322 = vrot.lane.b32.xlu0 %v7644, 96
        %v8323 = vpop.permute.xlu0 %8322
        %8324 = vrot.lane.b32.xlu0 %v7646, 96
        %v8325 = vpop.permute.xlu0 %8324
        %8326 = vrot.lane.b32.xlu0 %v7649, 96
        %v8327 = vpop.permute.xlu0 %8326
        %8328 = vrot.lane.b32.xlu0 %v7651, 96
        %v8329 = vpop.permute.xlu0 %8328
        %8330 = vrot.lane.b32.xlu0 %v7654, 96
        %v8331 = vpop.permute.xlu0 %8330
        %8332 = vrot.lane.b32.xlu0 %v7656, 96
        %v8333 = vpop.permute.xlu0 %8332
        %8334 = vrot.lane.b32.xlu0 %v7659, 96
        %v8335 = vpop.permute.xlu0 %8334
        %8336 = vrot.lane.b32.xlu0 %v7661, 96
        %v8337 = vpop.permute.xlu0 %8336
        %8338 = vrot.lane.b32.xlu0 %v7664, 96
        %v8339 = vpop.permute.xlu0 %8338
        %8340 = vrot.lane.b32.xlu0 %v7666, 96
        %v8341 = vpop.permute.xlu0 %8340
        %8342 = vrot.lane.b32.xlu0 %v7669, 96
        %v8343 = vpop.permute.xlu0 %8342
        %8344 = vrot.lane.b32.xlu0 %v7671, 96
        %v8345 = vpop.permute.xlu0 %8344
        %8346 = vrot.lane.b32.xlu0 %v7674, 96
        %v8347 = vpop.permute.xlu0 %8346
        %8348 = vrot.lane.b32.xlu0 %v7676, 96
        %v8349 = vpop.permute.xlu0 %8348
        %8350 = vrot.lane.b32.xlu0 %v7679, 96
        %v8351 = vpop.permute.xlu0 %8350
        %8352 = vrot.lane.b32.xlu0 %v7681, 96
        %v8353 = vpop.permute.xlu0 %8352
        %8354 = vrot.lane.b32.xlu0 %v7684, 96
        %v8355 = vpop.permute.xlu0 %8354
        %8356 = vrot.lane.b32.xlu0 %v7686, 96
        %v8357 = vpop.permute.xlu0 %8356
        %8358 = vrot.lane.b32.xlu0 %v7689, 96
        %v8359 = vpop.permute.xlu0 %8358
        %8360 = vrot.lane.b32.xlu0 %v7691, 96
        %v8361 = vpop.permute.xlu0 %8360
        %8362 = vrot.lane.b32.xlu0 %v7694, 96
        %v8363 = vpop.permute.xlu0 %8362
        %8364 = vrot.lane.b32.xlu0 %v7696, 96
        %v8365 = vpop.permute.xlu0 %8364
        %8366 = vrot.lane.b32.xlu0 %v7699, 96
        %v8367 = vpop.permute.xlu0 %8366
        %8368 = vrot.lane.b32.xlu0 %v7701, 96
        %v8369 = vpop.permute.xlu0 %8368
        %8370 = vrot.lane.b32.xlu0 %v7704, 96
        %v8371 = vpop.permute.xlu0 %8370
        %8372 = vrot.lane.b32.xlu0 %v7706, 96
        %v8373 = vpop.permute.xlu0 %8372
        %8374 = vrot.lane.b32.xlu0 %v7786, 96
        %v8375 = vpop.permute.xlu0 %8374
        %8376 = vrot.lane.b32.xlu0 %v7788, 96
        %v8377 = vpop.permute.xlu0 %8376
        %v8408 = vsel %vm1750, %v7570, %v7857
        %v8409 = vsel %vm1750, %v7477, %v7859
        %v8410 = vsel %vm1750, %v7571, %v7861
        %v8411 = vsel %vm1750, %v7480, %v7863
        %v8412 = vsel %vm1750, %v7572, %v7865
        %v8413 = vsel %vm1750, %v7483, %v7867
        %v8414 = vsel %vm1750, %v7573, %v7869
        %v8415 = vsel %vm1750, %v7486, %v7871
        %v8416 = vsel %vm1750, %v7574, %v7873
        %v8417 = vsel %vm1750, %v7489, %v7875
        %v8418 = vsel %vm1750, %v7575, %v7877
        %v8419 = vsel %vm1750, %v7492, %v7879
        %v8420 = vsel %vm1750, %v7576, %v7881
        %v8421 = vsel %vm1750, %v7495, %v7883
        %v8422 = vsel %vm1750, %v7577, %v7885
        %v8423 = vsel %vm1750, %v7498, %v7887
        %v8424 = vsel %vm1750, %v7578, %v7889
        %v8425 = vsel %vm1750, %v7501, %v7891
        %v8426 = vsel %vm1750, %v7579, %v7893
        %v8427 = vsel %vm1750, %v7504, %v7895
        %v8428 = vsel %vm1750, %v7580, %v7897
        %v8429 = vsel %vm1750, %v7507, %v7899
        %v8430 = vsel %vm1750, %v7581, %v7901
        %v8431 = vsel %vm1750, %v7510, %v7903
        %v8432 = vsel %vm1750, %v7582, %v7905
        %v8433 = vsel %vm1750, %v7513, %v7907
        %v8434 = vsel %vm1750, %v7583, %v7909
        %v8435 = vsel %vm1750, %v7516, %v7911
        %v8436 = vsel %vm1750, %v7584, %v7913
        %v8437 = vsel %vm1750, %v7519, %v7915
        %v8438 = vsel %vm1783, %v8408, %v7947
        %v8439 = vsel %vm1783, %v8409, %v7949
        %v8440 = vsel %vm1783, %v8410, %v7951
        %v8441 = vsel %vm1783, %v8411, %v7953
        %v8442 = vsel %vm1783, %v8412, %v7955
        %v8443 = vsel %vm1783, %v8413, %v7957
        %v8444 = vsel %vm1783, %v8414, %v7959
        %v8445 = vsel %vm1783, %v8415, %v7961
        %v8446 = vsel %vm1783, %v8416, %v7963
        %v8447 = vsel %vm1783, %v8417, %v7965
        %v8448 = vsel %vm1783, %v8418, %v7967
        %v8449 = vsel %vm1783, %v8419, %v7969
        %v8450 = vsel %vm1783, %v8420, %v7971
        %v8451 = vsel %vm1783, %v8421, %v7973
        %v8452 = vsel %vm1783, %v8422, %v7975
        %v8453 = vsel %vm1783, %v8423, %v7977
        %v8454 = vsel %vm1783, %v8424, %v7979
        %v8455 = vsel %vm1783, %v8425, %v7981
        %v8456 = vsel %vm1783, %v8426, %v7983
        %v8457 = vsel %vm1783, %v8427, %v7985
        %v8458 = vsel %vm1783, %v8428, %v7987
        %v8459 = vsel %vm1783, %v8429, %v7989
        %v8460 = vsel %vm1783, %v8430, %v7991
        %v8461 = vsel %vm1783, %v8431, %v7993
        %v8462 = vsel %vm1783, %v8432, %v7995
        %v8463 = vsel %vm1783, %v8433, %v7997
        %v8464 = vsel %vm1783, %v8434, %v7999
        %v8465 = vsel %vm1783, %v8435, %v8001
        %v8466 = vsel %vm1783, %v8436, %v8003
        %v8467 = vsel %vm1783, %v8437, %v8005
        %v8468 = vsel %vm1816, %v1784, %v8037
        %v8469 = vsel %vm1816, %v1785, %v8039
        %v8470 = vsel %vm1816, %v8438, %v8041
        %v8471 = vsel %vm1816, %v8439, %v8043
        %v8472 = vsel %vm1816, %v8440, %v8045
        %v8473 = vsel %vm1816, %v8441, %v8047
        %v8474 = vsel %vm1816, %v8442, %v8049
        %v8475 = vsel %vm1816, %v8443, %v8051
        %v8476 = vsel %vm1816, %v8444, %v8053
        %v8477 = vsel %vm1816, %v8445, %v8055
        %v8478 = vsel %vm1816, %v8446, %v8057
        %v8479 = vsel %vm1816, %v8447, %v8059
        %v8480 = vsel %vm1816, %v8448, %v8061
        %v8481 = vsel %vm1816, %v8449, %v8063
        %v8482 = vsel %vm1816, %v8450, %v8065
        %v8483 = vsel %vm1816, %v8451, %v8067
        %v8484 = vsel %vm1816, %v8452, %v8069
        %v8485 = vsel %vm1816, %v8453, %v8071
        %v8486 = vsel %vm1816, %v8454, %v8073
        %v8487 = vsel %vm1816, %v8455, %v8075
        %v8488 = vsel %vm1816, %v8456, %v8077
        %v8489 = vsel %vm1816, %v8457, %v8079
        %v8490 = vsel %vm1816, %v8458, %v8081
        %v8491 = vsel %vm1816, %v8459, %v8083
        %v8492 = vsel %vm1816, %v8460, %v8085
        %v8493 = vsel %vm1816, %v8461, %v8087
        %v8494 = vsel %vm1816, %v8462, %v8089
        %v8495 = vsel %vm1816, %v8463, %v8091
        %v8496 = vsel %vm1816, %v8464, %v8093
        %v8497 = vsel %vm1816, %v8465, %v8095
        %v8498 = vsel %vm1816, %v8466, %v8097
        %v8499 = vsel %vm1816, %v8467, %v8099
        %v8500 = vsel %vm1750, %v7634, %v8133
        %v8501 = vsel %vm1750, %v7636, %v8135
        %v8502 = vsel %vm1750, %v7639, %v8137
        %v8503 = vsel %vm1750, %v7641, %v8139
        %v8504 = vsel %vm1750, %v7644, %v8141
        %v8505 = vsel %vm1750, %v7646, %v8143
        %v8506 = vsel %vm1750, %v7649, %v8145
        %v8507 = vsel %vm1750, %v7651, %v8147
        %v8508 = vsel %vm1750, %v7654, %v8149
        %v8509 = vsel %vm1750, %v7656, %v8151
        %v8510 = vsel %vm1750, %v7659, %v8153
        %v8511 = vsel %vm1750, %v7661, %v8155
        %v8512 = vsel %vm1750, %v7664, %v8157
        %v8513 = vsel %vm1750, %v7666, %v8159
        %v8514 = vsel %vm1750, %v7669, %v8161
        %v8515 = vsel %vm1750, %v7671, %v8163
        %v8516 = vsel %vm1750, %v7674, %v8165
        %v8517 = vsel %vm1750, %v7676, %v8167
        %v8518 = vsel %vm1750, %v7679, %v8169
        %v8519 = vsel %vm1750, %v7681, %v8171
        %v8520 = vsel %vm1750, %v7684, %v8173
        %v8521 = vsel %vm1750, %v7686, %v8175
        %v8522 = vsel %vm1750, %v7689, %v8177
        %v8523 = vsel %vm1750, %v7691, %v8179
        %v8524 = vsel %vm1750, %v7694, %v8181
        %v8525 = vsel %vm1750, %v7696, %v8183
        %v8526 = vsel %vm1750, %v7699, %v8185
        %v8527 = vsel %vm1750, %v7701, %v8187
        %v8528 = vsel %vm1750, %v7704, %v8189
        %v8529 = vsel %vm1750, %v7706, %v8191
        %v8530 = vsel %vm1750, %v7786, %v8193
        %v8531 = vsel %vm1750, %v7788, %v8195
        %v8532 = vsel %vm1783, %v8500, %v8229
        %v8533 = vsel %vm1783, %v8501, %v8231
        %v8534 = vsel %vm1783, %v8502, %v8233
        %v8535 = vsel %vm1783, %v8503, %v8235
        %v8536 = vsel %vm1783, %v8504, %v8237
        %v8537 = vsel %vm1783, %v8505, %v8239
        %v8538 = vsel %vm1783, %v8506, %v8241
        %v8539 = vsel %vm1783, %v8507, %v8243
        %v8540 = vsel %vm1783, %v8508, %v8245
        %v8541 = vsel %vm1783, %v8509, %v8247
        %v8542 = vsel %vm1783, %v8510, %v8249
        %v8543 = vsel %vm1783, %v8511, %v8251
        %v8544 = vsel %vm1783, %v8512, %v8253
        %v8545 = vsel %vm1783, %v8513, %v8255
        %v8546 = vsel %vm1783, %v8514, %v8257
        %v8547 = vsel %vm1783, %v8515, %v8259
        %v8548 = vsel %vm1783, %v8516, %v8261
        %v8549 = vsel %vm1783, %v8517, %v8263
        %v8550 = vsel %vm1783, %v8518, %v8265
        %v8551 = vsel %vm1783, %v8519, %v8267
        %v8552 = vsel %vm1783, %v8520, %v8269
        %v8553 = vsel %vm1783, %v8521, %v8271
        %v8554 = vsel %vm1783, %v8522, %v8273
        %v8555 = vsel %vm1783, %v8523, %v8275
        %v8556 = vsel %vm1783, %v8524, %v8277
        %v8557 = vsel %vm1783, %v8525, %v8279
        %v8558 = vsel %vm1783, %v8526, %v8281
        %v8559 = vsel %vm1783, %v8527, %v8283
        %v8560 = vsel %vm1783, %v8528, %v8285
        %v8561 = vsel %vm1783, %v8529, %v8287
        %v8562 = vsel %vm1783, %v8530, %v1619
        %v8563 = vsel %vm1783, %v8531, %v1621
        %v8564 = vsel %vm1816, %v8532, %v8319
        %v8565 = vsel %vm1816, %v8533, %v8321
        %v8566 = vsel %vm1816, %v8534, %v8323
        %v8567 = vsel %vm1816, %v8535, %v8325
        %v8568 = vsel %vm1816, %v8536, %v8327
        %v8569 = vsel %vm1816, %v8537, %v8329
        %v8570 = vsel %vm1816, %v8538, %v8331
        %v8571 = vsel %vm1816, %v8539, %v8333
        %v8572 = vsel %vm1816, %v8540, %v8335
        %v8573 = vsel %vm1816, %v8541, %v8337
        %v8574 = vsel %vm1816, %v8542, %v8339
        %v8575 = vsel %vm1816, %v8543, %v8341
        %v8576 = vsel %vm1816, %v8544, %v8343
        %v8577 = vsel %vm1816, %v8545, %v8345
        %v8578 = vsel %vm1816, %v8546, %v8347
        %v8579 = vsel %vm1816, %v8547, %v8349
        %v8580 = vsel %vm1816, %v8548, %v8351
        %v8581 = vsel %vm1816, %v8549, %v8353
        %v8582 = vsel %vm1816, %v8550, %v8355
        %v8583 = vsel %vm1816, %v8551, %v8357
        %v8584 = vsel %vm1816, %v8552, %v8359
        %v8585 = vsel %vm1816, %v8553, %v8361
        %v8586 = vsel %vm1816, %v8554, %v8363
        %v8587 = vsel %vm1816, %v8555, %v8365
        %v8588 = vsel %vm1816, %v8556, %v8367
        %v8589 = vsel %vm1816, %v8557, %v8369
        %v8590 = vsel %vm1816, %v8558, %v8371
        %v8591 = vsel %vm1816, %v8559, %v8373
        %v8592 = vsel %vm1816, %v8560, %v8375
        %v8593 = vsel %vm1816, %v8561, %v8377
        %v8594 = vsel %vm1816, %v8562, %v1715
        %v8595 = vsel %vm1816, %v8563, %v1717
        %v8596 = vpack.c.bf16 %v8469, %v8468
        %v8597 = vpack.c.bf16 %v8565, %v8564
        %v8598 = vpack.c.bf16 %v7716, %v7714
        %v8599 = vpack.c.bf16 %v8471, %v8470
        %v8600 = vpack.c.bf16 %v8567, %v8566
        %v8601 = vpack.c.bf16 %v7721, %v7719
        %v8602 = vpack.c.bf16 %v8473, %v8472
        %v8603 = vpack.c.bf16 %v8569, %v8568
        %v8604 = vpack.c.bf16 %v7726, %v7724
        %v8605 = vpack.c.bf16 %v8475, %v8474
        %v8606 = vpack.c.bf16 %v8571, %v8570
        %v8607 = vpack.c.bf16 %v7731, %v7729
        %v8608 = vpack.c.bf16 %v8477, %v8476
        %v8609 = vpack.c.bf16 %v8573, %v8572
        %v8610 = vpack.c.bf16 %v7736, %v7734
        %v8611 = vpack.c.bf16 %v8479, %v8478
        %v8612 = vpack.c.bf16 %v8575, %v8574
        %v8613 = vpack.c.bf16 %v7741, %v7739
        %v8614 = vpack.c.bf16 %v8481, %v8480
        %v8615 = vpack.c.bf16 %v8577, %v8576
        %v8616 = vpack.c.bf16 %v7746, %v7744
        %v8617 = vpack.c.bf16 %v8483, %v8482
        %v8618 = vpack.c.bf16 %v8579, %v8578
        %v8619 = vpack.c.bf16 %v7751, %v7749
        %v8620 = vpack.c.bf16 %v8485, %v8484
        %v8621 = vpack.c.bf16 %v8581, %v8580
        %v8622 = vpack.c.bf16 %v7756, %v7754
        %v8623 = vpack.c.bf16 %v8487, %v8486
        %v8624 = vpack.c.bf16 %v8583, %v8582
        %v8625 = vpack.c.bf16 %v7761, %v7759
        %v8626 = vpack.c.bf16 %v8489, %v8488
        %v8627 = vpack.c.bf16 %v8585, %v8584
        %v8628 = vpack.c.bf16 %v7766, %v7764
        %v8629 = vpack.c.bf16 %v8491, %v8490
        %v8630 = vpack.c.bf16 %v8587, %v8586
        %v8631 = vpack.c.bf16 %v7771, %v7769
        %v8632 = vpack.c.bf16 %v8493, %v8492
        %v8633 = vpack.c.bf16 %v8589, %v8588
        %v8634 = vpack.c.bf16 %v7776, %v7774
        %v8635 = vpack.c.bf16 %v8495, %v8494
        %v8636 = vpack.c.bf16 %v8591, %v8590
        %v8637 = vpack.c.bf16 %v7781, %v7779
        %v8638 = vpack.c.bf16 %v8497, %v8496
        %v8639 = vpack.c.bf16 %v8593, %v8592
        %v8640 = vpack.c.bf16 %v7825, %v7823
        %v8641 = vpack.c.bf16 %v8499, %v8498
        %v8642 = vpack.c.bf16 %v8595, %v8594
        %v8643 = vld [vmem:[%s14] sm:$0xf]
        %v8644 = vld [vmem:[%s14 + $0x4] sm:$0xf]
        %v8645 = vld [vmem:[%s14 + $0x8] sm:$0xf]
        %v8646 = vld [vmem:[%s14 + $0xc] sm:$0xf]
        %v8647 = vld [vmem:[%s14 + $0x10] sm:$0xf]
        %v8648 = vld [vmem:[%s14 + $0x14] sm:$0xf]
        %v8649 = vld [vmem:[%s14 + $0x18] sm:$0xf]
        %v8650 = vld [vmem:[%s14 + $0x1c] sm:$0xf]
        %v8651 = vld [vmem:[%s14 + $0x20] sm:$0xf]
        %v8652 = vld [vmem:[%s14 + $0x24] sm:$0xf]
        %v8653 = vld [vmem:[%s14 + $0x28] sm:$0xf]
        %v8654 = vld [vmem:[%s14 + $0x2c] sm:$0xf]
        %v8655 = vld [vmem:[%s14 + $0x30] sm:$0xf]
        %v8656 = vld [vmem:[%s14 + $0x34] sm:$0xf]
        %v8657 = vld [vmem:[%s14 + $0x38] sm:$0xf]
        %v8658 = vld [vmem:[%s14 + $0x3c] sm:$0xf]
        %v8659 = vld [vmem:[%s14 + $0x40] sm:$0xf]
        %v8660 = vld [vmem:[%s14 + $0x44] sm:$0xf]
        %v8661 = vld [vmem:[%s14 + $0x48] sm:$0xf]
        %v8662 = vld [vmem:[%s14 + $0x4c] sm:$0xf]
        %v8663 = vld [vmem:[%s14 + $0x50] sm:$0xf]
        %v8664 = vld [vmem:[%s14 + $0x54] sm:$0xf]
        %v8665 = vld [vmem:[%s14 + $0x58] sm:$0xf]
        %v8666 = vld [vmem:[%s14 + $0x5c] sm:$0xf]
        %v8667 = vld [vmem:[%s14 + $0x60] sm:$0xf]
        %v8668 = vld [vmem:[%s14 + $0x64] sm:$0xf]
        %v8669 = vld [vmem:[%s14 + $0x68] sm:$0xf]
        %v8670 = vld [vmem:[%s14 + $0x6c] sm:$0xf]
        %v8671 = vld [vmem:[%s14 + $0x70] sm:$0xf]
        %v8672 = vld [vmem:[%s14 + $0x74] sm:$0xf]
        %v8673 = vld [vmem:[%s14 + $0x78] sm:$0xf]
        %v8674 = vld [vmem:[%s14 + $0x7c] sm:$0xf]
        %v8675 = vld [vmem:[%s14 + $0x80] sm:$0xf]
        %v8676 = vld [vmem:[%s14 + $0x84] sm:$0xf]
        %v8677 = vld [vmem:[%s14 + $0x88] sm:$0xf]
        %v8678 = vld [vmem:[%s14 + $0x8c] sm:$0xf]
        %v8679 = vld [vmem:[%s15] sm:$0x1]
        %v8681 = vperm.slane %v8679, 0
        %v8719 = vunpack.c.l.b16 %v8643
        %v8720 = vunpack.c.l.b16 %v8644
        %v8721 = vunpack.c.l.b16 %v8645
        %v8722 = vunpack.c.l.b16 %v8646
        %v8723 = vunpack.c.l.b16 %v8647
        %v8724 = vunpack.c.l.b16 %v8648
        %v8725 = vunpack.c.l.b16 %v8649
        %v8726 = vunpack.c.l.b16 %v8650
        %v8727 = vunpack.c.l.b16 %v8651
        %v8728 = vunpack.c.l.b16 %v8652
        %v8729 = vunpack.c.l.b16 %v8653
        %v8730 = vunpack.c.l.b16 %v8654
        %v8731 = vunpack.c.l.b16 %v8655
        %v8732 = vunpack.c.l.b16 %v8656
        %v8733 = vunpack.c.l.b16 %v8657
        %v8734 = vunpack.c.l.b16 %v8658
        %v8735 = vunpack.c.l.b16 %v8659
        %v8736 = vunpack.c.l.b16 %v8660
        %v8737 = vunpack.c.l.b16 %v8661
        %v8738 = vunpack.c.l.b16 %v8662
        %v8739 = vunpack.c.l.b16 %v8663
        %v8740 = vunpack.c.l.b16 %v8664
        %v8741 = vunpack.c.l.b16 %v8665
        %v8742 = vunpack.c.l.b16 %v8666
        %v8743 = vunpack.c.l.b16 %v8667
        %v8744 = vunpack.c.l.b16 %v8668
        %v8745 = vunpack.c.l.b16 %v8669
        %v8746 = vunpack.c.l.b16 %v8670
        %v8747 = vunpack.c.l.b16 %v8671
        %v8748 = vunpack.c.l.b16 %v8672
        %v8749 = vunpack.c.l.b16 %v8673
        %v8750 = vunpack.c.l.b16 %v8674
        %v8751 = vunpack.c.l.b16 %v8675
        %v8752 = vunpack.c.l.b16 %v8676
        %v8753 = vunpack.c.l.b16 %v8677
        %v8754 = vunpack.c.l.b16 %v8678
        %v8755 = vpack.c.b16 %v8720, %v8719
        %v8756 = vpack.c.b16 %v8722, %v8721
        %v8757 = vpack.c.b16 %v8724, %v8723
        %v8758 = vpack.c.b16 %v8726, %v8725
        %v8759 = vpack.c.b16 %v8728, %v8727
        %v8760 = vpack.c.b16 %v8730, %v8729
        %v8761 = vpack.c.b16 %v8732, %v8731
        %v8762 = vpack.c.b16 %v8734, %v8733
        %v8763 = vpack.c.b16 %v8736, %v8735
        %v8764 = vpack.c.b16 %v8738, %v8737
        %v8765 = vpack.c.b16 %v8740, %v8739
        %v8766 = vpack.c.b16 %v8742, %v8741
        %v8767 = vpack.c.b16 %v8744, %v8743
        %v8768 = vpack.c.b16 %v8746, %v8745
        %v8769 = vpack.c.b16 %v8748, %v8747
        %v8770 = vpack.c.b16 %v8750, %v8749
        %v8771 = vpack.c.b16 %v8752, %v8751
        %v8772 = vpack.c.b16 %v8754, %v8753
        %v8792 = vsel %vm1750, %v8598, 0
        %v8795 = vsel %vm1750, %v8601, 0
        %v8798 = vsel %vm1750, %v8604, 0
        %v8801 = vsel %vm1750, %v8607, 0
        %v8804 = vsel %vm1750, %v8610, 0
        %v8807 = vsel %vm1750, %v8613, 0
        %v8810 = vsel %vm1750, %v8616, 0
        %v8813 = vsel %vm1750, %v8619, 0
        %v8816 = vsel %vm1750, %v8622, 0
        %v8819 = vsel %vm1750, %v8625, 0
        %v8822 = vsel %vm1750, %v8628, 0
        %v8825 = vsel %vm1750, %v8631, 0
        %v8828 = vsel %vm1750, %v8634, 0
        %v8831 = vsel %vm1750, %v8637, 0
        %v8834 = vsel %vm1750, %v8640, 0
        %8836 = vmatpush.bf16.msra.mxu0 %v8762
        %8837 = vmatpush.bf16.msra.mxu0 %v8761
        %8838 = vmatpush.bf16.msra.mxu0 %v8760
        %8839 = vmatpush.bf16.msra.mxu0 %v8759
        %8840 = vmatpush.bf16.msra.mxu0 %v8758
        %8841 = vmatpush.bf16.msra.mxu0 %v8757
        %8842 = vmatpush.bf16.msra.mxu0 %v8756
        %8843 = vmatpush.bf16.msra.mxu0 %v8755
        %8844 = vmatmul.bf16.gmra.mxu0 %v8596
        %v8845 = vpop.f32.mrf.mxu0
        %v8846 = vadd.f32 %v8681, %v8845
        %v8847 = vpop.f32.mrf.mxu0
        %v8848 = vadd.f32 %v8681, %v8847
        %8849 = vmatmul.bf16.gmra.mxu0 %v8599
        %v8850 = vpop.f32.mrf.mxu0
        %v8851 = vadd.f32 %v8681, %v8850
        %v8852 = vpop.f32.mrf.mxu0
        %v8853 = vadd.f32 %v8681, %v8852
        %8854 = vmatmul.bf16.gmra.mxu0 %v8602
        %v8855 = vpop.f32.mrf.mxu0
        %v8856 = vadd.f32 %v8681, %v8855
        %v8857 = vpop.f32.mrf.mxu0
        %v8858 = vadd.f32 %v8681, %v8857
        %8859 = vmatmul.bf16.gmra.mxu0 %v8605
        %v8860 = vpop.f32.mrf.mxu0
        %v8861 = vadd.f32 %v8681, %v8860
        %v8862 = vpop.f32.mrf.mxu0
        %v8863 = vadd.f32 %v8681, %v8862
        %8864 = vmatmul.bf16.gmra.mxu0 %v8608
        %v8865 = vpop.f32.mrf.mxu0
        %v8866 = vadd.f32 %v8681, %v8865
        %v8867 = vpop.f32.mrf.mxu0
        %v8868 = vadd.f32 %v8681, %v8867
        %8869 = vmatmul.bf16.gmra.mxu0 %v8611
        %v8870 = vpop.f32.mrf.mxu0
        %v8871 = vadd.f32 %v8681, %v8870
        %v8872 = vpop.f32.mrf.mxu0
        %v8873 = vadd.f32 %v8681, %v8872
        %8874 = vmatmul.bf16.gmra.mxu0 %v8614
        %v8875 = vpop.f32.mrf.mxu0
        %v8876 = vadd.f32 %v8681, %v8875
        %v8877 = vpop.f32.mrf.mxu0
        %v8878 = vadd.f32 %v8681, %v8877
        %8879 = vmatmul.bf16.gmra.mxu0 %v8617
        %v8880 = vpop.f32.mrf.mxu0
        %v8881 = vadd.f32 %v8681, %v8880
        %v8882 = vpop.f32.mrf.mxu0
        %v8883 = vadd.f32 %v8681, %v8882
        %8884 = vmatmul.bf16.gmra.mxu0 %v8620
        %v8885 = vpop.f32.mrf.mxu0
        %v8886 = vadd.f32 %v8681, %v8885
        %v8887 = vpop.f32.mrf.mxu0
        %v8888 = vadd.f32 %v8681, %v8887
        %8889 = vmatmul.bf16.gmra.mxu0 %v8623
        %v8890 = vpop.f32.mrf.mxu0
        %v8891 = vadd.f32 %v8681, %v8890
        %v8892 = vpop.f32.mrf.mxu0
        %v8893 = vadd.f32 %v8681, %v8892
        %8894 = vmatmul.bf16.gmra.mxu0 %v8626
        %v8895 = vpop.f32.mrf.mxu0
        %v8896 = vadd.f32 %v8681, %v8895
        %v8897 = vpop.f32.mrf.mxu0
        %v8898 = vadd.f32 %v8681, %v8897
        %8899 = vmatmul.bf16.gmra.mxu0 %v8629
        %v8900 = vpop.f32.mrf.mxu0
        %v8901 = vadd.f32 %v8681, %v8900
        %v8902 = vpop.f32.mrf.mxu0
        %v8903 = vadd.f32 %v8681, %v8902
        %8904 = vmatmul.bf16.gmra.mxu0 %v8632
        %v8905 = vpop.f32.mrf.mxu0
        %v8906 = vadd.f32 %v8681, %v8905
        %v8907 = vpop.f32.mrf.mxu0
        %v8908 = vadd.f32 %v8681, %v8907
        %8909 = vmatmul.bf16.gmra.mxu0 %v8635
        %v8910 = vpop.f32.mrf.mxu0
        %v8911 = vadd.f32 %v8681, %v8910
        %v8912 = vpop.f32.mrf.mxu0
        %v8913 = vadd.f32 %v8681, %v8912
        %8914 = vmatmul.bf16.gmra.mxu0 %v8638
        %v8915 = vpop.f32.mrf.mxu0
        %v8916 = vadd.f32 %v8681, %v8915
        %v8917 = vpop.f32.mrf.mxu0
        %v8918 = vadd.f32 %v8681, %v8917
        %8919 = vmatmul.bf16.gmra.mxu0 %v8641
        %v8920 = vpop.f32.mrf.mxu0
        %v8921 = vadd.f32 %v8681, %v8920
        %v8922 = vpop.f32.mrf.mxu0
        %v8923 = vadd.f32 %v8681, %v8922
        %8924 = vdwg.mxu0
        %8925 = vmatpush.bf16.msra.mxu0 %v8770
        %8926 = vmatpush.bf16.msra.mxu0 %v8769
        %8927 = vmatpush.bf16.msra.mxu0 %v8768
        %8928 = vmatpush.bf16.msra.mxu0 %v8767
        %8929 = vmatpush.bf16.msra.mxu0 %v8766
        %8930 = vmatpush.bf16.msra.mxu0 %v8765
        %8931 = vmatpush.bf16.msra.mxu0 %v8764
        %8932 = vmatpush.bf16.msra.mxu0 %v8763
        %8933 = vmatmul.bf16.gmra.mxu0 %v8597
        %v8934 = vpop.f32.mrf.mxu0
        %v8935 = vadd.f32 %v8846, %v8934
        %v8936 = vpop.f32.mrf.mxu0
        %v8937 = vadd.f32 %v8848, %v8936
        %8938 = vmatmul.bf16.gmra.mxu0 %v8600
        %v8939 = vpop.f32.mrf.mxu0
        %v8940 = vadd.f32 %v8851, %v8939
        %v8941 = vpop.f32.mrf.mxu0
        %v8942 = vadd.f32 %v8853, %v8941
        %8943 = vmatmul.bf16.gmra.mxu0 %v8603
        %v8944 = vpop.f32.mrf.mxu0
        %v8945 = vadd.f32 %v8856, %v8944
        %v8946 = vpop.f32.mrf.mxu0
        %v8947 = vadd.f32 %v8858, %v8946
        %8948 = vmatmul.bf16.gmra.mxu0 %v8606
        %v8949 = vpop.f32.mrf.mxu0
        %v8950 = vadd.f32 %v8861, %v8949
        %v8951 = vpop.f32.mrf.mxu0
        %v8952 = vadd.f32 %v8863, %v8951
        %8953 = vmatmul.bf16.gmra.mxu0 %v8609
        %v8954 = vpop.f32.mrf.mxu0
        %v8955 = vadd.f32 %v8866, %v8954
        %v8956 = vpop.f32.mrf.mxu0
        %v8957 = vadd.f32 %v8868, %v8956
        %8958 = vmatmul.bf16.gmra.mxu0 %v8612
        %v8959 = vpop.f32.mrf.mxu0
        %v8960 = vadd.f32 %v8871, %v8959
        %v8961 = vpop.f32.mrf.mxu0
        %v8962 = vadd.f32 %v8873, %v8961
        %8963 = vmatmul.bf16.gmra.mxu0 %v8615
        %v8964 = vpop.f32.mrf.mxu0
        %v8965 = vadd.f32 %v8876, %v8964
        %v8966 = vpop.f32.mrf.mxu0
        %v8967 = vadd.f32 %v8878, %v8966
        %8968 = vmatmul.bf16.gmra.mxu0 %v8618
        %v8969 = vpop.f32.mrf.mxu0
        %v8970 = vadd.f32 %v8881, %v8969
        %v8971 = vpop.f32.mrf.mxu0
        %v8972 = vadd.f32 %v8883, %v8971
        %8973 = vmatmul.bf16.gmra.mxu0 %v8621
        %v8974 = vpop.f32.mrf.mxu0
        %v8975 = vadd.f32 %v8886, %v8974
        %v8976 = vpop.f32.mrf.mxu0
        %v8977 = vadd.f32 %v8888, %v8976
        %8978 = vmatmul.bf16.gmra.mxu0 %v8624
        %v8979 = vpop.f32.mrf.mxu0
        %v8980 = vadd.f32 %v8891, %v8979
        %v8981 = vpop.f32.mrf.mxu0
        %v8982 = vadd.f32 %v8893, %v8981
        %8983 = vmatmul.bf16.gmra.mxu0 %v8627
        %v8984 = vpop.f32.mrf.mxu0
        %v8985 = vadd.f32 %v8896, %v8984
        %v8986 = vpop.f32.mrf.mxu0
        %v8987 = vadd.f32 %v8898, %v8986
        %8988 = vmatmul.bf16.gmra.mxu0 %v8630
        %v8989 = vpop.f32.mrf.mxu0
        %v8990 = vadd.f32 %v8901, %v8989
        %v8991 = vpop.f32.mrf.mxu0
        %v8992 = vadd.f32 %v8903, %v8991
        %8993 = vmatmul.bf16.gmra.mxu0 %v8633
        %v8994 = vpop.f32.mrf.mxu0
        %v8995 = vadd.f32 %v8906, %v8994
        %v8996 = vpop.f32.mrf.mxu0
        %v8997 = vadd.f32 %v8908, %v8996
        %8998 = vmatmul.bf16.gmra.mxu0 %v8636
        %v8999 = vpop.f32.mrf.mxu0
        %v9000 = vadd.f32 %v8911, %v8999
        %v9001 = vpop.f32.mrf.mxu0
        %v9002 = vadd.f32 %v8913, %v9001
        %9003 = vmatmul.bf16.gmra.mxu0 %v8639
        %v9004 = vpop.f32.mrf.mxu0
        %v9005 = vadd.f32 %v8916, %v9004
        %v9006 = vpop.f32.mrf.mxu0
        %v9007 = vadd.f32 %v8918, %v9006
        %9008 = vmatmul.bf16.gmra.mxu0 %v8642
        %v9009 = vpop.f32.mrf.mxu0
        %v9010 = vadd.f32 %v8921, %v9009
        %v9011 = vpop.f32.mrf.mxu0
        %v9012 = vadd.f32 %v8923, %v9011
        %9013 = vdwg.mxu0
        %9014 = vmatpush.bf16.msra.mxu0 0
        %9015 = vmatpush.bf16.msra.mxu0 0
        %9016 = vmatpush.bf16.msra.mxu0 0
        %9017 = vmatpush.bf16.msra.mxu0 0
        %9018 = vmatpush.bf16.msra.mxu0 0
        %9019 = vmatpush.bf16.msra.mxu0 0
        %9020 = vmatpush.bf16.msra.mxu0 %v8772
        %9021 = vmatpush.bf16.msra.mxu0 %v8771
        %9022 = vmatmul.bf16.gmra.mxu0 %v8792
        %v9023 = vpop.f32.mrf.mxu0
        %v9024 = vadd.f32 %v8935, %v9023
        %v9025 = vpop.f32.mrf.mxu0
        %v9026 = vadd.f32 %v8937, %v9025
        %9027 = vmatmul.bf16.gmra.mxu0 %v8795
        %v9028 = vpop.f32.mrf.mxu0
        %v9029 = vadd.f32 %v8940, %v9028
        %v9030 = vpop.f32.mrf.mxu0
        %v9031 = vadd.f32 %v8942, %v9030
        %9032 = vmatmul.bf16.gmra.mxu0 %v8798
        %v9033 = vpop.f32.mrf.mxu0
        %v9034 = vadd.f32 %v8945, %v9033
        %v9035 = vpop.f32.mrf.mxu0
        %v9036 = vadd.f32 %v8947, %v9035
        %9037 = vmatmul.bf16.gmra.mxu0 %v8801
        %v9038 = vpop.f32.mrf.mxu0
        %v9039 = vadd.f32 %v8950, %v9038
        %v9040 = vpop.f32.mrf.mxu0
        %v9041 = vadd.f32 %v8952, %v9040
        %9042 = vmatmul.bf16.gmra.mxu0 %v8804
        %v9043 = vpop.f32.mrf.mxu0
        %v9044 = vadd.f32 %v8955, %v9043
        %v9045 = vpop.f32.mrf.mxu0
        %v9046 = vadd.f32 %v8957, %v9045
        %9047 = vmatmul.bf16.gmra.mxu0 %v8807
        %v9048 = vpop.f32.mrf.mxu0
        %v9049 = vadd.f32 %v8960, %v9048
        %v9050 = vpop.f32.mrf.mxu0
        %v9051 = vadd.f32 %v8962, %v9050
        %9052 = vmatmul.bf16.gmra.mxu0 %v8810
        %v9053 = vpop.f32.mrf.mxu0
        %v9054 = vadd.f32 %v8965, %v9053
        %v9055 = vpop.f32.mrf.mxu0
        %v9056 = vadd.f32 %v8967, %v9055
        %9057 = vmatmul.bf16.gmra.mxu0 %v8813
        %v9058 = vpop.f32.mrf.mxu0
        %v9059 = vadd.f32 %v8970, %v9058
        %v9060 = vpop.f32.mrf.mxu0
        %v9061 = vadd.f32 %v8972, %v9060
        %9062 = vmatmul.bf16.gmra.mxu0 %v8816
        %v9063 = vpop.f32.mrf.mxu0
        %v9064 = vadd.f32 %v8975, %v9063
        %v9065 = vpop.f32.mrf.mxu0
        %v9066 = vadd.f32 %v8977, %v9065
        %9067 = vmatmul.bf16.gmra.mxu0 %v8819
        %v9068 = vpop.f32.mrf.mxu0
        %v9069 = vadd.f32 %v8980, %v9068
        %v9070 = vpop.f32.mrf.mxu0
        %v9071 = vadd.f32 %v8982, %v9070
        %9072 = vmatmul.bf16.gmra.mxu0 %v8822
        %v9073 = vpop.f32.mrf.mxu0
        %v9074 = vadd.f32 %v8985, %v9073
        %v9075 = vpop.f32.mrf.mxu0
        %v9076 = vadd.f32 %v8987, %v9075
        %9077 = vmatmul.bf16.gmra.mxu0 %v8825
        %v9078 = vpop.f32.mrf.mxu0
        %v9079 = vadd.f32 %v8990, %v9078
        %v9080 = vpop.f32.mrf.mxu0
        %v9081 = vadd.f32 %v8992, %v9080
        %9082 = vmatmul.bf16.gmra.mxu0 %v8828
        %v9083 = vpop.f32.mrf.mxu0
        %v9084 = vadd.f32 %v8995, %v9083
        %v9085 = vpop.f32.mrf.mxu0
        %v9086 = vadd.f32 %v8997, %v9085
        %9087 = vmatmul.bf16.gmra.mxu0 %v8831
        %v9088 = vpop.f32.mrf.mxu0
        %v9089 = vadd.f32 %v9000, %v9088
        %v9090 = vpop.f32.mrf.mxu0
        %v9091 = vadd.f32 %v9002, %v9090
        %9092 = vmatmul.bf16.gmra.mxu0 %v8834
        %v9093 = vpop.f32.mrf.mxu0
        %v9094 = vadd.f32 %v9005, %v9093
        %v9095 = vpop.f32.mrf.mxu0
        %v9096 = vadd.f32 %v9007, %v9095
        %9097 = vmatmul.bf16.gmra.mxu0 %v2187
        %v9098 = vpop.f32.mrf.mxu0
        %v9099 = vadd.f32 %v9010, %v9098
        %v9100 = vpop.f32.mrf.mxu0
        %v9101 = vadd.f32 %v9012, %v9100
        %9102 = vdwg.mxu0
        %v9103 = vld [vmem:[%s16] sm:$0xff]
        %v9104 = vld [vmem:[%s16 + $0x8] sm:$0xff]
        %v9105 = vld [vmem:[%s16 + $0x10] sm:$0xff]
        %v9106 = vld [vmem:[%s16 + $0x18] sm:$0xff]
        %v9107 = vld [vmem:[%s16 + $0x20] sm:$0xff]
        %v9108 = vld [vmem:[%s16 + $0x28] sm:$0xff]
        %v9109 = vld [vmem:[%s16 + $0x30] sm:$0xff]
        %v9110 = vld [vmem:[%s16 + $0x38] sm:$0xff]
        %v9111 = vld [vmem:[%s16 + $0x40] sm:$0xff]
        %v9112 = vld [vmem:[%s16 + $0x48] sm:$0xff]
        %v9113 = vld [vmem:[%s16 + $0x50] sm:$0xff]
        %v9114 = vld [vmem:[%s16 + $0x58] sm:$0xff]
        %v9115 = vld [vmem:[%s16 + $0x60] sm:$0xff]
        %v9116 = vld [vmem:[%s16 + $0x68] sm:$0xff]
        %v9117 = vld [vmem:[%s16 + $0x70] sm:$0xff]
        %v9118 = vld [vmem:[%s16 + $0x78] sm:$0xff]
        %v9119 = vld [vmem:[%s16 + $0x80] sm:$0xff]
        %v9120 = vld [vmem:[%s16 + $0x88] sm:$0xff]
        %v9121 = vld [vmem:[%s16 + $0x90] sm:$0xff]
        %v9122 = vld [vmem:[%s16 + $0x98] sm:$0xff]
        %v9123 = vld [vmem:[%s16 + $0xa0] sm:$0xff]
        %v9124 = vld [vmem:[%s16 + $0xa8] sm:$0xff]
        %v9125 = vld [vmem:[%s16 + $0xb0] sm:$0xff]
        %v9126 = vld [vmem:[%s16 + $0xb8] sm:$0xff]
        %v9127 = vld [vmem:[%s16 + $0xc0] sm:$0xff]
        %v9128 = vld [vmem:[%s16 + $0xc8] sm:$0xff]
        %v9129 = vld [vmem:[%s16 + $0xd0] sm:$0xff]
        %v9130 = vld [vmem:[%s16 + $0xd8] sm:$0xff]
        %v9131 = vld [vmem:[%s16 + $0xe0] sm:$0xff]
        %v9132 = vld [vmem:[%s16 + $0xe8] sm:$0xff]
        %v9133 = vld [vmem:[%s16 + $0xf0] sm:$0xff]
        %v9134 = vld [vmem:[%s16 + $0xf8] sm:$0xff]
        %v9135 = vld [vmem:[%s17] sm:$0xff]
        %v9136 = vld [vmem:[%s17 + $0x8] sm:$0xff]
        %v9137 = vld [vmem:[%s17 + $0x10] sm:$0xff]
        %v9138 = vld [vmem:[%s17 + $0x18] sm:$0xff]
        %v9139 = vld [vmem:[%s17 + $0x20] sm:$0xff]
        %v9140 = vld [vmem:[%s17 + $0x28] sm:$0xff]
        %v9141 = vld [vmem:[%s17 + $0x30] sm:$0xff]
        %v9142 = vld [vmem:[%s17 + $0x38] sm:$0xff]
        %v9143 = vld [vmem:[%s17 + $0x40] sm:$0xff]
        %v9144 = vld [vmem:[%s17 + $0x48] sm:$0xff]
        %v9145 = vld [vmem:[%s17 + $0x50] sm:$0xff]
        %v9146 = vld [vmem:[%s17 + $0x58] sm:$0xff]
        %v9147 = vld [vmem:[%s17 + $0x60] sm:$0xff]
        %v9148 = vld [vmem:[%s17 + $0x68] sm:$0xff]
        %v9149 = vld [vmem:[%s17 + $0x70] sm:$0xff]
        %v9150 = vld [vmem:[%s17 + $0x78] sm:$0xff]
        %v9151 = vld [vmem:[%s17 + $0x80] sm:$0xff]
        %v9152 = vld [vmem:[%s17 + $0x88] sm:$0xff]
        %v9153 = vld [vmem:[%s17 + $0x90] sm:$0xff]
        %v9154 = vld [vmem:[%s17 + $0x98] sm:$0xff]
        %v9155 = vld [vmem:[%s17 + $0xa0] sm:$0xff]
        %v9156 = vld [vmem:[%s17 + $0xa8] sm:$0xff]
        %v9157 = vld [vmem:[%s17 + $0xb0] sm:$0xff]
        %v9158 = vld [vmem:[%s17 + $0xb8] sm:$0xff]
        %v9159 = vld [vmem:[%s17 + $0xc0] sm:$0xff]
        %v9160 = vld [vmem:[%s17 + $0xc8] sm:$0xff]
        %v9161 = vld [vmem:[%s17 + $0xd0] sm:$0xff]
        %v9162 = vld [vmem:[%s17 + $0xd8] sm:$0xff]
        %v9163 = vld [vmem:[%s17 + $0xe0] sm:$0xff]
        %v9164 = vld [vmem:[%s17 + $0xe8] sm:$0xff]
        %v9165 = vld [vmem:[%s17 + $0xf0] sm:$0xff]
        %v9166 = vld [vmem:[%s17 + $0xf8] sm:$0xff]
        %v9167 = vsel %vm1816, %v9024, 0.0
        %v9168 = vsel %vm1816, %v9026, 0.0
        %v9169 = vadd.f32 %v9167, %v9168
        %v9170 = vsel %vm1816, %v9029, 0.0
        %v9171 = vadd.f32 %v9169, %v9170
        %v9172 = vsel %vm1816, %v9031, 0.0
        %v9173 = vadd.f32 %v9171, %v9172
        %v9174 = vsel %vm1816, %v9034, 0.0
        %v9175 = vadd.f32 %v9173, %v9174
        %v9176 = vsel %vm1816, %v9036, 0.0
        %v9177 = vadd.f32 %v9175, %v9176
        %v9178 = vsel %vm1816, %v9039, 0.0
        %v9179 = vadd.f32 %v9177, %v9178
        %v9180 = vsel %vm1816, %v9041, 0.0
        %v9181 = vadd.f32 %v9179, %v9180
        %v9182 = vsel %vm1816, %v9044, 0.0
        %v9183 = vadd.f32 %v9181, %v9182
        %v9184 = vsel %vm1816, %v9046, 0.0
        %v9185 = vadd.f32 %v9183, %v9184
        %v9186 = vsel %vm1816, %v9049, 0.0
        %v9187 = vadd.f32 %v9185, %v9186
        %v9188 = vsel %vm1816, %v9051, 0.0
        %v9189 = vadd.f32 %v9187, %v9188
        %v9190 = vsel %vm1816, %v9054, 0.0
        %v9191 = vadd.f32 %v9189, %v9190
        %v9192 = vsel %vm1816, %v9056, 0.0
        %v9193 = vadd.f32 %v9191, %v9192
        %v9194 = vsel %vm1816, %v9059, 0.0
        %v9195 = vadd.f32 %v9193, %v9194
        %v9196 = vsel %vm1816, %v9061, 0.0
        %v9197 = vadd.f32 %v9195, %v9196
        %v9198 = vsel %vm1816, %v9064, 0.0
        %v9199 = vadd.f32 %v9197, %v9198
        %v9200 = vsel %vm1816, %v9066, 0.0
        %v9201 = vadd.f32 %v9199, %v9200
        %v9202 = vsel %vm1816, %v9069, 0.0
        %v9203 = vadd.f32 %v9201, %v9202
        %v9204 = vsel %vm1816, %v9071, 0.0
        %v9205 = vadd.f32 %v9203, %v9204
        %v9206 = vsel %vm1816, %v9074, 0.0
        %v9207 = vadd.f32 %v9205, %v9206
        %v9208 = vsel %vm1816, %v9076, 0.0
        %v9209 = vadd.f32 %v9207, %v9208
        %v9210 = vsel %vm1816, %v9079, 0.0
        %v9211 = vadd.f32 %v9209, %v9210
        %v9212 = vsel %vm1816, %v9081, 0.0
        %v9213 = vadd.f32 %v9211, %v9212
        %v9214 = vsel %vm1816, %v9084, 0.0
        %v9215 = vadd.f32 %v9213, %v9214
        %v9216 = vsel %vm1816, %v9086, 0.0
        %v9217 = vadd.f32 %v9215, %v9216
        %v9218 = vsel %vm1816, %v9089, 0.0
        %v9219 = vadd.f32 %v9217, %v9218
        %v9220 = vsel %vm1816, %v9091, 0.0
        %v9221 = vadd.f32 %v9219, %v9220
        %v9222 = vsel %vm1816, %v9094, 0.0
        %v9223 = vadd.f32 %v9221, %v9222
        %v9224 = vsel %vm1816, %v9096, 0.0
        %v9225 = vadd.f32 %v9223, %v9224
        %v9226 = vsel %vm1816, %v9099, 0.0
        %v9227 = vadd.f32 %v9225, %v9226
        %v9228 = vsel %vm1816, %v9101, 0.0
        %v9229 = vadd.f32 %v9227, %v9228
        %9230 = vadd.xlane.f32.xlu0 %v9229
        %v9231 = vpop.xlane.xlu0 %9230
        %v9232 = vrot.slane %v9231, 4
        %v9233 = vadd.f32 %v9231, %v9232
        %v9234 = vrot.slane %v9233, 2
        %v9235 = vadd.f32 %v9233, %v9234
        %v9236 = vrot.slane %v9235, 1
        %v9237 = vadd.f32 %v9235, %v9236
        %s9238 = vtos %v9237
        %s9239 = smul.f32 %s9238, 4.0690105e-05
        %v9240 = vmul.f32 %v9024, %v9024
        %v9241 = vmul.f32 %v9026, %v9026
        %v9242 = vmul.f32 %v9029, %v9029
        %v9243 = vmul.f32 %v9031, %v9031
        %v9244 = vmul.f32 %v9034, %v9034
        %v9245 = vmul.f32 %v9036, %v9036
        %v9246 = vmul.f32 %v9039, %v9039
        %v9247 = vmul.f32 %v9041, %v9041
        %v9248 = vmul.f32 %v9044, %v9044
        %v9249 = vmul.f32 %v9046, %v9046
        %v9250 = vmul.f32 %v9049, %v9049
        %v9251 = vmul.f32 %v9051, %v9051
        %v9252 = vmul.f32 %v9054, %v9054
        %v9253 = vmul.f32 %v9056, %v9056
        %v9254 = vmul.f32 %v9059, %v9059
        %v9255 = vmul.f32 %v9061, %v9061
        %v9256 = vmul.f32 %v9064, %v9064
        %v9257 = vmul.f32 %v9066, %v9066
        %v9258 = vmul.f32 %v9069, %v9069
        %v9259 = vmul.f32 %v9071, %v9071
        %v9260 = vmul.f32 %v9074, %v9074
        %v9261 = vmul.f32 %v9076, %v9076
        %v9262 = vmul.f32 %v9079, %v9079
        %v9263 = vmul.f32 %v9081, %v9081
        %v9264 = vmul.f32 %v9084, %v9084
        %v9265 = vmul.f32 %v9086, %v9086
        %v9266 = vmul.f32 %v9089, %v9089
        %v9267 = vmul.f32 %v9091, %v9091
        %v9268 = vmul.f32 %v9094, %v9094
        %v9269 = vmul.f32 %v9096, %v9096
        %v9270 = vmul.f32 %v9099, %v9099
        %v9271 = vmul.f32 %v9101, %v9101
        %v9272 = vsel %vm1816, %v9240, 0.0
        %v9273 = vsel %vm1816, %v9241, 0.0
        %v9274 = vadd.f32 %v9272, %v9273
        %v9275 = vsel %vm1816, %v9242, 0.0
        %v9276 = vadd.f32 %v9274, %v9275
        %v9277 = vsel %vm1816, %v9243, 0.0
        %v9278 = vadd.f32 %v9276, %v9277
        %v9279 = vsel %vm1816, %v9244, 0.0
        %v9280 = vadd.f32 %v9278, %v9279
        %v9281 = vsel %vm1816, %v9245, 0.0
        %v9282 = vadd.f32 %v9280, %v9281
        %v9283 = vsel %vm1816, %v9246, 0.0
        %v9284 = vadd.f32 %v9282, %v9283
        %v9285 = vsel %vm1816, %v9247, 0.0
        %v9286 = vadd.f32 %v9284, %v9285
        %v9287 = vsel %vm1816, %v9248, 0.0
        %v9288 = vadd.f32 %v9286, %v9287
        %v9289 = vsel %vm1816, %v9249, 0.0
        %v9290 = vadd.f32 %v9288, %v9289
        %v9291 = vsel %vm1816, %v9250, 0.0
        %v9292 = vadd.f32 %v9290, %v9291
        %v9293 = vsel %vm1816, %v9251, 0.0
        %v9294 = vadd.f32 %v9292, %v9293
        %v9295 = vsel %vm1816, %v9252, 0.0
        %v9296 = vadd.f32 %v9294, %v9295
        %v9297 = vsel %vm1816, %v9253, 0.0
        %v9298 = vadd.f32 %v9296, %v9297
        %v9299 = vsel %vm1816, %v9254, 0.0
        %v9300 = vadd.f32 %v9298, %v9299
        %v9301 = vsel %vm1816, %v9255, 0.0
        %v9302 = vadd.f32 %v9300, %v9301
        %v9303 = vsel %vm1816, %v9256, 0.0
        %v9304 = vadd.f32 %v9302, %v9303
        %v9305 = vsel %vm1816, %v9257, 0.0
        %v9306 = vadd.f32 %v9304, %v9305
        %v9307 = vsel %vm1816, %v9258, 0.0
        %v9308 = vadd.f32 %v9306, %v9307
        %v9309 = vsel %vm1816, %v9259, 0.0
        %v9310 = vadd.f32 %v9308, %v9309
        %v9311 = vsel %vm1816, %v9260, 0.0
        %v9312 = vadd.f32 %v9310, %v9311
        %v9313 = vsel %vm1816, %v9261, 0.0
        %v9314 = vadd.f32 %v9312, %v9313
        %v9315 = vsel %vm1816, %v9262, 0.0
        %v9316 = vadd.f32 %v9314, %v9315
        %v9317 = vsel %vm1816, %v9263, 0.0
        %v9318 = vadd.f32 %v9316, %v9317
        %v9319 = vsel %vm1816, %v9264, 0.0
        %v9320 = vadd.f32 %v9318, %v9319
        %v9321 = vsel %vm1816, %v9265, 0.0
        %v9322 = vadd.f32 %v9320, %v9321
        %v9323 = vsel %vm1816, %v9266, 0.0
        %v9324 = vadd.f32 %v9322, %v9323
        %v9325 = vsel %vm1816, %v9267, 0.0
        %v9326 = vadd.f32 %v9324, %v9325
        %v9327 = vsel %vm1816, %v9268, 0.0
        %v9328 = vadd.f32 %v9326, %v9327
        %v9329 = vsel %vm1816, %v9269, 0.0
        %v9330 = vadd.f32 %v9328, %v9329
        %v9331 = vsel %vm1816, %v9270, 0.0
        %v9332 = vadd.f32 %v9330, %v9331
        %v9333 = vsel %vm1816, %v9271, 0.0
        %v9334 = vadd.f32 %v9332, %v9333
        %9335 = vadd.xlane.f32.xlu0 %v9334
        %v9336 = vpop.xlane.xlu0 %9335
        %v9337 = vrot.slane %v9336, 4
        %v9338 = vadd.f32 %v9336, %v9337
        %v9339 = vrot.slane %v9338, 2
        %v9340 = vadd.f32 %v9338, %v9339
        %v9341 = vrot.slane %v9340, 1
        %v9342 = vadd.f32 %v9340, %v9341
        %s9343 = vtos %v9342
        %s9344 = smul.f32 %s9343, 4.0690105e-05
        %s9345 = smul.f32 %s9239, %s9239
        %s9346 = ssub.f32 %s9344, %s9345
        %s9347 = sadd.f32 %s9346, 1e-05
        %v9348 = vstv %s9347
        %v9349 = vrsqrt.pop %v9348
        %v9350 = vmul.f32 %v9349, %v9348
        %v9351 = vmul.f32 %v9350, %v9349
        %v9352 = vmul.f32 0.5, %v9351
        %v9353 = vsub.f32 1.5, %v9352
        %v9354 = vmul.f32 %v9349, %v9353
        %vm9355 = vweird.f32 %v9348
        %vm9356 = vweird.f32 %v9349
        %vm9357 = vmor %vm9355, %vm9356
        %v9358 = vsel %vm9357, %v9349, %v9354
        %s9359 = vtos %v9358
        %v9360 = vstv %s9239
        %v9361 = vsub.f32 %v9024, %v9360
        %v9362 = vsub.f32 %v9026, %v9360
        %v9363 = vsub.f32 %v9029, %v9360
        %v9364 = vsub.f32 %v9031, %v9360
        %v9365 = vsub.f32 %v9034, %v9360
        %v9366 = vsub.f32 %v9036, %v9360
        %v9367 = vsub.f32 %v9039, %v9360
        %v9368 = vsub.f32 %v9041, %v9360
        %v9369 = vsub.f32 %v9044, %v9360
        %v9370 = vsub.f32 %v9046, %v9360
        %v9371 = vsub.f32 %v9049, %v9360
        %v9372 = vsub.f32 %v9051, %v9360
        %v9373 = vsub.f32 %v9054, %v9360
        %v9374 = vsub.f32 %v9056, %v9360
        %v9375 = vsub.f32 %v9059, %v9360
        %v9376 = vsub.f32 %v9061, %v9360
        %v9377 = vsub.f32 %v9064, %v9360
        %v9378 = vsub.f32 %v9066, %v9360
        %v9379 = vsub.f32 %v9069, %v9360
        %v9380 = vsub.f32 %v9071, %v9360
        %v9381 = vsub.f32 %v9074, %v9360
        %v9382 = vsub.f32 %v9076, %v9360
        %v9383 = vsub.f32 %v9079, %v9360
        %v9384 = vsub.f32 %v9081, %v9360
        %v9385 = vsub.f32 %v9084, %v9360
        %v9386 = vsub.f32 %v9086, %v9360
        %v9387 = vsub.f32 %v9089, %v9360
        %v9388 = vsub.f32 %v9091, %v9360
        %v9389 = vsub.f32 %v9094, %v9360
        %v9390 = vsub.f32 %v9096, %v9360
        %v9391 = vsub.f32 %v9099, %v9360
        %v9392 = vsub.f32 %v9101, %v9360
        %v9393 = vstv %s9359
        %v9394 = vmul.f32 %v9361, %v9393
        %v9395 = vmul.f32 %v9362, %v9393
        %v9396 = vmul.f32 %v9363, %v9393
        %v9397 = vmul.f32 %v9364, %v9393
        %v9398 = vmul.f32 %v9365, %v9393
        %v9399 = vmul.f32 %v9366, %v9393
        %v9400 = vmul.f32 %v9367, %v9393
        %v9401 = vmul.f32 %v9368, %v9393
        %v9402 = vmul.f32 %v9369, %v9393
        %v9403 = vmul.f32 %v9370, %v9393
        %v9404 = vmul.f32 %v9371, %v9393
        %v9405 = vmul.f32 %v9372, %v9393
        %v9406 = vmul.f32 %v9373, %v9393
        %v9407 = vmul.f32 %v9374, %v9393
        %v9408 = vmul.f32 %v9375, %v9393
        %v9409 = vmul.f32 %v9376, %v9393
        %v9410 = vmul.f32 %v9377, %v9393
        %v9411 = vmul.f32 %v9378, %v9393
        %v9412 = vmul.f32 %v9379, %v9393
        %v9413 = vmul.f32 %v9380, %v9393
        %v9414 = vmul.f32 %v9381, %v9393
        %v9415 = vmul.f32 %v9382, %v9393
        %v9416 = vmul.f32 %v9383, %v9393
        %v9417 = vmul.f32 %v9384, %v9393
        %v9418 = vmul.f32 %v9385, %v9393
        %v9419 = vmul.f32 %v9386, %v9393
        %v9420 = vmul.f32 %v9387, %v9393
        %v9421 = vmul.f32 %v9388, %v9393
        %v9422 = vmul.f32 %v9389, %v9393
        %v9423 = vmul.f32 %v9390, %v9393
        %v9424 = vmul.f32 %v9391, %v9393
        %v9425 = vmul.f32 %v9392, %v9393
        %v9426 = vmul.f32 %v9394, %v9103
        %v9427 = vmul.f32 %v9395, %v9104
        %v9428 = vmul.f32 %v9396, %v9105
        %v9429 = vmul.f32 %v9397, %v9106
        %v9430 = vmul.f32 %v9398, %v9107
        %v9431 = vmul.f32 %v9399, %v9108
        %v9432 = vmul.f32 %v9400, %v9109
        %v9433 = vmul.f32 %v9401, %v9110
        %v9434 = vmul.f32 %v9402, %v9111
        %v9435 = vmul.f32 %v9403, %v9112
        %v9436 = vmul.f32 %v9404, %v9113
        %v9437 = vmul.f32 %v9405, %v9114
        %v9438 = vmul.f32 %v9406, %v9115
        %v9439 = vmul.f32 %v9407, %v9116
        %v9440 = vmul.f32 %v9408, %v9117
        %v9441 = vmul.f32 %v9409, %v9118
        %v9442 = vmul.f32 %v9410, %v9119
        %v9443 = vmul.f32 %v9411, %v9120
        %v9444 = vmul.f32 %v9412, %v9121
        %v9445 = vmul.f32 %v9413, %v9122
        %v9446 = vmul.f32 %v9414, %v9123
        %v9447 = vmul.f32 %v9415, %v9124
        %v9448 = vmul.f32 %v9416, %v9125
        %v9449 = vmul.f32 %v9417, %v9126
        %v9450 = vmul.f32 %v9418, %v9127
        %v9451 = vmul.f32 %v9419, %v9128
        %v9452 = vmul.f32 %v9420, %v9129
        %v9453 = vmul.f32 %v9421, %v9130
        %v9454 = vmul.f32 %v9422, %v9131
        %v9455 = vmul.f32 %v9423, %v9132
        %v9456 = vmul.f32 %v9424, %v9133
        %v9457 = vmul.f32 %v9425, %v9134
        %v9458 = vadd.f32 %v9426, %v9135
        %v9459 = vadd.f32 %v9427, %v9136
        %v9460 = vadd.f32 %v9428, %v9137
        %v9461 = vadd.f32 %v9429, %v9138
        %v9462 = vadd.f32 %v9430, %v9139
        %v9463 = vadd.f32 %v9431, %v9140
        %v9464 = vadd.f32 %v9432, %v9141
        %v9465 = vadd.f32 %v9433, %v9142
        %v9466 = vadd.f32 %v9434, %v9143
        %v9467 = vadd.f32 %v9435, %v9144
        %v9468 = vadd.f32 %v9436, %v9145
        %v9469 = vadd.f32 %v9437, %v9146
        %v9470 = vadd.f32 %v9438, %v9147
        %v9471 = vadd.f32 %v9439, %v9148
        %v9472 = vadd.f32 %v9440, %v9149
        %v9473 = vadd.f32 %v9441, %v9150
        %v9474 = vadd.f32 %v9442, %v9151
        %v9475 = vadd.f32 %v9443, %v9152
        %v9476 = vadd.f32 %v9444, %v9153
        %v9477 = vadd.f32 %v9445, %v9154
        %v9478 = vadd.f32 %v9446, %v9155
        %v9479 = vadd.f32 %v9447, %v9156
        %v9480 = vadd.f32 %v9448, %v9157
        %v9481 = vadd.f32 %v9449, %v9158
        %v9482 = vadd.f32 %v9450, %v9159
        %v9483 = vadd.f32 %v9451, %v9160
        %v9484 = vadd.f32 %v9452, %v9161
        %v9485 = vadd.f32 %v9453, %v9162
        %v9486 = vadd.f32 %v9454, %v9163
        %v9487 = vadd.f32 %v9455, %v9164
        %v9488 = vadd.f32 %v9456, %v9165
        %v9489 = vadd.f32 %v9457, %v9166
        %v9490 = vxor.u32 %v9458, 2147483648
        %v9491 = vxor.u32 %v9459, 2147483648
        %v9492 = vxor.u32 %v9460, 2147483648
        %v9493 = vxor.u32 %v9461, 2147483648
        %v9494 = vxor.u32 %v9462, 2147483648
        %v9495 = vxor.u32 %v9463, 2147483648
        %v9496 = vxor.u32 %v9464, 2147483648
        %v9497 = vxor.u32 %v9465, 2147483648
        %v9498 = vxor.u32 %v9466, 2147483648
        %v9499 = vxor.u32 %v9467, 2147483648
        %v9500 = vxor.u32 %v9468, 2147483648
        %v9501 = vxor.u32 %v9469, 2147483648
        %v9502 = vxor.u32 %v9470, 2147483648
        %v9503 = vxor.u32 %v9471, 2147483648
        %v9504 = vxor.u32 %v9472, 2147483648
        %v9505 = vxor.u32 %v9473, 2147483648
        %v9506 = vxor.u32 %v9474, 2147483648
        %v9507 = vxor.u32 %v9475, 2147483648
        %v9508 = vxor.u32 %v9476, 2147483648
        %v9509 = vxor.u32 %v9477, 2147483648
        %v9510 = vxor.u32 %v9478, 2147483648
        %v9511 = vxor.u32 %v9479, 2147483648
        %v9512 = vxor.u32 %v9480, 2147483648
        %v9513 = vxor.u32 %v9481, 2147483648
        %v9514 = vxor.u32 %v9482, 2147483648
        %v9515 = vxor.u32 %v9483, 2147483648
        %v9516 = vxor.u32 %v9484, 2147483648
        %v9517 = vxor.u32 %v9485, 2147483648
        %v9518 = vxor.u32 %v9486, 2147483648
        %v9519 = vxor.u32 %v9487, 2147483648
        %v9520 = vxor.u32 %v9488, 2147483648
        %v9521 = vxor.u32 %v9489, 2147483648
        %v9522 = vmul.f32 %v9490, 1.442695
        %v9523 = vpow.pop %v9522
        %v9524 = vmul.f32 %v9491, 1.442695
        %v9525 = vpow.pop %v9524
        %v9526 = vmul.f32 %v9492, 1.442695
        %v9527 = vpow.pop %v9526
        %v9528 = vmul.f32 %v9493, 1.442695
        %v9529 = vpow.pop %v9528
        %v9530 = vmul.f32 %v9494, 1.442695
        %v9531 = vpow.pop %v9530
        %v9532 = vmul.f32 %v9495, 1.442695
        %v9533 = vpow.pop %v9532
        %v9534 = vmul.f32 %v9496, 1.442695
        %v9535 = vpow.pop %v9534
        %v9536 = vmul.f32 %v9497, 1.442695
        %v9537 = vpow.pop %v9536
        %v9538 = vmul.f32 %v9498, 1.442695
        %v9539 = vpow.pop %v9538
        %v9540 = vmul.f32 %v9499, 1.442695
        %v9541 = vpow.pop %v9540
        %v9542 = vmul.f32 %v9500, 1.442695
        %v9543 = vpow.pop %v9542
        %v9544 = vmul.f32 %v9501, 1.442695
        %v9545 = vpow.pop %v9544
        %v9546 = vmul.f32 %v9502, 1.442695
        %v9547 = vpow.pop %v9546
        %v9548 = vmul.f32 %v9503, 1.442695
        %v9549 = vpow.pop %v9548
        %v9550 = vmul.f32 %v9504, 1.442695
        %v9551 = vpow.pop %v9550
        %v9552 = vmul.f32 %v9505, 1.442695
        %v9553 = vpow.pop %v9552
        %v9554 = vmul.f32 %v9506, 1.442695
        %v9555 = vpow.pop %v9554
        %v9556 = vmul.f32 %v9507, 1.442695
        %v9557 = vpow.pop %v9556
        %v9558 = vmul.f32 %v9508, 1.442695
        %v9559 = vpow.pop %v9558
        %v9560 = vmul.f32 %v9509, 1.442695
        %v9561 = vpow.pop %v9560
        %v9562 = vmul.f32 %v9510, 1.442695
        %v9563 = vpow.pop %v9562
        %v9564 = vmul.f32 %v9511, 1.442695
        %v9565 = vpow.pop %v9564
        %v9566 = vmul.f32 %v9512, 1.442695
        %v9567 = vpow.pop %v9566
        %v9568 = vmul.f32 %v9513, 1.442695
        %v9569 = vpow.pop %v9568
        %v9570 = vmul.f32 %v9514, 1.442695
        %v9571 = vpow.pop %v9570
        %v9572 = vmul.f32 %v9515, 1.442695
        %v9573 = vpow.pop %v9572
        %v9574 = vmul.f32 %v9516, 1.442695
        %v9575 = vpow.pop %v9574
        %v9576 = vmul.f32 %v9517, 1.442695
        %v9577 = vpow.pop %v9576
        %v9578 = vmul.f32 %v9518, 1.442695
        %v9579 = vpow.pop %v9578
        %v9580 = vmul.f32 %v9519, 1.442695
        %v9581 = vpow.pop %v9580
        %v9582 = vmul.f32 %v9520, 1.442695
        %v9583 = vpow.pop %v9582
        %v9584 = vmul.f32 %v9521, 1.442695
        %v9585 = vpow.pop %v9584
        %v9586 = vadd.f32 %v9523, 1.0
        %v9587 = vadd.f32 %v9525, 1.0
        %v9588 = vadd.f32 %v9527, 1.0
        %v9589 = vadd.f32 %v9529, 1.0
        %v9590 = vadd.f32 %v9531, 1.0
        %v9591 = vadd.f32 %v9533, 1.0
        %v9592 = vadd.f32 %v9535, 1.0
        %v9593 = vadd.f32 %v9537, 1.0
        %v9594 = vadd.f32 %v9539, 1.0
        %v9595 = vadd.f32 %v9541, 1.0
        %v9596 = vadd.f32 %v9543, 1.0
        %v9597 = vadd.f32 %v9545, 1.0
        %v9598 = vadd.f32 %v9547, 1.0
        %v9599 = vadd.f32 %v9549, 1.0
        %v9600 = vadd.f32 %v9551, 1.0
        %v9601 = vadd.f32 %v9553, 1.0
        %v9602 = vadd.f32 %v9555, 1.0
        %v9603 = vadd.f32 %v9557, 1.0
        %v9604 = vadd.f32 %v9559, 1.0
        %v9605 = vadd.f32 %v9561, 1.0
        %v9606 = vadd.f32 %v9563, 1.0
        %v9607 = vadd.f32 %v9565, 1.0
        %v9608 = vadd.f32 %v9567, 1.0
        %v9609 = vadd.f32 %v9569, 1.0
        %v9610 = vadd.f32 %v9571, 1.0
        %v9611 = vadd.f32 %v9573, 1.0
        %v9612 = vadd.f32 %v9575, 1.0
        %v9613 = vadd.f32 %v9577, 1.0
        %v9614 = vadd.f32 %v9579, 1.0
        %v9615 = vadd.f32 %v9581, 1.0
        %v9616 = vadd.f32 %v9583, 1.0
        %v9617 = vadd.f32 %v9585, 1.0
        %v9618 = vrcp.pop %v9586
        %v9619 = vmul.f32 %v9586, %v9618
        %v9620 = vsub.f32 1.0, %v9619
        %v9621 = vmul.f32 %v9618, %v9620
        %v9622 = vadd.f32 %v9618, %v9621
        %vm9623 = vweird.f32 %v9586
        %vm9624 = vweird.f32 %v9618
        %vm9625 = vmor %vm9623, %vm9624
        %v9626 = vsel %vm9625, %v9618, %v9622
        %v9627 = vand.u32 2147483647, %v9586
        %vm9628 = vcmp.eq.f32.partialorder %v9627, 8.507059e+37
        %v9629 = vand.u32 %v9586, 2147483648
        %v9630 = vor.u32 1.1754944e-38, %v9629
        %v9631 = vsel %vm9628, %v9630, %v9626
        %v9632 = vmul.f32 1.0, %v9631
        %v9633 = vrcp.pop %v9587
        %v9634 = vmul.f32 %v9587, %v9633
        %v9635 = vsub.f32 1.0, %v9634
        %v9636 = vmul.f32 %v9633, %v9635
        %v9637 = vadd.f32 %v9633, %v9636
        %vm9638 = vweird.f32 %v9587
        %vm9639 = vweird.f32 %v9633
        %vm9640 = vmor %vm9638, %vm9639
        %v9641 = vsel %vm9640, %v9633, %v9637
        %v9642 = vand.u32 2147483647, %v9587
        %vm9643 = vcmp.eq.f32.partialorder %v9642, 8.507059e+37
        %v9644 = vand.u32 %v9587, 2147483648
        %v9645 = vor.u32 1.1754944e-38, %v9644
        %v9646 = vsel %vm9643, %v9645, %v9641
        %v9647 = vmul.f32 1.0, %v9646
        %v9648 = vrcp.pop %v9588
        %v9649 = vmul.f32 %v9588, %v9648
        %v9650 = vsub.f32 1.0, %v9649
        %v9651 = vmul.f32 %v9648, %v9650
        %v9652 = vadd.f32 %v9648, %v9651
        %vm9653 = vweird.f32 %v9588
        %vm9654 = vweird.f32 %v9648
        %vm9655 = vmor %vm9653, %vm9654
        %v9656 = vsel %vm9655, %v9648, %v9652
        %v9657 = vand.u32 2147483647, %v9588
        %vm9658 = vcmp.eq.f32.partialorder %v9657, 8.507059e+37
        %v9659 = vand.u32 %v9588, 2147483648
        %v9660 = vor.u32 1.1754944e-38, %v9659
        %v9661 = vsel %vm9658, %v9660, %v9656
        %v9662 = vmul.f32 1.0, %v9661
        %v9663 = vrcp.pop %v9589
        %v9664 = vmul.f32 %v9589, %v9663
        %v9665 = vsub.f32 1.0, %v9664
        %v9666 = vmul.f32 %v9663, %v9665
        %v9667 = vadd.f32 %v9663, %v9666
        %vm9668 = vweird.f32 %v9589
        %vm9669 = vweird.f32 %v9663
        %vm9670 = vmor %vm9668, %vm9669
        %v9671 = vsel %vm9670, %v9663, %v9667
        %v9672 = vand.u32 2147483647, %v9589
        %vm9673 = vcmp.eq.f32.partialorder %v9672, 8.507059e+37
        %v9674 = vand.u32 %v9589, 2147483648
        %v9675 = vor.u32 1.1754944e-38, %v9674
        %v9676 = vsel %vm9673, %v9675, %v9671
        %v9677 = vmul.f32 1.0, %v9676
        %v9678 = vrcp.pop %v9590
        %v9679 = vmul.f32 %v9590, %v9678
        %v9680 = vsub.f32 1.0, %v9679
        %v9681 = vmul.f32 %v9678, %v9680
        %v9682 = vadd.f32 %v9678, %v9681
        %vm9683 = vweird.f32 %v9590
        %vm9684 = vweird.f32 %v9678
        %vm9685 = vmor %vm9683, %vm9684
        %v9686 = vsel %vm9685, %v9678, %v9682
        %v9687 = vand.u32 2147483647, %v9590
        %vm9688 = vcmp.eq.f32.partialorder %v9687, 8.507059e+37
        %v9689 = vand.u32 %v9590, 2147483648
        %v9690 = vor.u32 1.1754944e-38, %v9689
        %v9691 = vsel %vm9688, %v9690, %v9686
        %v9692 = vmul.f32 1.0, %v9691
        %v9693 = vrcp.pop %v9591
        %v9694 = vmul.f32 %v9591, %v9693
        %v9695 = vsub.f32 1.0, %v9694
        %v9696 = vmul.f32 %v9693, %v9695
        %v9697 = vadd.f32 %v9693, %v9696
        %vm9698 = vweird.f32 %v9591
        %vm9699 = vweird.f32 %v9693
        %vm9700 = vmor %vm9698, %vm9699
        %v9701 = vsel %vm9700, %v9693, %v9697
        %v9702 = vand.u32 2147483647, %v9591
        %vm9703 = vcmp.eq.f32.partialorder %v9702, 8.507059e+37
        %v9704 = vand.u32 %v9591, 2147483648
        %v9705 = vor.u32 1.1754944e-38, %v9704
        %v9706 = vsel %vm9703, %v9705, %v9701
        %v9707 = vmul.f32 1.0, %v9706
        %v9708 = vrcp.pop %v9592
        %v9709 = vmul.f32 %v9592, %v9708
        %v9710 = vsub.f32 1.0, %v9709
        %v9711 = vmul.f32 %v9708, %v9710
        %v9712 = vadd.f32 %v9708, %v9711
        %vm9713 = vweird.f32 %v9592
        %vm9714 = vweird.f32 %v9708
        %vm9715 = vmor %vm9713, %vm9714
        %v9716 = vsel %vm9715, %v9708, %v9712
        %v9717 = vand.u32 2147483647, %v9592
        %vm9718 = vcmp.eq.f32.partialorder %v9717, 8.507059e+37
        %v9719 = vand.u32 %v9592, 2147483648
        %v9720 = vor.u32 1.1754944e-38, %v9719
        %v9721 = vsel %vm9718, %v9720, %v9716
        %v9722 = vmul.f32 1.0, %v9721
        %v9723 = vrcp.pop %v9593
        %v9724 = vmul.f32 %v9593, %v9723
        %v9725 = vsub.f32 1.0, %v9724
        %v9726 = vmul.f32 %v9723, %v9725
        %v9727 = vadd.f32 %v9723, %v9726
        %vm9728 = vweird.f32 %v9593
        %vm9729 = vweird.f32 %v9723
        %vm9730 = vmor %vm9728, %vm9729
        %v9731 = vsel %vm9730, %v9723, %v9727
        %v9732 = vand.u32 2147483647, %v9593
        %vm9733 = vcmp.eq.f32.partialorder %v9732, 8.507059e+37
        %v9734 = vand.u32 %v9593, 2147483648
        %v9735 = vor.u32 1.1754944e-38, %v9734
        %v9736 = vsel %vm9733, %v9735, %v9731
        %v9737 = vmul.f32 1.0, %v9736
        %v9738 = vrcp.pop %v9594
        %v9739 = vmul.f32 %v9594, %v9738
        %v9740 = vsub.f32 1.0, %v9739
        %v9741 = vmul.f32 %v9738, %v9740
        %v9742 = vadd.f32 %v9738, %v9741
        %vm9743 = vweird.f32 %v9594
        %vm9744 = vweird.f32 %v9738
        %vm9745 = vmor %vm9743, %vm9744
        %v9746 = vsel %vm9745, %v9738, %v9742
        %v9747 = vand.u32 2147483647, %v9594
        %vm9748 = vcmp.eq.f32.partialorder %v9747, 8.507059e+37
        %v9749 = vand.u32 %v9594, 2147483648
        %v9750 = vor.u32 1.1754944e-38, %v9749
        %v9751 = vsel %vm9748, %v9750, %v9746
        %v9752 = vmul.f32 1.0, %v9751
        %v9753 = vrcp.pop %v9595
        %v9754 = vmul.f32 %v9595, %v9753
        %v9755 = vsub.f32 1.0, %v9754
        %v9756 = vmul.f32 %v9753, %v9755
        %v9757 = vadd.f32 %v9753, %v9756
        %vm9758 = vweird.f32 %v9595
        %vm9759 = vweird.f32 %v9753
        %vm9760 = vmor %vm9758, %vm9759
        %v9761 = vsel %vm9760, %v9753, %v9757
        %v9762 = vand.u32 2147483647, %v9595
        %vm9763 = vcmp.eq.f32.partialorder %v9762, 8.507059e+37
        %v9764 = vand.u32 %v9595, 2147483648
        %v9765 = vor.u32 1.1754944e-38, %v9764
        %v9766 = vsel %vm9763, %v9765, %v9761
        %v9767 = vmul.f32 1.0, %v9766
        %v9768 = vrcp.pop %v9596
        %v9769 = vmul.f32 %v9596, %v9768
        %v9770 = vsub.f32 1.0, %v9769
        %v9771 = vmul.f32 %v9768, %v9770
        %v9772 = vadd.f32 %v9768, %v9771
        %vm9773 = vweird.f32 %v9596
        %vm9774 = vweird.f32 %v9768
        %vm9775 = vmor %vm9773, %vm9774
        %v9776 = vsel %vm9775, %v9768, %v9772
        %v9777 = vand.u32 2147483647, %v9596
        %vm9778 = vcmp.eq.f32.partialorder %v9777, 8.507059e+37
        %v9779 = vand.u32 %v9596, 2147483648
        %v9780 = vor.u32 1.1754944e-38, %v9779
        %v9781 = vsel %vm9778, %v9780, %v9776
        %v9782 = vmul.f32 1.0, %v9781
        %v9783 = vrcp.pop %v9597
        %v9784 = vmul.f32 %v9597, %v9783
        %v9785 = vsub.f32 1.0, %v9784
        %v9786 = vmul.f32 %v9783, %v9785
        %v9787 = vadd.f32 %v9783, %v9786
        %vm9788 = vweird.f32 %v9597
        %vm9789 = vweird.f32 %v9783
        %vm9790 = vmor %vm9788, %vm9789
        %v9791 = vsel %vm9790, %v9783, %v9787
        %v9792 = vand.u32 2147483647, %v9597
        %vm9793 = vcmp.eq.f32.partialorder %v9792, 8.507059e+37
        %v9794 = vand.u32 %v9597, 2147483648
        %v9795 = vor.u32 1.1754944e-38, %v9794
        %v9796 = vsel %vm9793, %v9795, %v9791
        %v9797 = vmul.f32 1.0, %v9796
        %v9798 = vrcp.pop %v9598
        %v9799 = vmul.f32 %v9598, %v9798
        %v9800 = vsub.f32 1.0, %v9799
        %v9801 = vmul.f32 %v9798, %v9800
        %v9802 = vadd.f32 %v9798, %v9801
        %vm9803 = vweird.f32 %v9598
        %vm9804 = vweird.f32 %v9798
        %vm9805 = vmor %vm9803, %vm9804
        %v9806 = vsel %vm9805, %v9798, %v9802
        %v9807 = vand.u32 2147483647, %v9598
        %vm9808 = vcmp.eq.f32.partialorder %v9807, 8.507059e+37
        %v9809 = vand.u32 %v9598, 2147483648
        %v9810 = vor.u32 1.1754944e-38, %v9809
        %v9811 = vsel %vm9808, %v9810, %v9806
        %v9812 = vmul.f32 1.0, %v9811
        %v9813 = vrcp.pop %v9599
        %v9814 = vmul.f32 %v9599, %v9813
        %v9815 = vsub.f32 1.0, %v9814
        %v9816 = vmul.f32 %v9813, %v9815
        %v9817 = vadd.f32 %v9813, %v9816
        %vm9818 = vweird.f32 %v9599
        %vm9819 = vweird.f32 %v9813
        %vm9820 = vmor %vm9818, %vm9819
        %v9821 = vsel %vm9820, %v9813, %v9817
        %v9822 = vand.u32 2147483647, %v9599
        %vm9823 = vcmp.eq.f32.partialorder %v9822, 8.507059e+37
        %v9824 = vand.u32 %v9599, 2147483648
        %v9825 = vor.u32 1.1754944e-38, %v9824
        %v9826 = vsel %vm9823, %v9825, %v9821
        %v9827 = vmul.f32 1.0, %v9826
        %v9828 = vrcp.pop %v9600
        %v9829 = vmul.f32 %v9600, %v9828
        %v9830 = vsub.f32 1.0, %v9829
        %v9831 = vmul.f32 %v9828, %v9830
        %v9832 = vadd.f32 %v9828, %v9831
        %vm9833 = vweird.f32 %v9600
        %vm9834 = vweird.f32 %v9828
        %vm9835 = vmor %vm9833, %vm9834
        %v9836 = vsel %vm9835, %v9828, %v9832
        %v9837 = vand.u32 2147483647, %v9600
        %vm9838 = vcmp.eq.f32.partialorder %v9837, 8.507059e+37
        %v9839 = vand.u32 %v9600, 2147483648
        %v9840 = vor.u32 1.1754944e-38, %v9839
        %v9841 = vsel %vm9838, %v9840, %v9836
        %v9842 = vmul.f32 1.0, %v9841
        %v9843 = vrcp.pop %v9601
        %v9844 = vmul.f32 %v9601, %v9843
        %v9845 = vsub.f32 1.0, %v9844
        %v9846 = vmul.f32 %v9843, %v9845
        %v9847 = vadd.f32 %v9843, %v9846
        %vm9848 = vweird.f32 %v9601
        %vm9849 = vweird.f32 %v9843
        %vm9850 = vmor %vm9848, %vm9849
        %v9851 = vsel %vm9850, %v9843, %v9847
        %v9852 = vand.u32 2147483647, %v9601
        %vm9853 = vcmp.eq.f32.partialorder %v9852, 8.507059e+37
        %v9854 = vand.u32 %v9601, 2147483648
        %v9855 = vor.u32 1.1754944e-38, %v9854
        %v9856 = vsel %vm9853, %v9855, %v9851
        %v9857 = vmul.f32 1.0, %v9856
        %v9858 = vrcp.pop %v9602
        %v9859 = vmul.f32 %v9602, %v9858
        %v9860 = vsub.f32 1.0, %v9859
        %v9861 = vmul.f32 %v9858, %v9860
        %v9862 = vadd.f32 %v9858, %v9861
        %vm9863 = vweird.f32 %v9602
        %vm9864 = vweird.f32 %v9858
        %vm9865 = vmor %vm9863, %vm9864
        %v9866 = vsel %vm9865, %v9858, %v9862
        %v9867 = vand.u32 2147483647, %v9602
        %vm9868 = vcmp.eq.f32.partialorder %v9867, 8.507059e+37
        %v9869 = vand.u32 %v9602, 2147483648
        %v9870 = vor.u32 1.1754944e-38, %v9869
        %v9871 = vsel %vm9868, %v9870, %v9866
        %v9872 = vmul.f32 1.0, %v9871
        %v9873 = vrcp.pop %v9603
        %v9874 = vmul.f32 %v9603, %v9873
        %v9875 = vsub.f32 1.0, %v9874
        %v9876 = vmul.f32 %v9873, %v9875
        %v9877 = vadd.f32 %v9873, %v9876
        %vm9878 = vweird.f32 %v9603
        %vm9879 = vweird.f32 %v9873
        %vm9880 = vmor %vm9878, %vm9879
        %v9881 = vsel %vm9880, %v9873, %v9877
        %v9882 = vand.u32 2147483647, %v9603
        %vm9883 = vcmp.eq.f32.partialorder %v9882, 8.507059e+37
        %v9884 = vand.u32 %v9603, 2147483648
        %v9885 = vor.u32 1.1754944e-38, %v9884
        %v9886 = vsel %vm9883, %v9885, %v9881
        %v9887 = vmul.f32 1.0, %v9886
        %v9888 = vrcp.pop %v9604
        %v9889 = vmul.f32 %v9604, %v9888
        %v9890 = vsub.f32 1.0, %v9889
        %v9891 = vmul.f32 %v9888, %v9890
        %v9892 = vadd.f32 %v9888, %v9891
        %vm9893 = vweird.f32 %v9604
        %vm9894 = vweird.f32 %v9888
        %vm9895 = vmor %vm9893, %vm9894
        %v9896 = vsel %vm9895, %v9888, %v9892
        %v9897 = vand.u32 2147483647, %v9604
        %vm9898 = vcmp.eq.f32.partialorder %v9897, 8.507059e+37
        %v9899 = vand.u32 %v9604, 2147483648
        %v9900 = vor.u32 1.1754944e-38, %v9899
        %v9901 = vsel %vm9898, %v9900, %v9896
        %v9902 = vmul.f32 1.0, %v9901
        %v9903 = vrcp.pop %v9605
        %v9904 = vmul.f32 %v9605, %v9903
        %v9905 = vsub.f32 1.0, %v9904
        %v9906 = vmul.f32 %v9903, %v9905
        %v9907 = vadd.f32 %v9903, %v9906
        %vm9908 = vweird.f32 %v9605
        %vm9909 = vweird.f32 %v9903
        %vm9910 = vmor %vm9908, %vm9909
        %v9911 = vsel %vm9910, %v9903, %v9907
        %v9912 = vand.u32 2147483647, %v9605
        %vm9913 = vcmp.eq.f32.partialorder %v9912, 8.507059e+37
        %v9914 = vand.u32 %v9605, 2147483648
        %v9915 = vor.u32 1.1754944e-38, %v9914
        %v9916 = vsel %vm9913, %v9915, %v9911
        %v9917 = vmul.f32 1.0, %v9916
        %v9918 = vrcp.pop %v9606
        %v9919 = vmul.f32 %v9606, %v9918
        %v9920 = vsub.f32 1.0, %v9919
        %v9921 = vmul.f32 %v9918, %v9920
        %v9922 = vadd.f32 %v9918, %v9921
        %vm9923 = vweird.f32 %v9606
        %vm9924 = vweird.f32 %v9918
        %vm9925 = vmor %vm9923, %vm9924
        %v9926 = vsel %vm9925, %v9918, %v9922
        %v9927 = vand.u32 2147483647, %v9606
        %vm9928 = vcmp.eq.f32.partialorder %v9927, 8.507059e+37
        %v9929 = vand.u32 %v9606, 2147483648
        %v9930 = vor.u32 1.1754944e-38, %v9929
        %v9931 = vsel %vm9928, %v9930, %v9926
        %v9932 = vmul.f32 1.0, %v9931
        %v9933 = vrcp.pop %v9607
        %v9934 = vmul.f32 %v9607, %v9933
        %v9935 = vsub.f32 1.0, %v9934
        %v9936 = vmul.f32 %v9933, %v9935
        %v9937 = vadd.f32 %v9933, %v9936
        %vm9938 = vweird.f32 %v9607
        %vm9939 = vweird.f32 %v9933
        %vm9940 = vmor %vm9938, %vm9939
        %v9941 = vsel %vm9940, %v9933, %v9937
        %v9942 = vand.u32 2147483647, %v9607
        %vm9943 = vcmp.eq.f32.partialorder %v9942, 8.507059e+37
        %v9944 = vand.u32 %v9607, 2147483648
        %v9945 = vor.u32 1.1754944e-38, %v9944
        %v9946 = vsel %vm9943, %v9945, %v9941
        %v9947 = vmul.f32 1.0, %v9946
        %v9948 = vrcp.pop %v9608
        %v9949 = vmul.f32 %v9608, %v9948
        %v9950 = vsub.f32 1.0, %v9949
        %v9951 = vmul.f32 %v9948, %v9950
        %v9952 = vadd.f32 %v9948, %v9951
        %vm9953 = vweird.f32 %v9608
        %vm9954 = vweird.f32 %v9948
        %vm9955 = vmor %vm9953, %vm9954
        %v9956 = vsel %vm9955, %v9948, %v9952
        %v9957 = vand.u32 2147483647, %v9608
        %vm9958 = vcmp.eq.f32.partialorder %v9957, 8.507059e+37
        %v9959 = vand.u32 %v9608, 2147483648
        %v9960 = vor.u32 1.1754944e-38, %v9959
        %v9961 = vsel %vm9958, %v9960, %v9956
        %v9962 = vmul.f32 1.0, %v9961
        %v9963 = vrcp.pop %v9609
        %v9964 = vmul.f32 %v9609, %v9963
        %v9965 = vsub.f32 1.0, %v9964
        %v9966 = vmul.f32 %v9963, %v9965
        %v9967 = vadd.f32 %v9963, %v9966
        %vm9968 = vweird.f32 %v9609
        %vm9969 = vweird.f32 %v9963
        %vm9970 = vmor %vm9968, %vm9969
        %v9971 = vsel %vm9970, %v9963, %v9967
        %v9972 = vand.u32 2147483647, %v9609
        %vm9973 = vcmp.eq.f32.partialorder %v9972, 8.507059e+37
        %v9974 = vand.u32 %v9609, 2147483648
        %v9975 = vor.u32 1.1754944e-38, %v9974
        %v9976 = vsel %vm9973, %v9975, %v9971
        %v9977 = vmul.f32 1.0, %v9976
        %v9978 = vrcp.pop %v9610
        %v9979 = vmul.f32 %v9610, %v9978
        %v9980 = vsub.f32 1.0, %v9979
        %v9981 = vmul.f32 %v9978, %v9980
        %v9982 = vadd.f32 %v9978, %v9981
        %vm9983 = vweird.f32 %v9610
        %vm9984 = vweird.f32 %v9978
        %vm9985 = vmor %vm9983, %vm9984
        %v9986 = vsel %vm9985, %v9978, %v9982
        %v9987 = vand.u32 2147483647, %v9610
        %vm9988 = vcmp.eq.f32.partialorder %v9987, 8.507059e+37
        %v9989 = vand.u32 %v9610, 2147483648
        %v9990 = vor.u32 1.1754944e-38, %v9989
        %v9991 = vsel %vm9988, %v9990, %v9986
        %v9992 = vmul.f32 1.0, %v9991
        %v9993 = vrcp.pop %v9611
        %v9994 = vmul.f32 %v9611, %v9993
        %v9995 = vsub.f32 1.0, %v9994
        %v9996 = vmul.f32 %v9993, %v9995
        %v9997 = vadd.f32 %v9993, %v9996
        %vm9998 = vweird.f32 %v9611
        %vm9999 = vweird.f32 %v9993
        %vm10000 = vmor %vm9998, %vm9999
        %v10001 = vsel %vm10000, %v9993, %v9997
        %v10002 = vand.u32 2147483647, %v9611
        %vm10003 = vcmp.eq.f32.partialorder %v10002, 8.507059e+37
        %v10004 = vand.u32 %v9611, 2147483648
        %v10005 = vor.u32 1.1754944e-38, %v10004
        %v10006 = vsel %vm10003, %v10005, %v10001
        %v10007 = vmul.f32 1.0, %v10006
        %v10008 = vrcp.pop %v9612
        %v10009 = vmul.f32 %v9612, %v10008
        %v10010 = vsub.f32 1.0, %v10009
        %v10011 = vmul.f32 %v10008, %v10010
        %v10012 = vadd.f32 %v10008, %v10011
        %vm10013 = vweird.f32 %v9612
        %vm10014 = vweird.f32 %v10008
        %vm10015 = vmor %vm10013, %vm10014
        %v10016 = vsel %vm10015, %v10008, %v10012
        %v10017 = vand.u32 2147483647, %v9612
        %vm10018 = vcmp.eq.f32.partialorder %v10017, 8.507059e+37
        %v10019 = vand.u32 %v9612, 2147483648
        %v10020 = vor.u32 1.1754944e-38, %v10019
        %v10021 = vsel %vm10018, %v10020, %v10016
        %v10022 = vmul.f32 1.0, %v10021
        %v10023 = vrcp.pop %v9613
        %v10024 = vmul.f32 %v9613, %v10023
        %v10025 = vsub.f32 1.0, %v10024
        %v10026 = vmul.f32 %v10023, %v10025
        %v10027 = vadd.f32 %v10023, %v10026
        %vm10028 = vweird.f32 %v9613
        %vm10029 = vweird.f32 %v10023
        %vm10030 = vmor %vm10028, %vm10029
        %v10031 = vsel %vm10030, %v10023, %v10027
        %v10032 = vand.u32 2147483647, %v9613
        %vm10033 = vcmp.eq.f32.partialorder %v10032, 8.507059e+37
        %v10034 = vand.u32 %v9613, 2147483648
        %v10035 = vor.u32 1.1754944e-38, %v10034
        %v10036 = vsel %vm10033, %v10035, %v10031
        %v10037 = vmul.f32 1.0, %v10036
        %v10038 = vrcp.pop %v9614
        %v10039 = vmul.f32 %v9614, %v10038
        %v10040 = vsub.f32 1.0, %v10039
        %v10041 = vmul.f32 %v10038, %v10040
        %v10042 = vadd.f32 %v10038, %v10041
        %vm10043 = vweird.f32 %v9614
        %vm10044 = vweird.f32 %v10038
        %vm10045 = vmor %vm10043, %vm10044
        %v10046 = vsel %vm10045, %v10038, %v10042
        %v10047 = vand.u32 2147483647, %v9614
        %vm10048 = vcmp.eq.f32.partialorder %v10047, 8.507059e+37
        %v10049 = vand.u32 %v9614, 2147483648
        %v10050 = vor.u32 1.1754944e-38, %v10049
        %v10051 = vsel %vm10048, %v10050, %v10046
        %v10052 = vmul.f32 1.0, %v10051
        %v10053 = vrcp.pop %v9615
        %v10054 = vmul.f32 %v9615, %v10053
        %v10055 = vsub.f32 1.0, %v10054
        %v10056 = vmul.f32 %v10053, %v10055
        %v10057 = vadd.f32 %v10053, %v10056
        %vm10058 = vweird.f32 %v9615
        %vm10059 = vweird.f32 %v10053
        %vm10060 = vmor %vm10058, %vm10059
        %v10061 = vsel %vm10060, %v10053, %v10057
        %v10062 = vand.u32 2147483647, %v9615
        %vm10063 = vcmp.eq.f32.partialorder %v10062, 8.507059e+37
        %v10064 = vand.u32 %v9615, 2147483648
        %v10065 = vor.u32 1.1754944e-38, %v10064
        %v10066 = vsel %vm10063, %v10065, %v10061
        %v10067 = vmul.f32 1.0, %v10066
        %v10068 = vrcp.pop %v9616
        %v10069 = vmul.f32 %v9616, %v10068
        %v10070 = vsub.f32 1.0, %v10069
        %v10071 = vmul.f32 %v10068, %v10070
        %v10072 = vadd.f32 %v10068, %v10071
        %vm10073 = vweird.f32 %v9616
        %vm10074 = vweird.f32 %v10068
        %vm10075 = vmor %vm10073, %vm10074
        %v10076 = vsel %vm10075, %v10068, %v10072
        %v10077 = vand.u32 2147483647, %v9616
        %vm10078 = vcmp.eq.f32.partialorder %v10077, 8.507059e+37
        %v10079 = vand.u32 %v9616, 2147483648
        %v10080 = vor.u32 1.1754944e-38, %v10079
        %v10081 = vsel %vm10078, %v10080, %v10076
        %v10082 = vmul.f32 1.0, %v10081
        %v10083 = vrcp.pop %v9617
        %v10084 = vmul.f32 %v9617, %v10083
        %v10085 = vsub.f32 1.0, %v10084
        %v10086 = vmul.f32 %v10083, %v10085
        %v10087 = vadd.f32 %v10083, %v10086
        %vm10088 = vweird.f32 %v9617
        %vm10089 = vweird.f32 %v10083
        %vm10090 = vmor %vm10088, %vm10089
        %v10091 = vsel %vm10090, %v10083, %v10087
        %v10092 = vand.u32 2147483647, %v9617
        %vm10093 = vcmp.eq.f32.partialorder %v10092, 8.507059e+37
        %v10094 = vand.u32 %v9617, 2147483648
        %v10095 = vor.u32 1.1754944e-38, %v10094
        %v10096 = vsel %vm10093, %v10095, %v10091
        %v10097 = vmul.f32 1.0, %v10096
        %v10098 = vxor.u32 %v3678, 2147483648
        %v10099 = vxor.u32 %v3679, 2147483648
        %v10100 = vxor.u32 %v3680, 2147483648
        %v10101 = vxor.u32 %v3681, 2147483648
        %v10102 = vxor.u32 %v3682, 2147483648
        %v10103 = vxor.u32 %v3683, 2147483648
        %v10104 = vxor.u32 %v3684, 2147483648
        %v10105 = vxor.u32 %v3685, 2147483648
        %v10106 = vxor.u32 %v3686, 2147483648
        %v10107 = vxor.u32 %v3687, 2147483648
        %v10108 = vxor.u32 %v3688, 2147483648
        %v10109 = vxor.u32 %v3689, 2147483648
        %v10110 = vxor.u32 %v3690, 2147483648
        %v10111 = vxor.u32 %v3691, 2147483648
        %v10112 = vxor.u32 %v3692, 2147483648
        %v10113 = vxor.u32 %v3693, 2147483648
        %v10114 = vxor.u32 %v3694, 2147483648
        %v10115 = vxor.u32 %v3695, 2147483648
        %v10116 = vxor.u32 %v3696, 2147483648
        %v10117 = vxor.u32 %v3697, 2147483648
        %v10118 = vxor.u32 %v3698, 2147483648
        %v10119 = vxor.u32 %v3699, 2147483648
        %v10120 = vxor.u32 %v3700, 2147483648
        %v10121 = vxor.u32 %v3701, 2147483648
        %v10122 = vxor.u32 %v3702, 2147483648
        %v10123 = vxor.u32 %v3703, 2147483648
        %v10124 = vxor.u32 %v3704, 2147483648
        %v10125 = vxor.u32 %v3705, 2147483648
        %v10126 = vxor.u32 %v3706, 2147483648
        %v10127 = vxor.u32 %v3707, 2147483648
        %v10128 = vxor.u32 %v3708, 2147483648
        %v10129 = vxor.u32 %v3709, 2147483648
        %v10130 = vmul.f32 %v10098, 1.442695
        %v10131 = vpow.pop %v10130
        %v10132 = vmul.f32 %v10099, 1.442695
        %v10133 = vpow.pop %v10132
        %v10134 = vmul.f32 %v10100, 1.442695
        %v10135 = vpow.pop %v10134
        %v10136 = vmul.f32 %v10101, 1.442695
        %v10137 = vpow.pop %v10136
        %v10138 = vmul.f32 %v10102, 1.442695
        %v10139 = vpow.pop %v10138
        %v10140 = vmul.f32 %v10103, 1.442695
        %v10141 = vpow.pop %v10140
        %v10142 = vmul.f32 %v10104, 1.442695
        %v10143 = vpow.pop %v10142
        %v10144 = vmul.f32 %v10105, 1.442695
        %v10145 = vpow.pop %v10144
        %v10146 = vmul.f32 %v10106, 1.442695
        %v10147 = vpow.pop %v10146
        %v10148 = vmul.f32 %v10107, 1.442695
        %v10149 = vpow.pop %v10148
        %v10150 = vmul.f32 %v10108, 1.442695
        %v10151 = vpow.pop %v10150
        %v10152 = vmul.f32 %v10109, 1.442695
        %v10153 = vpow.pop %v10152
        %v10154 = vmul.f32 %v10110, 1.442695
        %v10155 = vpow.pop %v10154
        %v10156 = vmul.f32 %v10111, 1.442695
        %v10157 = vpow.pop %v10156
        %v10158 = vmul.f32 %v10112, 1.442695
        %v10159 = vpow.pop %v10158
        %v10160 = vmul.f32 %v10113, 1.442695
        %v10161 = vpow.pop %v10160
        %v10162 = vmul.f32 %v10114, 1.442695
        %v10163 = vpow.pop %v10162
        %v10164 = vmul.f32 %v10115, 1.442695
        %v10165 = vpow.pop %v10164
        %v10166 = vmul.f32 %v10116, 1.442695
        %v10167 = vpow.pop %v10166
        %v10168 = vmul.f32 %v10117, 1.442695
        %v10169 = vpow.pop %v10168
        %v10170 = vmul.f32 %v10118, 1.442695
        %v10171 = vpow.pop %v10170
        %v10172 = vmul.f32 %v10119, 1.442695
        %v10173 = vpow.pop %v10172
        %v10174 = vmul.f32 %v10120, 1.442695
        %v10175 = vpow.pop %v10174
        %v10176 = vmul.f32 %v10121, 1.442695
        %v10177 = vpow.pop %v10176
        %v10178 = vmul.f32 %v10122, 1.442695
        %v10179 = vpow.pop %v10178
        %v10180 = vmul.f32 %v10123, 1.442695
        %v10181 = vpow.pop %v10180
        %v10182 = vmul.f32 %v10124, 1.442695
        %v10183 = vpow.pop %v10182
        %v10184 = vmul.f32 %v10125, 1.442695
        %v10185 = vpow.pop %v10184
        %v10186 = vmul.f32 %v10126, 1.442695
        %v10187 = vpow.pop %v10186
        %v10188 = vmul.f32 %v10127, 1.442695
        %v10189 = vpow.pop %v10188
        %v10190 = vmul.f32 %v10128, 1.442695
        %v10191 = vpow.pop %v10190
        %v10192 = vmul.f32 %v10129, 1.442695
        %v10193 = vpow.pop %v10192
        %v10194 = vadd.f32 %v10131, 1.0
        %v10195 = vadd.f32 %v10133, 1.0
        %v10196 = vadd.f32 %v10135, 1.0
        %v10197 = vadd.f32 %v10137, 1.0
        %v10198 = vadd.f32 %v10139, 1.0
        %v10199 = vadd.f32 %v10141, 1.0
        %v10200 = vadd.f32 %v10143, 1.0
        %v10201 = vadd.f32 %v10145, 1.0
        %v10202 = vadd.f32 %v10147, 1.0
        %v10203 = vadd.f32 %v10149, 1.0
        %v10204 = vadd.f32 %v10151, 1.0
        %v10205 = vadd.f32 %v10153, 1.0
        %v10206 = vadd.f32 %v10155, 1.0
        %v10207 = vadd.f32 %v10157, 1.0
        %v10208 = vadd.f32 %v10159, 1.0
        %v10209 = vadd.f32 %v10161, 1.0
        %v10210 = vadd.f32 %v10163, 1.0
        %v10211 = vadd.f32 %v10165, 1.0
        %v10212 = vadd.f32 %v10167, 1.0
        %v10213 = vadd.f32 %v10169, 1.0
        %v10214 = vadd.f32 %v10171, 1.0
        %v10215 = vadd.f32 %v10173, 1.0
        %v10216 = vadd.f32 %v10175, 1.0
        %v10217 = vadd.f32 %v10177, 1.0
        %v10218 = vadd.f32 %v10179, 1.0
        %v10219 = vadd.f32 %v10181, 1.0
        %v10220 = vadd.f32 %v10183, 1.0
        %v10221 = vadd.f32 %v10185, 1.0
        %v10222 = vadd.f32 %v10187, 1.0
        %v10223 = vadd.f32 %v10189, 1.0
        %v10224 = vadd.f32 %v10191, 1.0
        %v10225 = vadd.f32 %v10193, 1.0
        %v10226 = vrcp.pop %v10194
        %v10227 = vmul.f32 %v10194, %v10226
        %v10228 = vsub.f32 1.0, %v10227
        %v10229 = vmul.f32 %v10226, %v10228
        %v10230 = vadd.f32 %v10226, %v10229
        %vm10231 = vweird.f32 %v10194
        %vm10232 = vweird.f32 %v10226
        %vm10233 = vmor %vm10231, %vm10232
        %v10234 = vsel %vm10233, %v10226, %v10230
        %v10235 = vand.u32 2147483647, %v10194
        %vm10236 = vcmp.eq.f32.partialorder %v10235, 8.507059e+37
        %v10237 = vand.u32 %v10194, 2147483648
        %v10238 = vor.u32 1.1754944e-38, %v10237
        %v10239 = vsel %vm10236, %v10238, %v10234
        %v10240 = vmul.f32 1.0, %v10239
        %v10241 = vrcp.pop %v10195
        %v10242 = vmul.f32 %v10195, %v10241
        %v10243 = vsub.f32 1.0, %v10242
        %v10244 = vmul.f32 %v10241, %v10243
        %v10245 = vadd.f32 %v10241, %v10244
        %vm10246 = vweird.f32 %v10195
        %vm10247 = vweird.f32 %v10241
        %vm10248 = vmor %vm10246, %vm10247
        %v10249 = vsel %vm10248, %v10241, %v10245
        %v10250 = vand.u32 2147483647, %v10195
        %vm10251 = vcmp.eq.f32.partialorder %v10250, 8.507059e+37
        %v10252 = vand.u32 %v10195, 2147483648
        %v10253 = vor.u32 1.1754944e-38, %v10252
        %v10254 = vsel %vm10251, %v10253, %v10249
        %v10255 = vmul.f32 1.0, %v10254
        %v10256 = vrcp.pop %v10196
        %v10257 = vmul.f32 %v10196, %v10256
        %v10258 = vsub.f32 1.0, %v10257
        %v10259 = vmul.f32 %v10256, %v10258
        %v10260 = vadd.f32 %v10256, %v10259
        %vm10261 = vweird.f32 %v10196
        %vm10262 = vweird.f32 %v10256
        %vm10263 = vmor %vm10261, %vm10262
        %v10264 = vsel %vm10263, %v10256, %v10260
        %v10265 = vand.u32 2147483647, %v10196
        %vm10266 = vcmp.eq.f32.partialorder %v10265, 8.507059e+37
        %v10267 = vand.u32 %v10196, 2147483648
        %v10268 = vor.u32 1.1754944e-38, %v10267
        %v10269 = vsel %vm10266, %v10268, %v10264
        %v10270 = vmul.f32 1.0, %v10269
        %v10271 = vrcp.pop %v10197
        %v10272 = vmul.f32 %v10197, %v10271
        %v10273 = vsub.f32 1.0, %v10272
        %v10274 = vmul.f32 %v10271, %v10273
        %v10275 = vadd.f32 %v10271, %v10274
        %vm10276 = vweird.f32 %v10197
        %vm10277 = vweird.f32 %v10271
        %vm10278 = vmor %vm10276, %vm10277
        %v10279 = vsel %vm10278, %v10271, %v10275
        %v10280 = vand.u32 2147483647, %v10197
        %vm10281 = vcmp.eq.f32.partialorder %v10280, 8.507059e+37
        %v10282 = vand.u32 %v10197, 2147483648
        %v10283 = vor.u32 1.1754944e-38, %v10282
        %v10284 = vsel %vm10281, %v10283, %v10279
        %v10285 = vmul.f32 1.0, %v10284
        %v10286 = vrcp.pop %v10198
        %v10287 = vmul.f32 %v10198, %v10286
        %v10288 = vsub.f32 1.0, %v10287
        %v10289 = vmul.f32 %v10286, %v10288
        %v10290 = vadd.f32 %v10286, %v10289
        %vm10291 = vweird.f32 %v10198
        %vm10292 = vweird.f32 %v10286
        %vm10293 = vmor %vm10291, %vm10292
        %v10294 = vsel %vm10293, %v10286, %v10290
        %v10295 = vand.u32 2147483647, %v10198
        %vm10296 = vcmp.eq.f32.partialorder %v10295, 8.507059e+37
        %v10297 = vand.u32 %v10198, 2147483648
        %v10298 = vor.u32 1.1754944e-38, %v10297
        %v10299 = vsel %vm10296, %v10298, %v10294
        %v10300 = vmul.f32 1.0, %v10299
        %v10301 = vrcp.pop %v10199
        %v10302 = vmul.f32 %v10199, %v10301
        %v10303 = vsub.f32 1.0, %v10302
        %v10304 = vmul.f32 %v10301, %v10303
        %v10305 = vadd.f32 %v10301, %v10304
        %vm10306 = vweird.f32 %v10199
        %vm10307 = vweird.f32 %v10301
        %vm10308 = vmor %vm10306, %vm10307
        %v10309 = vsel %vm10308, %v10301, %v10305
        %v10310 = vand.u32 2147483647, %v10199
        %vm10311 = vcmp.eq.f32.partialorder %v10310, 8.507059e+37
        %v10312 = vand.u32 %v10199, 2147483648
        %v10313 = vor.u32 1.1754944e-38, %v10312
        %v10314 = vsel %vm10311, %v10313, %v10309
        %v10315 = vmul.f32 1.0, %v10314
        %v10316 = vrcp.pop %v10200
        %v10317 = vmul.f32 %v10200, %v10316
        %v10318 = vsub.f32 1.0, %v10317
        %v10319 = vmul.f32 %v10316, %v10318
        %v10320 = vadd.f32 %v10316, %v10319
        %vm10321 = vweird.f32 %v10200
        %vm10322 = vweird.f32 %v10316
        %vm10323 = vmor %vm10321, %vm10322
        %v10324 = vsel %vm10323, %v10316, %v10320
        %v10325 = vand.u32 2147483647, %v10200
        %vm10326 = vcmp.eq.f32.partialorder %v10325, 8.507059e+37
        %v10327 = vand.u32 %v10200, 2147483648
        %v10328 = vor.u32 1.1754944e-38, %v10327
        %v10329 = vsel %vm10326, %v10328, %v10324
        %v10330 = vmul.f32 1.0, %v10329
        %v10331 = vrcp.pop %v10201
        %v10332 = vmul.f32 %v10201, %v10331
        %v10333 = vsub.f32 1.0, %v10332
        %v10334 = vmul.f32 %v10331, %v10333
        %v10335 = vadd.f32 %v10331, %v10334
        %vm10336 = vweird.f32 %v10201
        %vm10337 = vweird.f32 %v10331
        %vm10338 = vmor %vm10336, %vm10337
        %v10339 = vsel %vm10338, %v10331, %v10335
        %v10340 = vand.u32 2147483647, %v10201
        %vm10341 = vcmp.eq.f32.partialorder %v10340, 8.507059e+37
        %v10342 = vand.u32 %v10201, 2147483648
        %v10343 = vor.u32 1.1754944e-38, %v10342
        %v10344 = vsel %vm10341, %v10343, %v10339
        %v10345 = vmul.f32 1.0, %v10344
        %v10346 = vrcp.pop %v10202
        %v10347 = vmul.f32 %v10202, %v10346
        %v10348 = vsub.f32 1.0, %v10347
        %v10349 = vmul.f32 %v10346, %v10348
        %v10350 = vadd.f32 %v10346, %v10349
        %vm10351 = vweird.f32 %v10202
        %vm10352 = vweird.f32 %v10346
        %vm10353 = vmor %vm10351, %vm10352
        %v10354 = vsel %vm10353, %v10346, %v10350
        %v10355 = vand.u32 2147483647, %v10202
        %vm10356 = vcmp.eq.f32.partialorder %v10355, 8.507059e+37
        %v10357 = vand.u32 %v10202, 2147483648
        %v10358 = vor.u32 1.1754944e-38, %v10357
        %v10359 = vsel %vm10356, %v10358, %v10354
        %v10360 = vmul.f32 1.0, %v10359
        %v10361 = vrcp.pop %v10203
        %v10362 = vmul.f32 %v10203, %v10361
        %v10363 = vsub.f32 1.0, %v10362
        %v10364 = vmul.f32 %v10361, %v10363
        %v10365 = vadd.f32 %v10361, %v10364
        %vm10366 = vweird.f32 %v10203
        %vm10367 = vweird.f32 %v10361
        %vm10368 = vmor %vm10366, %vm10367
        %v10369 = vsel %vm10368, %v10361, %v10365
        %v10370 = vand.u32 2147483647, %v10203
        %vm10371 = vcmp.eq.f32.partialorder %v10370, 8.507059e+37
        %v10372 = vand.u32 %v10203, 2147483648
        %v10373 = vor.u32 1.1754944e-38, %v10372
        %v10374 = vsel %vm10371, %v10373, %v10369
        %v10375 = vmul.f32 1.0, %v10374
        %v10376 = vrcp.pop %v10204
        %v10377 = vmul.f32 %v10204, %v10376
        %v10378 = vsub.f32 1.0, %v10377
        %v10379 = vmul.f32 %v10376, %v10378
        %v10380 = vadd.f32 %v10376, %v10379
        %vm10381 = vweird.f32 %v10204
        %vm10382 = vweird.f32 %v10376
        %vm10383 = vmor %vm10381, %vm10382
        %v10384 = vsel %vm10383, %v10376, %v10380
        %v10385 = vand.u32 2147483647, %v10204
        %vm10386 = vcmp.eq.f32.partialorder %v10385, 8.507059e+37
        %v10387 = vand.u32 %v10204, 2147483648
        %v10388 = vor.u32 1.1754944e-38, %v10387
        %v10389 = vsel %vm10386, %v10388, %v10384
        %v10390 = vmul.f32 1.0, %v10389
        %v10391 = vrcp.pop %v10205
        %v10392 = vmul.f32 %v10205, %v10391
        %v10393 = vsub.f32 1.0, %v10392
        %v10394 = vmul.f32 %v10391, %v10393
        %v10395 = vadd.f32 %v10391, %v10394
        %vm10396 = vweird.f32 %v10205
        %vm10397 = vweird.f32 %v10391
        %vm10398 = vmor %vm10396, %vm10397
        %v10399 = vsel %vm10398, %v10391, %v10395
        %v10400 = vand.u32 2147483647, %v10205
        %vm10401 = vcmp.eq.f32.partialorder %v10400, 8.507059e+37
        %v10402 = vand.u32 %v10205, 2147483648
        %v10403 = vor.u32 1.1754944e-38, %v10402
        %v10404 = vsel %vm10401, %v10403, %v10399
        %v10405 = vmul.f32 1.0, %v10404
        %v10406 = vrcp.pop %v10206
        %v10407 = vmul.f32 %v10206, %v10406
        %v10408 = vsub.f32 1.0, %v10407
        %v10409 = vmul.f32 %v10406, %v10408
        %v10410 = vadd.f32 %v10406, %v10409
        %vm10411 = vweird.f32 %v10206
        %vm10412 = vweird.f32 %v10406
        %vm10413 = vmor %vm10411, %vm10412
        %v10414 = vsel %vm10413, %v10406, %v10410
        %v10415 = vand.u32 2147483647, %v10206
        %vm10416 = vcmp.eq.f32.partialorder %v10415, 8.507059e+37
        %v10417 = vand.u32 %v10206, 2147483648
        %v10418 = vor.u32 1.1754944e-38, %v10417
        %v10419 = vsel %vm10416, %v10418, %v10414
        %v10420 = vmul.f32 1.0, %v10419
        %v10421 = vrcp.pop %v10207
        %v10422 = vmul.f32 %v10207, %v10421
        %v10423 = vsub.f32 1.0, %v10422
        %v10424 = vmul.f32 %v10421, %v10423
        %v10425 = vadd.f32 %v10421, %v10424
        %vm10426 = vweird.f32 %v10207
        %vm10427 = vweird.f32 %v10421
        %vm10428 = vmor %vm10426, %vm10427
        %v10429 = vsel %vm10428, %v10421, %v10425
        %v10430 = vand.u32 2147483647, %v10207
        %vm10431 = vcmp.eq.f32.partialorder %v10430, 8.507059e+37
        %v10432 = vand.u32 %v10207, 2147483648
        %v10433 = vor.u32 1.1754944e-38, %v10432
        %v10434 = vsel %vm10431, %v10433, %v10429
        %v10435 = vmul.f32 1.0, %v10434
        %v10436 = vrcp.pop %v10208
        %v10437 = vmul.f32 %v10208, %v10436
        %v10438 = vsub.f32 1.0, %v10437
        %v10439 = vmul.f32 %v10436, %v10438
        %v10440 = vadd.f32 %v10436, %v10439
        %vm10441 = vweird.f32 %v10208
        %vm10442 = vweird.f32 %v10436
        %vm10443 = vmor %vm10441, %vm10442
        %v10444 = vsel %vm10443, %v10436, %v10440
        %v10445 = vand.u32 2147483647, %v10208
        %vm10446 = vcmp.eq.f32.partialorder %v10445, 8.507059e+37
        %v10447 = vand.u32 %v10208, 2147483648
        %v10448 = vor.u32 1.1754944e-38, %v10447
        %v10449 = vsel %vm10446, %v10448, %v10444
        %v10450 = vmul.f32 1.0, %v10449
        %v10451 = vrcp.pop %v10209
        %v10452 = vmul.f32 %v10209, %v10451
        %v10453 = vsub.f32 1.0, %v10452
        %v10454 = vmul.f32 %v10451, %v10453
        %v10455 = vadd.f32 %v10451, %v10454
        %vm10456 = vweird.f32 %v10209
        %vm10457 = vweird.f32 %v10451
        %vm10458 = vmor %vm10456, %vm10457
        %v10459 = vsel %vm10458, %v10451, %v10455
        %v10460 = vand.u32 2147483647, %v10209
        %vm10461 = vcmp.eq.f32.partialorder %v10460, 8.507059e+37
        %v10462 = vand.u32 %v10209, 2147483648
        %v10463 = vor.u32 1.1754944e-38, %v10462
        %v10464 = vsel %vm10461, %v10463, %v10459
        %v10465 = vmul.f32 1.0, %v10464
        %v10466 = vrcp.pop %v10210
        %v10467 = vmul.f32 %v10210, %v10466
        %v10468 = vsub.f32 1.0, %v10467
        %v10469 = vmul.f32 %v10466, %v10468
        %v10470 = vadd.f32 %v10466, %v10469
        %vm10471 = vweird.f32 %v10210
        %vm10472 = vweird.f32 %v10466
        %vm10473 = vmor %vm10471, %vm10472
        %v10474 = vsel %vm10473, %v10466, %v10470
        %v10475 = vand.u32 2147483647, %v10210
        %vm10476 = vcmp.eq.f32.partialorder %v10475, 8.507059e+37
        %v10477 = vand.u32 %v10210, 2147483648
        %v10478 = vor.u32 1.1754944e-38, %v10477
        %v10479 = vsel %vm10476, %v10478, %v10474
        %v10480 = vmul.f32 1.0, %v10479
        %v10481 = vrcp.pop %v10211
        %v10482 = vmul.f32 %v10211, %v10481
        %v10483 = vsub.f32 1.0, %v10482
        %v10484 = vmul.f32 %v10481, %v10483
        %v10485 = vadd.f32 %v10481, %v10484
        %vm10486 = vweird.f32 %v10211
        %vm10487 = vweird.f32 %v10481
        %vm10488 = vmor %vm10486, %vm10487
        %v10489 = vsel %vm10488, %v10481, %v10485
        %v10490 = vand.u32 2147483647, %v10211
        %vm10491 = vcmp.eq.f32.partialorder %v10490, 8.507059e+37
        %v10492 = vand.u32 %v10211, 2147483648
        %v10493 = vor.u32 1.1754944e-38, %v10492
        %v10494 = vsel %vm10491, %v10493, %v10489
        %v10495 = vmul.f32 1.0, %v10494
        %v10496 = vrcp.pop %v10212
        %v10497 = vmul.f32 %v10212, %v10496
        %v10498 = vsub.f32 1.0, %v10497
        %v10499 = vmul.f32 %v10496, %v10498
        %v10500 = vadd.f32 %v10496, %v10499
        %vm10501 = vweird.f32 %v10212
        %vm10502 = vweird.f32 %v10496
        %vm10503 = vmor %vm10501, %vm10502
        %v10504 = vsel %vm10503, %v10496, %v10500
        %v10505 = vand.u32 2147483647, %v10212
        %vm10506 = vcmp.eq.f32.partialorder %v10505, 8.507059e+37
        %v10507 = vand.u32 %v10212, 2147483648
        %v10508 = vor.u32 1.1754944e-38, %v10507
        %v10509 = vsel %vm10506, %v10508, %v10504
        %v10510 = vmul.f32 1.0, %v10509
        %v10511 = vrcp.pop %v10213
        %v10512 = vmul.f32 %v10213, %v10511
        %v10513 = vsub.f32 1.0, %v10512
        %v10514 = vmul.f32 %v10511, %v10513
        %v10515 = vadd.f32 %v10511, %v10514
        %vm10516 = vweird.f32 %v10213
        %vm10517 = vweird.f32 %v10511
        %vm10518 = vmor %vm10516, %vm10517
        %v10519 = vsel %vm10518, %v10511, %v10515
        %v10520 = vand.u32 2147483647, %v10213
        %vm10521 = vcmp.eq.f32.partialorder %v10520, 8.507059e+37
        %v10522 = vand.u32 %v10213, 2147483648
        %v10523 = vor.u32 1.1754944e-38, %v10522
        %v10524 = vsel %vm10521, %v10523, %v10519
        %v10525 = vmul.f32 1.0, %v10524
        %v10526 = vrcp.pop %v10214
        %v10527 = vmul.f32 %v10214, %v10526
        %v10528 = vsub.f32 1.0, %v10527
        %v10529 = vmul.f32 %v10526, %v10528
        %v10530 = vadd.f32 %v10526, %v10529
        %vm10531 = vweird.f32 %v10214
        %vm10532 = vweird.f32 %v10526
        %vm10533 = vmor %vm10531, %vm10532
        %v10534 = vsel %vm10533, %v10526, %v10530
        %v10535 = vand.u32 2147483647, %v10214
        %vm10536 = vcmp.eq.f32.partialorder %v10535, 8.507059e+37
        %v10537 = vand.u32 %v10214, 2147483648
        %v10538 = vor.u32 1.1754944e-38, %v10537
        %v10539 = vsel %vm10536, %v10538, %v10534
        %v10540 = vmul.f32 1.0, %v10539
        %v10541 = vrcp.pop %v10215
        %v10542 = vmul.f32 %v10215, %v10541
        %v10543 = vsub.f32 1.0, %v10542
        %v10544 = vmul.f32 %v10541, %v10543
        %v10545 = vadd.f32 %v10541, %v10544
        %vm10546 = vweird.f32 %v10215
        %vm10547 = vweird.f32 %v10541
        %vm10548 = vmor %vm10546, %vm10547
        %v10549 = vsel %vm10548, %v10541, %v10545
        %v10550 = vand.u32 2147483647, %v10215
        %vm10551 = vcmp.eq.f32.partialorder %v10550, 8.507059e+37
        %v10552 = vand.u32 %v10215, 2147483648
        %v10553 = vor.u32 1.1754944e-38, %v10552
        %v10554 = vsel %vm10551, %v10553, %v10549
        %v10555 = vmul.f32 1.0, %v10554
        %v10556 = vrcp.pop %v10216
        %v10557 = vmul.f32 %v10216, %v10556
        %v10558 = vsub.f32 1.0, %v10557
        %v10559 = vmul.f32 %v10556, %v10558
        %v10560 = vadd.f32 %v10556, %v10559
        %vm10561 = vweird.f32 %v10216
        %vm10562 = vweird.f32 %v10556
        %vm10563 = vmor %vm10561, %vm10562
        %v10564 = vsel %vm10563, %v10556, %v10560
        %v10565 = vand.u32 2147483647, %v10216
        %vm10566 = vcmp.eq.f32.partialorder %v10565, 8.507059e+37
        %v10567 = vand.u32 %v10216, 2147483648
        %v10568 = vor.u32 1.1754944e-38, %v10567
        %v10569 = vsel %vm10566, %v10568, %v10564
        %v10570 = vmul.f32 1.0, %v10569
        %v10571 = vrcp.pop %v10217
        %v10572 = vmul.f32 %v10217, %v10571
        %v10573 = vsub.f32 1.0, %v10572
        %v10574 = vmul.f32 %v10571, %v10573
        %v10575 = vadd.f32 %v10571, %v10574
        %vm10576 = vweird.f32 %v10217
        %vm10577 = vweird.f32 %v10571
        %vm10578 = vmor %vm10576, %vm10577
        %v10579 = vsel %vm10578, %v10571, %v10575
        %v10580 = vand.u32 2147483647, %v10217
        %vm10581 = vcmp.eq.f32.partialorder %v10580, 8.507059e+37
        %v10582 = vand.u32 %v10217, 2147483648
        %v10583 = vor.u32 1.1754944e-38, %v10582
        %v10584 = vsel %vm10581, %v10583, %v10579
        %v10585 = vmul.f32 1.0, %v10584
        %v10586 = vrcp.pop %v10218
        %v10587 = vmul.f32 %v10218, %v10586
        %v10588 = vsub.f32 1.0, %v10587
        %v10589 = vmul.f32 %v10586, %v10588
        %v10590 = vadd.f32 %v10586, %v10589
        %vm10591 = vweird.f32 %v10218
        %vm10592 = vweird.f32 %v10586
        %vm10593 = vmor %vm10591, %vm10592
        %v10594 = vsel %vm10593, %v10586, %v10590
        %v10595 = vand.u32 2147483647, %v10218
        %vm10596 = vcmp.eq.f32.partialorder %v10595, 8.507059e+37
        %v10597 = vand.u32 %v10218, 2147483648
        %v10598 = vor.u32 1.1754944e-38, %v10597
        %v10599 = vsel %vm10596, %v10598, %v10594
        %v10600 = vmul.f32 1.0, %v10599
        %v10601 = vrcp.pop %v10219
        %v10602 = vmul.f32 %v10219, %v10601
        %v10603 = vsub.f32 1.0, %v10602
        %v10604 = vmul.f32 %v10601, %v10603
        %v10605 = vadd.f32 %v10601, %v10604
        %vm10606 = vweird.f32 %v10219
        %vm10607 = vweird.f32 %v10601
        %vm10608 = vmor %vm10606, %vm10607
        %v10609 = vsel %vm10608, %v10601, %v10605
        %v10610 = vand.u32 2147483647, %v10219
        %vm10611 = vcmp.eq.f32.partialorder %v10610, 8.507059e+37
        %v10612 = vand.u32 %v10219, 2147483648
        %v10613 = vor.u32 1.1754944e-38, %v10612
        %v10614 = vsel %vm10611, %v10613, %v10609
        %v10615 = vmul.f32 1.0, %v10614
        %v10616 = vrcp.pop %v10220
        %v10617 = vmul.f32 %v10220, %v10616
        %v10618 = vsub.f32 1.0, %v10617
        %v10619 = vmul.f32 %v10616, %v10618
        %v10620 = vadd.f32 %v10616, %v10619
        %vm10621 = vweird.f32 %v10220
        %vm10622 = vweird.f32 %v10616
        %vm10623 = vmor %vm10621, %vm10622
        %v10624 = vsel %vm10623, %v10616, %v10620
        %v10625 = vand.u32 2147483647, %v10220
        %vm10626 = vcmp.eq.f32.partialorder %v10625, 8.507059e+37
        %v10627 = vand.u32 %v10220, 2147483648
        %v10628 = vor.u32 1.1754944e-38, %v10627
        %v10629 = vsel %vm10626, %v10628, %v10624
        %v10630 = vmul.f32 1.0, %v10629
        %v10631 = vrcp.pop %v10221
        %v10632 = vmul.f32 %v10221, %v10631
        %v10633 = vsub.f32 1.0, %v10632
        %v10634 = vmul.f32 %v10631, %v10633
        %v10635 = vadd.f32 %v10631, %v10634
        %vm10636 = vweird.f32 %v10221
        %vm10637 = vweird.f32 %v10631
        %vm10638 = vmor %vm10636, %vm10637
        %v10639 = vsel %vm10638, %v10631, %v10635
        %v10640 = vand.u32 2147483647, %v10221
        %vm10641 = vcmp.eq.f32.partialorder %v10640, 8.507059e+37
        %v10642 = vand.u32 %v10221, 2147483648
        %v10643 = vor.u32 1.1754944e-38, %v10642
        %v10644 = vsel %vm10641, %v10643, %v10639
        %v10645 = vmul.f32 1.0, %v10644
        %v10646 = vrcp.pop %v10222
        %v10647 = vmul.f32 %v10222, %v10646
        %v10648 = vsub.f32 1.0, %v10647
        %v10649 = vmul.f32 %v10646, %v10648
        %v10650 = vadd.f32 %v10646, %v10649
        %vm10651 = vweird.f32 %v10222
        %vm10652 = vweird.f32 %v10646
        %vm10653 = vmor %vm10651, %vm10652
        %v10654 = vsel %vm10653, %v10646, %v10650
        %v10655 = vand.u32 2147483647, %v10222
        %vm10656 = vcmp.eq.f32.partialorder %v10655, 8.507059e+37
        %v10657 = vand.u32 %v10222, 2147483648
        %v10658 = vor.u32 1.1754944e-38, %v10657
        %v10659 = vsel %vm10656, %v10658, %v10654
        %v10660 = vmul.f32 1.0, %v10659
        %v10661 = vrcp.pop %v10223
        %v10662 = vmul.f32 %v10223, %v10661
        %v10663 = vsub.f32 1.0, %v10662
        %v10664 = vmul.f32 %v10661, %v10663
        %v10665 = vadd.f32 %v10661, %v10664
        %vm10666 = vweird.f32 %v10223
        %vm10667 = vweird.f32 %v10661
        %vm10668 = vmor %vm10666, %vm10667
        %v10669 = vsel %vm10668, %v10661, %v10665
        %v10670 = vand.u32 2147483647, %v10223
        %vm10671 = vcmp.eq.f32.partialorder %v10670, 8.507059e+37
        %v10672 = vand.u32 %v10223, 2147483648
        %v10673 = vor.u32 1.1754944e-38, %v10672
        %v10674 = vsel %vm10671, %v10673, %v10669
        %v10675 = vmul.f32 1.0, %v10674
        %v10676 = vrcp.pop %v10224
        %v10677 = vmul.f32 %v10224, %v10676
        %v10678 = vsub.f32 1.0, %v10677
        %v10679 = vmul.f32 %v10676, %v10678
        %v10680 = vadd.f32 %v10676, %v10679
        %vm10681 = vweird.f32 %v10224
        %vm10682 = vweird.f32 %v10676
        %vm10683 = vmor %vm10681, %vm10682
        %v10684 = vsel %vm10683, %v10676, %v10680
        %v10685 = vand.u32 2147483647, %v10224
        %vm10686 = vcmp.eq.f32.partialorder %v10685, 8.507059e+37
        %v10687 = vand.u32 %v10224, 2147483648
        %v10688 = vor.u32 1.1754944e-38, %v10687
        %v10689 = vsel %vm10686, %v10688, %v10684
        %v10690 = vmul.f32 1.0, %v10689
        %v10691 = vrcp.pop %v10225
        %v10692 = vmul.f32 %v10225, %v10691
        %v10693 = vsub.f32 1.0, %v10692
        %v10694 = vmul.f32 %v10691, %v10693
        %v10695 = vadd.f32 %v10691, %v10694
        %vm10696 = vweird.f32 %v10225
        %vm10697 = vweird.f32 %v10691
        %vm10698 = vmor %vm10696, %vm10697
        %v10699 = vsel %vm10698, %v10691, %v10695
        %v10700 = vand.u32 2147483647, %v10225
        %vm10701 = vcmp.eq.f32.partialorder %v10700, 8.507059e+37
        %v10702 = vand.u32 %v10225, 2147483648
        %v10703 = vor.u32 1.1754944e-38, %v10702
        %v10704 = vsel %vm10701, %v10703, %v10699
        %v10705 = vmul.f32 1.0, %v10704
        %10738 = vrot.lane.b32.xlu0 %v9458, 96
        %v10739 = vpop.permute.xlu0 %10738
        %10740 = vrot.lane.b32.xlu0 %v9459, 96
        %v10741 = vpop.permute.xlu0 %10740
        %10742 = vrot.lane.b32.xlu0 %v9460, 96
        %v10743 = vpop.permute.xlu0 %10742
        %10744 = vrot.lane.b32.xlu0 %v9461, 96
        %v10745 = vpop.permute.xlu0 %10744
        %10746 = vrot.lane.b32.xlu0 %v9462, 96
        %v10747 = vpop.permute.xlu0 %10746
        %10748 = vrot.lane.b32.xlu0 %v9463, 96
        %v10749 = vpop.permute.xlu0 %10748
        %10750 = vrot.lane.b32.xlu0 %v9464, 96
        %v10751 = vpop.permute.xlu0 %10750
        %10752 = vrot.lane.b32.xlu0 %v9465, 96
        %v10753 = vpop.permute.xlu0 %10752
        %10754 = vrot.lane.b32.xlu0 %v9466, 96
        %v10755 = vpop.permute.xlu0 %10754
        %10756 = vrot.lane.b32.xlu0 %v9467, 96
        %v10757 = vpop.permute.xlu0 %10756
        %10758 = vrot.lane.b32.xlu0 %v9468, 96
        %v10759 = vpop.permute.xlu0 %10758
        %10760 = vrot.lane.b32.xlu0 %v9469, 96
        %v10761 = vpop.permute.xlu0 %10760
        %10762 = vrot.lane.b32.xlu0 %v9470, 96
        %v10763 = vpop.permute.xlu0 %10762
        %10764 = vrot.lane.b32.xlu0 %v9471, 96
        %v10765 = vpop.permute.xlu0 %10764
        %10766 = vrot.lane.b32.xlu0 %v9472, 96
        %v10767 = vpop.permute.xlu0 %10766
        %10768 = vrot.lane.b32.xlu0 %v9473, 96
        %v10769 = vpop.permute.xlu0 %10768
        %10770 = vrot.lane.b32.xlu0 %v9474, 96
        %v10771 = vpop.permute.xlu0 %10770
        %10772 = vrot.lane.b32.xlu0 %v9475, 96
        %v10773 = vpop.permute.xlu0 %10772
        %10774 = vrot.lane.b32.xlu0 %v9476, 96
        %v10775 = vpop.permute.xlu0 %10774
        %10776 = vrot.lane.b32.xlu0 %v9477, 96
        %v10777 = vpop.permute.xlu0 %10776
        %10778 = vrot.lane.b32.xlu0 %v9478, 96
        %v10779 = vpop.permute.xlu0 %10778
        %10780 = vrot.lane.b32.xlu0 %v9479, 96
        %v10781 = vpop.permute.xlu0 %10780
        %10782 = vrot.lane.b32.xlu0 %v9480, 96
        %v10783 = vpop.permute.xlu0 %10782
        %10784 = vrot.lane.b32.xlu0 %v9481, 96
        %v10785 = vpop.permute.xlu0 %10784
        %10786 = vrot.lane.b32.xlu0 %v9482, 96
        %v10787 = vpop.permute.xlu0 %10786
        %10788 = vrot.lane.b32.xlu0 %v9483, 96
        %v10789 = vpop.permute.xlu0 %10788
        %10790 = vrot.lane.b32.xlu0 %v9484, 96
        %v10791 = vpop.permute.xlu0 %10790
        %10792 = vrot.lane.b32.xlu0 %v9485, 96
        %v10793 = vpop.permute.xlu0 %10792
        %10794 = vrot.lane.b32.xlu0 %v9486, 96
        %v10795 = vpop.permute.xlu0 %10794
        %10796 = vrot.lane.b32.xlu0 %v9487, 96
        %v10797 = vpop.permute.xlu0 %10796
        %10798 = vrot.lane.b32.xlu0 %v9488, 96
        %v10799 = vpop.permute.xlu0 %10798
        %10800 = vrot.lane.b32.xlu0 %v9489, 96
        %v10801 = vpop.permute.xlu0 %10800
        %v10834 = vmul.f32 %v9632, %v10739
        %v10835 = vmul.f32 %v9647, %v10741
        %v10836 = vmul.f32 %v9662, %v10743
        %v10837 = vmul.f32 %v9677, %v10745
        %v10838 = vmul.f32 %v9692, %v10747
        %v10839 = vmul.f32 %v9707, %v10749
        %v10840 = vmul.f32 %v9722, %v10751
        %v10841 = vmul.f32 %v9737, %v10753
        %v10842 = vmul.f32 %v9752, %v10755
        %v10843 = vmul.f32 %v9767, %v10757
        %v10844 = vmul.f32 %v9782, %v10759
        %v10845 = vmul.f32 %v9797, %v10761
        %v10846 = vmul.f32 %v9812, %v10763
        %v10847 = vmul.f32 %v9827, %v10765
        %v10848 = vmul.f32 %v9842, %v10767
        %v10849 = vmul.f32 %v9857, %v10769
        %v10850 = vmul.f32 %v9872, %v10771
        %v10851 = vmul.f32 %v9887, %v10773
        %v10852 = vmul.f32 %v9902, %v10775
        %v10853 = vmul.f32 %v9917, %v10777
        %v10854 = vmul.f32 %v9932, %v10779
        %v10855 = vmul.f32 %v9947, %v10781
        %v10856 = vmul.f32 %v9962, %v10783
        %v10857 = vmul.f32 %v9977, %v10785
        %v10858 = vmul.f32 %v9992, %v10787
        %v10859 = vmul.f32 %v10007, %v10789
        %v10860 = vmul.f32 %v10022, %v10791
        %v10861 = vmul.f32 %v10037, %v10793
        %v10862 = vmul.f32 %v10052, %v10795
        %v10863 = vmul.f32 %v10067, %v10797
        %v10864 = vmul.f32 %v10082, %v10799
        %v10865 = vmul.f32 %v10097, %v10801
        %v10866 = vsub.f32 1.0, %v9632
        %v10867 = vsub.f32 1.0, %v9647
        %v10868 = vsub.f32 1.0, %v9662
        %v10869 = vsub.f32 1.0, %v9677
        %v10870 = vsub.f32 1.0, %v9692
        %v10871 = vsub.f32 1.0, %v9707
        %v10872 = vsub.f32 1.0, %v9722
        %v10873 = vsub.f32 1.0, %v9737
        %v10874 = vsub.f32 1.0, %v9752
        %v10875 = vsub.f32 1.0, %v9767
        %v10876 = vsub.f32 1.0, %v9782
        %v10877 = vsub.f32 1.0, %v9797
        %v10878 = vsub.f32 1.0, %v9812
        %v10879 = vsub.f32 1.0, %v9827
        %v10880 = vsub.f32 1.0, %v9842
        %v10881 = vsub.f32 1.0, %v9857
        %v10882 = vsub.f32 1.0, %v9872
        %v10883 = vsub.f32 1.0, %v9887
        %v10884 = vsub.f32 1.0, %v9902
        %v10885 = vsub.f32 1.0, %v9917
        %v10886 = vsub.f32 1.0, %v9932
        %v10887 = vsub.f32 1.0, %v9947
        %v10888 = vsub.f32 1.0, %v9962
        %v10889 = vsub.f32 1.0, %v9977
        %v10890 = vsub.f32 1.0, %v9992
        %v10891 = vsub.f32 1.0, %v10007
        %v10892 = vsub.f32 1.0, %v10022
        %v10893 = vsub.f32 1.0, %v10037
        %v10894 = vsub.f32 1.0, %v10052
        %v10895 = vsub.f32 1.0, %v10067
        %v10896 = vsub.f32 1.0, %v10082
        %v10897 = vsub.f32 1.0, %v10097
        %10930 = vrot.lane.b32.xlu0 %v3678, 64
        %v10931 = vpop.permute.xlu0 %10930
        %10932 = vrot.lane.b32.xlu0 %v3679, 64
        %v10933 = vpop.permute.xlu0 %10932
        %10934 = vrot.lane.b32.xlu0 %v3680, 64
        %v10935 = vpop.permute.xlu0 %10934
        %10936 = vrot.lane.b32.xlu0 %v3681, 64
        %v10937 = vpop.permute.xlu0 %10936
        %10938 = vrot.lane.b32.xlu0 %v3682, 64
        %v10939 = vpop.permute.xlu0 %10938
        %10940 = vrot.lane.b32.xlu0 %v3683, 64
        %v10941 = vpop.permute.xlu0 %10940
        %10942 = vrot.lane.b32.xlu0 %v3684, 64
        %v10943 = vpop.permute.xlu0 %10942
        %10944 = vrot.lane.b32.xlu0 %v3685, 64
        %v10945 = vpop.permute.xlu0 %10944
        %10946 = vrot.lane.b32.xlu0 %v3686, 64
        %v10947 = vpop.permute.xlu0 %10946
        %10948 = vrot.lane.b32.xlu0 %v3687, 64
        %v10949 = vpop.permute.xlu0 %10948
        %10950 = vrot.lane.b32.xlu0 %v3688, 64
        %v10951 = vpop.permute.xlu0 %10950
        %10952 = vrot.lane.b32.xlu0 %v3689, 64
        %v10953 = vpop.permute.xlu0 %10952
        %10954 = vrot.lane.b32.xlu0 %v3690, 64
        %v10955 = vpop.permute.xlu0 %10954
        %10956 = vrot.lane.b32.xlu0 %v3691, 64
        %v10957 = vpop.permute.xlu0 %10956
        %10958 = vrot.lane.b32.xlu0 %v3692, 64
        %v10959 = vpop.permute.xlu0 %10958
        %10960 = vrot.lane.b32.xlu0 %v3693, 64
        %v10961 = vpop.permute.xlu0 %10960
        %10962 = vrot.lane.b32.xlu0 %v3694, 64
        %v10963 = vpop.permute.xlu0 %10962
        %10964 = vrot.lane.b32.xlu0 %v3695, 64
        %v10965 = vpop.permute.xlu0 %10964
        %10966 = vrot.lane.b32.xlu0 %v3696, 64
        %v10967 = vpop.permute.xlu0 %10966
        %10968 = vrot.lane.b32.xlu0 %v3697, 64
        %v10969 = vpop.permute.xlu0 %10968
        %10970 = vrot.lane.b32.xlu0 %v3698, 64
        %v10971 = vpop.permute.xlu0 %10970
        %10972 = vrot.lane.b32.xlu0 %v3699, 64
        %v10973 = vpop.permute.xlu0 %10972
        %10974 = vrot.lane.b32.xlu0 %v3700, 64
        %v10975 = vpop.permute.xlu0 %10974
        %10976 = vrot.lane.b32.xlu0 %v3701, 64
        %v10977 = vpop.permute.xlu0 %10976
        %10978 = vrot.lane.b32.xlu0 %v3702, 64
        %v10979 = vpop.permute.xlu0 %10978
        %10980 = vrot.lane.b32.xlu0 %v3703, 64
        %v10981 = vpop.permute.xlu0 %10980
        %10982 = vrot.lane.b32.xlu0 %v3704, 64
        %v10983 = vpop.permute.xlu0 %10982
        %10984 = vrot.lane.b32.xlu0 %v3705, 64
        %v10985 = vpop.permute.xlu0 %10984
        %10986 = vrot.lane.b32.xlu0 %v3706, 64
        %v10987 = vpop.permute.xlu0 %10986
        %10988 = vrot.lane.b32.xlu0 %v3707, 64
        %v10989 = vpop.permute.xlu0 %10988
        %10990 = vrot.lane.b32.xlu0 %v3708, 64
        %v10991 = vpop.permute.xlu0 %10990
        %10992 = vrot.lane.b32.xlu0 %v3709, 64
        %v10993 = vpop.permute.xlu0 %10992
        %v11026 = vmul.f32 %v10866, %v10931
        %v11027 = vmul.f32 %v10867, %v10933
        %v11028 = vmul.f32 %v10868, %v10935
        %v11029 = vmul.f32 %v10869, %v10937
        %v11030 = vmul.f32 %v10870, %v10939
        %v11031 = vmul.f32 %v10871, %v10941
        %v11032 = vmul.f32 %v10872, %v10943
        %v11033 = vmul.f32 %v10873, %v10945
        %v11034 = vmul.f32 %v10874, %v10947
        %v11035 = vmul.f32 %v10875, %v10949
        %v11036 = vmul.f32 %v10876, %v10951
        %v11037 = vmul.f32 %v10877, %v10953
        %v11038 = vmul.f32 %v10878, %v10955
        %v11039 = vmul.f32 %v10879, %v10957
        %v11040 = vmul.f32 %v10880, %v10959
        %v11041 = vmul.f32 %v10881, %v10961
        %v11042 = vmul.f32 %v10882, %v10963
        %v11043 = vmul.f32 %v10883, %v10965
        %v11044 = vmul.f32 %v10884, %v10967
        %v11045 = vmul.f32 %v10885, %v10969
        %v11046 = vmul.f32 %v10886, %v10971
        %v11047 = vmul.f32 %v10887, %v10973
        %v11048 = vmul.f32 %v10888, %v10975
        %v11049 = vmul.f32 %v10889, %v10977
        %v11050 = vmul.f32 %v10890, %v10979
        %v11051 = vmul.f32 %v10891, %v10981
        %v11052 = vmul.f32 %v10892, %v10983
        %v11053 = vmul.f32 %v10893, %v10985
        %v11054 = vmul.f32 %v10894, %v10987
        %v11055 = vmul.f32 %v10895, %v10989
        %v11056 = vmul.f32 %v10896, %v10991
        %v11057 = vmul.f32 %v10897, %v10993
        %v11058 = vadd.f32 %v10834, %v11026
        %v11059 = vadd.f32 %v10835, %v11027
        %v11060 = vadd.f32 %v10836, %v11028
        %v11061 = vadd.f32 %v10837, %v11029
        %v11062 = vadd.f32 %v10838, %v11030
        %v11063 = vadd.f32 %v10839, %v11031
        %v11064 = vadd.f32 %v10840, %v11032
        %v11065 = vadd.f32 %v10841, %v11033
        %v11066 = vadd.f32 %v10842, %v11034
        %v11067 = vadd.f32 %v10843, %v11035
        %v11068 = vadd.f32 %v10844, %v11036
        %v11069 = vadd.f32 %v10845, %v11037
        %v11070 = vadd.f32 %v10846, %v11038
        %v11071 = vadd.f32 %v10847, %v11039
        %v11072 = vadd.f32 %v10848, %v11040
        %v11073 = vadd.f32 %v10849, %v11041
        %v11074 = vadd.f32 %v10850, %v11042
        %v11075 = vadd.f32 %v10851, %v11043
        %v11076 = vadd.f32 %v10852, %v11044
        %v11077 = vadd.f32 %v10853, %v11045
        %v11078 = vadd.f32 %v10854, %v11046
        %v11079 = vadd.f32 %v10855, %v11047
        %v11080 = vadd.f32 %v10856, %v11048
        %v11081 = vadd.f32 %v10857, %v11049
        %v11082 = vadd.f32 %v10858, %v11050
        %v11083 = vadd.f32 %v10859, %v11051
        %v11084 = vadd.f32 %v10860, %v11052
        %v11085 = vadd.f32 %v10861, %v11053
        %v11086 = vadd.f32 %v10862, %v11054
        %v11087 = vadd.f32 %v10863, %v11055
        %v11088 = vadd.f32 %v10864, %v11056
        %v11089 = vadd.f32 %v10865, %v11057
        %v11090 = vmul.f32 %v10240, %v10931
        %v11091 = vmul.f32 %v10255, %v10933
        %v11092 = vmul.f32 %v10270, %v10935
        %v11093 = vmul.f32 %v10285, %v10937
        %v11094 = vmul.f32 %v10300, %v10939
        %v11095 = vmul.f32 %v10315, %v10941
        %v11096 = vmul.f32 %v10330, %v10943
        %v11097 = vmul.f32 %v10345, %v10945
        %v11098 = vmul.f32 %v10360, %v10947
        %v11099 = vmul.f32 %v10375, %v10949
        %v11100 = vmul.f32 %v10390, %v10951
        %v11101 = vmul.f32 %v10405, %v10953
        %v11102 = vmul.f32 %v10420, %v10955
        %v11103 = vmul.f32 %v10435, %v10957
        %v11104 = vmul.f32 %v10450, %v10959
        %v11105 = vmul.f32 %v10465, %v10961
        %v11106 = vmul.f32 %v10480, %v10963
        %v11107 = vmul.f32 %v10495, %v10965
        %v11108 = vmul.f32 %v10510, %v10967
        %v11109 = vmul.f32 %v10525, %v10969
        %v11110 = vmul.f32 %v10540, %v10971
        %v11111 = vmul.f32 %v10555, %v10973
        %v11112 = vmul.f32 %v10570, %v10975
        %v11113 = vmul.f32 %v10585, %v10977
        %v11114 = vmul.f32 %v10600, %v10979
        %v11115 = vmul.f32 %v10615, %v10981
        %v11116 = vmul.f32 %v10630, %v10983
        %v11117 = vmul.f32 %v10645, %v10985
        %v11118 = vmul.f32 %v10660, %v10987
        %v11119 = vmul.f32 %v10675, %v10989
        %v11120 = vmul.f32 %v10690, %v10991
        %v11121 = vmul.f32 %v10705, %v10993
        %v11122 = vsub.f32 1.0, %v10240
        %v11123 = vsub.f32 1.0, %v10255
        %v11124 = vsub.f32 1.0, %v10270
        %v11125 = vsub.f32 1.0, %v10285
        %v11126 = vsub.f32 1.0, %v10300
        %v11127 = vsub.f32 1.0, %v10315
        %v11128 = vsub.f32 1.0, %v10330
        %v11129 = vsub.f32 1.0, %v10345
        %v11130 = vsub.f32 1.0, %v10360
        %v11131 = vsub.f32 1.0, %v10375
        %v11132 = vsub.f32 1.0, %v10390
        %v11133 = vsub.f32 1.0, %v10405
        %v11134 = vsub.f32 1.0, %v10420
        %v11135 = vsub.f32 1.0, %v10435
        %v11136 = vsub.f32 1.0, %v10450
        %v11137 = vsub.f32 1.0, %v10465
        %v11138 = vsub.f32 1.0, %v10480
        %v11139 = vsub.f32 1.0, %v10495
        %v11140 = vsub.f32 1.0, %v10510
        %v11141 = vsub.f32 1.0, %v10525
        %v11142 = vsub.f32 1.0, %v10540
        %v11143 = vsub.f32 1.0, %v10555
        %v11144 = vsub.f32 1.0, %v10570
        %v11145 = vsub.f32 1.0, %v10585
        %v11146 = vsub.f32 1.0, %v10600
        %v11147 = vsub.f32 1.0, %v10615
        %v11148 = vsub.f32 1.0, %v10630
        %v11149 = vsub.f32 1.0, %v10645
        %v11150 = vsub.f32 1.0, %v10660
        %v11151 = vsub.f32 1.0, %v10675
        %v11152 = vsub.f32 1.0, %v10690
        %v11153 = vsub.f32 1.0, %v10705
        %v11154 = vmul.f32 %v11122, %v10739
        %v11155 = vmul.f32 %v11123, %v10741
        %v11156 = vmul.f32 %v11124, %v10743
        %v11157 = vmul.f32 %v11125, %v10745
        %v11158 = vmul.f32 %v11126, %v10747
        %v11159 = vmul.f32 %v11127, %v10749
        %v11160 = vmul.f32 %v11128, %v10751
        %v11161 = vmul.f32 %v11129, %v10753
        %v11162 = vmul.f32 %v11130, %v10755
        %v11163 = vmul.f32 %v11131, %v10757
        %v11164 = vmul.f32 %v11132, %v10759
        %v11165 = vmul.f32 %v11133, %v10761
        %v11166 = vmul.f32 %v11134, %v10763
        %v11167 = vmul.f32 %v11135, %v10765
        %v11168 = vmul.f32 %v11136, %v10767
        %v11169 = vmul.f32 %v11137, %v10769
        %v11170 = vmul.f32 %v11138, %v10771
        %v11171 = vmul.f32 %v11139, %v10773
        %v11172 = vmul.f32 %v11140, %v10775
        %v11173 = vmul.f32 %v11141, %v10777
        %v11174 = vmul.f32 %v11142, %v10779
        %v11175 = vmul.f32 %v11143, %v10781
        %v11176 = vmul.f32 %v11144, %v10783
        %v11177 = vmul.f32 %v11145, %v10785
        %v11178 = vmul.f32 %v11146, %v10787
        %v11179 = vmul.f32 %v11147, %v10789
        %v11180 = vmul.f32 %v11148, %v10791
        %v11181 = vmul.f32 %v11149, %v10793
        %v11182 = vmul.f32 %v11150, %v10795
        %v11183 = vmul.f32 %v11151, %v10797
        %v11184 = vmul.f32 %v11152, %v10799
        %v11185 = vmul.f32 %v11153, %v10801
        %v11186 = vadd.f32 %v11090, %v11154
        %v11187 = vadd.f32 %v11091, %v11155
        %v11188 = vadd.f32 %v11092, %v11156
        %v11189 = vadd.f32 %v11093, %v11157
        %v11190 = vadd.f32 %v11094, %v11158
        %v11191 = vadd.f32 %v11095, %v11159
        %v11192 = vadd.f32 %v11096, %v11160
        %v11193 = vadd.f32 %v11097, %v11161
        %v11194 = vadd.f32 %v11098, %v11162
        %v11195 = vadd.f32 %v11099, %v11163
        %v11196 = vadd.f32 %v11100, %v11164
        %v11197 = vadd.f32 %v11101, %v11165
        %v11198 = vadd.f32 %v11102, %v11166
        %v11199 = vadd.f32 %v11103, %v11167
        %v11200 = vadd.f32 %v11104, %v11168
        %v11201 = vadd.f32 %v11105, %v11169
        %v11202 = vadd.f32 %v11106, %v11170
        %v11203 = vadd.f32 %v11107, %v11171
        %v11204 = vadd.f32 %v11108, %v11172
        %v11205 = vadd.f32 %v11109, %v11173
        %v11206 = vadd.f32 %v11110, %v11174
        %v11207 = vadd.f32 %v11111, %v11175
        %v11208 = vadd.f32 %v11112, %v11176
        %v11209 = vadd.f32 %v11113, %v11177
        %v11210 = vadd.f32 %v11114, %v11178
        %v11211 = vadd.f32 %v11115, %v11179
        %v11212 = vadd.f32 %v11116, %v11180
        %v11213 = vadd.f32 %v11117, %v11181
        %v11214 = vadd.f32 %v11118, %v11182
        %v11215 = vadd.f32 %v11119, %v11183
        %v11216 = vadd.f32 %v11120, %v11184
        %v11217 = vadd.f32 %v11121, %v11185
        %11218 = vrot.lane.b32.xlu0 %v673, 32
        %v11219 = vpop.permute.xlu0 %11218
        %11220 = vrot.lane.b32.xlu0 %v674, 32
        %v11221 = vpop.permute.xlu0 %11220
        %11222 = vrot.lane.b32.xlu0 %v675, 32
        %v11223 = vpop.permute.xlu0 %11222
        %11224 = vrot.lane.b32.xlu0 %v676, 32
        %v11225 = vpop.permute.xlu0 %11224
        %11226 = vrot.lane.b32.xlu0 %v677, 32
        %v11227 = vpop.permute.xlu0 %11226
        %11228 = vrot.lane.b32.xlu0 %v678, 32
        %v11229 = vpop.permute.xlu0 %11228
        %11230 = vrot.lane.b32.xlu0 %v679, 32
        %v11231 = vpop.permute.xlu0 %11230
        %11232 = vrot.lane.b32.xlu0 %v680, 32
        %v11233 = vpop.permute.xlu0 %11232
        %11234 = vrot.lane.b32.xlu0 %v681, 32
        %v11235 = vpop.permute.xlu0 %11234
        %11236 = vrot.lane.b32.xlu0 %v682, 32
        %v11237 = vpop.permute.xlu0 %11236
        %11238 = vrot.lane.b32.xlu0 %v683, 32
        %v11239 = vpop.permute.xlu0 %11238
        %11240 = vrot.lane.b32.xlu0 %v684, 32
        %v11241 = vpop.permute.xlu0 %11240
        %11242 = vrot.lane.b32.xlu0 %v685, 32
        %v11243 = vpop.permute.xlu0 %11242
        %11244 = vrot.lane.b32.xlu0 %v686, 32
        %v11245 = vpop.permute.xlu0 %11244
        %11246 = vrot.lane.b32.xlu0 %v687, 32
        %v11247 = vpop.permute.xlu0 %11246
        %11248 = vrot.lane.b32.xlu0 %v688, 32
        %v11249 = vpop.permute.xlu0 %11248
        %11250 = vrot.lane.b32.xlu0 %v689, 32
        %v11251 = vpop.permute.xlu0 %11250
        %11252 = vrot.lane.b32.xlu0 %v690, 32
        %v11253 = vpop.permute.xlu0 %11252
        %11254 = vrot.lane.b32.xlu0 %v691, 32
        %v11255 = vpop.permute.xlu0 %11254
        %11256 = vrot.lane.b32.xlu0 %v692, 32
        %v11257 = vpop.permute.xlu0 %11256
        %11258 = vrot.lane.b32.xlu0 %v693, 32
        %v11259 = vpop.permute.xlu0 %11258
        %11260 = vrot.lane.b32.xlu0 %v694, 32
        %v11261 = vpop.permute.xlu0 %11260
        %11262 = vrot.lane.b32.xlu0 %v695, 32
        %v11263 = vpop.permute.xlu0 %11262
        %11264 = vrot.lane.b32.xlu0 %v696, 32
        %v11265 = vpop.permute.xlu0 %11264
        %11266 = vrot.lane.b32.xlu0 %v697, 32
        %v11267 = vpop.permute.xlu0 %11266
        %11268 = vrot.lane.b32.xlu0 %v698, 32
        %v11269 = vpop.permute.xlu0 %11268
        %11270 = vrot.lane.b32.xlu0 %v699, 32
        %v11271 = vpop.permute.xlu0 %11270
        %11272 = vrot.lane.b32.xlu0 %v700, 32
        %v11273 = vpop.permute.xlu0 %11272
        %11274 = vrot.lane.b32.xlu0 %v701, 32
        %v11275 = vpop.permute.xlu0 %11274
        %11276 = vrot.lane.b32.xlu0 %v702, 32
        %v11277 = vpop.permute.xlu0 %11276
        %11278 = vrot.lane.b32.xlu0 %v703, 32
        %v11279 = vpop.permute.xlu0 %11278
        %11280 = vrot.lane.b32.xlu0 %v704, 32
        %v11281 = vpop.permute.xlu0 %11280
        %v11314 = vadd.f32 %v11186, %v11219
        %v11315 = vadd.f32 %v11187, %v11221
        %v11316 = vadd.f32 %v11188, %v11223
        %v11317 = vadd.f32 %v11189, %v11225
        %v11318 = vadd.f32 %v11190, %v11227
        %v11319 = vadd.f32 %v11191, %v11229
        %v11320 = vadd.f32 %v11192, %v11231
        %v11321 = vadd.f32 %v11193, %v11233
        %v11322 = vadd.f32 %v11194, %v11235
        %v11323 = vadd.f32 %v11195, %v11237
        %v11324 = vadd.f32 %v11196, %v11239
        %v11325 = vadd.f32 %v11197, %v11241
        %v11326 = vadd.f32 %v11198, %v11243
        %v11327 = vadd.f32 %v11199, %v11245
        %v11328 = vadd.f32 %v11200, %v11247
        %v11329 = vadd.f32 %v11201, %v11249
        %v11330 = vadd.f32 %v11202, %v11251
        %v11331 = vadd.f32 %v11203, %v11253
        %v11332 = vadd.f32 %v11204, %v11255
        %v11333 = vadd.f32 %v11205, %v11257
        %v11334 = vadd.f32 %v11206, %v11259
        %v11335 = vadd.f32 %v11207, %v11261
        %v11336 = vadd.f32 %v11208, %v11263
        %v11337 = vadd.f32 %v11209, %v11265
        %v11338 = vadd.f32 %v11210, %v11267
        %v11339 = vadd.f32 %v11211, %v11269
        %v11340 = vadd.f32 %v11212, %v11271
        %v11341 = vadd.f32 %v11213, %v11273
        %v11342 = vadd.f32 %v11214, %v11275
        %v11343 = vadd.f32 %v11215, %v11277
        %v11344 = vadd.f32 %v11216, %v11279
        %v11345 = vadd.f32 %v11217, %v11281
        %11346 = vst.msk [vmem:[%s644] sm:$0xff] %vm1750, %v11058
        %11347 = vst.msk [vmem:[%s644 + $0x8] sm:$0xff] %vm1750, %v11059
        %11348 = vst.msk [vmem:[%s644 + $0x10] sm:$0xff] %vm1750, %v11060
        %11349 = vst.msk [vmem:[%s644 + $0x18] sm:$0xff] %vm1750, %v11061
        %11350 = vst.msk [vmem:[%s644 + $0x20] sm:$0xff] %vm1750, %v11062
        %11351 = vst.msk [vmem:[%s644 + $0x28] sm:$0xff] %vm1750, %v11063
        %11352 = vst.msk [vmem:[%s644 + $0x30] sm:$0xff] %vm1750, %v11064
        %11353 = vst.msk [vmem:[%s644 + $0x38] sm:$0xff] %vm1750, %v11065
        %11354 = vst.msk [vmem:[%s644 + $0x40] sm:$0xff] %vm1750, %v11066
        %11355 = vst.msk [vmem:[%s644 + $0x48] sm:$0xff] %vm1750, %v11067
        %11356 = vst.msk [vmem:[%s644 + $0x50] sm:$0xff] %vm1750, %v11068
        %11357 = vst.msk [vmem:[%s644 + $0x58] sm:$0xff] %vm1750, %v11069
        %11358 = vst.msk [vmem:[%s644 + $0x60] sm:$0xff] %vm1750, %v11070
        %11359 = vst.msk [vmem:[%s644 + $0x68] sm:$0xff] %vm1750, %v11071
        %11360 = vst.msk [vmem:[%s644 + $0x70] sm:$0xff] %vm1750, %v11072
        %11361 = vst.msk [vmem:[%s644 + $0x78] sm:$0xff] %vm1750, %v11073
        %11362 = vst.msk [vmem:[%s644 + $0x80] sm:$0xff] %vm1750, %v11074
        %11363 = vst.msk [vmem:[%s644 + $0x88] sm:$0xff] %vm1750, %v11075
        %11364 = vst.msk [vmem:[%s644 + $0x90] sm:$0xff] %vm1750, %v11076
        %11365 = vst.msk [vmem:[%s644 + $0x98] sm:$0xff] %vm1750, %v11077
        %11366 = vst.msk [vmem:[%s644 + $0xa0] sm:$0xff] %vm1750, %v11078
        %11367 = vst.msk [vmem:[%s644 + $0xa8] sm:$0xff] %vm1750, %v11079
        %11368 = vst.msk [vmem:[%s644 + $0xb0] sm:$0xff] %vm1750, %v11080
        %11369 = vst.msk [vmem:[%s644 + $0xb8] sm:$0xff] %vm1750, %v11081
        %11370 = vst.msk [vmem:[%s644 + $0xc0] sm:$0xff] %vm1750, %v11082
        %11371 = vst.msk [vmem:[%s644 + $0xc8] sm:$0xff] %vm1750, %v11083
        %11372 = vst.msk [vmem:[%s644 + $0xd0] sm:$0xff] %vm1750, %v11084
        %11373 = vst.msk [vmem:[%s644 + $0xd8] sm:$0xff] %vm1750, %v11085
        %11374 = vst.msk [vmem:[%s644 + $0xe0] sm:$0xff] %vm1750, %v11086
        %11375 = vst.msk [vmem:[%s644 + $0xe8] sm:$0xff] %vm1750, %v11087
        %11376 = vst.msk [vmem:[%s644 + $0xf0] sm:$0xff] %vm1750, %v11088
        %11377 = vst.msk [vmem:[%s644 + $0xf8] sm:$0xff] %vm1750, %v11089
        %11410 = vrot.lane.b32.xlu0 %v11314, 96
        %v11411 = vpop.permute.xlu0 %11410
        %11412 = vrot.lane.b32.xlu0 %v11315, 96
        %v11413 = vpop.permute.xlu0 %11412
        %11414 = vrot.lane.b32.xlu0 %v11316, 96
        %v11415 = vpop.permute.xlu0 %11414
        %11416 = vrot.lane.b32.xlu0 %v11317, 96
        %v11417 = vpop.permute.xlu0 %11416
        %11418 = vrot.lane.b32.xlu0 %v11318, 96
        %v11419 = vpop.permute.xlu0 %11418
        %11420 = vrot.lane.b32.xlu0 %v11319, 96
        %v11421 = vpop.permute.xlu0 %11420
        %11422 = vrot.lane.b32.xlu0 %v11320, 96
        %v11423 = vpop.permute.xlu0 %11422
        %11424 = vrot.lane.b32.xlu0 %v11321, 96
        %v11425 = vpop.permute.xlu0 %11424
        %11426 = vrot.lane.b32.xlu0 %v11322, 96
        %v11427 = vpop.permute.xlu0 %11426
        %11428 = vrot.lane.b32.xlu0 %v11323, 96
        %v11429 = vpop.permute.xlu0 %11428
        %11430 = vrot.lane.b32.xlu0 %v11324, 96
        %v11431 = vpop.permute.xlu0 %11430
        %11432 = vrot.lane.b32.xlu0 %v11325, 96
        %v11433 = vpop.permute.xlu0 %11432
        %11434 = vrot.lane.b32.xlu0 %v11326, 96
        %v11435 = vpop.permute.xlu0 %11434
        %11436 = vrot.lane.b32.xlu0 %v11327, 96
        %v11437 = vpop.permute.xlu0 %11436
        %11438 = vrot.lane.b32.xlu0 %v11328, 96
        %v11439 = vpop.permute.xlu0 %11438
        %11440 = vrot.lane.b32.xlu0 %v11329, 96
        %v11441 = vpop.permute.xlu0 %11440
        %11442 = vrot.lane.b32.xlu0 %v11330, 96
        %v11443 = vpop.permute.xlu0 %11442
        %11444 = vrot.lane.b32.xlu0 %v11331, 96
        %v11445 = vpop.permute.xlu0 %11444
        %11446 = vrot.lane.b32.xlu0 %v11332, 96
        %v11447 = vpop.permute.xlu0 %11446
        %11448 = vrot.lane.b32.xlu0 %v11333, 96
        %v11449 = vpop.permute.xlu0 %11448
        %11450 = vrot.lane.b32.xlu0 %v11334, 96
        %v11451 = vpop.permute.xlu0 %11450
        %11452 = vrot.lane.b32.xlu0 %v11335, 96
        %v11453 = vpop.permute.xlu0 %11452
        %11454 = vrot.lane.b32.xlu0 %v11336, 96
        %v11455 = vpop.permute.xlu0 %11454
        %11456 = vrot.lane.b32.xlu0 %v11337, 96
        %v11457 = vpop.permute.xlu0 %11456
        %11458 = vrot.lane.b32.xlu0 %v11338, 96
        %v11459 = vpop.permute.xlu0 %11458
        %11460 = vrot.lane.b32.xlu0 %v11339, 96
        %v11461 = vpop.permute.xlu0 %11460
        %11462 = vrot.lane.b32.xlu0 %v11340, 96
        %v11463 = vpop.permute.xlu0 %11462
        %11464 = vrot.lane.b32.xlu0 %v11341, 96
        %v11465 = vpop.permute.xlu0 %11464
        %11466 = vrot.lane.b32.xlu0 %v11342, 96
        %v11467 = vpop.permute.xlu0 %11466
        %11468 = vrot.lane.b32.xlu0 %v11343, 96
        %v11469 = vpop.permute.xlu0 %11468
        %11470 = vrot.lane.b32.xlu0 %v11344, 96
        %v11471 = vpop.permute.xlu0 %11470
        %11472 = vrot.lane.b32.xlu0 %v11345, 96
        %v11473 = vpop.permute.xlu0 %11472
        %11506 = vst.msk [vmem:[%s651] sm:$0xff] %vm1750, %v11411
        %11507 = vst.msk [vmem:[%s651 + $0x8] sm:$0xff] %vm1750, %v11413
        %11508 = vst.msk [vmem:[%s651 + $0x10] sm:$0xff] %vm1750, %v11415
        %11509 = vst.msk [vmem:[%s651 + $0x18] sm:$0xff] %vm1750, %v11417
        %11510 = vst.msk [vmem:[%s651 + $0x20] sm:$0xff] %vm1750, %v11419
        %11511 = vst.msk [vmem:[%s651 + $0x28] sm:$0xff] %vm1750, %v11421
        %11512 = vst.msk [vmem:[%s651 + $0x30] sm:$0xff] %vm1750, %v11423
        %11513 = vst.msk [vmem:[%s651 + $0x38] sm:$0xff] %vm1750, %v11425
        %11514 = vst.msk [vmem:[%s651 + $0x40] sm:$0xff] %vm1750, %v11427
        %11515 = vst.msk [vmem:[%s651 + $0x48] sm:$0xff] %vm1750, %v11429
        %11516 = vst.msk [vmem:[%s651 + $0x50] sm:$0xff] %vm1750, %v11431
        %11517 = vst.msk [vmem:[%s651 + $0x58] sm:$0xff] %vm1750, %v11433
        %11518 = vst.msk [vmem:[%s651 + $0x60] sm:$0xff] %vm1750, %v11435
        %11519 = vst.msk [vmem:[%s651 + $0x68] sm:$0xff] %vm1750, %v11437
        %11520 = vst.msk [vmem:[%s651 + $0x70] sm:$0xff] %vm1750, %v11439
        %11521 = vst.msk [vmem:[%s651 + $0x78] sm:$0xff] %vm1750, %v11441
        %11522 = vst.msk [vmem:[%s651 + $0x80] sm:$0xff] %vm1750, %v11443
        %11523 = vst.msk [vmem:[%s651 + $0x88] sm:$0xff] %vm1750, %v11445
        %11524 = vst.msk [vmem:[%s651 + $0x90] sm:$0xff] %vm1750, %v11447
        %11525 = vst.msk [vmem:[%s651 + $0x98] sm:$0xff] %vm1750, %v11449
        %11526 = vst.msk [vmem:[%s651 + $0xa0] sm:$0xff] %vm1750, %v11451
        %11527 = vst.msk [vmem:[%s651 + $0xa8] sm:$0xff] %vm1750, %v11453
        %11528 = vst.msk [vmem:[%s651 + $0xb0] sm:$0xff] %vm1750, %v11455
        %11529 = vst.msk [vmem:[%s651 + $0xb8] sm:$0xff] %vm1750, %v11457
        %11530 = vst.msk [vmem:[%s651 + $0xc0] sm:$0xff] %vm1750, %v11459
        %11531 = vst.msk [vmem:[%s651 + $0xc8] sm:$0xff] %vm1750, %v11461
        %11532 = vst.msk [vmem:[%s651 + $0xd0] sm:$0xff] %vm1750, %v11463
        %11533 = vst.msk [vmem:[%s651 + $0xd8] sm:$0xff] %vm1750, %v11465
        %11534 = vst.msk [vmem:[%s651 + $0xe0] sm:$0xff] %vm1750, %v11467
        %11535 = vst.msk [vmem:[%s651 + $0xe8] sm:$0xff] %vm1750, %v11469
        %11536 = vst.msk [vmem:[%s651 + $0xf0] sm:$0xff] %vm1750, %v11471
        %11537 = vst.msk [vmem:[%s651 + $0xf8] sm:$0xff] %vm1750, %v11473
        %s11538 = sand.u32 %s443, 1
        %s11539 = scalar_lea.sflag [#allocation3], %s11538
        %s11540 = sand.u32 %s443, 1
        %s11541 = smul.addr %s11540, 256
        %s11542 = scalar_lea.vmem [#allocation2], %s11541
        %s11543 = sand.u32 %s469, 1
        %s11544 = scalar_lea.sflag [#allocation5], %s11543
        %s11545 = sand.u32 %s469, 1
        %s11546 = smul.addr %s11545, 256
        %s11547 = scalar_lea.vmem [#allocation4], %s11546
        // Predicated region
        $region93: #{_forward_impl.1} parent=91 // pred_check
          %p11548 = pneg %p453
        $region94: #{_forward_impl.1} parent=91 // pred_check_branch
          %11550 = sbr.rel (%p11548) target = $region96
        $region95: #{_forward_impl.1} parent=91 // pred_region
          %11552 = vsyncadd %s11539, 0
          %s11553 = smul.addr %s37, 32
          %s11554 = smul.addr %s11553, 8
          %s11555 = scalar_lea.hbm %s18, %s11554
          %s11556 = sshll.u32 %s11542, 4
          %s11557 = int_to_ptr.vmem [resolvable:$true] %s11556
          %s11558 = sshll.u32 %s11555, 4
          %s11559 = int_to_ptr.hbm [resolvable:$true] %s11558
          %11564 = dma.vmem_to_hbm [thread:$0]  %s11557, 4096, %s11559, %s11539, 128, 128, 8
        $region96: #{_forward_impl.1} parent=91 // pred_fallthru
          _
        // Predicated region
        $region97: #{_forward_impl.1} parent=91 // pred_check
          %p11565 = pneg %p479
        $region98: #{_forward_impl.1} parent=91 // pred_check_branch
          %11567 = sbr.rel (%p11565) target = $region100
        $region99: #{_forward_impl.1} parent=91 // pred_region
          %11569 = vsyncadd %s11544, 0
          %s11570 = smul.addr %s37, 32
          %s11571 = smul.addr %s11570, 8
          %s11572 = scalar_lea.hbm %s19, %s11571
          %s11573 = sshll.u32 %s11547, 4
          %s11574 = int_to_ptr.vmem [resolvable:$true] %s11573
          %s11575 = sshll.u32 %s11572, 4
          %s11576 = int_to_ptr.hbm [resolvable:$true] %s11575
          %11581 = dma.vmem_to_hbm [thread:$0]  %s11574, 4096, %s11576, %s11544, 128, 128, 8
        $region100: #{_forward_impl.1} parent=91 // pred_fallthru
          _
      $region92: #{_forward_impl.1} parent=5 // pred_fallthru
        _
      %p11582 = scmp.le.s32.totalorder 2, %s32
      // Predicated region
      $region101: #{_forward_impl.1} parent=5 // pred_check
        %p11583 = pneg %p11582
      $region102: #{_forward_impl.1} parent=5 // pred_check_branch
        %11585 = sbr.rel (%p11583) target = $region104
      $region103: #{_forward_impl.1} parent=5 // pred_region
        %s11586 = ssub.s32 %s32, 2
        // Predicated region
        $region105: #{_forward_impl.1} parent=103 // pred_check
          %p11587 = pneg %p459
        $region106: #{_forward_impl.1} parent=103 // pred_check_branch
          %11589 = sbr.rel (%p11587) target = $region108
        $region107: #{_forward_impl.1} parent=103 // pred_region
          %s11590 = sand.u32 %s444, 1
          %s11591 = scalar_lea.sflag [#allocation3], %s11590
          %s11592 = sand.u32 %s444, 1
          %s11593 = smul.addr %s11592, 256
          %s11594 = scalar_lea.vmem [#allocation2], %s11593
          %11596 = dma.done %s11591, 4096
        $region108: #{_forward_impl.1} parent=103 // pred_fallthru
          _
        // Predicated region
        $region109: #{_forward_impl.1} parent=103 // pred_check
          %p11597 = pneg %p485
        $region110: #{_forward_impl.1} parent=103 // pred_check_branch
          %11599 = sbr.rel (%p11597) target = $region112
        $region111: #{_forward_impl.1} parent=103 // pred_region
          %s11600 = sand.u32 %s470, 1
          %s11601 = scalar_lea.sflag [#allocation5], %s11600
          %s11602 = sand.u32 %s470, 1
          %s11603 = smul.addr %s11602, 256
          %s11604 = scalar_lea.vmem [#allocation4], %s11603
          %11606 = dma.done %s11601, 4096
        $region112: #{_forward_impl.1} parent=103 // pred_fallthru
          _
      $region104: #{_forward_impl.1} parent=5 // pred_fallthru
        _
    $region6: #{_forward_impl.1} parent=1 // loop_footer
      %s36 = sadd.s32 1, %s32
    $region7: #{_forward_impl.1} parent=1 // loop_footer_branch
      %31 = sbr.rel target = $region3
    $region8: #{_forward_impl.1} parent=1 // loop_exit
      _
    %11607 = vsyncpa [#allocation3], 1
    %s11608 = scalar_lea.sflag [#allocation3], 1
    %11609 = vsyncpa %s11608, 1
    %11610 = vsyncpa [#allocation5], 1
    %s11611 = scalar_lea.sflag [#allocation5], 1
    %11612 = vsyncpa %s11611, 1

</llo_original>
